<compile_context>
chip_gen: v5e
topology: v5e:2x2
jax: 0.10.0
libtpu: 0.0.40
codegen_flags: <defaults>
</compile_context>

<pallas_src>
import functools

import jax
import jax.numpy as jnp
import numpy as np
from jax.experimental import pallas as pl
from jax.experimental.pallas import tpu as pltpu

_LANE = 128  # channel padding target


# ----------------------------------------------------------------------------
# helpers
# ----------------------------------------------------------------------------
def _round_up(v, m):
    return ((v + m - 1) // m) * m


def _pad_last(a, target):
    pad = target - a.shape[-1]
    if pad == 0:
        return a
    return jnp.pad(a, [(0, 0)] * (a.ndim - 1) + [(0, pad)])


def _fold_bn(gamma, beta, mean, var, eps=1e-5):
    scale = gamma / jnp.sqrt(var + eps)
    shift = beta - mean * scale
    return scale.reshape(1, -1), shift.reshape(1, -1)


def _stride1_taps():
    # (row offset into padded scratch, col offset, channel-block offset)
    return tuple((ky, kx, 0) for ky in range(3) for kx in range(3))


def _s2d_taps(c):
    # Taps for a stride-2 3x3 conv expressed over the space-to-depth input
    # Z = concat(phases[(0,0),(0,1),(1,0),(1,1)], channel axis), with a
    # top/left pad of 1 on the phase grid.
    taps = []
    for ky in range(3):
        ry = 0 if ky == 1 else 1          # row phase this tap reads
        dy = 0 if ky == 0 else 1          # row offset in the padded scratch
        for kx in range(3):
            rx = 0 if kx == 1 else 1
            dx = 0 if kx == 0 else 1
            taps.append((dy, dx, (ry * 2 + rx) * c))
    return tuple(taps)


# ----------------------------------------------------------------------------
# fused kernel:  BN -> ReLU -> 3x3 conv (tap-by-tap MXU accumulation)
#                [+ 1x1 projection shortcut | + identity residual]
# ----------------------------------------------------------------------------
def _fused_conv_kernel(*refs, taps, pads, ck, shortcut):
    if shortcut == "proj":
        (x_ref, scale_ref, shift_ref, w_ref, b_ref,
         scx_ref, scw_ref, scb_ref, o_ref, pad_ref) = refs
    elif shortcut == "identity":
        (x_ref, scale_ref, shift_ref, w_ref, b_ref,
         res_ref, o_ref, pad_ref) = refs
    else:  # "none"
        (x_ref, scale_ref, shift_ref, w_ref, b_ref, o_ref, pad_ref) = refs

    _, hin, win, ce = x_ref.shape
    _, ho, wo, cout = o_ref.shape
    hp, wp, _ = pad_ref.shape
    pt, pb, pleft, pr = pads
    r = ho * wo

    # BN + ReLU in f32 (v5e VPU has no bf16), stored as bf16 (MXU operand).
    x = x_ref[0].astype(jnp.float32)
    scale = scale_ref[...].reshape(1, 1, ce)
    shift = shift_ref[...].reshape(1, 1, ce)
    y = jnp.maximum(x * scale + shift, 0.0).astype(jnp.bfloat16)

    # Zero only the pad border (cheap; done every step so it stays correct
    # under megacore splitting of the batch axis), then the interior.
    if pt:
        pad_ref[0:pt, :, :] = jnp.zeros((pt, wp, ce), jnp.bfloat16)
    if pb:
        pad_ref[hp - pb:hp, :, :] = jnp.zeros((pb, wp, ce), jnp.bfloat16)
    if pleft:
        pad_ref[:, 0:pleft, :] = jnp.zeros((hp, pleft, ce), jnp.bfloat16)
    if pr:
        pad_ref[:, wp - pr:wp, :] = jnp.zeros((hp, pr, ce), jnp.bfloat16)
    pad_ref[pt:pt + hin, pleft:pleft + win, :] = y

    # Tap-by-tap MXU accumulation against the resident (9*ck, Cout) weight:
    # slab extraction (loads/XLU) overlaps the previous tap's matmul, and the
    # full Cout width drives the 256-wide MXU of v6e/v7x in one shot.
    acc = b_ref[...].astype(jnp.float32)                       # (1, Cout)
    for t, (dy, dx, cb) in enumerate(taps):
        slab = pad_ref[dy:dy + ho, dx:dx + wo, cb:cb + ck].reshape(r, ck)
        acc = acc + jnp.dot(slab, w_ref[t * ck:(t + 1) * ck, :],
                            preferred_element_type=jnp.float32)

    if shortcut == "proj":
        xs = scx_ref[0].reshape(r, scx_ref.shape[3])           # bf16, pre-strided
        acc = acc + jnp.dot(xs, scw_ref[...],
                            preferred_element_type=jnp.float32)
        acc = acc + scb_ref[...]

    out = acc.reshape(ho, wo, cout)
    if shortcut == "identity":
        out = out + res_ref[0].astype(jnp.float32)

    o_ref[0] = out.astype(o_ref.dtype)


def fused_conv_block(x, scale, shift, w, b, *, taps, pads, ck, ho, wo,
                     out_dtype, shortcut="none", sc_x=None, sc_w=None,
                     sc_b=None, residual=None):
    """x: (N, Hin, Win, Ce) bf16; w: (9*ck, Cout_p) bf16; scale/shift/b padded."""
    n, hin, win, ce = x.shape
    k, cout_p = w.shape
    hp = hin + pads[0] + pads[1]
    wp = win + pads[2] + pads[3]
    r = ho * wo

    kernel = functools.partial(_fused_conv_kernel, taps=tuple(taps),
                               pads=tuple(pads), ck=ck, shortcut=shortcut)

    in_specs = [
        pl.BlockSpec((1, hin, win, ce), lambda i: (i, 0, 0, 0)),
        pl.BlockSpec((1, ce), lambda i: (0, 0)),          # constant -> resident
        pl.BlockSpec((1, ce), lambda i: (0, 0)),
        pl.BlockSpec((k, cout_p), lambda i: (0, 0)),      # resident weights
        pl.BlockSpec((1, cout_p), lambda i: (0, 0)),
    ]
    args = [x, scale, shift, w, b]
    if shortcut == "proj":
        cin_sc = sc_x.shape[3]
        in_specs += [
            pl.BlockSpec((1, ho, wo, cin_sc), lambda i: (i, 0, 0, 0)),
            pl.BlockSpec((cin_sc, cout_p), lambda i: (0, 0)),
            pl.BlockSpec((1, cout_p), lambda i: (0, 0)),
        ]
        args += [sc_x, sc_w, sc_b]
    elif shortcut == "identity":
        in_specs += [pl.BlockSpec((1, ho, wo, cout_p), lambda i: (i, 0, 0, 0))]
        args += [residual]

    # Per-shape VMEM budget (v7x has only 64 MiB physical): double-buffered
    # activation blocks + resident weights (budget 2x) + bf16 pad scratch +
    # f32 accumulation temporaries, with margin.
    out_bytes = r * cout_p * jnp.dtype(out_dtype).itemsize
    vmem = (2 * hin * win * ce * 2
            + 2 * out_bytes
            + 2 * k * cout_p * 2
            + hp * wp * ce * 2
            + 4 * r * cout_p * 4)
    if shortcut == "proj":
        vmem += 2 * r * sc_x.shape[3] * 2 + 2 * sc_x.shape[3] * cout_p * 2
    elif shortcut == "identity":
        vmem += 2 * r * cout_p * 2
    vmem_limit = int(min(max(vmem + (8 << 20), 24 << 20), 64 << 20))

    return pl.pallas_call(
        kernel,
        out_shape=jax.ShapeDtypeStruct((n, ho, wo, cout_p), out_dtype),
        grid=(n,),
        in_specs=in_specs,
        out_specs=pl.BlockSpec((1, ho, wo, cout_p), lambda i: (i, 0, 0, 0)),
        scratch_shapes=[
            pltpu.VMEM((hp, wp, ce), jnp.bfloat16),   # padded BN/ReLU activation
        ],
        compiler_params=pltpu.CompilerParams(
            dimension_semantics=("parallel",),
            vmem_limit_bytes=vmem_limit),
    )(*args)


# ----------------------------------------------------------------------------
# wide_basic forward (wrapper)
# ----------------------------------------------------------------------------
@functools.partial(jax.jit, static_argnames=("stride",))
def wide_basic_forward(x_nchw, params, stride):
    assert stride in (1, 2)   # TODO(synk): only Wide-ResNet strides supported
    # TODO(synk): in a full network keep activations NHWC + channel-padded
    # across blocks; the transposes/pads here only adapt the NCHW module API.
    x = jnp.transpose(x_nchw, (0, 2, 3, 1)).astype(jnp.float32)   # NCHW -> NHWC
    n, h, w, in_planes = x.shape
    planes = params["conv1_w"].shape[0]
    if stride == 2:
        assert h % 2 == 0 and w % 2 == 0
    cp_in = _round_up(in_planes, _LANE)
    cp_mid = _round_up(planes, _LANE)

    x_bf = _pad_last(x, cp_in).astype(jnp.bfloat16)

    # ---- bn1 -> relu -> conv1 (3x3, stride 1); dropout = eval-mode identity --
    s1, sh1 = _fold_bn(params["bn1_gamma"], params["bn1_beta"],
                       params["bn1_mean"], params["bn1_var"])
    s1, sh1 = _pad_last(s1, cp_in), _pad_last(sh1, cp_in)
    w1 = jnp.transpose(params["conv1_w"], (2, 3, 1, 0))           # (3,3,in,out)
    w1 = jnp.pad(w1, ((0, 0), (0, 0),
                      (0, cp_in - in_planes), (0, cp_mid - planes)))
    w1 = w1.reshape(9 * cp_in, cp_mid).astype(jnp.bfloat16)
    b1 = _pad_last(params["conv1_b"].reshape(1, -1), cp_mid)

    out1 = fused_conv_block(
        x_bf, s1, sh1, w1, b1, taps=_stride1_taps(), pads=(1, 1, 1, 1),
        ck=cp_in, ho=h, wo=w, out_dtype=jnp.bfloat16, shortcut="none")
    # TODO(synk): stochastic Dropout not reproduced (eval-mode identity).

    # ---- bn2 -> relu -> conv2 (3x3, stride s) fused with shortcut + add -----
    s2, sh2 = _fold_bn(params["bn2_gamma"], params["bn2_beta"],
                       params["bn2_mean"], params["bn2_var"])
    s2, sh2 = _pad_last(s2, cp_mid), _pad_last(sh2, cp_mid)
    w2 = jnp.transpose(params["conv2_w"], (2, 3, 1, 0))
    w2 = jnp.pad(w2, ((0, 0), (0, 0),
                      (0, cp_mid - planes), (0, cp_mid - planes)))
    w2 = w2.reshape(9 * cp_mid, cp_mid).astype(jnp.bfloat16)
    b2 = _pad_last(params["conv2_b"].reshape(1, -1), cp_mid)

    if stride == 1:
        h_in, s2e, sh2e = out1, s2, sh2
        taps2, pads2 = _stride1_taps(), (1, 1, 1, 1)
        ho, wo = h, w
    else:
        ho, wo = h // 2, w // 2
        # space-to-depth: the stride-2 3x3 conv becomes 9 contiguous in-kernel
        # taps over the 4 phases with the unchanged (9*Cin, Cout) weights.
        # TODO(synk): fold this phase split into kernel 2's build (strided
        # in-kernel loads) to save one HBM round trip of out1.
        phases = [out1[:, ry::2, rx::2, :] for ry in (0, 1) for rx in (0, 1)]
        h_in = jnp.concatenate(phases, axis=-1)            # (N, Ho, Wo, 4*Cmid)
        s2e, sh2e = jnp.tile(s2, (1, 4)), jnp.tile(sh2, (1, 4))
        taps2, pads2 = _s2d_taps(cp_mid), (1, 0, 1, 0)

    if stride != 1 or in_planes != planes:
        # projection shortcut (1x1 conv on the stride-subsampled input),
        # fused into the conv2 kernel's epilogue.
        sc_x = x_bf if stride == 1 else x_bf[:, ::stride, ::stride, :]
        w_sc = params["sc_w"].reshape(planes, in_planes).T        # (in, out)
        w_sc = jnp.pad(w_sc, ((0, cp_in - in_planes), (0, cp_mid - planes)))
        w_sc = w_sc.astype(jnp.bfloat16)
        b_sc = _pad_last(params["sc_b"].reshape(1, -1), cp_mid)
        out = fused_conv_block(
            h_in, s2e, sh2e, w2, b2, taps=taps2, pads=pads2, ck=cp_mid,
            ho=ho, wo=wo, out_dtype=jnp.float32, shortcut="proj",
            sc_x=sc_x, sc_w=w_sc, sc_b=b_sc)
    else:
        out = fused_conv_block(
            h_in, s2e, sh2e, w2, b2, taps=taps2, pads=pads2, ck=cp_mid,
            ho=ho, wo=wo, out_dtype=jnp.float32, shortcut="identity",
            residual=x_bf)

    out = out[..., :planes]
    return jnp.transpose(out, (0, 3, 1, 2))                       # NHWC -> NCHW


# ----------------------------------------------------------------------------
# Pure-JAX f32 reference (correctness check only)
# ----------------------------------------------------------------------------
def _ref_forward(x, p, stride, eps=1e-5):
    def bn(v, g, b, m, var):
        return (v - m[None, :, None, None]) / jnp.sqrt(var[None, :, None, None] + eps) \
               * g[None, :, None, None] + b[None, :, None, None]

    def conv(v, w, b, s, pad):
        y = jax.lax.conv_general_dilated(
            v, w, window_strides=(s, s), padding=((pad, pad), (pad, pad)),
            dimension_numbers=("NCHW", "OIHW", "NCHW"))
        return y + b[None, :, None, None]

    out = conv(jax.nn.relu(bn(x, p["bn1_gamma"], p["bn1_beta"],
                              p["bn1_mean"], p["bn1_var"])),
               p["conv1_w"], p["conv1_b"], 1, 1)
    out = conv(jax.nn.relu(bn(out, p["bn2_gamma"], p["bn2_beta"],
                              p["bn2_mean"], p["bn2_var"])),
               p["conv2_w"], p["conv2_b"], stride, 1)
    in_planes, planes = x.shape[1], p["conv1_w"].shape[0]
    if stride != 1 or in_planes != planes:
        sc = conv(x, p["sc_w"], p["sc_b"], stride, 0)
    else:
        sc = x
    return out + sc


def make_params(key, in_planes, planes):
    ks = jax.random.split(key, 12)
    u = lambda k, s: jax.random.uniform(k, s, jnp.float32, 0.5, 1.5)
    nrm = lambda k, s, sc=0.1: jax.random.normal(k, s, jnp.float32) * sc
    return {
        "bn1_gamma": u(ks[0], (in_planes,)),
        "bn1_beta": nrm(ks[1], (in_planes,)),
        "bn1_mean": nrm(ks[2], (in_planes,)),
        "bn1_var": u(ks[3], (in_planes,)),
        "conv1_w": nrm(ks[4], (planes, in_planes, 3, 3)),
        "conv1_b": nrm(ks[5], (planes,)),
        "bn2_gamma": u(ks[6], (planes,)),
        "bn2_beta": nrm(ks[7], (planes,)),
        "bn2_mean": nrm(ks[8], (planes,)),
        "bn2_var": u(ks[9], (planes,)),
        "conv2_w": nrm(ks[10], (planes, planes, 3, 3)),
        "conv2_b": nrm(ks[11], (planes,)),
        "sc_w": nrm(jax.random.fold_in(key, 100), (planes, in_planes, 1, 1)),
        "sc_b": nrm(jax.random.fold_in(key, 101), (planes,)),
    }


if __name__ == "__main__":
    def run_case(key, n, in_planes, planes, h, w, stride):
        kx, kp = jax.random.split(key)
        x = jax.random.normal(kx, (n, in_planes, h, w), jnp.float32)
        params = make_params(kp, in_planes, planes)
        out = jax.block_until_ready(wide_basic_forward(x, params, stride))
        ref = jax.block_until_ready(_ref_forward(x, params, stride))
        assert out.shape == ref.shape
        out_np, ref_np = np.asarray(out), np.asarray(ref)
        # tolerance scaled to output magnitude: bf16 inputs + bf16 MXU operands
        # with large contraction dims carry ~0.5% relative error vs the f32 ref.
        scale = float(np.std(ref_np)) + 1e-6
        np.testing.assert_allclose(out_np, ref_np, rtol=4e-2, atol=6e-2 * scale)

    key = jax.random.PRNGKey(0)
    # primary case: stride-2 downsampling block with projection shortcut
    run_case(key, 2, 4, 8, 16, 16, 2)
    # identity-shortcut block with >128 channels (pads to 256)
    run_case(jax.random.fold_in(key, 1), 2, 160, 160, 8, 8, 1)
    print("KERNEL_OK")
</pallas_src>

<mosaic_0001>
module attributes {stable_mosaic.version = 11 : i64} {
  func.func @_fused_conv_kernel(%arg0: i32, %arg1: memref<1x16x16x128xbf16, #tpu.memory_space<vmem>>, %arg2: memref<1x128xf32, #tpu.memory_space<vmem>>, %arg3: memref<1x128xf32, #tpu.memory_space<vmem>>, %arg4: memref<1152x128xbf16, #tpu.memory_space<vmem>>, %arg5: memref<1x128xf32, #tpu.memory_space<vmem>>, %arg6: memref<1x16x16x128xbf16, #tpu.memory_space<vmem>>, %arg7: memref<18x18x128xbf16, #tpu.memory_space<vmem>>) attributes {dimension_semantics = [#tpu.dimension_semantics<parallel>], iteration_bounds = array<i64: 2>, scalar_prefetch = 0 : i64, scratch_operands = 1 : i64, tpu.core_type = #tpu.core_type<tc>, window_params = [{transform_indices = @transform_0, window_bounds = array<i64: 1, 16, 16, 128>}, {pipeline_mode = #tpu.pipeline_mode<synchronous>, transform_indices = @transform_1, window_bounds = array<i64: 1, 128>}, {pipeline_mode = #tpu.pipeline_mode<synchronous>, transform_indices = @transform_2, window_bounds = array<i64: 1, 128>}, {pipeline_mode = #tpu.pipeline_mode<synchronous>, transform_indices = @transform_3, window_bounds = array<i64: 1152, 128>}, {pipeline_mode = #tpu.pipeline_mode<synchronous>, transform_indices = @transform_4, window_bounds = array<i64: 1, 128>}, {transform_indices = @transform_5, window_bounds = array<i64: 1, 16, 16, 128>}]} {
    %c0 = arith.constant 0 : index
    %c0_0 = arith.constant 0 : index
    %c0_1 = arith.constant 0 : index
    %c0_2 = arith.constant 0 : index
    %0 = vector.load %arg1[%c0, %c0_0, %c0_1, %c0_2] : memref<1x16x16x128xbf16, #tpu.memory_space<vmem>>, vector<1x16x16x128xbf16>
    %1 = vector.shape_cast %0 : vector<1x16x16x128xbf16> to vector<16x16x128xbf16>
    %2 = arith.extf %1 : vector<16x16x128xbf16> to vector<16x16x128xf32>
    %c0_3 = arith.constant 0 : index
    %c0_4 = arith.constant 0 : index
    %3 = vector.load %arg2[%c0_3, %c0_4] : memref<1x128xf32, #tpu.memory_space<vmem>>, vector<1x128xf32>
    %4 = vector.shape_cast %3 : vector<1x128xf32> to vector<1x1x128xf32>
    %c0_5 = arith.constant 0 : index
    %c0_6 = arith.constant 0 : index
    %5 = vector.load %arg3[%c0_5, %c0_6] : memref<1x128xf32, #tpu.memory_space<vmem>>, vector<1x128xf32>
    %6 = vector.shape_cast %5 : vector<1x128xf32> to vector<1x1x128xf32>
    %7 = vector.broadcast %4 : vector<1x1x128xf32> to vector<16x16x128xf32>
    %8 = arith.mulf %2, %7 : vector<16x16x128xf32>
    %9 = vector.broadcast %6 : vector<1x1x128xf32> to vector<16x16x128xf32>
    %10 = arith.addf %8, %9 : vector<16x16x128xf32>
    %cst = arith.constant 0.000000e+00 : f32
    %11 = vector.broadcast %cst : f32 to vector<16x16x128xf32>
    %12 = arith.maximumf %10, %11 : vector<16x16x128xf32>
    %13 = arith.truncf %12 : vector<16x16x128xf32> to vector<16x16x128xbf16>
    %cst_7 = arith.constant 0.000000e+00 : bf16
    %14 = vector.broadcast %cst_7 : bf16 to vector<1x18x128xbf16>
    %c0_8 = arith.constant 0 : index
    %c0_9 = arith.constant 0 : index
    %c0_10 = arith.constant 0 : index
    %15 = vector.load %arg7[%c0_8, %c0_9, %c0_10] : memref<18x18x128xbf16, #tpu.memory_space<vmem>>, vector<1x18x128xbf16>
    tpu.vector_store %arg7[%c0_8, %c0_9, %c0_10], %14 {strides = array<i32>} : memref<18x18x128xbf16, #tpu.memory_space<vmem>>, vector<1x18x128xbf16>,
    %cst_11 = arith.constant 0.000000e+00 : bf16
    %16 = vector.broadcast %cst_11 : bf16 to vector<1x18x128xbf16>
    %c17 = arith.constant 17 : index
    %c0_12 = arith.constant 0 : index
    %c0_13 = arith.constant 0 : index
    %17 = vector.load %arg7[%c17, %c0_12, %c0_13] : memref<18x18x128xbf16, #tpu.memory_space<vmem>>, vector<1x18x128xbf16>
    tpu.vector_store %arg7[%c17, %c0_12, %c0_13], %16 {strides = array<i32>} : memref<18x18x128xbf16, #tpu.memory_space<vmem>>, vector<1x18x128xbf16>,
    %cst_14 = arith.constant 0.000000e+00 : bf16
    %18 = vector.broadcast %cst_14 : bf16 to vector<18x1x128xbf16>
    %c0_15 = arith.constant 0 : index
    %c0_16 = arith.constant 0 : index
    %c0_17 = arith.constant 0 : index
    %19 = vector.load %arg7[%c0_15, %c0_16, %c0_17] : memref<18x18x128xbf16, #tpu.memory_space<vmem>>, vector<18x1x128xbf16>
    tpu.vector_store %arg7[%c0_15, %c0_16, %c0_17], %18 {strides = array<i32>} : memref<18x18x128xbf16, #tpu.memory_space<vmem>>, vector<18x1x128xbf16>,
    %cst_18 = arith.constant 0.000000e+00 : bf16
    %20 = vector.broadcast %cst_18 : bf16 to vector<18x1x128xbf16>
    %c0_19 = arith.constant 0 : index
    %c17_20 = arith.constant 17 : index
    %c0_21 = arith.constant 0 : index
    %21 = vector.load %arg7[%c0_19, %c17_20, %c0_21] : memref<18x18x128xbf16, #tpu.memory_space<vmem>>, vector<18x1x128xbf16>
    tpu.vector_store %arg7[%c0_19, %c17_20, %c0_21], %20 {strides = array<i32>} : memref<18x18x128xbf16, #tpu.memory_space<vmem>>, vector<18x1x128xbf16>,
    %c1 = arith.constant 1 : index
    %c1_22 = arith.constant 1 : index
    %c0_23 = arith.constant 0 : index
    %22 = vector.load %arg7[%c1, %c1_22, %c0_23] : memref<18x18x128xbf16, #tpu.memory_space<vmem>>, vector<16x16x128xbf16>
    tpu.vector_store %arg7[%c1, %c1_22, %c0_23], %13 {strides = array<i32>} : memref<18x18x128xbf16, #tpu.memory_space<vmem>>, vector<16x16x128xbf16>,
    %c0_24 = arith.constant 0 : index
    %c0_25 = arith.constant 0 : index
    %23 = vector.load %arg5[%c0_24, %c0_25] : memref<1x128xf32, #tpu.memory_space<vmem>>, vector<1x128xf32>
    %c0_26 = arith.constant 0 : index
    %c0_27 = arith.constant 0 : index
    %c0_28 = arith.constant 0 : index
    %24 = vector.load %arg7[%c0_26, %c0_27, %c0_28] : memref<18x18x128xbf16, #tpu.memory_space<vmem>>, vector<16x16x128xbf16>
    %25 = vector.shape_cast %24 : vector<16x16x128xbf16> to vector<256x128xbf16>
    %c0_29 = arith.constant 0 : index
    %c0_30 = arith.constant 0 : index
    %26 = vector.load %arg4[%c0_29, %c0_30] : memref<1152x128xbf16, #tpu.memory_space<vmem>>, vector<128x128xbf16>
    %cst_31 = arith.constant dense<0.000000e+00> : vector<256x128xf32>
    %27 = tpu.matmul %25, %26, %cst_31 {dimension_numbers = #tpu.dot_dimension_numbers<[1], [0], [0], [1], [0, 0, 1, 1], [], []>} : vector<256x128xbf16>, vector<128x128xbf16>, vector<256x128xf32> -> vector<256x128xf32>
    %28 = vector.broadcast %23 : vector<1x128xf32> to vector<256x128xf32>
    %29 = arith.addf %28, %27 : vector<256x128xf32>
    %c0_32 = arith.constant 0 : index
    %c1_33 = arith.constant 1 : index
    %c0_34 = arith.constant 0 : index
    %30 = vector.load %arg7[%c0_32, %c1_33, %c0_34] : memref<18x18x128xbf16, #tpu.memory_space<vmem>>, vector<16x16x128xbf16>
    %31 = vector.shape_cast %30 : vector<16x16x128xbf16> to vector<256x128xbf16>
    %c128 = arith.constant 128 : index
    %c0_35 = arith.constant 0 : index
    %32 = vector.load %arg4[%c128, %c0_35] : memref<1152x128xbf16, #tpu.memory_space<vmem>>, vector<128x128xbf16>
    %cst_36 = arith.constant dense<0.000000e+00> : vector<256x128xf32>
    %33 = tpu.matmul %31, %32, %cst_36 {dimension_numbers = #tpu.dot_dimension_numbers<[1], [0], [0], [1], [0, 0, 1, 1], [], []>} : vector<256x128xbf16>, vector<128x128xbf16>, vector<256x128xf32> -> vector<256x128xf32>
    %34 = arith.addf %29, %33 : vector<256x128xf32>
    %c0_37 = arith.constant 0 : index
    %c2 = arith.constant 2 : index
    %c0_38 = arith.constant 0 : index
    %35 = vector.load %arg7[%c0_37, %c2, %c0_38] : memref<18x18x128xbf16, #tpu.memory_space<vmem>>, vector<16x16x128xbf16>
    %36 = vector.shape_cast %35 : vector<16x16x128xbf16> to vector<256x128xbf16>
    %c256 = arith.constant 256 : index
    %c0_39 = arith.constant 0 : index
    %37 = vector.load %arg4[%c256, %c0_39] : memref<1152x128xbf16, #tpu.memory_space<vmem>>, vector<128x128xbf16>
    %cst_40 = arith.constant dense<0.000000e+00> : vector<256x128xf32>
    %38 = tpu.matmul %36, %37, %cst_40 {dimension_numbers = #tpu.dot_dimension_numbers<[1], [0], [0], [1], [0, 0, 1, 1], [], []>} : vector<256x128xbf16>, vector<128x128xbf16>, vector<256x128xf32> -> vector<256x128xf32>
    %39 = arith.addf %34, %38 : vector<256x128xf32>
    %c1_41 = arith.constant 1 : index
    %c0_42 = arith.constant 0 : index
    %c0_43 = arith.constant 0 : index
    %40 = vector.load %arg7[%c1_41, %c0_42, %c0_43] : memref<18x18x128xbf16, #tpu.memory_space<vmem>>, vector<16x16x128xbf16>
    %41 = vector.shape_cast %40 : vector<16x16x128xbf16> to vector<256x128xbf16>
    %c384 = arith.constant 384 : index
    %c0_44 = arith.constant 0 : index
    %42 = vector.load %arg4[%c384, %c0_44] : memref<1152x128xbf16, #tpu.memory_space<vmem>>, vector<128x128xbf16>
    %cst_45 = arith.constant dense<0.000000e+00> : vector<256x128xf32>
    %43 = tpu.matmul %41, %42, %cst_45 {dimension_numbers = #tpu.dot_dimension_numbers<[1], [0], [0], [1], [0, 0, 1, 1], [], []>} : vector<256x128xbf16>, vector<128x128xbf16>, vector<256x128xf32> -> vector<256x128xf32>
    %44 = arith.addf %39, %43 : vector<256x128xf32>
    %c1_46 = arith.constant 1 : index
    %c1_47 = arith.constant 1 : index
    %c0_48 = arith.constant 0 : index
    %45 = vector.load %arg7[%c1_46, %c1_47, %c0_48] : memref<18x18x128xbf16, #tpu.memory_space<vmem>>, vector<16x16x128xbf16>
    %46 = vector.shape_cast %45 : vector<16x16x128xbf16> to vector<256x128xbf16>
    %c512 = arith.constant 512 : index
    %c0_49 = arith.constant 0 : index
    %47 = vector.load %arg4[%c512, %c0_49] : memref<1152x128xbf16, #tpu.memory_space<vmem>>, vector<128x128xbf16>
    %cst_50 = arith.constant dense<0.000000e+00> : vector<256x128xf32>
    %48 = tpu.matmul %46, %47, %cst_50 {dimension_numbers = #tpu.dot_dimension_numbers<[1], [0], [0], [1], [0, 0, 1, 1], [], []>} : vector<256x128xbf16>, vector<128x128xbf16>, vector<256x128xf32> -> vector<256x128xf32>
    %49 = arith.addf %44, %48 : vector<256x128xf32>
    %c1_51 = arith.constant 1 : index
    %c2_52 = arith.constant 2 : index
    %c0_53 = arith.constant 0 : index
    %50 = vector.load %arg7[%c1_51, %c2_52, %c0_53] : memref<18x18x128xbf16, #tpu.memory_space<vmem>>, vector<16x16x128xbf16>
    %51 = vector.shape_cast %50 : vector<16x16x128xbf16> to vector<256x128xbf16>
    %c640 = arith.constant 640 : index
    %c0_54 = arith.constant 0 : index
    %52 = vector.load %arg4[%c640, %c0_54] : memref<1152x128xbf16, #tpu.memory_space<vmem>>, vector<128x128xbf16>
    %cst_55 = arith.constant dense<0.000000e+00> : vector<256x128xf32>
    %53 = tpu.matmul %51, %52, %cst_55 {dimension_numbers = #tpu.dot_dimension_numbers<[1], [0], [0], [1], [0, 0, 1, 1], [], []>} : vector<256x128xbf16>, vector<128x128xbf16>, vector<256x128xf32> -> vector<256x128xf32>
    %54 = arith.addf %49, %53 : vector<256x128xf32>
    %c2_56 = arith.constant 2 : index
    %c0_57 = arith.constant 0 : index
    %c0_58 = arith.constant 0 : index
    %55 = vector.load %arg7[%c2_56, %c0_57, %c0_58] : memref<18x18x128xbf16, #tpu.memory_space<vmem>>, vector<16x16x128xbf16>
    %56 = vector.shape_cast %55 : vector<16x16x128xbf16> to vector<256x128xbf16>
    %c768 = arith.constant 768 : index
    %c0_59 = arith.constant 0 : index
    %57 = vector.load %arg4[%c768, %c0_59] : memref<1152x128xbf16, #tpu.memory_space<vmem>>, vector<128x128xbf16>
    %cst_60 = arith.constant dense<0.000000e+00> : vector<256x128xf32>
    %58 = tpu.matmul %56, %57, %cst_60 {dimension_numbers = #tpu.dot_dimension_numbers<[1], [0], [0], [1], [0, 0, 1, 1], [], []>} : vector<256x128xbf16>, vector<128x128xbf16>, vector<256x128xf32> -> vector<256x128xf32>
    %59 = arith.addf %54, %58 : vector<256x128xf32>
    %c2_61 = arith.constant 2 : index
    %c1_62 = arith.constant 1 : index
    %c0_63 = arith.constant 0 : index
    %60 = vector.load %arg7[%c2_61, %c1_62, %c0_63] : memref<18x18x128xbf16, #tpu.memory_space<vmem>>, vector<16x16x128xbf16>
    %61 = vector.shape_cast %60 : vector<16x16x128xbf16> to vector<256x128xbf16>
    %c896 = arith.constant 896 : index
    %c0_64 = arith.constant 0 : index
    %62 = vector.load %arg4[%c896, %c0_64] : memref<1152x128xbf16, #tpu.memory_space<vmem>>, vector<128x128xbf16>
    %cst_65 = arith.constant dense<0.000000e+00> : vector<256x128xf32>
    %63 = tpu.matmul %61, %62, %cst_65 {dimension_numbers = #tpu.dot_dimension_numbers<[1], [0], [0], [1], [0, 0, 1, 1], [], []>} : vector<256x128xbf16>, vector<128x128xbf16>, vector<256x128xf32> -> vector<256x128xf32>
    %64 = arith.addf %59, %63 : vector<256x128xf32>
    %c2_66 = arith.constant 2 : index
    %c2_67 = arith.constant 2 : index
    %c0_68 = arith.constant 0 : index
    %65 = vector.load %arg7[%c2_66, %c2_67, %c0_68] : memref<18x18x128xbf16, #tpu.memory_space<vmem>>, vector<16x16x128xbf16>
    %66 = vector.shape_cast %65 : vector<16x16x128xbf16> to vector<256x128xbf16>
    %c1024 = arith.constant 1024 : index
    %c0_69 = arith.constant 0 : index
    %67 = vector.load %arg4[%c1024, %c0_69] : memref<1152x128xbf16, #tpu.memory_space<vmem>>, vector<128x128xbf16>
    %cst_70 = arith.constant dense<0.000000e+00> : vector<256x128xf32>
    %68 = tpu.matmul %66, %67, %cst_70 {dimension_numbers = #tpu.dot_dimension_numbers<[1], [0], [0], [1], [0, 0, 1, 1], [], []>} : vector<256x128xbf16>, vector<128x128xbf16>, vector<256x128xf32> -> vector<256x128xf32>
    %69 = arith.addf %64, %68 : vector<256x128xf32>
    %70 = vector.shape_cast %69 : vector<256x128xf32> to vector<16x16x128xf32>
    %71 = arith.truncf %70 : vector<16x16x128xf32> to vector<16x16x128xbf16>
    %c0_71 = arith.constant 0 : index
    %c0_72 = arith.constant 0 : index
    %c0_73 = arith.constant 0 : index
    %c0_74 = arith.constant 0 : index
    %72 = vector.load %arg6[%c0_71, %c0_72, %c0_73, %c0_74] : memref<1x16x16x128xbf16, #tpu.memory_space<vmem>>, vector<1x16x16x128xbf16>
    %73 = vector.shape_cast %72 : vector<1x16x16x128xbf16> to vector<16x16x128xbf16>
    %74 = vector.shape_cast %71 : vector<16x16x128xbf16> to vector<1x16x16x128xbf16>
    tpu.vector_store %arg6[%c0_71, %c0_72, %c0_73, %c0_74], %74 {strides = array<i32>} : memref<1x16x16x128xbf16, #tpu.memory_space<vmem>>, vector<1x16x16x128xbf16>,
    return
  }
  func.func @transform_0(%arg0: i32) -> (i32, i32, i32, i32) {
    %c0_i32 = arith.constant 0 : i32
    %c0_i32_0 = arith.constant 0 : i32
    %c0_i32_1 = arith.constant 0 : i32
    %c0_i32_2 = arith.constant 0 : i32
    return %arg0, %c0_i32, %c0_i32_0, %c0_i32_1 : i32, i32, i32, i32
  }
  func.func @transform_1(%arg0: i32) -> (i32, i32) {
    %c0_i32 = arith.constant 0 : i32
    %c0_i32_0 = arith.constant 0 : i32
    %c0_i32_1 = arith.constant 0 : i32
    return %c0_i32, %c0_i32_0 : i32, i32
  }
  func.func @transform_2(%arg0: i32) -> (i32, i32) {
    %c0_i32 = arith.constant 0 : i32
    %c0_i32_0 = arith.constant 0 : i32
    %c0_i32_1 = arith.constant 0 : i32
    return %c0_i32, %c0_i32_0 : i32, i32
  }
  func.func @transform_3(%arg0: i32) -> (i32, i32) {
    %c0_i32 = arith.constant 0 : i32
    %c0_i32_0 = arith.constant 0 : i32
    %c0_i32_1 = arith.constant 0 : i32
    return %c0_i32, %c0_i32_0 : i32, i32
  }
  func.func @transform_4(%arg0: i32) -> (i32, i32) {
    %c0_i32 = arith.constant 0 : i32
    %c0_i32_0 = arith.constant 0 : i32
    %c0_i32_1 = arith.constant 0 : i32
    return %c0_i32, %c0_i32_0 : i32, i32
  }
  func.func @transform_5(%arg0: i32) -> (i32, i32, i32, i32) {
    %c0_i32 = arith.constant 0 : i32
    %c0_i32_0 = arith.constant 0 : i32
    %c0_i32_1 = arith.constant 0 : i32
    %c0_i32_2 = arith.constant 0 : i32
    return %arg0, %c0_i32, %c0_i32_0, %c0_i32_1 : i32, i32, i32, i32
  }
}

module attributes {stable_mosaic.version = 11 : i64} {
  func.func @_fused_conv_kernel(%arg0: i32, %arg1: memref<1x8x8x512xbf16, #tpu.memory_space<vmem>>, %arg2: memref<1x512xf32, #tpu.memory_space<vmem>>, %arg3: memref<1x512xf32, #tpu.memory_space<vmem>>, %arg4: memref<1152x128xbf16, #tpu.memory_space<vmem>>, %arg5: memref<1x128xf32, #tpu.memory_space<vmem>>, %arg6: memref<1x8x8x128xbf16, #tpu.memory_space<vmem>>, %arg7: memref<128x128xbf16, #tpu.memory_space<vmem>>, %arg8: memref<1x128xf32, #tpu.memory_space<vmem>>, %arg9: memref<1x8x8x128xf32, #tpu.memory_space<vmem>>, %arg10: memref<9x9x512xbf16, #tpu.memory_space<vmem>>) attributes {dimension_semantics = [#tpu.dimension_semantics<parallel>], iteration_bounds = array<i64: 2>, scalar_prefetch = 0 : i64, scratch_operands = 1 : i64, tpu.core_type = #tpu.core_type<tc>, window_params = [{transform_indices = @transform_0, window_bounds = array<i64: 1, 8, 8, 512>}, {pipeline_mode = #tpu.pipeline_mode<synchronous>, transform_indices = @transform_1, window_bounds = array<i64: 1, 512>}, {pipeline_mode = #tpu.pipeline_mode<synchronous>, transform_indices = @transform_2, window_bounds = array<i64: 1, 512>}, {pipeline_mode = #tpu.pipeline_mode<synchronous>, transform_indices = @transform_3, window_bounds = array<i64: 1152, 128>}, {pipeline_mode = #tpu.pipeline_mode<synchronous>, transform_indices = @transform_4, window_bounds = array<i64: 1, 128>}, {transform_indices = @transform_5, window_bounds = array<i64: 1, 8, 8, 128>}, {pipeline_mode = #tpu.pipeline_mode<synchronous>, transform_indices = @transform_6, window_bounds = array<i64: 128, 128>}, {pipeline_mode = #tpu.pipeline_mode<synchronous>, transform_indices = @transform_7, window_bounds = array<i64: 1, 128>}, {transform_indices = @transform_8, window_bounds = array<i64: 1, 8, 8, 128>}]} {
    %c0 = arith.constant 0 : index
    %c0_0 = arith.constant 0 : index
    %c0_1 = arith.constant 0 : index
    %c0_2 = arith.constant 0 : index
    %0 = vector.load %arg1[%c0, %c0_0, %c0_1, %c0_2] : memref<1x8x8x512xbf16, #tpu.memory_space<vmem>>, vector<1x8x8x512xbf16>
    %1 = vector.shape_cast %0 : vector<1x8x8x512xbf16> to vector<8x8x512xbf16>
    %2 = arith.extf %1 : vector<8x8x512xbf16> to vector<8x8x512xf32>
    %c0_3 = arith.constant 0 : index
    %c0_4 = arith.constant 0 : index
    %3 = vector.load %arg2[%c0_3, %c0_4] : memref<1x512xf32, #tpu.memory_space<vmem>>, vector<1x512xf32>
    %4 = vector.shape_cast %3 : vector<1x512xf32> to vector<1x1x512xf32>
    %c0_5 = arith.constant 0 : index
    %c0_6 = arith.constant 0 : index
    %5 = vector.load %arg3[%c0_5, %c0_6] : memref<1x512xf32, #tpu.memory_space<vmem>>, vector<1x512xf32>
    %6 = vector.shape_cast %5 : vector<1x512xf32> to vector<1x1x512xf32>
    %7 = vector.broadcast %4 : vector<1x1x512xf32> to vector<8x8x512xf32>
    %8 = arith.mulf %2, %7 : vector<8x8x512xf32>
    %9 = vector.broadcast %6 : vector<1x1x512xf32> to vector<8x8x512xf32>
    %10 = arith.addf %8, %9 : vector<8x8x512xf32>
    %cst = arith.constant 0.000000e+00 : f32
    %11 = vector.broadcast %cst : f32 to vector<8x8x512xf32>
    %12 = arith.maximumf %10, %11 : vector<8x8x512xf32>
    %13 = arith.truncf %12 : vector<8x8x512xf32> to vector<8x8x512xbf16>
    %cst_7 = arith.constant 0.000000e+00 : bf16
    %14 = vector.broadcast %cst_7 : bf16 to vector<1x9x512xbf16>
    %c0_8 = arith.constant 0 : index
    %c0_9 = arith.constant 0 : index
    %c0_10 = arith.constant 0 : index
    %15 = vector.load %arg10[%c0_8, %c0_9, %c0_10] : memref<9x9x512xbf16, #tpu.memory_space<vmem>>, vector<1x9x512xbf16>
    tpu.vector_store %arg10[%c0_8, %c0_9, %c0_10], %14 {strides = array<i32>} : memref<9x9x512xbf16, #tpu.memory_space<vmem>>, vector<1x9x512xbf16>,
    %cst_11 = arith.constant 0.000000e+00 : bf16
    %16 = vector.broadcast %cst_11 : bf16 to vector<9x1x512xbf16>
    %c0_12 = arith.constant 0 : index
    %c0_13 = arith.constant 0 : index
    %c0_14 = arith.constant 0 : index
    %17 = vector.load %arg10[%c0_12, %c0_13, %c0_14] : memref<9x9x512xbf16, #tpu.memory_space<vmem>>, vector<9x1x512xbf16>
    tpu.vector_store %arg10[%c0_12, %c0_13, %c0_14], %16 {strides = array<i32>} : memref<9x9x512xbf16, #tpu.memory_space<vmem>>, vector<9x1x512xbf16>,
    %c1 = arith.constant 1 : index
    %c1_15 = arith.constant 1 : index
    %c0_16 = arith.constant 0 : index
    %18 = vector.load %arg10[%c1, %c1_15, %c0_16] : memref<9x9x512xbf16, #tpu.memory_space<vmem>>, vector<8x8x512xbf16>
    tpu.vector_store %arg10[%c1, %c1_15, %c0_16], %13 {strides = array<i32>} : memref<9x9x512xbf16, #tpu.memory_space<vmem>>, vector<8x8x512xbf16>,
    %c0_17 = arith.constant 0 : index
    %c0_18 = arith.constant 0 : index
    %19 = vector.load %arg5[%c0_17, %c0_18] : memref<1x128xf32, #tpu.memory_space<vmem>>, vector<1x128xf32>
    %c0_19 = arith.constant 0 : index
    %c0_20 = arith.constant 0 : index
    %c384 = arith.constant 384 : index
    %20 = vector.load %arg10[%c0_19, %c0_20, %c384] : memref<9x9x512xbf16, #tpu.memory_space<vmem>>, vector<8x8x128xbf16>
    %21 = vector.shape_cast %20 : vector<8x8x128xbf16> to vector<64x128xbf16>
    %c0_21 = arith.constant 0 : index
    %c0_22 = arith.constant 0 : index
    %22 = vector.load %arg4[%c0_21, %c0_22] : memref<1152x128xbf16, #tpu.memory_space<vmem>>, vector<128x128xbf16>
    %cst_23 = arith.constant dense<0.000000e+00> : vector<64x128xf32>
    %23 = tpu.matmul %21, %22, %cst_23 {dimension_numbers = #tpu.dot_dimension_numbers<[1], [0], [0], [1], [0, 0, 1, 1], [], []>} : vector<64x128xbf16>, vector<128x128xbf16>, vector<64x128xf32> -> vector<64x128xf32>
    %24 = vector.broadcast %19 : vector<1x128xf32> to vector<64x128xf32>
    %25 = arith.addf %24, %23 : vector<64x128xf32>
    %c0_24 = arith.constant 0 : index
    %c1_25 = arith.constant 1 : index
    %c256 = arith.constant 256 : index
    %26 = vector.load %arg10[%c0_24, %c1_25, %c256] : memref<9x9x512xbf16, #tpu.memory_space<vmem>>, vector<8x8x128xbf16>
    %27 = vector.shape_cast %26 : vector<8x8x128xbf16> to vector<64x128xbf16>
    %c128 = arith.constant 128 : index
    %c0_26 = arith.constant 0 : index
    %28 = vector.load %arg4[%c128, %c0_26] : memref<1152x128xbf16, #tpu.memory_space<vmem>>, vector<128x128xbf16>
    %cst_27 = arith.constant dense<0.000000e+00> : vector<64x128xf32>
    %29 = tpu.matmul %27, %28, %cst_27 {dimension_numbers = #tpu.dot_dimension_numbers<[1], [0], [0], [1], [0, 0, 1, 1], [], []>} : vector<64x128xbf16>, vector<128x128xbf16>, vector<64x128xf32> -> vector<64x128xf32>
    %30 = arith.addf %25, %29 : vector<64x128xf32>
    %c0_28 = arith.constant 0 : index
    %c1_29 = arith.constant 1 : index
    %c384_30 = arith.constant 384 : index
    %31 = vector.load %arg10[%c0_28, %c1_29, %c384_30] : memref<9x9x512xbf16, #tpu.memory_space<vmem>>, vector<8x8x128xbf16>
    %32 = vector.shape_cast %31 : vector<8x8x128xbf16> to vector<64x128xbf16>
    %c256_31 = arith.constant 256 : index
    %c0_32 = arith.constant 0 : index
    %33 = vector.load %arg4[%c256_31, %c0_32] : memref<1152x128xbf16, #tpu.memory_space<vmem>>, vector<128x128xbf16>
    %cst_33 = arith.constant dense<0.000000e+00> : vector<64x128xf32>
    %34 = tpu.matmul %32, %33, %cst_33 {dimension_numbers = #tpu.dot_dimension_numbers<[1], [0], [0], [1], [0, 0, 1, 1], [], []>} : vector<64x128xbf16>, vector<128x128xbf16>, vector<64x128xf32> -> vector<64x128xf32>
    %35 = arith.addf %30, %34 : vector<64x128xf32>
    %c1_34 = arith.constant 1 : index
    %c0_35 = arith.constant 0 : index
    %c128_36 = arith.constant 128 : index
    %36 = vector.load %arg10[%c1_34, %c0_35, %c128_36] : memref<9x9x512xbf16, #tpu.memory_space<vmem>>, vector<8x8x128xbf16>
    %37 = vector.shape_cast %36 : vector<8x8x128xbf16> to vector<64x128xbf16>
    %c384_37 = arith.constant 384 : index
    %c0_38 = arith.constant 0 : index
    %38 = vector.load %arg4[%c384_37, %c0_38] : memref<1152x128xbf16, #tpu.memory_space<vmem>>, vector<128x128xbf16>
    %cst_39 = arith.constant dense<0.000000e+00> : vector<64x128xf32>
    %39 = tpu.matmul %37, %38, %cst_39 {dimension_numbers = #tpu.dot_dimension_numbers<[1], [0], [0], [1], [0, 0, 1, 1], [], []>} : vector<64x128xbf16>, vector<128x128xbf16>, vector<64x128xf32> -> vector<64x128xf32>
    %40 = arith.addf %35, %39 : vector<64x128xf32>
    %c1_40 = arith.constant 1 : index
    %c1_41 = arith.constant 1 : index
    %c0_42 = arith.constant 0 : index
    %41 = vector.load %arg10[%c1_40, %c1_41, %c0_42] : memref<9x9x512xbf16, #tpu.memory_space<vmem>>, vector<8x8x128xbf16>
    %42 = vector.shape_cast %41 : vector<8x8x128xbf16> to vector<64x128xbf16>
    %c512 = arith.constant 512 : index
    %c0_43 = arith.constant 0 : index
    %43 = vector.load %arg4[%c512, %c0_43] : memref<1152x128xbf16, #tpu.memory_space<vmem>>, vector<128x128xbf16>
    %cst_44 = arith.constant dense<0.000000e+00> : vector<64x128xf32>
    %44 = tpu.matmul %42, %43, %cst_44 {dimension_numbers = #tpu.dot_dimension_numbers<[1], [0], [0], [1], [0, 0, 1, 1], [], []>} : vector<64x128xbf16>, vector<128x128xbf16>, vector<64x128xf32> -> vector<64x128xf32>
    %45 = arith.addf %40, %44 : vector<64x128xf32>
    %c1_45 = arith.constant 1 : index
    %c1_46 = arith.constant 1 : index
    %c128_47 = arith.constant 128 : index
    %46 = vector.load %arg10[%c1_45, %c1_46, %c128_47] : memref<9x9x512xbf16, #tpu.memory_space<vmem>>, vector<8x8x128xbf16>
    %47 = vector.shape_cast %46 : vector<8x8x128xbf16> to vector<64x128xbf16>
    %c640 = arith.constant 640 : index
    %c0_48 = arith.constant 0 : index
    %48 = vector.load %arg4[%c640, %c0_48] : memref<1152x128xbf16, #tpu.memory_space<vmem>>, vector<128x128xbf16>
    %cst_49 = arith.constant dense<0.000000e+00> : vector<64x128xf32>
    %49 = tpu.matmul %47, %48, %cst_49 {dimension_numbers = #tpu.dot_dimension_numbers<[1], [0], [0], [1], [0, 0, 1, 1], [], []>} : vector<64x128xbf16>, vector<128x128xbf16>, vector<64x128xf32> -> vector<64x128xf32>
    %50 = arith.addf %45, %49 : vector<64x128xf32>
    %c1_50 = arith.constant 1 : index
    %c0_51 = arith.constant 0 : index
    %c384_52 = arith.constant 384 : index
    %51 = vector.load %arg10[%c1_50, %c0_51, %c384_52] : memref<9x9x512xbf16, #tpu.memory_space<vmem>>, vector<8x8x128xbf16>
    %52 = vector.shape_cast %51 : vector<8x8x128xbf16> to vector<64x128xbf16>
    %c768 = arith.constant 768 : index
    %c0_53 = arith.constant 0 : index
    %53 = vector.load %arg4[%c768, %c0_53] : memref<1152x128xbf16, #tpu.memory_space<vmem>>, vector<128x128xbf16>
    %cst_54 = arith.constant dense<0.000000e+00> : vector<64x128xf32>
    %54 = tpu.matmul %52, %53, %cst_54 {dimension_numbers = #tpu.dot_dimension_numbers<[1], [0], [0], [1], [0, 0, 1, 1], [], []>} : vector<64x128xbf16>, vector<128x128xbf16>, vector<64x128xf32> -> vector<64x128xf32>
    %55 = arith.addf %50, %54 : vector<64x128xf32>
    %c1_55 = arith.constant 1 : index
    %c1_56 = arith.constant 1 : index
    %c256_57 = arith.constant 256 : index
    %56 = vector.load %arg10[%c1_55, %c1_56, %c256_57] : memref<9x9x512xbf16, #tpu.memory_space<vmem>>, vector<8x8x128xbf16>
    %57 = vector.shape_cast %56 : vector<8x8x128xbf16> to vector<64x128xbf16>
    %c896 = arith.constant 896 : index
    %c0_58 = arith.constant 0 : index
    %58 = vector.load %arg4[%c896, %c0_58] : memref<1152x128xbf16, #tpu.memory_space<vmem>>, vector<128x128xbf16>
    %cst_59 = arith.constant dense<0.000000e+00> : vector<64x128xf32>
    %59 = tpu.matmul %57, %58, %cst_59 {dimension_numbers = #tpu.dot_dimension_numbers<[1], [0], [0], [1], [0, 0, 1, 1], [], []>} : vector<64x128xbf16>, vector<128x128xbf16>, vector<64x128xf32> -> vector<64x128xf32>
    %60 = arith.addf %55, %59 : vector<64x128xf32>
    %c1_60 = arith.constant 1 : index
    %c1_61 = arith.constant 1 : index
    %c384_62 = arith.constant 384 : index
    %61 = vector.load %arg10[%c1_60, %c1_61, %c384_62] : memref<9x9x512xbf16, #tpu.memory_space<vmem>>, vector<8x8x128xbf16>
    %62 = vector.shape_cast %61 : vector<8x8x128xbf16> to vector<64x128xbf16>
    %c1024 = arith.constant 1024 : index
    %c0_63 = arith.constant 0 : index
    %63 = vector.load %arg4[%c1024, %c0_63] : memref<1152x128xbf16, #tpu.memory_space<vmem>>, vector<128x128xbf16>
    %cst_64 = arith.constant dense<0.000000e+00> : vector<64x128xf32>
    %64 = tpu.matmul %62, %63, %cst_64 {dimension_numbers = #tpu.dot_dimension_numbers<[1], [0], [0], [1], [0, 0, 1, 1], [], []>} : vector<64x128xbf16>, vector<128x128xbf16>, vector<64x128xf32> -> vector<64x128xf32>
    %65 = arith.addf %60, %64 : vector<64x128xf32>
    %c0_65 = arith.constant 0 : index
    %c0_66 = arith.constant 0 : index
    %c0_67 = arith.constant 0 : index
    %c0_68 = arith.constant 0 : index
    %66 = vector.load %arg6[%c0_65, %c0_66, %c0_67, %c0_68] : memref<1x8x8x128xbf16, #tpu.memory_space<vmem>>, vector<1x8x8x128xbf16>
    %67 = vector.shape_cast %66 : vector<1x8x8x128xbf16> to vector<8x8x128xbf16>
    %68 = vector.shape_cast %67 : vector<8x8x128xbf16> to vector<64x128xbf16>
    %c0_69 = arith.constant 0 : index
    %c0_70 = arith.constant 0 : index
    %69 = vector.load %arg7[%c0_69, %c0_70] : memref<128x128xbf16, #tpu.memory_space<vmem>>, vector<128x128xbf16>
    %cst_71 = arith.constant dense<0.000000e+00> : vector<64x128xf32>
    %70 = tpu.matmul %68, %69, %cst_71 {dimension_numbers = #tpu.dot_dimension_numbers<[1], [0], [0], [1], [0, 0, 1, 1], [], []>} : vector<64x128xbf16>, vector<128x128xbf16>, vector<64x128xf32> -> vector<64x128xf32>
    %71 = arith.addf %65, %70 : vector<64x128xf32>
    %c0_72 = arith.constant 0 : index
    %c0_73 = arith.constant 0 : index
    %72 = vector.load %arg8[%c0_72, %c0_73] : memref<1x128xf32, #tpu.memory_space<vmem>>, vector<1x128xf32>
    %73 = vector.broadcast %72 : vector<1x128xf32> to vector<64x128xf32>
    %74 = arith.addf %71, %73 : vector<64x128xf32>
    %75 = vector.shape_cast %74 : vector<64x128xf32> to vector<8x8x128xf32>
    %c0_74 = arith.constant 0 : index
    %c0_75 = arith.constant 0 : index
    %c0_76 = arith.constant 0 : index
    %c0_77 = arith.constant 0 : index
    %76 = vector.load %arg9[%c0_74, %c0_75, %c0_76, %c0_77] : memref<1x8x8x128xf32, #tpu.memory_space<vmem>>, vector<1x8x8x128xf32>
    %77 = vector.shape_cast %76 : vector<1x8x8x128xf32> to vector<8x8x128xf32>
    %78 = vector.shape_cast %75 : vector<8x8x128xf32> to vector<1x8x8x128xf32>
    tpu.vector_store %arg9[%c0_74, %c0_75, %c0_76, %c0_77], %78 {strides = array<i32>} : memref<1x8x8x128xf32, #tpu.memory_space<vmem>>, vector<1x8x8x128xf32>,
    return
  }
  func.func @transform_0(%arg0: i32) -> (i32, i32, i32, i32) {
    %c0_i32 = arith.constant 0 : i32
    %c0_i32_0 = arith.constant 0 : i32
    %c0_i32_1 = arith.constant 0 : i32
    %c0_i32_2 = arith.constant 0 : i32
    return %arg0, %c0_i32, %c0_i32_0, %c0_i32_1 : i32, i32, i32, i32
  }
  func.func @transform_1(%arg0: i32) -> (i32, i32) {
    %c0_i32 = arith.constant 0 : i32
    %c0_i32_0 = arith.constant 0 : i32
    %c0_i32_1 = arith.constant 0 : i32
    return %c0_i32, %c0_i32_0 : i32, i32
  }
  func.func @transform_2(%arg0: i32) -> (i32, i32) {
    %c0_i32 = arith.constant 0 : i32
    %c0_i32_0 = arith.constant 0 : i32
    %c0_i32_1 = arith.constant 0 : i32
    return %c0_i32, %c0_i32_0 : i32, i32
  }
  func.func @transform_3(%arg0: i32) -> (i32, i32) {
    %c0_i32 = arith.constant 0 : i32
    %c0_i32_0 = arith.constant 0 : i32
    %c0_i32_1 = arith.constant 0 : i32
    return %c0_i32, %c0_i32_0 : i32, i32
  }
  func.func @transform_4(%arg0: i32) -> (i32, i32) {
    %c0_i32 = arith.constant 0 : i32
    %c0_i32_0 = arith.constant 0 : i32
    %c0_i32_1 = arith.constant 0 : i32
    return %c0_i32, %c0_i32_0 : i32, i32
  }
  func.func @transform_5(%arg0: i32) -> (i32, i32, i32, i32) {
    %c0_i32 = arith.constant 0 : i32
    %c0_i32_0 = arith.constant 0 : i32
    %c0_i32_1 = arith.constant 0 : i32
    %c0_i32_2 = arith.constant 0 : i32
    return %arg0, %c0_i32, %c0_i32_0, %c0_i32_1 : i32, i32, i32, i32
  }
  func.func @transform_6(%arg0: i32) -> (i32, i32) {
    %c0_i32 = arith.constant 0 : i32
    %c0_i32_0 = arith.constant 0 : i32
    %c0_i32_1 = arith.constant 0 : i32
    return %c0_i32, %c0_i32_0 : i32, i32
  }
  func.func @transform_7(%arg0: i32) -> (i32, i32) {
    %c0_i32 = arith.constant 0 : i32
    %c0_i32_0 = arith.constant 0 : i32
    %c0_i32_1 = arith.constant 0 : i32
    return %c0_i32, %c0_i32_0 : i32, i32
  }
  func.func @transform_8(%arg0: i32) -> (i32, i32, i32, i32) {
    %c0_i32 = arith.constant 0 : i32
    %c0_i32_0 = arith.constant 0 : i32
    %c0_i32_1 = arith.constant 0 : i32
    %c0_i32_2 = arith.constant 0 : i32
    return %arg0, %c0_i32, %c0_i32_0, %c0_i32_1 : i32, i32, i32, i32
  }
}

</mosaic_0001>

<llo_original>
// kernel: wide_basic_forward.3
$region0: #{wide_basic_forward.3}
  #allocation0 [shape = 'u32[]', space=smem, size = 0x4, offset = 0x4, fixed_abs, tag = 'smem constant byte address 0x4 - core index']
  #allocation1 [shape = 'u32[72,128]{1,0:T(1,128)}', space=vmem, size = 0x9000, scoped, tag = 'internal scratch']
  #allocation2 [shape = 'bf16[9,9,512]{2,1,0:T(8,128)(2,1)}', space=vmem, size = 0x24000, scoped, tag = 'scratch operand']
  %s0 = inlined_call_operand.vmem [shape: bf16[2,8,8,512], index: 0, kind: input, shape index: {}]
  %s1 = inlined_call_operand.vmem [shape: f32[1,512], index: 1, kind: input, shape index: {}]
  %s2 = inlined_call_operand.vmem [shape: f32[1,512], index: 2, kind: input, shape index: {}]
  %s3 = inlined_call_operand.vmem [shape: bf16[1152,128], index: 3, kind: input, shape index: {}]
  %s4 = inlined_call_operand.vmem [shape: f32[1,128], index: 4, kind: input, shape index: {}]
  %s5 = inlined_call_operand.vmem [shape: bf16[2,8,8,128], index: 5, kind: input, shape index: {}]
  %s6 = inlined_call_operand.vmem [shape: bf16[128,128], index: 6, kind: input, shape index: {}]
  %s7 = inlined_call_operand.vmem [shape: f32[1,128], index: 7, kind: input, shape index: {}]
  %s8 = inlined_call_operand.vmem [shape: f32[2,8,8,128], index: 8, kind: output, shape index: {}]
  %s9 = sld [smem:[#allocation0]]
  $region65: #{wide_basic_forward.3} parent=0
    _
  %s11 = ssub.s32 1, %s9
  %s12 = scalar_select 0, %s11, %s9
  loop: start=0, step=1, limit=4
  $region2: #{wide_basic_forward.3} parent=0 // loop_pre_header
    _
  $region3: #{wide_basic_forward.3} parent=0 // loop_header
    %s14 = sphi 0, %s18
    %p15 = scmp.ge.s32.totalorder %s14, 4
    %s24 = sphi 0, %s26
    %s27 = sphi 0, %s24
    %s28 = sphi 0, %s27
    %s44 = sphi 0, %s28
    %s48 = sphi 0, %s48
    %s50 = sphi 0, %s48
    %s51 = sphi 0, %s50
    %s65 = sphi 0, %s51
    %s69 = sphi 0, %s69
    %s71 = sphi 0, %s69
    %s72 = sphi 0, %s71
    %s86 = sphi 0, %s72
    %s90 = sphi 0, %s90
    %s92 = sphi 0, %s90
    %s93 = sphi 0, %s92
    %s107 = sphi 0, %s93
    %s111 = sphi 0, %s111
    %s113 = sphi 0, %s111
    %s114 = sphi 0, %s113
    %s128 = sphi 0, %s114
    %s134 = sphi 0, %s136
    %s137 = sphi 0, %s134
    %s138 = sphi 0, %s137
    %s154 = sphi 0, %s138
    %s158 = sphi 0, %s158
    %s160 = sphi 0, %s158
    %s161 = sphi 0, %s160
    %s175 = sphi 0, %s161
    %s179 = sphi 0, %s179
    %s181 = sphi 0, %s179
    %s182 = sphi 0, %s181
    %s196 = sphi 0, %s182
    %s202 = sphi 0, %s204
    %s205 = sphi 0, %s202
    %s206 = sphi 0, %s205
    %s222 = sphi 0, %s206
  $region4: #{wide_basic_forward.3} parent=0 // loop_header_branch
    %17 = sbr.rel (%p15) target = $region8
  $region5: #{wide_basic_forward.3} parent=0 // loop_body
    %s19 = ssub.s32 %s14, 1
    %s20 = ssub.s32 %s14, 2
    %s21 = sadd.s32 %s14, 1
    %s22 = ssub.s32 %s14, %s21
    %p23 = scmp.eq.s32.totalorder %s22, 0
    %s25 = sadd.s32 %s24, 1
    %s26 = scalar_select %p23, %s24, %s25
    %p29 = pneg %p23
    %p30 = scmp.eq.s32.totalorder %s14, 1
    %p31 = por %p29, %p30
    %p32 = scmp.ne.s32.totalorder %s24, %s27
    %p33 = scmp.eq.s32.totalorder %s14, 0
    %p34 = por %p32, %p33
    %p35 = scmp.ne.s32.totalorder %s24, %s27
    %p36 = scmp.eq.s32.totalorder %s19, 1
    %p37 = por %p35, %p36
    %p38 = scmp.ne.s32.totalorder %s27, %s28
    %p39 = scmp.eq.s32.totalorder %s19, 0
    %p40 = por %p38, %p39
    %p41 = scmp.ne.s32.totalorder %s27, %s28
    %p42 = scmp.eq.s32.totalorder %s20, 1
    %p43 = por %p41, %p42
    %p45 = scmp.ne.s32.totalorder %s28, %s44
    %p46 = scmp.eq.s32.totalorder %s20, 0
    %p47 = por %p45, %p46
    %s49 = sadd.s32 %s48, 1
    %p52 = scmp.eq.s32.totalorder %s14, 1
    %p53 = scmp.ne.s32.totalorder %s48, %s50
    %p54 = scmp.eq.s32.totalorder %s14, 0
    %p55 = por %p53, %p54
    %p56 = scmp.ne.s32.totalorder %s48, %s50
    %p57 = scmp.eq.s32.totalorder %s19, 1
    %p58 = por %p56, %p57
    %p59 = scmp.ne.s32.totalorder %s50, %s51
    %p60 = scmp.eq.s32.totalorder %s19, 0
    %p61 = por %p59, %p60
    %p62 = scmp.ne.s32.totalorder %s50, %s51
    %p63 = scmp.eq.s32.totalorder %s20, 1
    %p64 = por %p62, %p63
    %p66 = scmp.ne.s32.totalorder %s51, %s65
    %p67 = scmp.eq.s32.totalorder %s20, 0
    %p68 = por %p66, %p67
    %s70 = sadd.s32 %s69, 1
    %p73 = scmp.eq.s32.totalorder %s14, 1
    %p74 = scmp.ne.s32.totalorder %s69, %s71
    %p75 = scmp.eq.s32.totalorder %s14, 0
    %p76 = por %p74, %p75
    %p77 = scmp.ne.s32.totalorder %s69, %s71
    %p78 = scmp.eq.s32.totalorder %s19, 1
    %p79 = por %p77, %p78
    %p80 = scmp.ne.s32.totalorder %s71, %s72
    %p81 = scmp.eq.s32.totalorder %s19, 0
    %p82 = por %p80, %p81
    %p83 = scmp.ne.s32.totalorder %s71, %s72
    %p84 = scmp.eq.s32.totalorder %s20, 1
    %p85 = por %p83, %p84
    %p87 = scmp.ne.s32.totalorder %s72, %s86
    %p88 = scmp.eq.s32.totalorder %s20, 0
    %p89 = por %p87, %p88
    %s91 = sadd.s32 %s90, 1
    %p94 = scmp.eq.s32.totalorder %s14, 1
    %p95 = scmp.ne.s32.totalorder %s90, %s92
    %p96 = scmp.eq.s32.totalorder %s14, 0
    %p97 = por %p95, %p96
    %p98 = scmp.ne.s32.totalorder %s90, %s92
    %p99 = scmp.eq.s32.totalorder %s19, 1
    %p100 = por %p98, %p99
    %p101 = scmp.ne.s32.totalorder %s92, %s93
    %p102 = scmp.eq.s32.totalorder %s19, 0
    %p103 = por %p101, %p102
    %p104 = scmp.ne.s32.totalorder %s92, %s93
    %p105 = scmp.eq.s32.totalorder %s20, 1
    %p106 = por %p104, %p105
    %p108 = scmp.ne.s32.totalorder %s93, %s107
    %p109 = scmp.eq.s32.totalorder %s20, 0
    %p110 = por %p108, %p109
    %s112 = sadd.s32 %s111, 1
    %p115 = scmp.eq.s32.totalorder %s14, 1
    %p116 = scmp.ne.s32.totalorder %s111, %s113
    %p117 = scmp.eq.s32.totalorder %s14, 0
    %p118 = por %p116, %p117
    %p119 = scmp.ne.s32.totalorder %s111, %s113
    %p120 = scmp.eq.s32.totalorder %s19, 1
    %p121 = por %p119, %p120
    %p122 = scmp.ne.s32.totalorder %s113, %s114
    %p123 = scmp.eq.s32.totalorder %s19, 0
    %p124 = por %p122, %p123
    %p125 = scmp.ne.s32.totalorder %s113, %s114
    %p126 = scmp.eq.s32.totalorder %s20, 1
    %p127 = por %p125, %p126
    %p129 = scmp.ne.s32.totalorder %s114, %s128
    %p130 = scmp.eq.s32.totalorder %s20, 0
    %p131 = por %p129, %p130
    %s132 = ssub.s32 %s14, %s21
    %p133 = scmp.eq.s32.totalorder %s132, 0
    %s135 = sadd.s32 %s134, 1
    %s136 = scalar_select %p133, %s134, %s135
    %p139 = pneg %p133
    %p140 = scmp.eq.s32.totalorder %s14, 1
    %p141 = por %p139, %p140
    %p142 = scmp.ne.s32.totalorder %s134, %s137
    %p143 = scmp.eq.s32.totalorder %s14, 0
    %p144 = por %p142, %p143
    %p145 = scmp.ne.s32.totalorder %s134, %s137
    %p146 = scmp.eq.s32.totalorder %s19, 1
    %p147 = por %p145, %p146
    %p148 = scmp.ne.s32.totalorder %s137, %s138
    %p149 = scmp.eq.s32.totalorder %s19, 0
    %p150 = por %p148, %p149
    %p151 = scmp.ne.s32.totalorder %s137, %s138
    %p152 = scmp.eq.s32.totalorder %s20, 1
    %p153 = por %p151, %p152
    %p155 = scmp.ne.s32.totalorder %s138, %s154
    %p156 = scmp.eq.s32.totalorder %s20, 0
    %p157 = por %p155, %p156
    %s159 = sadd.s32 %s158, 1
    %p162 = scmp.eq.s32.totalorder %s14, 1
    %p163 = scmp.ne.s32.totalorder %s158, %s160
    %p164 = scmp.eq.s32.totalorder %s14, 0
    %p165 = por %p163, %p164
    %p166 = scmp.ne.s32.totalorder %s158, %s160
    %p167 = scmp.eq.s32.totalorder %s19, 1
    %p168 = por %p166, %p167
    %p169 = scmp.ne.s32.totalorder %s160, %s161
    %p170 = scmp.eq.s32.totalorder %s19, 0
    %p171 = por %p169, %p170
    %p172 = scmp.ne.s32.totalorder %s160, %s161
    %p173 = scmp.eq.s32.totalorder %s20, 1
    %p174 = por %p172, %p173
    %p176 = scmp.ne.s32.totalorder %s161, %s175
    %p177 = scmp.eq.s32.totalorder %s20, 0
    %p178 = por %p176, %p177
    %s180 = sadd.s32 %s179, 1
    %p183 = scmp.eq.s32.totalorder %s14, 1
    %p184 = scmp.ne.s32.totalorder %s179, %s181
    %p185 = scmp.eq.s32.totalorder %s14, 0
    %p186 = por %p184, %p185
    %p187 = scmp.ne.s32.totalorder %s179, %s181
    %p188 = scmp.eq.s32.totalorder %s19, 1
    %p189 = por %p187, %p188
    %p190 = scmp.ne.s32.totalorder %s181, %s182
    %p191 = scmp.eq.s32.totalorder %s19, 0
    %p192 = por %p190, %p191
    %p193 = scmp.ne.s32.totalorder %s181, %s182
    %p194 = scmp.eq.s32.totalorder %s20, 1
    %p195 = por %p193, %p194
    %p197 = scmp.ne.s32.totalorder %s182, %s196
    %p198 = scmp.eq.s32.totalorder %s20, 0
    %p199 = por %p197, %p198
    %s200 = ssub.s32 %s14, %s21
    %p201 = scmp.eq.s32.totalorder %s200, 0
    %s203 = sadd.s32 %s202, 1
    %s204 = scalar_select %p201, %s202, %s203
    %p207 = pneg %p201
    %p208 = scmp.eq.s32.totalorder %s14, 1
    %p209 = por %p207, %p208
    %p210 = scmp.ne.s32.totalorder %s202, %s205
    %p211 = scmp.eq.s32.totalorder %s14, 0
    %p212 = por %p210, %p211
    %p213 = scmp.ne.s32.totalorder %s202, %s205
    %p214 = scmp.eq.s32.totalorder %s19, 1
    %p215 = por %p213, %p214
    %p216 = scmp.ne.s32.totalorder %s205, %s206
    %p217 = scmp.eq.s32.totalorder %s19, 0
    %p218 = por %p216, %p217
    %p219 = scmp.ne.s32.totalorder %s205, %s206
    %p220 = scmp.eq.s32.totalorder %s20, 1
    %p221 = por %p219, %p220
    %p223 = scmp.ne.s32.totalorder %s206, %s222
    %p224 = scmp.eq.s32.totalorder %s20, 0
    %p225 = por %p223, %p224
    %p226 = scmp.le.s32.totalorder 1, %s14
    %p227 = scmp.lt.s32.totalorder %s14, 3
    %p228 = pnand %p226, %p227
    %p229 = pneg %p228
    // Predicated region
    $region9: #{wide_basic_forward.3} parent=5 // pred_check
      _
    $region10: #{wide_basic_forward.3} parent=5 // pred_check_branch
      %231 = sbr.rel (%p228) target = $region12
    $region11: #{wide_basic_forward.3} parent=5 // pred_region
      %s232 = ssub.s32 %s14, 1
      // Predicated region
      $region13: #{wide_basic_forward.3} parent=11 // pred_check
        %p233 = pneg %p61
      $region14: #{wide_basic_forward.3} parent=11 // pred_check_branch
        %235 = sbr.rel (%p233) target = $region16
      $region15: #{wide_basic_forward.3} parent=11 // pred_region
        _
      $region16: #{wide_basic_forward.3} parent=11 // pred_fallthru
        _
      // Predicated region
      $region17: #{wide_basic_forward.3} parent=11 // pred_check
        %p236 = pneg %p82
      $region18: #{wide_basic_forward.3} parent=11 // pred_check_branch
        %238 = sbr.rel (%p236) target = $region20
      $region19: #{wide_basic_forward.3} parent=11 // pred_region
        _
      $region20: #{wide_basic_forward.3} parent=11 // pred_fallthru
        _
      // Predicated region
      $region21: #{wide_basic_forward.3} parent=11 // pred_check
        %p239 = pneg %p103
      $region22: #{wide_basic_forward.3} parent=11 // pred_check_branch
        %241 = sbr.rel (%p239) target = $region24
      $region23: #{wide_basic_forward.3} parent=11 // pred_region
        _
      $region24: #{wide_basic_forward.3} parent=11 // pred_fallthru
        _
      // Predicated region
      $region25: #{wide_basic_forward.3} parent=11 // pred_check
        %p242 = pneg %p124
      $region26: #{wide_basic_forward.3} parent=11 // pred_check_branch
        %244 = sbr.rel (%p242) target = $region28
      $region27: #{wide_basic_forward.3} parent=11 // pred_region
        _
      $region28: #{wide_basic_forward.3} parent=11 // pred_fallthru
        _
      // Predicated region
      $region29: #{wide_basic_forward.3} parent=11 // pred_check
        %p245 = pneg %p171
      $region30: #{wide_basic_forward.3} parent=11 // pred_check_branch
        %247 = sbr.rel (%p245) target = $region32
      $region31: #{wide_basic_forward.3} parent=11 // pred_region
        _
      $region32: #{wide_basic_forward.3} parent=11 // pred_fallthru
        _
      // Predicated region
      $region33: #{wide_basic_forward.3} parent=11 // pred_check
        %p248 = pneg %p192
      $region34: #{wide_basic_forward.3} parent=11 // pred_check_branch
        %250 = sbr.rel (%p248) target = $region36
      $region35: #{wide_basic_forward.3} parent=11 // pred_region
        _
      $region36: #{wide_basic_forward.3} parent=11 // pred_fallthru
        _
    $region12: #{wide_basic_forward.3} parent=5 // pred_fallthru
      _
    %p251 = scmp.lt.s32.totalorder %s14, 2
    // Predicated region
    $region37: #{wide_basic_forward.3} parent=5 // pred_check
      %p252 = pneg %p251
    $region38: #{wide_basic_forward.3} parent=5 // pred_check_branch
      %254 = sbr.rel (%p252) target = $region40
    $region39: #{wide_basic_forward.3} parent=5 // pred_region
      // Predicated region
      $region41: #{wide_basic_forward.3} parent=39 // pred_check
        %p255 = pneg %p34
      $region42: #{wide_basic_forward.3} parent=39 // pred_check_branch
        %257 = sbr.rel (%p255) target = $region44
      $region43: #{wide_basic_forward.3} parent=39 // pred_region
        %p258 = scmp.lt.s32.totalorder %s14, 1
        %s259 = scalar_select %p258, %s14, 1
        %s260 = smul.addr %s259, 32
        %s261 = smul.addr %s260, 4
        %s262 = scalar_lea.vmem %s0, %s261
      $region44: #{wide_basic_forward.3} parent=39 // pred_fallthru
        _
      // Predicated region
      $region45: #{wide_basic_forward.3} parent=39 // pred_check
        %p263 = pneg %p144
      $region46: #{wide_basic_forward.3} parent=39 // pred_check_branch
        %265 = sbr.rel (%p263) target = $region48
      $region47: #{wide_basic_forward.3} parent=39 // pred_region
        %p266 = scmp.lt.s32.totalorder %s14, 1
        %s267 = scalar_select %p266, %s14, 1
        %s268 = smul.addr %s267, 8
        %s269 = smul.addr %s268, 4
        %s270 = scalar_lea.vmem %s5, %s269
      $region48: #{wide_basic_forward.3} parent=39 // pred_fallthru
        _
    $region40: #{wide_basic_forward.3} parent=5 // pred_fallthru
      _
    %p271 = scmp.le.s32.totalorder 1, %s14
    %p272 = scmp.lt.s32.totalorder %s14, 3
    %p273 = pnand %p271, %p272
    %p274 = pneg %p273
    // Predicated region
    $region49: #{wide_basic_forward.3} parent=5 // pred_check
      _
    $region50: #{wide_basic_forward.3} parent=5 // pred_check_branch
      %276 = sbr.rel (%p273) target = $region52
    $region51: #{wide_basic_forward.3} parent=5 // pred_region
      %s277 = ssub.s32 %s14, 1
      %p278 = scmp.lt.s32.totalorder %s19, 1
      %s279 = scalar_select %p278, %s19, 1
      %s280 = smul.addr %s279, 32
      %s281 = smul.addr %s280, 4
      %s282 = scalar_lea.vmem %s0, %s281
      %p283 = pneg %p40
      %p284 = pneg %p37
      %p285 = pneg %p61
      %p286 = pneg %p58
      %p287 = pneg %p82
      %p288 = pneg %p79
      %p289 = pneg %p103
      %p290 = pneg %p100
      %p291 = pneg %p124
      %p292 = pneg %p121
      %p293 = scmp.lt.s32.totalorder %s19, 1
      %s294 = scalar_select %p293, %s19, 1
      %s295 = smul.addr %s294, 8
      %s296 = smul.addr %s295, 4
      %s297 = scalar_lea.vmem %s5, %s296
      %p298 = pneg %p150
      %p299 = pneg %p147
      %p300 = pneg %p171
      %p301 = pneg %p168
      %p302 = pneg %p192
      %p303 = pneg %p189
      %p304 = pneg %p218
      %p305 = pneg %p215
      %p306 = scmp.lt.s32.totalorder %s19, 1
      %s307 = scalar_select %p306, %s19, 1
      %s308 = smul.addr %s307, 8
      %s309 = smul.addr %s308, 8
      %s310 = scalar_lea.vmem %s8, %s309
      %p311 = scmp.lt.s32.totalorder %s19, 1
      %s312 = scalar_select %p311, %s19, 1
      %s313 = smul.addr %s312, 32
      %s314 = smul.addr %s313, 4
      %s315 = scalar_lea.vmem %s0, %s314
      %p316 = scmp.lt.s32.totalorder %s19, 1
      %s317 = scalar_select %p316, %s19, 1
      %s318 = smul.addr %s317, 8
      %s319 = smul.addr %s318, 4
      %s320 = scalar_lea.vmem %s5, %s319
      %p321 = scmp.lt.s32.totalorder %s19, 1
      %s322 = scalar_select %p321, %s19, 1
      %s323 = smul.addr %s322, 8
      %s324 = smul.addr %s323, 8
      %s325 = scalar_lea.vmem %s8, %s324
      %v327 = vld [vmem:[%s315] sm:$0xff]
      %v328 = vld [vmem:[%s315 + $0x8] sm:$0xff]
      %v329 = vld [vmem:[%s315 + $0x10] sm:$0xff]
      %v330 = vld [vmem:[%s315 + $0x18] sm:$0xff]
      %v331 = vld [vmem:[%s315 + $0x20] sm:$0xff]
      %v332 = vld [vmem:[%s315 + $0x28] sm:$0xff]
      %v333 = vld [vmem:[%s315 + $0x30] sm:$0xff]
      %v334 = vld [vmem:[%s315 + $0x38] sm:$0xff]
      %v335 = vld [vmem:[%s315 + $0x40] sm:$0xff]
      %v336 = vld [vmem:[%s315 + $0x48] sm:$0xff]
      %v337 = vld [vmem:[%s315 + $0x50] sm:$0xff]
      %v338 = vld [vmem:[%s315 + $0x58] sm:$0xff]
      %v339 = vld [vmem:[%s315 + $0x60] sm:$0xff]
      %v340 = vld [vmem:[%s315 + $0x68] sm:$0xff]
      %v341 = vld [vmem:[%s315 + $0x70] sm:$0xff]
      %v342 = vld [vmem:[%s315 + $0x78] sm:$0xff]
      %v343 = vunpack.c.l.bf16 %v327
      %v344 = vunpack.c.h.bf16 %v327
      %v345 = vunpack.c.l.bf16 %v328
      %v346 = vunpack.c.h.bf16 %v328
      %v347 = vunpack.c.l.bf16 %v329
      %v348 = vunpack.c.h.bf16 %v329
      %v349 = vunpack.c.l.bf16 %v330
      %v350 = vunpack.c.h.bf16 %v330
      %v351 = vunpack.c.l.bf16 %v331
      %v352 = vunpack.c.h.bf16 %v331
      %v353 = vunpack.c.l.bf16 %v332
      %v354 = vunpack.c.h.bf16 %v332
      %v355 = vunpack.c.l.bf16 %v333
      %v356 = vunpack.c.h.bf16 %v333
      %v357 = vunpack.c.l.bf16 %v334
      %v358 = vunpack.c.h.bf16 %v334
      %v359 = vunpack.c.l.bf16 %v335
      %v360 = vunpack.c.h.bf16 %v335
      %v361 = vunpack.c.l.bf16 %v336
      %v362 = vunpack.c.h.bf16 %v336
      %v363 = vunpack.c.l.bf16 %v337
      %v364 = vunpack.c.h.bf16 %v337
      %v365 = vunpack.c.l.bf16 %v338
      %v366 = vunpack.c.h.bf16 %v338
      %v367 = vunpack.c.l.bf16 %v339
      %v368 = vunpack.c.h.bf16 %v339
      %v369 = vunpack.c.l.bf16 %v340
      %v370 = vunpack.c.h.bf16 %v340
      %v371 = vunpack.c.l.bf16 %v341
      %v372 = vunpack.c.h.bf16 %v341
      %v373 = vunpack.c.l.bf16 %v342
      %v374 = vunpack.c.h.bf16 %v342
      %v375 = vld [vmem:[%s1] sm:$0xf]
      %v376 = vld [vmem:[%s2] sm:$0xf]
      %v378 = vperm.slane %v375, 0
      %v379 = vperm.slane %v375, 1
      %v380 = vperm.slane %v375, 2
      %v381 = vperm.slane %v375, 3
      %v386 = vmul.f32 %v343, %v378
      %v387 = vmul.f32 %v344, %v379
      %v388 = vmul.f32 %v345, %v380
      %v389 = vmul.f32 %v346, %v381
      %v390 = vmul.f32 %v347, %v378
      %v391 = vmul.f32 %v348, %v379
      %v392 = vmul.f32 %v349, %v380
      %v393 = vmul.f32 %v350, %v381
      %v394 = vmul.f32 %v351, %v378
      %v395 = vmul.f32 %v352, %v379
      %v396 = vmul.f32 %v353, %v380
      %v397 = vmul.f32 %v354, %v381
      %v398 = vmul.f32 %v355, %v378
      %v399 = vmul.f32 %v356, %v379
      %v400 = vmul.f32 %v357, %v380
      %v401 = vmul.f32 %v358, %v381
      %v402 = vmul.f32 %v359, %v378
      %v403 = vmul.f32 %v360, %v379
      %v404 = vmul.f32 %v361, %v380
      %v405 = vmul.f32 %v362, %v381
      %v406 = vmul.f32 %v363, %v378
      %v407 = vmul.f32 %v364, %v379
      %v408 = vmul.f32 %v365, %v380
      %v409 = vmul.f32 %v366, %v381
      %v410 = vmul.f32 %v367, %v378
      %v411 = vmul.f32 %v368, %v379
      %v412 = vmul.f32 %v369, %v380
      %v413 = vmul.f32 %v370, %v381
      %v414 = vmul.f32 %v371, %v378
      %v415 = vmul.f32 %v372, %v379
      %v416 = vmul.f32 %v373, %v380
      %v417 = vmul.f32 %v374, %v381
      %v419 = vperm.slane %v376, 0
      %v420 = vperm.slane %v376, 1
      %v421 = vperm.slane %v376, 2
      %v422 = vperm.slane %v376, 3
      %v427 = vadd.f32 %v386, %v419
      %v428 = vadd.f32 %v387, %v420
      %v429 = vadd.f32 %v388, %v421
      %v430 = vadd.f32 %v389, %v422
      %v431 = vadd.f32 %v390, %v419
      %v432 = vadd.f32 %v391, %v420
      %v433 = vadd.f32 %v392, %v421
      %v434 = vadd.f32 %v393, %v422
      %v435 = vadd.f32 %v394, %v419
      %v436 = vadd.f32 %v395, %v420
      %v437 = vadd.f32 %v396, %v421
      %v438 = vadd.f32 %v397, %v422
      %v439 = vadd.f32 %v398, %v419
      %v440 = vadd.f32 %v399, %v420
      %v441 = vadd.f32 %v400, %v421
      %v442 = vadd.f32 %v401, %v422
      %v443 = vadd.f32 %v402, %v419
      %v444 = vadd.f32 %v403, %v420
      %v445 = vadd.f32 %v404, %v421
      %v446 = vadd.f32 %v405, %v422
      %v447 = vadd.f32 %v406, %v419
      %v448 = vadd.f32 %v407, %v420
      %v449 = vadd.f32 %v408, %v421
      %v450 = vadd.f32 %v409, %v422
      %v451 = vadd.f32 %v410, %v419
      %v452 = vadd.f32 %v411, %v420
      %v453 = vadd.f32 %v412, %v421
      %v454 = vadd.f32 %v413, %v422
      %v455 = vadd.f32 %v414, %v419
      %v456 = vadd.f32 %v415, %v420
      %v457 = vadd.f32 %v416, %v421
      %v458 = vadd.f32 %v417, %v422
      %v459 = vmax.f32 %v427, 0.0
      %v460 = vmax.f32 %v428, 0.0
      %v461 = vmax.f32 %v429, 0.0
      %v462 = vmax.f32 %v430, 0.0
      %v463 = vmax.f32 %v431, 0.0
      %v464 = vmax.f32 %v432, 0.0
      %v465 = vmax.f32 %v433, 0.0
      %v466 = vmax.f32 %v434, 0.0
      %v467 = vmax.f32 %v435, 0.0
      %v468 = vmax.f32 %v436, 0.0
      %v469 = vmax.f32 %v437, 0.0
      %v470 = vmax.f32 %v438, 0.0
      %v471 = vmax.f32 %v439, 0.0
      %v472 = vmax.f32 %v440, 0.0
      %v473 = vmax.f32 %v441, 0.0
      %v474 = vmax.f32 %v442, 0.0
      %v475 = vmax.f32 %v443, 0.0
      %v476 = vmax.f32 %v444, 0.0
      %v477 = vmax.f32 %v445, 0.0
      %v478 = vmax.f32 %v446, 0.0
      %v479 = vmax.f32 %v447, 0.0
      %v480 = vmax.f32 %v448, 0.0
      %v481 = vmax.f32 %v449, 0.0
      %v482 = vmax.f32 %v450, 0.0
      %v483 = vmax.f32 %v451, 0.0
      %v484 = vmax.f32 %v452, 0.0
      %v485 = vmax.f32 %v453, 0.0
      %v486 = vmax.f32 %v454, 0.0
      %v487 = vmax.f32 %v455, 0.0
      %v488 = vmax.f32 %v456, 0.0
      %v489 = vmax.f32 %v457, 0.0
      %v490 = vmax.f32 %v458, 0.0
      %v491 = vpack.c.bf16 %v460, %v459
      %v492 = vpack.c.bf16 %v462, %v461
      %v493 = vpack.c.bf16 %v464, %v463
      %v494 = vpack.c.bf16 %v466, %v465
      %v495 = vpack.c.bf16 %v468, %v467
      %v496 = vpack.c.bf16 %v470, %v469
      %v497 = vpack.c.bf16 %v472, %v471
      %v498 = vpack.c.bf16 %v474, %v473
      %v499 = vpack.c.bf16 %v476, %v475
      %v500 = vpack.c.bf16 %v478, %v477
      %v501 = vpack.c.bf16 %v480, %v479
      %v502 = vpack.c.bf16 %v482, %v481
      %v503 = vpack.c.bf16 %v484, %v483
      %v504 = vpack.c.bf16 %v486, %v485
      %v505 = vpack.c.bf16 %v488, %v487
      %v506 = vpack.c.bf16 %v490, %v489
      %507 = vst [vmem:[#allocation2] sm:$0xff] 0
      %508 = vst [vmem:[#allocation2 + $0x8] sm:$0xff] 0
      %vm509 = vcmask 1040384
      %vm510 = vsmask.f32 256
      %vm511 = vmand %vm509, %vm510
      %vm512 = vcmask 1044484
      %vm513 = vsmask.f32 4352
      %vm514 = vmand %vm512, %vm513
      %vm515 = vmor %vm514, %vm511
      %v516 = vld [vmem:[#allocation2 + $0x10] sm:$0x11]
      %v517 = vsel %vm515, 0, %v516
      %518 = vst [vmem:[#allocation2 + $0x10] sm:$0x11] %v517
      %v519 = vld [vmem:[#allocation2 + $0x18] sm:$0x11]
      %v520 = vsel %vm515, 0, %v519
      %521 = vst [vmem:[#allocation2 + $0x18] sm:$0x11] %v520
      %v522 = vld [vmem:[#allocation2] sm:$0x11]
      %v523 = vsel %vm515, 0, %v522
      %524 = vst [vmem:[#allocation2] sm:$0x11] %v523
      %v525 = vld [vmem:[#allocation2 + $0x8] sm:$0x11]
      %v526 = vsel %vm515, 0, %v525
      %527 = vst [vmem:[#allocation2 + $0x8] sm:$0x11] %v526
      %v528 = vld [vmem:[#allocation2 + $0x20] sm:$0x11]
      %v529 = vsel %vm515, 0, %v528
      %530 = vst [vmem:[#allocation2 + $0x20] sm:$0x11] %v529
      %v531 = vld [vmem:[#allocation2 + $0x28] sm:$0x11]
      %v532 = vsel %vm515, 0, %v531
      %533 = vst [vmem:[#allocation2 + $0x28] sm:$0x11] %v532
      %v534 = vld [vmem:[#allocation2 + $0x40] sm:$0x11]
      %v535 = vsel %vm515, 0, %v534
      %536 = vst [vmem:[#allocation2 + $0x40] sm:$0x11] %v535
      %v537 = vld [vmem:[#allocation2 + $0x48] sm:$0x11]
      %v538 = vsel %vm515, 0, %v537
      %539 = vst [vmem:[#allocation2 + $0x48] sm:$0x11] %v538
      %v540 = vld [vmem:[#allocation2 + $0x60] sm:$0x11]
      %v541 = vsel %vm515, 0, %v540
      %542 = vst [vmem:[#allocation2 + $0x60] sm:$0x11] %v541
      %v543 = vld [vmem:[#allocation2 + $0x68] sm:$0x11]
      %v544 = vsel %vm515, 0, %v543
      %545 = vst [vmem:[#allocation2 + $0x68] sm:$0x11] %v544
      %v546 = vld [vmem:[#allocation2 + $0x80] sm:$0x11]
      %v547 = vsel %vm515, 0, %v546
      %548 = vst [vmem:[#allocation2 + $0x80] sm:$0x11] %v547
      %v549 = vld [vmem:[#allocation2 + $0x88] sm:$0x11]
      %v550 = vsel %vm515, 0, %v549
      %551 = vst [vmem:[#allocation2 + $0x88] sm:$0x11] %v550
      %v552 = vld [vmem:[#allocation2 + $0xa0] sm:$0x11]
      %v553 = vsel %vm515, 0, %v552
      %554 = vst [vmem:[#allocation2 + $0xa0] sm:$0x11] %v553
      %v555 = vld [vmem:[#allocation2 + $0xa8] sm:$0x11]
      %v556 = vsel %vm515, 0, %v555
      %557 = vst [vmem:[#allocation2 + $0xa8] sm:$0x11] %v556
      %v558 = vld [vmem:[#allocation2 + $0xc0] sm:$0x11]
      %v559 = vsel %vm515, 0, %v558
      %560 = vst [vmem:[#allocation2 + $0xc0] sm:$0x11] %v559
      %v561 = vld [vmem:[#allocation2 + $0xc8] sm:$0x11]
      %v562 = vsel %vm515, 0, %v561
      %563 = vst [vmem:[#allocation2 + $0xc8] sm:$0x11] %v562
      %v564 = vld [vmem:[#allocation2 + $0xe0] sm:$0x11]
      %v565 = vsel %vm515, 0, %v564
      %566 = vst [vmem:[#allocation2 + $0xe0] sm:$0x11] %v565
      %v567 = vld [vmem:[#allocation2 + $0xe8] sm:$0x11]
      %v568 = vsel %vm515, 0, %v567
      %569 = vst [vmem:[#allocation2 + $0xe8] sm:$0x11] %v568
      %v570 = vld [vmem:[#allocation2 + $0x100] sm:$0x11]
      %v571 = vsel %vm515, 0, %v570
      %572 = vst [vmem:[#allocation2 + $0x100] sm:$0x11] %v571
      %v573 = vld [vmem:[#allocation2 + $0x108] sm:$0x11]
      %v574 = vsel %vm515, 0, %v573
      %575 = vst [vmem:[#allocation2 + $0x108] sm:$0x11] %v574
      %v577 = vshrl.u32 %v491, 16
      %v579 = vrot.slane %v577, 7
      %v580 = vshll.u32 %v491, 16
      %v582 = vor.u32 %v579, %v580
      %v584 = vshrl.u32 %v492, 16
      %v586 = vrot.slane %v584, 7
      %v587 = vshll.u32 %v492, 16
      %v589 = vor.u32 %v586, %v587
      %v590 = vrot.slane %v579, 4
      %v591 = vrot.slane %v586, 4
      %v593 = vshrl.u32 %v493, 16
      %v595 = vrot.slane %v593, 7
      %v596 = vshll.u32 %v493, 16
      %v598 = vor.u32 %v595, %v596
      %v600 = vshrl.u32 %v494, 16
      %v602 = vrot.slane %v600, 7
      %v603 = vshll.u32 %v494, 16
      %v605 = vor.u32 %v602, %v603
      %v606 = vrot.slane %v595, 4
      %v607 = vrot.slane %v602, 4
      %v609 = vshrl.u32 %v495, 16
      %v611 = vrot.slane %v609, 7
      %v612 = vshll.u32 %v495, 16
      %v614 = vor.u32 %v611, %v612
      %v616 = vshrl.u32 %v496, 16
      %v618 = vrot.slane %v616, 7
      %v619 = vshll.u32 %v496, 16
      %v621 = vor.u32 %v618, %v619
      %v622 = vrot.slane %v611, 4
      %v623 = vrot.slane %v618, 4
      %v625 = vshrl.u32 %v497, 16
      %v627 = vrot.slane %v625, 7
      %v628 = vshll.u32 %v497, 16
      %v630 = vor.u32 %v627, %v628
      %v632 = vshrl.u32 %v498, 16
      %v634 = vrot.slane %v632, 7
      %v635 = vshll.u32 %v498, 16
      %v637 = vor.u32 %v634, %v635
      %v638 = vrot.slane %v627, 4
      %v639 = vrot.slane %v634, 4
      %v641 = vshrl.u32 %v499, 16
      %v643 = vrot.slane %v641, 7
      %v644 = vshll.u32 %v499, 16
      %v646 = vor.u32 %v643, %v644
      %v648 = vshrl.u32 %v500, 16
      %v650 = vrot.slane %v648, 7
      %v651 = vshll.u32 %v500, 16
      %v653 = vor.u32 %v650, %v651
      %v654 = vrot.slane %v643, 4
      %v655 = vrot.slane %v650, 4
      %v657 = vshrl.u32 %v501, 16
      %v659 = vrot.slane %v657, 7
      %v660 = vshll.u32 %v501, 16
      %v662 = vor.u32 %v659, %v660
      %v664 = vshrl.u32 %v502, 16
      %v666 = vrot.slane %v664, 7
      %v667 = vshll.u32 %v502, 16
      %v669 = vor.u32 %v666, %v667
      %v670 = vrot.slane %v659, 4
      %v671 = vrot.slane %v666, 4
      %v673 = vshrl.u32 %v503, 16
      %v675 = vrot.slane %v673, 7
      %v676 = vshll.u32 %v503, 16
      %v678 = vor.u32 %v675, %v676
      %v680 = vshrl.u32 %v504, 16
      %v682 = vrot.slane %v680, 7
      %v683 = vshll.u32 %v504, 16
      %v685 = vor.u32 %v682, %v683
      %v686 = vrot.slane %v675, 4
      %v687 = vrot.slane %v682, 4
      %v689 = vshrl.u32 %v505, 16
      %v691 = vrot.slane %v689, 7
      %v692 = vshll.u32 %v505, 16
      %v694 = vor.u32 %v691, %v692
      %v696 = vshrl.u32 %v506, 16
      %v698 = vrot.slane %v696, 7
      %v699 = vshll.u32 %v506, 16
      %v701 = vor.u32 %v698, %v699
      %v702 = vrot.slane %v691, 4
      %v703 = vrot.slane %v698, 4
      %s736 = scalar_lea.vmem [#allocation2], 32
      %vm737 = vcmask 1043456
      %vm738 = vsmask.f32 7938
      %vm739 = vmand %vm737, %vm738
      %vm740 = vcmask 1047556
      %vm741 = vsmask.f32 7954
      %vm742 = vmand %vm740, %vm741
      %vm743 = vmor %vm742, %vm739
      %v744 = vld [vmem:[%s736] sm:$0xff]
      %v745 = vsel %vm743, %v582, %v744
      %746 = vst [vmem:[%s736] sm:$0xff] %v745
      %v747 = vld [vmem:[%s736 + $0x8] sm:$0xff]
      %v748 = vsel %vm743, %v589, %v747
      %749 = vst [vmem:[%s736 + $0x8] sm:$0xff] %v748
      %v750 = vld [vmem:[%s736 + $0x10] sm:$0x11]
      %v751 = vsel %vm515, %v590, %v750
      %752 = vst [vmem:[%s736 + $0x10] sm:$0x11] %v751
      %v753 = vld [vmem:[%s736 + $0x18] sm:$0x11]
      %v754 = vsel %vm515, %v591, %v753
      %755 = vst [vmem:[%s736 + $0x18] sm:$0x11] %v754
      %v756 = vld [vmem:[%s736 + $0x20] sm:$0xff]
      %v757 = vsel %vm743, %v598, %v756
      %758 = vst [vmem:[%s736 + $0x20] sm:$0xff] %v757
      %v759 = vld [vmem:[%s736 + $0x28] sm:$0xff]
      %v760 = vsel %vm743, %v605, %v759
      %761 = vst [vmem:[%s736 + $0x28] sm:$0xff] %v760
      %v762 = vld [vmem:[%s736 + $0x30] sm:$0x11]
      %v763 = vsel %vm515, %v606, %v762
      %764 = vst [vmem:[%s736 + $0x30] sm:$0x11] %v763
      %v765 = vld [vmem:[%s736 + $0x38] sm:$0x11]
      %v766 = vsel %vm515, %v607, %v765
      %767 = vst [vmem:[%s736 + $0x38] sm:$0x11] %v766
      %v768 = vld [vmem:[%s736 + $0x40] sm:$0xff]
      %v769 = vsel %vm743, %v614, %v768
      %770 = vst [vmem:[%s736 + $0x40] sm:$0xff] %v769
      %v771 = vld [vmem:[%s736 + $0x48] sm:$0xff]
      %v772 = vsel %vm743, %v621, %v771
      %773 = vst [vmem:[%s736 + $0x48] sm:$0xff] %v772
      %v774 = vld [vmem:[%s736 + $0x50] sm:$0x11]
      %v775 = vsel %vm515, %v622, %v774
      %776 = vst [vmem:[%s736 + $0x50] sm:$0x11] %v775
      %v777 = vld [vmem:[%s736 + $0x58] sm:$0x11]
      %v778 = vsel %vm515, %v623, %v777
      %779 = vst [vmem:[%s736 + $0x58] sm:$0x11] %v778
      %v780 = vld [vmem:[%s736 + $0x60] sm:$0xff]
      %v781 = vsel %vm743, %v630, %v780
      %782 = vst [vmem:[%s736 + $0x60] sm:$0xff] %v781
      %v783 = vld [vmem:[%s736 + $0x68] sm:$0xff]
      %v784 = vsel %vm743, %v637, %v783
      %785 = vst [vmem:[%s736 + $0x68] sm:$0xff] %v784
      %v786 = vld [vmem:[%s736 + $0x70] sm:$0x11]
      %v787 = vsel %vm515, %v638, %v786
      %788 = vst [vmem:[%s736 + $0x70] sm:$0x11] %v787
      %v789 = vld [vmem:[%s736 + $0x78] sm:$0x11]
      %v790 = vsel %vm515, %v639, %v789
      %791 = vst [vmem:[%s736 + $0x78] sm:$0x11] %v790
      %v792 = vld [vmem:[%s736 + $0x80] sm:$0xff]
      %v793 = vsel %vm743, %v646, %v792
      %794 = vst [vmem:[%s736 + $0x80] sm:$0xff] %v793
      %v795 = vld [vmem:[%s736 + $0x88] sm:$0xff]
      %v796 = vsel %vm743, %v653, %v795
      %797 = vst [vmem:[%s736 + $0x88] sm:$0xff] %v796
      %v798 = vld [vmem:[%s736 + $0x90] sm:$0x11]
      %v799 = vsel %vm515, %v654, %v798
      %800 = vst [vmem:[%s736 + $0x90] sm:$0x11] %v799
      %v801 = vld [vmem:[%s736 + $0x98] sm:$0x11]
      %v802 = vsel %vm515, %v655, %v801
      %803 = vst [vmem:[%s736 + $0x98] sm:$0x11] %v802
      %v804 = vld [vmem:[%s736 + $0xa0] sm:$0xff]
      %v805 = vsel %vm743, %v662, %v804
      %806 = vst [vmem:[%s736 + $0xa0] sm:$0xff] %v805
      %v807 = vld [vmem:[%s736 + $0xa8] sm:$0xff]
      %v808 = vsel %vm743, %v669, %v807
      %809 = vst [vmem:[%s736 + $0xa8] sm:$0xff] %v808
      %v810 = vld [vmem:[%s736 + $0xb0] sm:$0x11]
      %v811 = vsel %vm515, %v670, %v810
      %812 = vst [vmem:[%s736 + $0xb0] sm:$0x11] %v811
      %v813 = vld [vmem:[%s736 + $0xb8] sm:$0x11]
      %v814 = vsel %vm515, %v671, %v813
      %815 = vst [vmem:[%s736 + $0xb8] sm:$0x11] %v814
      %v816 = vld [vmem:[%s736 + $0xc0] sm:$0xff]
      %v817 = vsel %vm743, %v678, %v816
      %818 = vst [vmem:[%s736 + $0xc0] sm:$0xff] %v817
      %v819 = vld [vmem:[%s736 + $0xc8] sm:$0xff]
      %v820 = vsel %vm743, %v685, %v819
      %821 = vst [vmem:[%s736 + $0xc8] sm:$0xff] %v820
      %v822 = vld [vmem:[%s736 + $0xd0] sm:$0x11]
      %v823 = vsel %vm515, %v686, %v822
      %824 = vst [vmem:[%s736 + $0xd0] sm:$0x11] %v823
      %v825 = vld [vmem:[%s736 + $0xd8] sm:$0x11]
      %v826 = vsel %vm515, %v687, %v825
      %827 = vst [vmem:[%s736 + $0xd8] sm:$0x11] %v826
      %v828 = vld [vmem:[%s736 + $0xe0] sm:$0xff]
      %v829 = vsel %vm743, %v694, %v828
      %830 = vst [vmem:[%s736 + $0xe0] sm:$0xff] %v829
      %v831 = vld [vmem:[%s736 + $0xe8] sm:$0xff]
      %v832 = vsel %vm743, %v701, %v831
      %833 = vst [vmem:[%s736 + $0xe8] sm:$0xff] %v832
      %v834 = vld [vmem:[%s736 + $0xf0] sm:$0x11]
      %v835 = vsel %vm515, %v702, %v834
      %836 = vst [vmem:[%s736 + $0xf0] sm:$0x11] %v835
      %v837 = vld [vmem:[%s736 + $0xf8] sm:$0x11]
      %v838 = vsel %vm515, %v703, %v837
      %839 = vst [vmem:[%s736 + $0xf8] sm:$0x11] %v838
      %v840 = vld [vmem:[%s4] sm:$0x1]
      %v841 = vld [vmem:[#allocation2 + $0xc] sm:$0xf]
      %v842 = vld [vmem:[#allocation2 + $0x2c] sm:$0xf]
      %v843 = vld [vmem:[#allocation2 + $0x4c] sm:$0xf]
      %v844 = vld [vmem:[#allocation2 + $0x6c] sm:$0xf]
      %v845 = vld [vmem:[#allocation2 + $0x8c] sm:$0xf]
      %v846 = vld [vmem:[#allocation2 + $0xac] sm:$0xf]
      %v847 = vld [vmem:[#allocation2 + $0xcc] sm:$0xf]
      %v848 = vld [vmem:[#allocation2 + $0xec] sm:$0xf]
      %v849 = vld [vmem:[%s3] sm:$0xf]
      %v850 = vld [vmem:[%s3 + $0x4] sm:$0xf]
      %v851 = vld [vmem:[%s3 + $0x8] sm:$0xf]
      %v852 = vld [vmem:[%s3 + $0xc] sm:$0xf]
      %v853 = vld [vmem:[%s3 + $0x10] sm:$0xf]
      %v854 = vld [vmem:[%s3 + $0x14] sm:$0xf]
      %v855 = vld [vmem:[%s3 + $0x18] sm:$0xf]
      %v856 = vld [vmem:[%s3 + $0x1c] sm:$0xf]
      %v857 = vld [vmem:[%s3 + $0x20] sm:$0xf]
      %v858 = vld [vmem:[%s3 + $0x24] sm:$0xf]
      %v859 = vld [vmem:[%s3 + $0x28] sm:$0xf]
      %v860 = vld [vmem:[%s3 + $0x2c] sm:$0xf]
      %v861 = vld [vmem:[%s3 + $0x30] sm:$0xf]
      %v862 = vld [vmem:[%s3 + $0x34] sm:$0xf]
      %v863 = vld [vmem:[%s3 + $0x38] sm:$0xf]
      %v864 = vld [vmem:[%s3 + $0x3c] sm:$0xf]
      %v873 = vunpack.c.l.b16 %v841
      %v874 = vunpack.c.l.b16 %v842
      %v875 = vunpack.c.l.b16 %v843
      %v876 = vunpack.c.l.b16 %v844
      %v877 = vunpack.c.l.b16 %v845
      %v878 = vunpack.c.l.b16 %v846
      %v879 = vunpack.c.l.b16 %v847
      %v880 = vunpack.c.l.b16 %v848
      %v881 = vpack.c.b16 %v874, %v873
      %v882 = vpack.c.b16 %v876, %v875
      %v883 = vpack.c.b16 %v878, %v877
      %v884 = vpack.c.b16 %v880, %v879
      %v905 = vunpack.c.l.b16 %v849
      %v906 = vunpack.c.l.b16 %v850
      %v907 = vunpack.c.l.b16 %v851
      %v908 = vunpack.c.l.b16 %v852
      %v909 = vunpack.c.l.b16 %v853
      %v910 = vunpack.c.l.b16 %v854
      %v911 = vunpack.c.l.b16 %v855
      %v912 = vunpack.c.l.b16 %v856
      %v913 = vunpack.c.l.b16 %v857
      %v914 = vunpack.c.l.b16 %v858
      %v915 = vunpack.c.l.b16 %v859
      %v916 = vunpack.c.l.b16 %v860
      %v917 = vunpack.c.l.b16 %v861
      %v918 = vunpack.c.l.b16 %v862
      %v919 = vunpack.c.l.b16 %v863
      %v920 = vunpack.c.l.b16 %v864
      %v921 = vpack.c.b16 %v906, %v905
      %v922 = vpack.c.b16 %v908, %v907
      %v923 = vpack.c.b16 %v910, %v909
      %v924 = vpack.c.b16 %v912, %v911
      %v925 = vpack.c.b16 %v914, %v913
      %v926 = vpack.c.b16 %v916, %v915
      %v927 = vpack.c.b16 %v918, %v917
      %v928 = vpack.c.b16 %v920, %v919
      %937 = vmatpush.bf16.msra.mxu0 %v928
      %938 = vmatpush.bf16.msra.mxu0 %v927
      %939 = vmatpush.bf16.msra.mxu0 %v926
      %940 = vmatpush.bf16.msra.mxu0 %v925
      %941 = vmatpush.bf16.msra.mxu0 %v924
      %942 = vmatpush.bf16.msra.mxu0 %v923
      %943 = vmatpush.bf16.msra.mxu0 %v922
      %944 = vmatpush.bf16.msra.mxu0 %v921
      %945 = vmatmul.bf16.gmra.mxu0 %v881
      %v946 = vpop.f32.mrf.mxu0
      %v947 = vadd.f32 0.0, %v946
      %v948 = vpop.f32.mrf.mxu0
      %v949 = vadd.f32 0.0, %v948
      %950 = vmatmul.bf16.gmra.mxu0 %v882
      %v951 = vpop.f32.mrf.mxu0
      %v952 = vadd.f32 0.0, %v951
      %v953 = vpop.f32.mrf.mxu0
      %v954 = vadd.f32 0.0, %v953
      %955 = vmatmul.bf16.gmra.mxu0 %v883
      %v956 = vpop.f32.mrf.mxu0
      %v957 = vadd.f32 0.0, %v956
      %v958 = vpop.f32.mrf.mxu0
      %v959 = vadd.f32 0.0, %v958
      %960 = vmatmul.bf16.gmra.mxu0 %v884
      %v961 = vpop.f32.mrf.mxu0
      %v962 = vadd.f32 0.0, %v961
      %v963 = vpop.f32.mrf.mxu0
      %v964 = vadd.f32 0.0, %v963
      %965 = vdwg.mxu0
      %v967 = vperm.slane %v840, 0
      %v969 = vadd.f32 %v967, %v947
      %v970 = vadd.f32 %v967, %v949
      %v971 = vadd.f32 %v967, %v952
      %v972 = vadd.f32 %v967, %v954
      %v973 = vadd.f32 %v967, %v957
      %v974 = vadd.f32 %v967, %v959
      %v975 = vadd.f32 %v967, %v962
      %v976 = vadd.f32 %v967, %v964
      %v977 = vld [vmem:[#allocation2 + $0x8] sm:$0xf]
      %v978 = vld [vmem:[#allocation2 + $0x18] sm:$0x1]
      %v979 = vld [vmem:[#allocation2 + $0x28] sm:$0xf]
      %v980 = vld [vmem:[#allocation2 + $0x38] sm:$0x1]
      %v981 = vld [vmem:[#allocation2 + $0x48] sm:$0xf]
      %v982 = vld [vmem:[#allocation2 + $0x58] sm:$0x1]
      %v983 = vld [vmem:[#allocation2 + $0x68] sm:$0xf]
      %v984 = vld [vmem:[#allocation2 + $0x78] sm:$0x1]
      %v985 = vld [vmem:[#allocation2 + $0x88] sm:$0xf]
      %v986 = vld [vmem:[#allocation2 + $0x98] sm:$0x1]
      %v987 = vld [vmem:[#allocation2 + $0xa8] sm:$0xf]
      %v988 = vld [vmem:[#allocation2 + $0xb8] sm:$0x1]
      %v989 = vld [vmem:[#allocation2 + $0xc8] sm:$0xf]
      %v990 = vld [vmem:[#allocation2 + $0xd8] sm:$0x1]
      %v991 = vld [vmem:[#allocation2 + $0xe8] sm:$0xf]
      %v992 = vld [vmem:[#allocation2 + $0xf8] sm:$0x1]
      %vm993 = vsmask.f32 3328
      %vm994 = vsmask.f32 7440
      %vm995 = vmor %vm993, %vm994
      %v997 = vshrl.u32 %v977, 16
      %v999 = vrot.slane %v997, 4
      %v1000 = vshll.u32 %v977, 16
      %v1002 = vrot.slane %v1000, 5
      %v1003 = vor.u32 %v999, %v1002
      %v1004 = vrot.slane %v1003, 4
      %v1006 = vshll.u32 %v978, 16
      %v1008 = vrot.slane %v1006, 5
      %v1009 = vsel %vm995, %v1004, %v1008
      %v1011 = vshrl.u32 %v979, 16
      %v1013 = vrot.slane %v1011, 4
      %v1014 = vshll.u32 %v979, 16
      %v1016 = vrot.slane %v1014, 5
      %v1017 = vor.u32 %v1013, %v1016
      %v1018 = vrot.slane %v1017, 4
      %v1020 = vshll.u32 %v980, 16
      %v1022 = vrot.slane %v1020, 5
      %v1023 = vsel %vm995, %v1018, %v1022
      %v1025 = vshrl.u32 %v981, 16
      %v1027 = vrot.slane %v1025, 4
      %v1028 = vshll.u32 %v981, 16
      %v1030 = vrot.slane %v1028, 5
      %v1031 = vor.u32 %v1027, %v1030
      %v1032 = vrot.slane %v1031, 4
      %v1034 = vshll.u32 %v982, 16
      %v1036 = vrot.slane %v1034, 5
      %v1037 = vsel %vm995, %v1032, %v1036
      %v1039 = vshrl.u32 %v983, 16
      %v1041 = vrot.slane %v1039, 4
      %v1042 = vshll.u32 %v983, 16
      %v1044 = vrot.slane %v1042, 5
      %v1045 = vor.u32 %v1041, %v1044
      %v1046 = vrot.slane %v1045, 4
      %v1048 = vshll.u32 %v984, 16
      %v1050 = vrot.slane %v1048, 5
      %v1051 = vsel %vm995, %v1046, %v1050
      %v1053 = vshrl.u32 %v985, 16
      %v1055 = vrot.slane %v1053, 4
      %v1056 = vshll.u32 %v985, 16
      %v1058 = vrot.slane %v1056, 5
      %v1059 = vor.u32 %v1055, %v1058
      %v1060 = vrot.slane %v1059, 4
      %v1062 = vshll.u32 %v986, 16
      %v1064 = vrot.slane %v1062, 5
      %v1065 = vsel %vm995, %v1060, %v1064
      %v1067 = vshrl.u32 %v987, 16
      %v1069 = vrot.slane %v1067, 4
      %v1070 = vshll.u32 %v987, 16
      %v1072 = vrot.slane %v1070, 5
      %v1073 = vor.u32 %v1069, %v1072
      %v1074 = vrot.slane %v1073, 4
      %v1076 = vshll.u32 %v988, 16
      %v1078 = vrot.slane %v1076, 5
      %v1079 = vsel %vm995, %v1074, %v1078
      %v1081 = vshrl.u32 %v989, 16
      %v1083 = vrot.slane %v1081, 4
      %v1084 = vshll.u32 %v989, 16
      %v1086 = vrot.slane %v1084, 5
      %v1087 = vor.u32 %v1083, %v1086
      %v1088 = vrot.slane %v1087, 4
      %v1090 = vshll.u32 %v990, 16
      %v1092 = vrot.slane %v1090, 5
      %v1093 = vsel %vm995, %v1088, %v1092
      %v1095 = vshrl.u32 %v991, 16
      %v1097 = vrot.slane %v1095, 4
      %v1098 = vshll.u32 %v991, 16
      %v1100 = vrot.slane %v1098, 5
      %v1101 = vor.u32 %v1097, %v1100
      %v1102 = vrot.slane %v1101, 4
      %v1104 = vshll.u32 %v992, 16
      %v1106 = vrot.slane %v1104, 5
      %v1107 = vsel %vm995, %v1102, %v1106
      %v1108 = vld [vmem:[%s3 + $0x40] sm:$0xf]
      %v1109 = vld [vmem:[%s3 + $0x44] sm:$0xf]
      %v1110 = vld [vmem:[%s3 + $0x48] sm:$0xf]
      %v1111 = vld [vmem:[%s3 + $0x4c] sm:$0xf]
      %v1112 = vld [vmem:[%s3 + $0x50] sm:$0xf]
      %v1113 = vld [vmem:[%s3 + $0x54] sm:$0xf]
      %v1114 = vld [vmem:[%s3 + $0x58] sm:$0xf]
      %v1115 = vld [vmem:[%s3 + $0x5c] sm:$0xf]
      %v1116 = vld [vmem:[%s3 + $0x60] sm:$0xf]
      %v1117 = vld [vmem:[%s3 + $0x64] sm:$0xf]
      %v1118 = vld [vmem:[%s3 + $0x68] sm:$0xf]
      %v1119 = vld [vmem:[%s3 + $0x6c] sm:$0xf]
      %v1120 = vld [vmem:[%s3 + $0x70] sm:$0xf]
      %v1121 = vld [vmem:[%s3 + $0x74] sm:$0xf]
      %v1122 = vld [vmem:[%s3 + $0x78] sm:$0xf]
      %v1123 = vld [vmem:[%s3 + $0x7c] sm:$0xf]
      %v1124 = vunpack.c.l.b16 %v1009
      %v1125 = vunpack.c.l.b16 %v1023
      %v1126 = vunpack.c.l.b16 %v1037
      %v1127 = vunpack.c.l.b16 %v1051
      %v1128 = vunpack.c.l.b16 %v1065
      %v1129 = vunpack.c.l.b16 %v1079
      %v1130 = vunpack.c.l.b16 %v1093
      %v1131 = vunpack.c.l.b16 %v1107
      %v1132 = vpack.c.b16 %v1125, %v1124
      %v1133 = vpack.c.b16 %v1127, %v1126
      %v1134 = vpack.c.b16 %v1129, %v1128
      %v1135 = vpack.c.b16 %v1131, %v1130
      %v1156 = vunpack.c.l.b16 %v1108
      %v1157 = vunpack.c.l.b16 %v1109
      %v1158 = vunpack.c.l.b16 %v1110
      %v1159 = vunpack.c.l.b16 %v1111
      %v1160 = vunpack.c.l.b16 %v1112
      %v1161 = vunpack.c.l.b16 %v1113
      %v1162 = vunpack.c.l.b16 %v1114
      %v1163 = vunpack.c.l.b16 %v1115
      %v1164 = vunpack.c.l.b16 %v1116
      %v1165 = vunpack.c.l.b16 %v1117
      %v1166 = vunpack.c.l.b16 %v1118
      %v1167 = vunpack.c.l.b16 %v1119
      %v1168 = vunpack.c.l.b16 %v1120
      %v1169 = vunpack.c.l.b16 %v1121
      %v1170 = vunpack.c.l.b16 %v1122
      %v1171 = vunpack.c.l.b16 %v1123
      %v1172 = vpack.c.b16 %v1157, %v1156
      %v1173 = vpack.c.b16 %v1159, %v1158
      %v1174 = vpack.c.b16 %v1161, %v1160
      %v1175 = vpack.c.b16 %v1163, %v1162
      %v1176 = vpack.c.b16 %v1165, %v1164
      %v1177 = vpack.c.b16 %v1167, %v1166
      %v1178 = vpack.c.b16 %v1169, %v1168
      %v1179 = vpack.c.b16 %v1171, %v1170
      %1188 = vmatpush.bf16.msra.mxu0 %v1179
      %1189 = vmatpush.bf16.msra.mxu0 %v1178
      %1190 = vmatpush.bf16.msra.mxu0 %v1177
      %1191 = vmatpush.bf16.msra.mxu0 %v1176
      %1192 = vmatpush.bf16.msra.mxu0 %v1175
      %1193 = vmatpush.bf16.msra.mxu0 %v1174
      %1194 = vmatpush.bf16.msra.mxu0 %v1173
      %1195 = vmatpush.bf16.msra.mxu0 %v1172
      %1196 = vmatmul.bf16.gmra.mxu0 %v1132
      %v1197 = vpop.f32.mrf.mxu0
      %v1198 = vadd.f32 0.0, %v1197
      %v1199 = vpop.f32.mrf.mxu0
      %v1200 = vadd.f32 0.0, %v1199
      %1201 = vmatmul.bf16.gmra.mxu0 %v1133
      %v1202 = vpop.f32.mrf.mxu0
      %v1203 = vadd.f32 0.0, %v1202
      %v1204 = vpop.f32.mrf.mxu0
      %v1205 = vadd.f32 0.0, %v1204
      %1206 = vmatmul.bf16.gmra.mxu0 %v1134
      %v1207 = vpop.f32.mrf.mxu0
      %v1208 = vadd.f32 0.0, %v1207
      %v1209 = vpop.f32.mrf.mxu0
      %v1210 = vadd.f32 0.0, %v1209
      %1211 = vmatmul.bf16.gmra.mxu0 %v1135
      %v1212 = vpop.f32.mrf.mxu0
      %v1213 = vadd.f32 0.0, %v1212
      %v1214 = vpop.f32.mrf.mxu0
      %v1215 = vadd.f32 0.0, %v1214
      %1216 = vdwg.mxu0
      %v1217 = vadd.f32 %v969, %v1198
      %v1218 = vadd.f32 %v970, %v1200
      %v1219 = vadd.f32 %v971, %v1203
      %v1220 = vadd.f32 %v972, %v1205
      %v1221 = vadd.f32 %v973, %v1208
      %v1222 = vadd.f32 %v974, %v1210
      %v1223 = vadd.f32 %v975, %v1213
      %v1224 = vadd.f32 %v976, %v1215
      %v1225 = vld [vmem:[#allocation2 + $0xc] sm:$0xf]
      %v1226 = vld [vmem:[#allocation2 + $0x1c] sm:$0x1]
      %v1227 = vld [vmem:[#allocation2 + $0x2c] sm:$0xf]
      %v1228 = vld [vmem:[#allocation2 + $0x3c] sm:$0x1]
      %v1229 = vld [vmem:[#allocation2 + $0x4c] sm:$0xf]
      %v1230 = vld [vmem:[#allocation2 + $0x5c] sm:$0x1]
      %v1231 = vld [vmem:[#allocation2 + $0x6c] sm:$0xf]
      %v1232 = vld [vmem:[#allocation2 + $0x7c] sm:$0x1]
      %v1233 = vld [vmem:[#allocation2 + $0x8c] sm:$0xf]
      %v1234 = vld [vmem:[#allocation2 + $0x9c] sm:$0x1]
      %v1235 = vld [vmem:[#allocation2 + $0xac] sm:$0xf]
      %v1236 = vld [vmem:[#allocation2 + $0xbc] sm:$0x1]
      %v1237 = vld [vmem:[#allocation2 + $0xcc] sm:$0xf]
      %v1238 = vld [vmem:[#allocation2 + $0xdc] sm:$0x1]
      %v1239 = vld [vmem:[#allocation2 + $0xec] sm:$0xf]
      %v1240 = vld [vmem:[#allocation2 + $0xfc] sm:$0x1]
      %v1242 = vshrl.u32 %v1225, 16
      %v1244 = vrot.slane %v1242, 4
      %v1245 = vshll.u32 %v1225, 16
      %v1247 = vrot.slane %v1245, 5
      %v1248 = vor.u32 %v1244, %v1247
      %v1249 = vrot.slane %v1248, 4
      %v1251 = vshll.u32 %v1226, 16
      %v1253 = vrot.slane %v1251, 5
      %v1254 = vsel %vm995, %v1249, %v1253
      %v1256 = vshrl.u32 %v1227, 16
      %v1258 = vrot.slane %v1256, 4
      %v1259 = vshll.u32 %v1227, 16
      %v1261 = vrot.slane %v1259, 5
      %v1262 = vor.u32 %v1258, %v1261
      %v1263 = vrot.slane %v1262, 4
      %v1265 = vshll.u32 %v1228, 16
      %v1267 = vrot.slane %v1265, 5
      %v1268 = vsel %vm995, %v1263, %v1267
      %v1270 = vshrl.u32 %v1229, 16
      %v1272 = vrot.slane %v1270, 4
      %v1273 = vshll.u32 %v1229, 16
      %v1275 = vrot.slane %v1273, 5
      %v1276 = vor.u32 %v1272, %v1275
      %v1277 = vrot.slane %v1276, 4
      %v1279 = vshll.u32 %v1230, 16
      %v1281 = vrot.slane %v1279, 5
      %v1282 = vsel %vm995, %v1277, %v1281
      %v1284 = vshrl.u32 %v1231, 16
      %v1286 = vrot.slane %v1284, 4
      %v1287 = vshll.u32 %v1231, 16
      %v1289 = vrot.slane %v1287, 5
      %v1290 = vor.u32 %v1286, %v1289
      %v1291 = vrot.slane %v1290, 4
      %v1293 = vshll.u32 %v1232, 16
      %v1295 = vrot.slane %v1293, 5
      %v1296 = vsel %vm995, %v1291, %v1295
      %v1298 = vshrl.u32 %v1233, 16
      %v1300 = vrot.slane %v1298, 4
      %v1301 = vshll.u32 %v1233, 16
      %v1303 = vrot.slane %v1301, 5
      %v1304 = vor.u32 %v1300, %v1303
      %v1305 = vrot.slane %v1304, 4
      %v1307 = vshll.u32 %v1234, 16
      %v1309 = vrot.slane %v1307, 5
      %v1310 = vsel %vm995, %v1305, %v1309
      %v1312 = vshrl.u32 %v1235, 16
      %v1314 = vrot.slane %v1312, 4
      %v1315 = vshll.u32 %v1235, 16
      %v1317 = vrot.slane %v1315, 5
      %v1318 = vor.u32 %v1314, %v1317
      %v1319 = vrot.slane %v1318, 4
      %v1321 = vshll.u32 %v1236, 16
      %v1323 = vrot.slane %v1321, 5
      %v1324 = vsel %vm995, %v1319, %v1323
      %v1326 = vshrl.u32 %v1237, 16
      %v1328 = vrot.slane %v1326, 4
      %v1329 = vshll.u32 %v1237, 16
      %v1331 = vrot.slane %v1329, 5
      %v1332 = vor.u32 %v1328, %v1331
      %v1333 = vrot.slane %v1332, 4
      %v1335 = vshll.u32 %v1238, 16
      %v1337 = vrot.slane %v1335, 5
      %v1338 = vsel %vm995, %v1333, %v1337
      %v1340 = vshrl.u32 %v1239, 16
      %v1342 = vrot.slane %v1340, 4
      %v1343 = vshll.u32 %v1239, 16
      %v1345 = vrot.slane %v1343, 5
      %v1346 = vor.u32 %v1342, %v1345
      %v1347 = vrot.slane %v1346, 4
      %v1349 = vshll.u32 %v1240, 16
      %v1351 = vrot.slane %v1349, 5
      %v1352 = vsel %vm995, %v1347, %v1351
      %v1353 = vld [vmem:[%s3 + $0x80] sm:$0xf]
      %v1354 = vld [vmem:[%s3 + $0x84] sm:$0xf]
      %v1355 = vld [vmem:[%s3 + $0x88] sm:$0xf]
      %v1356 = vld [vmem:[%s3 + $0x8c] sm:$0xf]
      %v1357 = vld [vmem:[%s3 + $0x90] sm:$0xf]
      %v1358 = vld [vmem:[%s3 + $0x94] sm:$0xf]
      %v1359 = vld [vmem:[%s3 + $0x98] sm:$0xf]
      %v1360 = vld [vmem:[%s3 + $0x9c] sm:$0xf]
      %v1361 = vld [vmem:[%s3 + $0xa0] sm:$0xf]
      %v1362 = vld [vmem:[%s3 + $0xa4] sm:$0xf]
      %v1363 = vld [vmem:[%s3 + $0xa8] sm:$0xf]
      %v1364 = vld [vmem:[%s3 + $0xac] sm:$0xf]
      %v1365 = vld [vmem:[%s3 + $0xb0] sm:$0xf]
      %v1366 = vld [vmem:[%s3 + $0xb4] sm:$0xf]
      %v1367 = vld [vmem:[%s3 + $0xb8] sm:$0xf]
      %v1368 = vld [vmem:[%s3 + $0xbc] sm:$0xf]
      %v1369 = vunpack.c.l.b16 %v1254
      %v1370 = vunpack.c.l.b16 %v1268
      %v1371 = vunpack.c.l.b16 %v1282
      %v1372 = vunpack.c.l.b16 %v1296
      %v1373 = vunpack.c.l.b16 %v1310
      %v1374 = vunpack.c.l.b16 %v1324
      %v1375 = vunpack.c.l.b16 %v1338
      %v1376 = vunpack.c.l.b16 %v1352
      %v1377 = vpack.c.b16 %v1370, %v1369
      %v1378 = vpack.c.b16 %v1372, %v1371
      %v1379 = vpack.c.b16 %v1374, %v1373
      %v1380 = vpack.c.b16 %v1376, %v1375
      %v1401 = vunpack.c.l.b16 %v1353
      %v1402 = vunpack.c.l.b16 %v1354
      %v1403 = vunpack.c.l.b16 %v1355
      %v1404 = vunpack.c.l.b16 %v1356
      %v1405 = vunpack.c.l.b16 %v1357
      %v1406 = vunpack.c.l.b16 %v1358
      %v1407 = vunpack.c.l.b16 %v1359
      %v1408 = vunpack.c.l.b16 %v1360
      %v1409 = vunpack.c.l.b16 %v1361
      %v1410 = vunpack.c.l.b16 %v1362
      %v1411 = vunpack.c.l.b16 %v1363
      %v1412 = vunpack.c.l.b16 %v1364
      %v1413 = vunpack.c.l.b16 %v1365
      %v1414 = vunpack.c.l.b16 %v1366
      %v1415 = vunpack.c.l.b16 %v1367
      %v1416 = vunpack.c.l.b16 %v1368
      %v1417 = vpack.c.b16 %v1402, %v1401
      %v1418 = vpack.c.b16 %v1404, %v1403
      %v1419 = vpack.c.b16 %v1406, %v1405
      %v1420 = vpack.c.b16 %v1408, %v1407
      %v1421 = vpack.c.b16 %v1410, %v1409
      %v1422 = vpack.c.b16 %v1412, %v1411
      %v1423 = vpack.c.b16 %v1414, %v1413
      %v1424 = vpack.c.b16 %v1416, %v1415
      %1433 = vmatpush.bf16.msra.mxu0 %v1424
      %1434 = vmatpush.bf16.msra.mxu0 %v1423
      %1435 = vmatpush.bf16.msra.mxu0 %v1422
      %1436 = vmatpush.bf16.msra.mxu0 %v1421
      %1437 = vmatpush.bf16.msra.mxu0 %v1420
      %1438 = vmatpush.bf16.msra.mxu0 %v1419
      %1439 = vmatpush.bf16.msra.mxu0 %v1418
      %1440 = vmatpush.bf16.msra.mxu0 %v1417
      %1441 = vmatmul.bf16.gmra.mxu0 %v1377
      %v1442 = vpop.f32.mrf.mxu0
      %v1443 = vadd.f32 0.0, %v1442
      %v1444 = vpop.f32.mrf.mxu0
      %v1445 = vadd.f32 0.0, %v1444
      %1446 = vmatmul.bf16.gmra.mxu0 %v1378
      %v1447 = vpop.f32.mrf.mxu0
      %v1448 = vadd.f32 0.0, %v1447
      %v1449 = vpop.f32.mrf.mxu0
      %v1450 = vadd.f32 0.0, %v1449
      %1451 = vmatmul.bf16.gmra.mxu0 %v1379
      %v1452 = vpop.f32.mrf.mxu0
      %v1453 = vadd.f32 0.0, %v1452
      %v1454 = vpop.f32.mrf.mxu0
      %v1455 = vadd.f32 0.0, %v1454
      %1456 = vmatmul.bf16.gmra.mxu0 %v1380
      %v1457 = vpop.f32.mrf.mxu0
      %v1458 = vadd.f32 0.0, %v1457
      %v1459 = vpop.f32.mrf.mxu0
      %v1460 = vadd.f32 0.0, %v1459
      %1461 = vdwg.mxu0
      %v1462 = vadd.f32 %v1217, %v1443
      %v1463 = vadd.f32 %v1218, %v1445
      %v1464 = vadd.f32 %v1219, %v1448
      %v1465 = vadd.f32 %v1220, %v1450
      %v1466 = vadd.f32 %v1221, %v1453
      %v1467 = vadd.f32 %v1222, %v1455
      %v1468 = vadd.f32 %v1223, %v1458
      %v1469 = vadd.f32 %v1224, %v1460
      %v1470 = vld [vmem:[%s736 + $0x4] sm:$0xf]
      %v1471 = vld [vmem:[%s736 + $0x24] sm:$0xf]
      %v1472 = vld [vmem:[%s736 + $0x44] sm:$0xf]
      %v1473 = vld [vmem:[%s736 + $0x64] sm:$0xf]
      %v1474 = vld [vmem:[%s736 + $0x84] sm:$0xf]
      %v1475 = vld [vmem:[%s736 + $0xa4] sm:$0xf]
      %v1476 = vld [vmem:[%s736 + $0xc4] sm:$0xf]
      %v1477 = vld [vmem:[%s736 + $0xe4] sm:$0xf]
      %v1478 = vld [vmem:[%s3 + $0xc0] sm:$0xf]
      %v1479 = vld [vmem:[%s3 + $0xc4] sm:$0xf]
      %v1480 = vld [vmem:[%s3 + $0xc8] sm:$0xf]
      %v1481 = vld [vmem:[%s3 + $0xcc] sm:$0xf]
      %v1482 = vld [vmem:[%s3 + $0xd0] sm:$0xf]
      %v1483 = vld [vmem:[%s3 + $0xd4] sm:$0xf]
      %v1484 = vld [vmem:[%s3 + $0xd8] sm:$0xf]
      %v1485 = vld [vmem:[%s3 + $0xdc] sm:$0xf]
      %v1486 = vld [vmem:[%s3 + $0xe0] sm:$0xf]
      %v1487 = vld [vmem:[%s3 + $0xe4] sm:$0xf]
      %v1488 = vld [vmem:[%s3 + $0xe8] sm:$0xf]
      %v1489 = vld [vmem:[%s3 + $0xec] sm:$0xf]
      %v1490 = vld [vmem:[%s3 + $0xf0] sm:$0xf]
      %v1491 = vld [vmem:[%s3 + $0xf4] sm:$0xf]
      %v1492 = vld [vmem:[%s3 + $0xf8] sm:$0xf]
      %v1493 = vld [vmem:[%s3 + $0xfc] sm:$0xf]
      %v1502 = vunpack.c.l.b16 %v1470
      %v1503 = vunpack.c.l.b16 %v1471
      %v1504 = vunpack.c.l.b16 %v1472
      %v1505 = vunpack.c.l.b16 %v1473
      %v1506 = vunpack.c.l.b16 %v1474
      %v1507 = vunpack.c.l.b16 %v1475
      %v1508 = vunpack.c.l.b16 %v1476
      %v1509 = vunpack.c.l.b16 %v1477
      %v1510 = vpack.c.b16 %v1503, %v1502
      %v1511 = vpack.c.b16 %v1505, %v1504
      %v1512 = vpack.c.b16 %v1507, %v1506
      %v1513 = vpack.c.b16 %v1509, %v1508
      %v1534 = vunpack.c.l.b16 %v1478
      %v1535 = vunpack.c.l.b16 %v1479
      %v1536 = vunpack.c.l.b16 %v1480
      %v1537 = vunpack.c.l.b16 %v1481
      %v1538 = vunpack.c.l.b16 %v1482
      %v1539 = vunpack.c.l.b16 %v1483
      %v1540 = vunpack.c.l.b16 %v1484
      %v1541 = vunpack.c.l.b16 %v1485
      %v1542 = vunpack.c.l.b16 %v1486
      %v1543 = vunpack.c.l.b16 %v1487
      %v1544 = vunpack.c.l.b16 %v1488
      %v1545 = vunpack.c.l.b16 %v1489
      %v1546 = vunpack.c.l.b16 %v1490
      %v1547 = vunpack.c.l.b16 %v1491
      %v1548 = vunpack.c.l.b16 %v1492
      %v1549 = vunpack.c.l.b16 %v1493
      %v1550 = vpack.c.b16 %v1535, %v1534
      %v1551 = vpack.c.b16 %v1537, %v1536
      %v1552 = vpack.c.b16 %v1539, %v1538
      %v1553 = vpack.c.b16 %v1541, %v1540
      %v1554 = vpack.c.b16 %v1543, %v1542
      %v1555 = vpack.c.b16 %v1545, %v1544
      %v1556 = vpack.c.b16 %v1547, %v1546
      %v1557 = vpack.c.b16 %v1549, %v1548
      %1566 = vmatpush.bf16.msra.mxu0 %v1557
      %1567 = vmatpush.bf16.msra.mxu0 %v1556
      %1568 = vmatpush.bf16.msra.mxu0 %v1555
      %1569 = vmatpush.bf16.msra.mxu0 %v1554
      %1570 = vmatpush.bf16.msra.mxu0 %v1553
      %1571 = vmatpush.bf16.msra.mxu0 %v1552
      %1572 = vmatpush.bf16.msra.mxu0 %v1551
      %1573 = vmatpush.bf16.msra.mxu0 %v1550
      %1574 = vmatmul.bf16.gmra.mxu0 %v1510
      %v1575 = vpop.f32.mrf.mxu0
      %v1576 = vadd.f32 0.0, %v1575
      %v1577 = vpop.f32.mrf.mxu0
      %v1578 = vadd.f32 0.0, %v1577
      %1579 = vmatmul.bf16.gmra.mxu0 %v1511
      %v1580 = vpop.f32.mrf.mxu0
      %v1581 = vadd.f32 0.0, %v1580
      %v1582 = vpop.f32.mrf.mxu0
      %v1583 = vadd.f32 0.0, %v1582
      %1584 = vmatmul.bf16.gmra.mxu0 %v1512
      %v1585 = vpop.f32.mrf.mxu0
      %v1586 = vadd.f32 0.0, %v1585
      %v1587 = vpop.f32.mrf.mxu0
      %v1588 = vadd.f32 0.0, %v1587
      %1589 = vmatmul.bf16.gmra.mxu0 %v1513
      %v1590 = vpop.f32.mrf.mxu0
      %v1591 = vadd.f32 0.0, %v1590
      %v1592 = vpop.f32.mrf.mxu0
      %v1593 = vadd.f32 0.0, %v1592
      %1594 = vdwg.mxu0
      %v1595 = vadd.f32 %v1462, %v1576
      %v1596 = vadd.f32 %v1463, %v1578
      %v1597 = vadd.f32 %v1464, %v1581
      %v1598 = vadd.f32 %v1465, %v1583
      %v1599 = vadd.f32 %v1466, %v1586
      %v1600 = vadd.f32 %v1467, %v1588
      %v1601 = vadd.f32 %v1468, %v1591
      %v1602 = vadd.f32 %v1469, %v1593
      %v1603 = vld [vmem:[%s736] sm:$0xf]
      %v1604 = vld [vmem:[%s736 + $0x10] sm:$0x1]
      %v1605 = vld [vmem:[%s736 + $0x20] sm:$0xf]
      %v1606 = vld [vmem:[%s736 + $0x30] sm:$0x1]
      %v1607 = vld [vmem:[%s736 + $0x40] sm:$0xf]
      %v1608 = vld [vmem:[%s736 + $0x50] sm:$0x1]
      %v1609 = vld [vmem:[%s736 + $0x60] sm:$0xf]
      %v1610 = vld [vmem:[%s736 + $0x70] sm:$0x1]
      %v1611 = vld [vmem:[%s736 + $0x80] sm:$0xf]
      %v1612 = vld [vmem:[%s736 + $0x90] sm:$0x1]
      %v1613 = vld [vmem:[%s736 + $0xa0] sm:$0xf]
      %v1614 = vld [vmem:[%s736 + $0xb0] sm:$0x1]
      %v1615 = vld [vmem:[%s736 + $0xc0] sm:$0xf]
      %v1616 = vld [vmem:[%s736 + $0xd0] sm:$0x1]
      %v1617 = vld [vmem:[%s736 + $0xe0] sm:$0xf]
      %v1618 = vld [vmem:[%s736 + $0xf0] sm:$0x1]
      %v1620 = vshrl.u32 %v1603, 16
      %v1622 = vrot.slane %v1620, 4
      %v1623 = vshll.u32 %v1603, 16
      %v1625 = vrot.slane %v1623, 5
      %v1626 = vor.u32 %v1622, %v1625
      %v1627 = vrot.slane %v1626, 4
      %v1629 = vshll.u32 %v1604, 16
      %v1631 = vrot.slane %v1629, 5
      %v1632 = vsel %vm995, %v1627, %v1631
      %v1634 = vshrl.u32 %v1605, 16
      %v1636 = vrot.slane %v1634, 4
      %v1637 = vshll.u32 %v1605, 16
      %v1639 = vrot.slane %v1637, 5
      %v1640 = vor.u32 %v1636, %v1639
      %v1641 = vrot.slane %v1640, 4
      %v1643 = vshll.u32 %v1606, 16
      %v1645 = vrot.slane %v1643, 5
      %v1646 = vsel %vm995, %v1641, %v1645
      %v1648 = vshrl.u32 %v1607, 16
      %v1650 = vrot.slane %v1648, 4
      %v1651 = vshll.u32 %v1607, 16
      %v1653 = vrot.slane %v1651, 5
      %v1654 = vor.u32 %v1650, %v1653
      %v1655 = vrot.slane %v1654, 4
      %v1657 = vshll.u32 %v1608, 16
      %v1659 = vrot.slane %v1657, 5
      %v1660 = vsel %vm995, %v1655, %v1659
      %v1662 = vshrl.u32 %v1609, 16
      %v1664 = vrot.slane %v1662, 4
      %v1665 = vshll.u32 %v1609, 16
      %v1667 = vrot.slane %v1665, 5
      %v1668 = vor.u32 %v1664, %v1667
      %v1669 = vrot.slane %v1668, 4
      %v1671 = vshll.u32 %v1610, 16
      %v1673 = vrot.slane %v1671, 5
      %v1674 = vsel %vm995, %v1669, %v1673
      %v1676 = vshrl.u32 %v1611, 16
      %v1678 = vrot.slane %v1676, 4
      %v1679 = vshll.u32 %v1611, 16
      %v1681 = vrot.slane %v1679, 5
      %v1682 = vor.u32 %v1678, %v1681
      %v1683 = vrot.slane %v1682, 4
      %v1685 = vshll.u32 %v1612, 16
      %v1687 = vrot.slane %v1685, 5
      %v1688 = vsel %vm995, %v1683, %v1687
      %v1690 = vshrl.u32 %v1613, 16
      %v1692 = vrot.slane %v1690, 4
      %v1693 = vshll.u32 %v1613, 16
      %v1695 = vrot.slane %v1693, 5
      %v1696 = vor.u32 %v1692, %v1695
      %v1697 = vrot.slane %v1696, 4
      %v1699 = vshll.u32 %v1614, 16
      %v1701 = vrot.slane %v1699, 5
      %v1702 = vsel %vm995, %v1697, %v1701
      %v1704 = vshrl.u32 %v1615, 16
      %v1706 = vrot.slane %v1704, 4
      %v1707 = vshll.u32 %v1615, 16
      %v1709 = vrot.slane %v1707, 5
      %v1710 = vor.u32 %v1706, %v1709
      %v1711 = vrot.slane %v1710, 4
      %v1713 = vshll.u32 %v1616, 16
      %v1715 = vrot.slane %v1713, 5
      %v1716 = vsel %vm995, %v1711, %v1715
      %v1718 = vshrl.u32 %v1617, 16
      %v1720 = vrot.slane %v1718, 4
      %v1721 = vshll.u32 %v1617, 16
      %v1723 = vrot.slane %v1721, 5
      %v1724 = vor.u32 %v1720, %v1723
      %v1725 = vrot.slane %v1724, 4
      %v1727 = vshll.u32 %v1618, 16
      %v1729 = vrot.slane %v1727, 5
      %v1730 = vsel %vm995, %v1725, %v1729
      %v1731 = vld [vmem:[%s3 + $0x100] sm:$0xf]
      %v1732 = vld [vmem:[%s3 + $0x104] sm:$0xf]
      %v1733 = vld [vmem:[%s3 + $0x108] sm:$0xf]
      %v1734 = vld [vmem:[%s3 + $0x10c] sm:$0xf]
      %v1735 = vld [vmem:[%s3 + $0x110] sm:$0xf]
      %v1736 = vld [vmem:[%s3 + $0x114] sm:$0xf]
      %v1737 = vld [vmem:[%s3 + $0x118] sm:$0xf]
      %v1738 = vld [vmem:[%s3 + $0x11c] sm:$0xf]
      %v1739 = vld [vmem:[%s3 + $0x120] sm:$0xf]
      %v1740 = vld [vmem:[%s3 + $0x124] sm:$0xf]
      %v1741 = vld [vmem:[%s3 + $0x128] sm:$0xf]
      %v1742 = vld [vmem:[%s3 + $0x12c] sm:$0xf]
      %v1743 = vld [vmem:[%s3 + $0x130] sm:$0xf]
      %v1744 = vld [vmem:[%s3 + $0x134] sm:$0xf]
      %v1745 = vld [vmem:[%s3 + $0x138] sm:$0xf]
      %v1746 = vld [vmem:[%s3 + $0x13c] sm:$0xf]
      %v1747 = vunpack.c.l.b16 %v1632
      %v1748 = vunpack.c.l.b16 %v1646
      %v1749 = vunpack.c.l.b16 %v1660
      %v1750 = vunpack.c.l.b16 %v1674
      %v1751 = vunpack.c.l.b16 %v1688
      %v1752 = vunpack.c.l.b16 %v1702
      %v1753 = vunpack.c.l.b16 %v1716
      %v1754 = vunpack.c.l.b16 %v1730
      %v1755 = vpack.c.b16 %v1748, %v1747
      %v1756 = vpack.c.b16 %v1750, %v1749
      %v1757 = vpack.c.b16 %v1752, %v1751
      %v1758 = vpack.c.b16 %v1754, %v1753
      %v1779 = vunpack.c.l.b16 %v1731
      %v1780 = vunpack.c.l.b16 %v1732
      %v1781 = vunpack.c.l.b16 %v1733
      %v1782 = vunpack.c.l.b16 %v1734
      %v1783 = vunpack.c.l.b16 %v1735
      %v1784 = vunpack.c.l.b16 %v1736
      %v1785 = vunpack.c.l.b16 %v1737
      %v1786 = vunpack.c.l.b16 %v1738
      %v1787 = vunpack.c.l.b16 %v1739
      %v1788 = vunpack.c.l.b16 %v1740
      %v1789 = vunpack.c.l.b16 %v1741
      %v1790 = vunpack.c.l.b16 %v1742
      %v1791 = vunpack.c.l.b16 %v1743
      %v1792 = vunpack.c.l.b16 %v1744
      %v1793 = vunpack.c.l.b16 %v1745
      %v1794 = vunpack.c.l.b16 %v1746
      %v1795 = vpack.c.b16 %v1780, %v1779
      %v1796 = vpack.c.b16 %v1782, %v1781
      %v1797 = vpack.c.b16 %v1784, %v1783
      %v1798 = vpack.c.b16 %v1786, %v1785
      %v1799 = vpack.c.b16 %v1788, %v1787
      %v1800 = vpack.c.b16 %v1790, %v1789
      %v1801 = vpack.c.b16 %v1792, %v1791
      %v1802 = vpack.c.b16 %v1794, %v1793
      %1811 = vmatpush.bf16.msra.mxu0 %v1802
      %1812 = vmatpush.bf16.msra.mxu0 %v1801
      %1813 = vmatpush.bf16.msra.mxu0 %v1800
      %1814 = vmatpush.bf16.msra.mxu0 %v1799
      %1815 = vmatpush.bf16.msra.mxu0 %v1798
      %1816 = vmatpush.bf16.msra.mxu0 %v1797
      %1817 = vmatpush.bf16.msra.mxu0 %v1796
      %1818 = vmatpush.bf16.msra.mxu0 %v1795
      %1819 = vmatmul.bf16.gmra.mxu0 %v1755
      %v1820 = vpop.f32.mrf.mxu0
      %v1821 = vadd.f32 0.0, %v1820
      %v1822 = vpop.f32.mrf.mxu0
      %v1823 = vadd.f32 0.0, %v1822
      %1824 = vmatmul.bf16.gmra.mxu0 %v1756
      %v1825 = vpop.f32.mrf.mxu0
      %v1826 = vadd.f32 0.0, %v1825
      %v1827 = vpop.f32.mrf.mxu0
      %v1828 = vadd.f32 0.0, %v1827
      %1829 = vmatmul.bf16.gmra.mxu0 %v1757
      %v1830 = vpop.f32.mrf.mxu0
      %v1831 = vadd.f32 0.0, %v1830
      %v1832 = vpop.f32.mrf.mxu0
      %v1833 = vadd.f32 0.0, %v1832
      %1834 = vmatmul.bf16.gmra.mxu0 %v1758
      %v1835 = vpop.f32.mrf.mxu0
      %v1836 = vadd.f32 0.0, %v1835
      %v1837 = vpop.f32.mrf.mxu0
      %v1838 = vadd.f32 0.0, %v1837
      %1839 = vdwg.mxu0
      %v1840 = vadd.f32 %v1595, %v1821
      %v1841 = vadd.f32 %v1596, %v1823
      %v1842 = vadd.f32 %v1597, %v1826
      %v1843 = vadd.f32 %v1598, %v1828
      %v1844 = vadd.f32 %v1599, %v1831
      %v1845 = vadd.f32 %v1600, %v1833
      %v1846 = vadd.f32 %v1601, %v1836
      %v1847 = vadd.f32 %v1602, %v1838
      %v1848 = vld [vmem:[%s736 + $0x4] sm:$0xf]
      %v1849 = vld [vmem:[%s736 + $0x14] sm:$0x1]
      %v1850 = vld [vmem:[%s736 + $0x24] sm:$0xf]
      %v1851 = vld [vmem:[%s736 + $0x34] sm:$0x1]
      %v1852 = vld [vmem:[%s736 + $0x44] sm:$0xf]
      %v1853 = vld [vmem:[%s736 + $0x54] sm:$0x1]
      %v1854 = vld [vmem:[%s736 + $0x64] sm:$0xf]
      %v1855 = vld [vmem:[%s736 + $0x74] sm:$0x1]
      %v1856 = vld [vmem:[%s736 + $0x84] sm:$0xf]
      %v1857 = vld [vmem:[%s736 + $0x94] sm:$0x1]
      %v1858 = vld [vmem:[%s736 + $0xa4] sm:$0xf]
      %v1859 = vld [vmem:[%s736 + $0xb4] sm:$0x1]
      %v1860 = vld [vmem:[%s736 + $0xc4] sm:$0xf]
      %v1861 = vld [vmem:[%s736 + $0xd4] sm:$0x1]
      %v1862 = vld [vmem:[%s736 + $0xe4] sm:$0xf]
      %v1863 = vld [vmem:[%s736 + $0xf4] sm:$0x1]
      %v1865 = vshrl.u32 %v1848, 16
      %v1867 = vrot.slane %v1865, 4
      %v1868 = vshll.u32 %v1848, 16
      %v1870 = vrot.slane %v1868, 5
      %v1871 = vor.u32 %v1867, %v1870
      %v1872 = vrot.slane %v1871, 4
      %v1874 = vshll.u32 %v1849, 16
      %v1876 = vrot.slane %v1874, 5
      %v1877 = vsel %vm995, %v1872, %v1876
      %v1879 = vshrl.u32 %v1850, 16
      %v1881 = vrot.slane %v1879, 4
      %v1882 = vshll.u32 %v1850, 16
      %v1884 = vrot.slane %v1882, 5
      %v1885 = vor.u32 %v1881, %v1884
      %v1886 = vrot.slane %v1885, 4
      %v1888 = vshll.u32 %v1851, 16
      %v1890 = vrot.slane %v1888, 5
      %v1891 = vsel %vm995, %v1886, %v1890
      %v1893 = vshrl.u32 %v1852, 16
      %v1895 = vrot.slane %v1893, 4
      %v1896 = vshll.u32 %v1852, 16
      %v1898 = vrot.slane %v1896, 5
      %v1899 = vor.u32 %v1895, %v1898
      %v1900 = vrot.slane %v1899, 4
      %v1902 = vshll.u32 %v1853, 16
      %v1904 = vrot.slane %v1902, 5
      %v1905 = vsel %vm995, %v1900, %v1904
      %v1907 = vshrl.u32 %v1854, 16
      %v1909 = vrot.slane %v1907, 4
      %v1910 = vshll.u32 %v1854, 16
      %v1912 = vrot.slane %v1910, 5
      %v1913 = vor.u32 %v1909, %v1912
      %v1914 = vrot.slane %v1913, 4
      %v1916 = vshll.u32 %v1855, 16
      %v1918 = vrot.slane %v1916, 5
      %v1919 = vsel %vm995, %v1914, %v1918
      %v1921 = vshrl.u32 %v1856, 16
      %v1923 = vrot.slane %v1921, 4
      %v1924 = vshll.u32 %v1856, 16
      %v1926 = vrot.slane %v1924, 5
      %v1927 = vor.u32 %v1923, %v1926
      %v1928 = vrot.slane %v1927, 4
      %v1930 = vshll.u32 %v1857, 16
      %v1932 = vrot.slane %v1930, 5
      %v1933 = vsel %vm995, %v1928, %v1932
      %v1935 = vshrl.u32 %v1858, 16
      %v1937 = vrot.slane %v1935, 4
      %v1938 = vshll.u32 %v1858, 16
      %v1940 = vrot.slane %v1938, 5
      %v1941 = vor.u32 %v1937, %v1940
      %v1942 = vrot.slane %v1941, 4
      %v1944 = vshll.u32 %v1859, 16
      %v1946 = vrot.slane %v1944, 5
      %v1947 = vsel %vm995, %v1942, %v1946
      %v1949 = vshrl.u32 %v1860, 16
      %v1951 = vrot.slane %v1949, 4
      %v1952 = vshll.u32 %v1860, 16
      %v1954 = vrot.slane %v1952, 5
      %v1955 = vor.u32 %v1951, %v1954
      %v1956 = vrot.slane %v1955, 4
      %v1958 = vshll.u32 %v1861, 16
      %v1960 = vrot.slane %v1958, 5
      %v1961 = vsel %vm995, %v1956, %v1960
      %v1963 = vshrl.u32 %v1862, 16
      %v1965 = vrot.slane %v1963, 4
      %v1966 = vshll.u32 %v1862, 16
      %v1968 = vrot.slane %v1966, 5
      %v1969 = vor.u32 %v1965, %v1968
      %v1970 = vrot.slane %v1969, 4
      %v1972 = vshll.u32 %v1863, 16
      %v1974 = vrot.slane %v1972, 5
      %v1975 = vsel %vm995, %v1970, %v1974
      %v1976 = vld [vmem:[%s3 + $0x140] sm:$0xf]
      %v1977 = vld [vmem:[%s3 + $0x144] sm:$0xf]
      %v1978 = vld [vmem:[%s3 + $0x148] sm:$0xf]
      %v1979 = vld [vmem:[%s3 + $0x14c] sm:$0xf]
      %v1980 = vld [vmem:[%s3 + $0x150] sm:$0xf]
      %v1981 = vld [vmem:[%s3 + $0x154] sm:$0xf]
      %v1982 = vld [vmem:[%s3 + $0x158] sm:$0xf]
      %v1983 = vld [vmem:[%s3 + $0x15c] sm:$0xf]
      %v1984 = vld [vmem:[%s3 + $0x160] sm:$0xf]
      %v1985 = vld [vmem:[%s3 + $0x164] sm:$0xf]
      %v1986 = vld [vmem:[%s3 + $0x168] sm:$0xf]
      %v1987 = vld [vmem:[%s3 + $0x16c] sm:$0xf]
      %v1988 = vld [vmem:[%s3 + $0x170] sm:$0xf]
      %v1989 = vld [vmem:[%s3 + $0x174] sm:$0xf]
      %v1990 = vld [vmem:[%s3 + $0x178] sm:$0xf]
      %v1991 = vld [vmem:[%s3 + $0x17c] sm:$0xf]
      %v1992 = vunpack.c.l.b16 %v1877
      %v1993 = vunpack.c.l.b16 %v1891
      %v1994 = vunpack.c.l.b16 %v1905
      %v1995 = vunpack.c.l.b16 %v1919
      %v1996 = vunpack.c.l.b16 %v1933
      %v1997 = vunpack.c.l.b16 %v1947
      %v1998 = vunpack.c.l.b16 %v1961
      %v1999 = vunpack.c.l.b16 %v1975
      %v2000 = vpack.c.b16 %v1993, %v1992
      %v2001 = vpack.c.b16 %v1995, %v1994
      %v2002 = vpack.c.b16 %v1997, %v1996
      %v2003 = vpack.c.b16 %v1999, %v1998
      %v2024 = vunpack.c.l.b16 %v1976
      %v2025 = vunpack.c.l.b16 %v1977
      %v2026 = vunpack.c.l.b16 %v1978
      %v2027 = vunpack.c.l.b16 %v1979
      %v2028 = vunpack.c.l.b16 %v1980
      %v2029 = vunpack.c.l.b16 %v1981
      %v2030 = vunpack.c.l.b16 %v1982
      %v2031 = vunpack.c.l.b16 %v1983
      %v2032 = vunpack.c.l.b16 %v1984
      %v2033 = vunpack.c.l.b16 %v1985
      %v2034 = vunpack.c.l.b16 %v1986
      %v2035 = vunpack.c.l.b16 %v1987
      %v2036 = vunpack.c.l.b16 %v1988
      %v2037 = vunpack.c.l.b16 %v1989
      %v2038 = vunpack.c.l.b16 %v1990
      %v2039 = vunpack.c.l.b16 %v1991
      %v2040 = vpack.c.b16 %v2025, %v2024
      %v2041 = vpack.c.b16 %v2027, %v2026
      %v2042 = vpack.c.b16 %v2029, %v2028
      %v2043 = vpack.c.b16 %v2031, %v2030
      %v2044 = vpack.c.b16 %v2033, %v2032
      %v2045 = vpack.c.b16 %v2035, %v2034
      %v2046 = vpack.c.b16 %v2037, %v2036
      %v2047 = vpack.c.b16 %v2039, %v2038
      %2056 = vmatpush.bf16.msra.mxu0 %v2047
      %2057 = vmatpush.bf16.msra.mxu0 %v2046
      %2058 = vmatpush.bf16.msra.mxu0 %v2045
      %2059 = vmatpush.bf16.msra.mxu0 %v2044
      %2060 = vmatpush.bf16.msra.mxu0 %v2043
      %2061 = vmatpush.bf16.msra.mxu0 %v2042
      %2062 = vmatpush.bf16.msra.mxu0 %v2041
      %2063 = vmatpush.bf16.msra.mxu0 %v2040
      %2064 = vmatmul.bf16.gmra.mxu0 %v2000
      %v2065 = vpop.f32.mrf.mxu0
      %v2066 = vadd.f32 0.0, %v2065
      %v2067 = vpop.f32.mrf.mxu0
      %v2068 = vadd.f32 0.0, %v2067
      %2069 = vmatmul.bf16.gmra.mxu0 %v2001
      %v2070 = vpop.f32.mrf.mxu0
      %v2071 = vadd.f32 0.0, %v2070
      %v2072 = vpop.f32.mrf.mxu0
      %v2073 = vadd.f32 0.0, %v2072
      %2074 = vmatmul.bf16.gmra.mxu0 %v2002
      %v2075 = vpop.f32.mrf.mxu0
      %v2076 = vadd.f32 0.0, %v2075
      %v2077 = vpop.f32.mrf.mxu0
      %v2078 = vadd.f32 0.0, %v2077
      %2079 = vmatmul.bf16.gmra.mxu0 %v2003
      %v2080 = vpop.f32.mrf.mxu0
      %v2081 = vadd.f32 0.0, %v2080
      %v2082 = vpop.f32.mrf.mxu0
      %v2083 = vadd.f32 0.0, %v2082
      %2084 = vdwg.mxu0
      %v2085 = vadd.f32 %v1840, %v2066
      %v2086 = vadd.f32 %v1841, %v2068
      %v2087 = vadd.f32 %v1842, %v2071
      %v2088 = vadd.f32 %v1843, %v2073
      %v2089 = vadd.f32 %v1844, %v2076
      %v2090 = vadd.f32 %v1845, %v2078
      %v2091 = vadd.f32 %v1846, %v2081
      %v2092 = vadd.f32 %v1847, %v2083
      %v2093 = vld [vmem:[%s736 + $0xc] sm:$0xf]
      %v2094 = vld [vmem:[%s736 + $0x2c] sm:$0xf]
      %v2095 = vld [vmem:[%s736 + $0x4c] sm:$0xf]
      %v2096 = vld [vmem:[%s736 + $0x6c] sm:$0xf]
      %v2097 = vld [vmem:[%s736 + $0x8c] sm:$0xf]
      %v2098 = vld [vmem:[%s736 + $0xac] sm:$0xf]
      %v2099 = vld [vmem:[%s736 + $0xcc] sm:$0xf]
      %v2100 = vld [vmem:[%s736 + $0xec] sm:$0xf]
      %v2101 = vld [vmem:[%s3 + $0x180] sm:$0xf]
      %v2102 = vld [vmem:[%s3 + $0x184] sm:$0xf]
      %v2103 = vld [vmem:[%s3 + $0x188] sm:$0xf]
      %v2104 = vld [vmem:[%s3 + $0x18c] sm:$0xf]
      %v2105 = vld [vmem:[%s3 + $0x190] sm:$0xf]
      %v2106 = vld [vmem:[%s3 + $0x194] sm:$0xf]
      %v2107 = vld [vmem:[%s3 + $0x198] sm:$0xf]
      %v2108 = vld [vmem:[%s3 + $0x19c] sm:$0xf]
      %v2109 = vld [vmem:[%s3 + $0x1a0] sm:$0xf]
      %v2110 = vld [vmem:[%s3 + $0x1a4] sm:$0xf]
      %v2111 = vld [vmem:[%s3 + $0x1a8] sm:$0xf]
      %v2112 = vld [vmem:[%s3 + $0x1ac] sm:$0xf]
      %v2113 = vld [vmem:[%s3 + $0x1b0] sm:$0xf]
      %v2114 = vld [vmem:[%s3 + $0x1b4] sm:$0xf]
      %v2115 = vld [vmem:[%s3 + $0x1b8] sm:$0xf]
      %v2116 = vld [vmem:[%s3 + $0x1bc] sm:$0xf]
      %v2125 = vunpack.c.l.b16 %v2093
      %v2126 = vunpack.c.l.b16 %v2094
      %v2127 = vunpack.c.l.b16 %v2095
      %v2128 = vunpack.c.l.b16 %v2096
      %v2129 = vunpack.c.l.b16 %v2097
      %v2130 = vunpack.c.l.b16 %v2098
      %v2131 = vunpack.c.l.b16 %v2099
      %v2132 = vunpack.c.l.b16 %v2100
      %v2133 = vpack.c.b16 %v2126, %v2125
      %v2134 = vpack.c.b16 %v2128, %v2127
      %v2135 = vpack.c.b16 %v2130, %v2129
      %v2136 = vpack.c.b16 %v2132, %v2131
      %v2157 = vunpack.c.l.b16 %v2101
      %v2158 = vunpack.c.l.b16 %v2102
      %v2159 = vunpack.c.l.b16 %v2103
      %v2160 = vunpack.c.l.b16 %v2104
      %v2161 = vunpack.c.l.b16 %v2105
      %v2162 = vunpack.c.l.b16 %v2106
      %v2163 = vunpack.c.l.b16 %v2107
      %v2164 = vunpack.c.l.b16 %v2108
      %v2165 = vunpack.c.l.b16 %v2109
      %v2166 = vunpack.c.l.b16 %v2110
      %v2167 = vunpack.c.l.b16 %v2111
      %v2168 = vunpack.c.l.b16 %v2112
      %v2169 = vunpack.c.l.b16 %v2113
      %v2170 = vunpack.c.l.b16 %v2114
      %v2171 = vunpack.c.l.b16 %v2115
      %v2172 = vunpack.c.l.b16 %v2116
      %v2173 = vpack.c.b16 %v2158, %v2157
      %v2174 = vpack.c.b16 %v2160, %v2159
      %v2175 = vpack.c.b16 %v2162, %v2161
      %v2176 = vpack.c.b16 %v2164, %v2163
      %v2177 = vpack.c.b16 %v2166, %v2165
      %v2178 = vpack.c.b16 %v2168, %v2167
      %v2179 = vpack.c.b16 %v2170, %v2169
      %v2180 = vpack.c.b16 %v2172, %v2171
      %2189 = vmatpush.bf16.msra.mxu0 %v2180
      %2190 = vmatpush.bf16.msra.mxu0 %v2179
      %2191 = vmatpush.bf16.msra.mxu0 %v2178
      %2192 = vmatpush.bf16.msra.mxu0 %v2177
      %2193 = vmatpush.bf16.msra.mxu0 %v2176
      %2194 = vmatpush.bf16.msra.mxu0 %v2175
      %2195 = vmatpush.bf16.msra.mxu0 %v2174
      %2196 = vmatpush.bf16.msra.mxu0 %v2173
      %2197 = vmatmul.bf16.gmra.mxu0 %v2133
      %v2198 = vpop.f32.mrf.mxu0
      %v2199 = vadd.f32 0.0, %v2198
      %v2200 = vpop.f32.mrf.mxu0
      %v2201 = vadd.f32 0.0, %v2200
      %2202 = vmatmul.bf16.gmra.mxu0 %v2134
      %v2203 = vpop.f32.mrf.mxu0
      %v2204 = vadd.f32 0.0, %v2203
      %v2205 = vpop.f32.mrf.mxu0
      %v2206 = vadd.f32 0.0, %v2205
      %2207 = vmatmul.bf16.gmra.mxu0 %v2135
      %v2208 = vpop.f32.mrf.mxu0
      %v2209 = vadd.f32 0.0, %v2208
      %v2210 = vpop.f32.mrf.mxu0
      %v2211 = vadd.f32 0.0, %v2210
      %2212 = vmatmul.bf16.gmra.mxu0 %v2136
      %v2213 = vpop.f32.mrf.mxu0
      %v2214 = vadd.f32 0.0, %v2213
      %v2215 = vpop.f32.mrf.mxu0
      %v2216 = vadd.f32 0.0, %v2215
      %2217 = vdwg.mxu0
      %v2218 = vadd.f32 %v2085, %v2199
      %v2219 = vadd.f32 %v2086, %v2201
      %v2220 = vadd.f32 %v2087, %v2204
      %v2221 = vadd.f32 %v2088, %v2206
      %v2222 = vadd.f32 %v2089, %v2209
      %v2223 = vadd.f32 %v2090, %v2211
      %v2224 = vadd.f32 %v2091, %v2214
      %v2225 = vadd.f32 %v2092, %v2216
      %v2226 = vld [vmem:[%s736 + $0x8] sm:$0xf]
      %v2227 = vld [vmem:[%s736 + $0x18] sm:$0x1]
      %v2228 = vld [vmem:[%s736 + $0x28] sm:$0xf]
      %v2229 = vld [vmem:[%s736 + $0x38] sm:$0x1]
      %v2230 = vld [vmem:[%s736 + $0x48] sm:$0xf]
      %v2231 = vld [vmem:[%s736 + $0x58] sm:$0x1]
      %v2232 = vld [vmem:[%s736 + $0x68] sm:$0xf]
      %v2233 = vld [vmem:[%s736 + $0x78] sm:$0x1]
      %v2234 = vld [vmem:[%s736 + $0x88] sm:$0xf]
      %v2235 = vld [vmem:[%s736 + $0x98] sm:$0x1]
      %v2236 = vld [vmem:[%s736 + $0xa8] sm:$0xf]
      %v2237 = vld [vmem:[%s736 + $0xb8] sm:$0x1]
      %v2238 = vld [vmem:[%s736 + $0xc8] sm:$0xf]
      %v2239 = vld [vmem:[%s736 + $0xd8] sm:$0x1]
      %v2240 = vld [vmem:[%s736 + $0xe8] sm:$0xf]
      %v2241 = vld [vmem:[%s736 + $0xf8] sm:$0x1]
      %v2243 = vshrl.u32 %v2226, 16
      %v2245 = vrot.slane %v2243, 4
      %v2246 = vshll.u32 %v2226, 16
      %v2248 = vrot.slane %v2246, 5
      %v2249 = vor.u32 %v2245, %v2248
      %v2250 = vrot.slane %v2249, 4
      %v2252 = vshll.u32 %v2227, 16
      %v2254 = vrot.slane %v2252, 5
      %v2255 = vsel %vm995, %v2250, %v2254
      %v2257 = vshrl.u32 %v2228, 16
      %v2259 = vrot.slane %v2257, 4
      %v2260 = vshll.u32 %v2228, 16
      %v2262 = vrot.slane %v2260, 5
      %v2263 = vor.u32 %v2259, %v2262
      %v2264 = vrot.slane %v2263, 4
      %v2266 = vshll.u32 %v2229, 16
      %v2268 = vrot.slane %v2266, 5
      %v2269 = vsel %vm995, %v2264, %v2268
      %v2271 = vshrl.u32 %v2230, 16
      %v2273 = vrot.slane %v2271, 4
      %v2274 = vshll.u32 %v2230, 16
      %v2276 = vrot.slane %v2274, 5
      %v2277 = vor.u32 %v2273, %v2276
      %v2278 = vrot.slane %v2277, 4
      %v2280 = vshll.u32 %v2231, 16
      %v2282 = vrot.slane %v2280, 5
      %v2283 = vsel %vm995, %v2278, %v2282
      %v2285 = vshrl.u32 %v2232, 16
      %v2287 = vrot.slane %v2285, 4
      %v2288 = vshll.u32 %v2232, 16
      %v2290 = vrot.slane %v2288, 5
      %v2291 = vor.u32 %v2287, %v2290
      %v2292 = vrot.slane %v2291, 4
      %v2294 = vshll.u32 %v2233, 16
      %v2296 = vrot.slane %v2294, 5
      %v2297 = vsel %vm995, %v2292, %v2296
      %v2299 = vshrl.u32 %v2234, 16
      %v2301 = vrot.slane %v2299, 4
      %v2302 = vshll.u32 %v2234, 16
      %v2304 = vrot.slane %v2302, 5
      %v2305 = vor.u32 %v2301, %v2304
      %v2306 = vrot.slane %v2305, 4
      %v2308 = vshll.u32 %v2235, 16
      %v2310 = vrot.slane %v2308, 5
      %v2311 = vsel %vm995, %v2306, %v2310
      %v2313 = vshrl.u32 %v2236, 16
      %v2315 = vrot.slane %v2313, 4
      %v2316 = vshll.u32 %v2236, 16
      %v2318 = vrot.slane %v2316, 5
      %v2319 = vor.u32 %v2315, %v2318
      %v2320 = vrot.slane %v2319, 4
      %v2322 = vshll.u32 %v2237, 16
      %v2324 = vrot.slane %v2322, 5
      %v2325 = vsel %vm995, %v2320, %v2324
      %v2327 = vshrl.u32 %v2238, 16
      %v2329 = vrot.slane %v2327, 4
      %v2330 = vshll.u32 %v2238, 16
      %v2332 = vrot.slane %v2330, 5
      %v2333 = vor.u32 %v2329, %v2332
      %v2334 = vrot.slane %v2333, 4
      %v2336 = vshll.u32 %v2239, 16
      %v2338 = vrot.slane %v2336, 5
      %v2339 = vsel %vm995, %v2334, %v2338
      %v2341 = vshrl.u32 %v2240, 16
      %v2343 = vrot.slane %v2341, 4
      %v2344 = vshll.u32 %v2240, 16
      %v2346 = vrot.slane %v2344, 5
      %v2347 = vor.u32 %v2343, %v2346
      %v2348 = vrot.slane %v2347, 4
      %v2350 = vshll.u32 %v2241, 16
      %v2352 = vrot.slane %v2350, 5
      %v2353 = vsel %vm995, %v2348, %v2352
      %v2354 = vld [vmem:[%s3 + $0x1c0] sm:$0xf]
      %v2355 = vld [vmem:[%s3 + $0x1c4] sm:$0xf]
      %v2356 = vld [vmem:[%s3 + $0x1c8] sm:$0xf]
      %v2357 = vld [vmem:[%s3 + $0x1cc] sm:$0xf]
      %v2358 = vld [vmem:[%s3 + $0x1d0] sm:$0xf]
      %v2359 = vld [vmem:[%s3 + $0x1d4] sm:$0xf]
      %v2360 = vld [vmem:[%s3 + $0x1d8] sm:$0xf]
      %v2361 = vld [vmem:[%s3 + $0x1dc] sm:$0xf]
      %v2362 = vld [vmem:[%s3 + $0x1e0] sm:$0xf]
      %v2363 = vld [vmem:[%s3 + $0x1e4] sm:$0xf]
      %v2364 = vld [vmem:[%s3 + $0x1e8] sm:$0xf]
      %v2365 = vld [vmem:[%s3 + $0x1ec] sm:$0xf]
      %v2366 = vld [vmem:[%s3 + $0x1f0] sm:$0xf]
      %v2367 = vld [vmem:[%s3 + $0x1f4] sm:$0xf]
      %v2368 = vld [vmem:[%s3 + $0x1f8] sm:$0xf]
      %v2369 = vld [vmem:[%s3 + $0x1fc] sm:$0xf]
      %v2370 = vunpack.c.l.b16 %v2255
      %v2371 = vunpack.c.l.b16 %v2269
      %v2372 = vunpack.c.l.b16 %v2283
      %v2373 = vunpack.c.l.b16 %v2297
      %v2374 = vunpack.c.l.b16 %v2311
      %v2375 = vunpack.c.l.b16 %v2325
      %v2376 = vunpack.c.l.b16 %v2339
      %v2377 = vunpack.c.l.b16 %v2353
      %v2378 = vpack.c.b16 %v2371, %v2370
      %v2379 = vpack.c.b16 %v2373, %v2372
      %v2380 = vpack.c.b16 %v2375, %v2374
      %v2381 = vpack.c.b16 %v2377, %v2376
      %v2402 = vunpack.c.l.b16 %v2354
      %v2403 = vunpack.c.l.b16 %v2355
      %v2404 = vunpack.c.l.b16 %v2356
      %v2405 = vunpack.c.l.b16 %v2357
      %v2406 = vunpack.c.l.b16 %v2358
      %v2407 = vunpack.c.l.b16 %v2359
      %v2408 = vunpack.c.l.b16 %v2360
      %v2409 = vunpack.c.l.b16 %v2361
      %v2410 = vunpack.c.l.b16 %v2362
      %v2411 = vunpack.c.l.b16 %v2363
      %v2412 = vunpack.c.l.b16 %v2364
      %v2413 = vunpack.c.l.b16 %v2365
      %v2414 = vunpack.c.l.b16 %v2366
      %v2415 = vunpack.c.l.b16 %v2367
      %v2416 = vunpack.c.l.b16 %v2368
      %v2417 = vunpack.c.l.b16 %v2369
      %v2418 = vpack.c.b16 %v2403, %v2402
      %v2419 = vpack.c.b16 %v2405, %v2404
      %v2420 = vpack.c.b16 %v2407, %v2406
      %v2421 = vpack.c.b16 %v2409, %v2408
      %v2422 = vpack.c.b16 %v2411, %v2410
      %v2423 = vpack.c.b16 %v2413, %v2412
      %v2424 = vpack.c.b16 %v2415, %v2414
      %v2425 = vpack.c.b16 %v2417, %v2416
      %2434 = vmatpush.bf16.msra.mxu0 %v2425
      %2435 = vmatpush.bf16.msra.mxu0 %v2424
      %2436 = vmatpush.bf16.msra.mxu0 %v2423
      %2437 = vmatpush.bf16.msra.mxu0 %v2422
      %2438 = vmatpush.bf16.msra.mxu0 %v2421
      %2439 = vmatpush.bf16.msra.mxu0 %v2420
      %2440 = vmatpush.bf16.msra.mxu0 %v2419
      %2441 = vmatpush.bf16.msra.mxu0 %v2418
      %2442 = vmatmul.bf16.gmra.mxu0 %v2378
      %v2443 = vpop.f32.mrf.mxu0
      %v2444 = vadd.f32 0.0, %v2443
      %v2445 = vpop.f32.mrf.mxu0
      %v2446 = vadd.f32 0.0, %v2445
      %2447 = vmatmul.bf16.gmra.mxu0 %v2379
      %v2448 = vpop.f32.mrf.mxu0
      %v2449 = vadd.f32 0.0, %v2448
      %v2450 = vpop.f32.mrf.mxu0
      %v2451 = vadd.f32 0.0, %v2450
      %2452 = vmatmul.bf16.gmra.mxu0 %v2380
      %v2453 = vpop.f32.mrf.mxu0
      %v2454 = vadd.f32 0.0, %v2453
      %v2455 = vpop.f32.mrf.mxu0
      %v2456 = vadd.f32 0.0, %v2455
      %2457 = vmatmul.bf16.gmra.mxu0 %v2381
      %v2458 = vpop.f32.mrf.mxu0
      %v2459 = vadd.f32 0.0, %v2458
      %v2460 = vpop.f32.mrf.mxu0
      %v2461 = vadd.f32 0.0, %v2460
      %2462 = vdwg.mxu0
      %v2463 = vadd.f32 %v2218, %v2444
      %v2464 = vadd.f32 %v2219, %v2446
      %v2465 = vadd.f32 %v2220, %v2449
      %v2466 = vadd.f32 %v2221, %v2451
      %v2467 = vadd.f32 %v2222, %v2454
      %v2468 = vadd.f32 %v2223, %v2456
      %v2469 = vadd.f32 %v2224, %v2459
      %v2470 = vadd.f32 %v2225, %v2461
      %v2471 = vld [vmem:[%s736 + $0xc] sm:$0xf]
      %v2472 = vld [vmem:[%s736 + $0x1c] sm:$0x1]
      %v2473 = vld [vmem:[%s736 + $0x2c] sm:$0xf]
      %v2474 = vld [vmem:[%s736 + $0x3c] sm:$0x1]
      %v2475 = vld [vmem:[%s736 + $0x4c] sm:$0xf]
      %v2476 = vld [vmem:[%s736 + $0x5c] sm:$0x1]
      %v2477 = vld [vmem:[%s736 + $0x6c] sm:$0xf]
      %v2478 = vld [vmem:[%s736 + $0x7c] sm:$0x1]
      %v2479 = vld [vmem:[%s736 + $0x8c] sm:$0xf]
      %v2480 = vld [vmem:[%s736 + $0x9c] sm:$0x1]
      %v2481 = vld [vmem:[%s736 + $0xac] sm:$0xf]
      %v2482 = vld [vmem:[%s736 + $0xbc] sm:$0x1]
      %v2483 = vld [vmem:[%s736 + $0xcc] sm:$0xf]
      %v2484 = vld [vmem:[%s736 + $0xdc] sm:$0x1]
      %v2485 = vld [vmem:[%s736 + $0xec] sm:$0xf]
      %v2486 = vld [vmem:[%s736 + $0xfc] sm:$0x1]
      %v2488 = vshrl.u32 %v2471, 16
      %v2490 = vrot.slane %v2488, 4
      %v2491 = vshll.u32 %v2471, 16
      %v2493 = vrot.slane %v2491, 5
      %v2494 = vor.u32 %v2490, %v2493
      %v2495 = vrot.slane %v2494, 4
      %v2497 = vshll.u32 %v2472, 16
      %v2499 = vrot.slane %v2497, 5
      %v2500 = vsel %vm995, %v2495, %v2499
      %v2502 = vshrl.u32 %v2473, 16
      %v2504 = vrot.slane %v2502, 4
      %v2505 = vshll.u32 %v2473, 16
      %v2507 = vrot.slane %v2505, 5
      %v2508 = vor.u32 %v2504, %v2507
      %v2509 = vrot.slane %v2508, 4
      %v2511 = vshll.u32 %v2474, 16
      %v2513 = vrot.slane %v2511, 5
      %v2514 = vsel %vm995, %v2509, %v2513
      %v2516 = vshrl.u32 %v2475, 16
      %v2518 = vrot.slane %v2516, 4
      %v2519 = vshll.u32 %v2475, 16
      %v2521 = vrot.slane %v2519, 5
      %v2522 = vor.u32 %v2518, %v2521
      %v2523 = vrot.slane %v2522, 4
      %v2525 = vshll.u32 %v2476, 16
      %v2527 = vrot.slane %v2525, 5
      %v2528 = vsel %vm995, %v2523, %v2527
      %v2530 = vshrl.u32 %v2477, 16
      %v2532 = vrot.slane %v2530, 4
      %v2533 = vshll.u32 %v2477, 16
      %v2535 = vrot.slane %v2533, 5
      %v2536 = vor.u32 %v2532, %v2535
      %v2537 = vrot.slane %v2536, 4
      %v2539 = vshll.u32 %v2478, 16
      %v2541 = vrot.slane %v2539, 5
      %v2542 = vsel %vm995, %v2537, %v2541
      %v2544 = vshrl.u32 %v2479, 16
      %v2546 = vrot.slane %v2544, 4
      %v2547 = vshll.u32 %v2479, 16
      %v2549 = vrot.slane %v2547, 5
      %v2550 = vor.u32 %v2546, %v2549
      %v2551 = vrot.slane %v2550, 4
      %v2553 = vshll.u32 %v2480, 16
      %v2555 = vrot.slane %v2553, 5
      %v2556 = vsel %vm995, %v2551, %v2555
      %v2558 = vshrl.u32 %v2481, 16
      %v2560 = vrot.slane %v2558, 4
      %v2561 = vshll.u32 %v2481, 16
      %v2563 = vrot.slane %v2561, 5
      %v2564 = vor.u32 %v2560, %v2563
      %v2565 = vrot.slane %v2564, 4
      %v2567 = vshll.u32 %v2482, 16
      %v2569 = vrot.slane %v2567, 5
      %v2570 = vsel %vm995, %v2565, %v2569
      %v2572 = vshrl.u32 %v2483, 16
      %v2574 = vrot.slane %v2572, 4
      %v2575 = vshll.u32 %v2483, 16
      %v2577 = vrot.slane %v2575, 5
      %v2578 = vor.u32 %v2574, %v2577
      %v2579 = vrot.slane %v2578, 4
      %v2581 = vshll.u32 %v2484, 16
      %v2583 = vrot.slane %v2581, 5
      %v2584 = vsel %vm995, %v2579, %v2583
      %v2586 = vshrl.u32 %v2485, 16
      %v2588 = vrot.slane %v2586, 4
      %v2589 = vshll.u32 %v2485, 16
      %v2591 = vrot.slane %v2589, 5
      %v2592 = vor.u32 %v2588, %v2591
      %v2593 = vrot.slane %v2592, 4
      %v2595 = vshll.u32 %v2486, 16
      %v2597 = vrot.slane %v2595, 5
      %v2598 = vsel %vm995, %v2593, %v2597
      %v2599 = vld [vmem:[%s3 + $0x200] sm:$0xf]
      %v2600 = vld [vmem:[%s3 + $0x204] sm:$0xf]
      %v2601 = vld [vmem:[%s3 + $0x208] sm:$0xf]
      %v2602 = vld [vmem:[%s3 + $0x20c] sm:$0xf]
      %v2603 = vld [vmem:[%s3 + $0x210] sm:$0xf]
      %v2604 = vld [vmem:[%s3 + $0x214] sm:$0xf]
      %v2605 = vld [vmem:[%s3 + $0x218] sm:$0xf]
      %v2606 = vld [vmem:[%s3 + $0x21c] sm:$0xf]
      %v2607 = vld [vmem:[%s3 + $0x220] sm:$0xf]
      %v2608 = vld [vmem:[%s3 + $0x224] sm:$0xf]
      %v2609 = vld [vmem:[%s3 + $0x228] sm:$0xf]
      %v2610 = vld [vmem:[%s3 + $0x22c] sm:$0xf]
      %v2611 = vld [vmem:[%s3 + $0x230] sm:$0xf]
      %v2612 = vld [vmem:[%s3 + $0x234] sm:$0xf]
      %v2613 = vld [vmem:[%s3 + $0x238] sm:$0xf]
      %v2614 = vld [vmem:[%s3 + $0x23c] sm:$0xf]
      %v2615 = vunpack.c.l.b16 %v2500
      %v2616 = vunpack.c.l.b16 %v2514
      %v2617 = vunpack.c.l.b16 %v2528
      %v2618 = vunpack.c.l.b16 %v2542
      %v2619 = vunpack.c.l.b16 %v2556
      %v2620 = vunpack.c.l.b16 %v2570
      %v2621 = vunpack.c.l.b16 %v2584
      %v2622 = vunpack.c.l.b16 %v2598
      %v2623 = vpack.c.b16 %v2616, %v2615
      %v2624 = vpack.c.b16 %v2618, %v2617
      %v2625 = vpack.c.b16 %v2620, %v2619
      %v2626 = vpack.c.b16 %v2622, %v2621
      %v2647 = vunpack.c.l.b16 %v2599
      %v2648 = vunpack.c.l.b16 %v2600
      %v2649 = vunpack.c.l.b16 %v2601
      %v2650 = vunpack.c.l.b16 %v2602
      %v2651 = vunpack.c.l.b16 %v2603
      %v2652 = vunpack.c.l.b16 %v2604
      %v2653 = vunpack.c.l.b16 %v2605
      %v2654 = vunpack.c.l.b16 %v2606
      %v2655 = vunpack.c.l.b16 %v2607
      %v2656 = vunpack.c.l.b16 %v2608
      %v2657 = vunpack.c.l.b16 %v2609
      %v2658 = vunpack.c.l.b16 %v2610
      %v2659 = vunpack.c.l.b16 %v2611
      %v2660 = vunpack.c.l.b16 %v2612
      %v2661 = vunpack.c.l.b16 %v2613
      %v2662 = vunpack.c.l.b16 %v2614
      %v2663 = vpack.c.b16 %v2648, %v2647
      %v2664 = vpack.c.b16 %v2650, %v2649
      %v2665 = vpack.c.b16 %v2652, %v2651
      %v2666 = vpack.c.b16 %v2654, %v2653
      %v2667 = vpack.c.b16 %v2656, %v2655
      %v2668 = vpack.c.b16 %v2658, %v2657
      %v2669 = vpack.c.b16 %v2660, %v2659
      %v2670 = vpack.c.b16 %v2662, %v2661
      %2679 = vmatpush.bf16.msra.mxu0 %v2670
      %2680 = vmatpush.bf16.msra.mxu0 %v2669
      %2681 = vmatpush.bf16.msra.mxu0 %v2668
      %2682 = vmatpush.bf16.msra.mxu0 %v2667
      %2683 = vmatpush.bf16.msra.mxu0 %v2666
      %2684 = vmatpush.bf16.msra.mxu0 %v2665
      %2685 = vmatpush.bf16.msra.mxu0 %v2664
      %2686 = vmatpush.bf16.msra.mxu0 %v2663
      %2687 = vmatmul.bf16.gmra.mxu0 %v2623
      %v2688 = vpop.f32.mrf.mxu0
      %v2689 = vadd.f32 0.0, %v2688
      %v2690 = vpop.f32.mrf.mxu0
      %v2691 = vadd.f32 0.0, %v2690
      %2692 = vmatmul.bf16.gmra.mxu0 %v2624
      %v2693 = vpop.f32.mrf.mxu0
      %v2694 = vadd.f32 0.0, %v2693
      %v2695 = vpop.f32.mrf.mxu0
      %v2696 = vadd.f32 0.0, %v2695
      %2697 = vmatmul.bf16.gmra.mxu0 %v2625
      %v2698 = vpop.f32.mrf.mxu0
      %v2699 = vadd.f32 0.0, %v2698
      %v2700 = vpop.f32.mrf.mxu0
      %v2701 = vadd.f32 0.0, %v2700
      %2702 = vmatmul.bf16.gmra.mxu0 %v2626
      %v2703 = vpop.f32.mrf.mxu0
      %v2704 = vadd.f32 0.0, %v2703
      %v2705 = vpop.f32.mrf.mxu0
      %v2706 = vadd.f32 0.0, %v2705
      %2707 = vdwg.mxu0
      %v2708 = vadd.f32 %v2463, %v2689
      %v2709 = vadd.f32 %v2464, %v2691
      %v2710 = vadd.f32 %v2465, %v2694
      %v2711 = vadd.f32 %v2466, %v2696
      %v2712 = vadd.f32 %v2467, %v2699
      %v2713 = vadd.f32 %v2468, %v2701
      %v2714 = vadd.f32 %v2469, %v2704
      %v2715 = vadd.f32 %v2470, %v2706
      %v2716 = vld [vmem:[%s320] sm:$0xf]
      %v2717 = vld [vmem:[%s320 + $0x4] sm:$0xf]
      %v2718 = vld [vmem:[%s320 + $0x8] sm:$0xf]
      %v2719 = vld [vmem:[%s320 + $0xc] sm:$0xf]
      %v2720 = vld [vmem:[%s320 + $0x10] sm:$0xf]
      %v2721 = vld [vmem:[%s320 + $0x14] sm:$0xf]
      %v2722 = vld [vmem:[%s320 + $0x18] sm:$0xf]
      %v2723 = vld [vmem:[%s320 + $0x1c] sm:$0xf]
      %v2724 = vld [vmem:[%s6] sm:$0xf]
      %v2725 = vld [vmem:[%s6 + $0x4] sm:$0xf]
      %v2726 = vld [vmem:[%s6 + $0x8] sm:$0xf]
      %v2727 = vld [vmem:[%s6 + $0xc] sm:$0xf]
      %v2728 = vld [vmem:[%s6 + $0x10] sm:$0xf]
      %v2729 = vld [vmem:[%s6 + $0x14] sm:$0xf]
      %v2730 = vld [vmem:[%s6 + $0x18] sm:$0xf]
      %v2731 = vld [vmem:[%s6 + $0x1c] sm:$0xf]
      %v2732 = vld [vmem:[%s6 + $0x20] sm:$0xf]
      %v2733 = vld [vmem:[%s6 + $0x24] sm:$0xf]
      %v2734 = vld [vmem:[%s6 + $0x28] sm:$0xf]
      %v2735 = vld [vmem:[%s6 + $0x2c] sm:$0xf]
      %v2736 = vld [vmem:[%s6 + $0x30] sm:$0xf]
      %v2737 = vld [vmem:[%s6 + $0x34] sm:$0xf]
      %v2738 = vld [vmem:[%s6 + $0x38] sm:$0xf]
      %v2739 = vld [vmem:[%s6 + $0x3c] sm:$0xf]
      %v2748 = vunpack.c.l.b16 %v2716
      %v2749 = vunpack.c.l.b16 %v2717
      %v2750 = vunpack.c.l.b16 %v2718
      %v2751 = vunpack.c.l.b16 %v2719
      %v2752 = vunpack.c.l.b16 %v2720
      %v2753 = vunpack.c.l.b16 %v2721
      %v2754 = vunpack.c.l.b16 %v2722
      %v2755 = vunpack.c.l.b16 %v2723
      %v2756 = vpack.c.b16 %v2749, %v2748
      %v2757 = vpack.c.b16 %v2751, %v2750
      %v2758 = vpack.c.b16 %v2753, %v2752
      %v2759 = vpack.c.b16 %v2755, %v2754
      %v2780 = vunpack.c.l.b16 %v2724
      %v2781 = vunpack.c.l.b16 %v2725
      %v2782 = vunpack.c.l.b16 %v2726
      %v2783 = vunpack.c.l.b16 %v2727
      %v2784 = vunpack.c.l.b16 %v2728
      %v2785 = vunpack.c.l.b16 %v2729
      %v2786 = vunpack.c.l.b16 %v2730
      %v2787 = vunpack.c.l.b16 %v2731
      %v2788 = vunpack.c.l.b16 %v2732
      %v2789 = vunpack.c.l.b16 %v2733
      %v2790 = vunpack.c.l.b16 %v2734
      %v2791 = vunpack.c.l.b16 %v2735
      %v2792 = vunpack.c.l.b16 %v2736
      %v2793 = vunpack.c.l.b16 %v2737
      %v2794 = vunpack.c.l.b16 %v2738
      %v2795 = vunpack.c.l.b16 %v2739
      %v2796 = vpack.c.b16 %v2781, %v2780
      %v2797 = vpack.c.b16 %v2783, %v2782
      %v2798 = vpack.c.b16 %v2785, %v2784
      %v2799 = vpack.c.b16 %v2787, %v2786
      %v2800 = vpack.c.b16 %v2789, %v2788
      %v2801 = vpack.c.b16 %v2791, %v2790
      %v2802 = vpack.c.b16 %v2793, %v2792
      %v2803 = vpack.c.b16 %v2795, %v2794
      %2812 = vmatpush.bf16.msra.mxu0 %v2803
      %2813 = vmatpush.bf16.msra.mxu0 %v2802
      %2814 = vmatpush.bf16.msra.mxu0 %v2801
      %2815 = vmatpush.bf16.msra.mxu0 %v2800
      %2816 = vmatpush.bf16.msra.mxu0 %v2799
      %2817 = vmatpush.bf16.msra.mxu0 %v2798
      %2818 = vmatpush.bf16.msra.mxu0 %v2797
      %2819 = vmatpush.bf16.msra.mxu0 %v2796
      %2820 = vmatmul.bf16.gmra.mxu0 %v2756
      %v2821 = vpop.f32.mrf.mxu0
      %v2822 = vadd.f32 0.0, %v2821
      %v2823 = vpop.f32.mrf.mxu0
      %v2824 = vadd.f32 0.0, %v2823
      %2825 = vmatmul.bf16.gmra.mxu0 %v2757
      %v2826 = vpop.f32.mrf.mxu0
      %v2827 = vadd.f32 0.0, %v2826
      %v2828 = vpop.f32.mrf.mxu0
      %v2829 = vadd.f32 0.0, %v2828
      %2830 = vmatmul.bf16.gmra.mxu0 %v2758
      %v2831 = vpop.f32.mrf.mxu0
      %v2832 = vadd.f32 0.0, %v2831
      %v2833 = vpop.f32.mrf.mxu0
      %v2834 = vadd.f32 0.0, %v2833
      %2835 = vmatmul.bf16.gmra.mxu0 %v2759
      %v2836 = vpop.f32.mrf.mxu0
      %v2837 = vadd.f32 0.0, %v2836
      %v2838 = vpop.f32.mrf.mxu0
      %v2839 = vadd.f32 0.0, %v2838
      %2840 = vdwg.mxu0
      %v2841 = vadd.f32 %v2708, %v2822
      %v2842 = vadd.f32 %v2709, %v2824
      %v2843 = vadd.f32 %v2710, %v2827
      %v2844 = vadd.f32 %v2711, %v2829
      %v2845 = vadd.f32 %v2712, %v2832
      %v2846 = vadd.f32 %v2713, %v2834
      %v2847 = vadd.f32 %v2714, %v2837
      %v2848 = vadd.f32 %v2715, %v2839
      %v2849 = vld [vmem:[%s7] sm:$0x1]
      %v2851 = vperm.slane %v2849, 0
      %v2853 = vadd.f32 %v2841, %v2851
      %v2854 = vadd.f32 %v2842, %v2851
      %v2855 = vadd.f32 %v2843, %v2851
      %v2856 = vadd.f32 %v2844, %v2851
      %v2857 = vadd.f32 %v2845, %v2851
      %v2858 = vadd.f32 %v2846, %v2851
      %v2859 = vadd.f32 %v2847, %v2851
      %v2860 = vadd.f32 %v2848, %v2851
      %2861 = vst [vmem:[%s325] sm:$0xff] %v2853
      %2862 = vst [vmem:[%s325 + $0x8] sm:$0xff] %v2854
      %2863 = vst [vmem:[%s325 + $0x10] sm:$0xff] %v2855
      %2864 = vst [vmem:[%s325 + $0x18] sm:$0xff] %v2856
      %2865 = vst [vmem:[%s325 + $0x20] sm:$0xff] %v2857
      %2866 = vst [vmem:[%s325 + $0x28] sm:$0xff] %v2858
      %2867 = vst [vmem:[%s325 + $0x30] sm:$0xff] %v2859
      %2868 = vst [vmem:[%s325 + $0x38] sm:$0xff] %v2860
      %p2869 = scmp.lt.s32.totalorder %s19, 1
      %s2870 = scalar_select %p2869, %s19, 1
      %s2871 = smul.addr %s2870, 8
      %s2872 = smul.addr %s2871, 8
      %s2873 = scalar_lea.vmem %s8, %s2872
      // Predicated region
      $region53: #{wide_basic_forward.3} parent=51 // pred_check
        %p2874 = pneg %p215
      $region54: #{wide_basic_forward.3} parent=51 // pred_check_branch
        %2876 = sbr.rel (%p2874) target = $region56
      $region55: #{wide_basic_forward.3} parent=51 // pred_region
        _
      $region56: #{wide_basic_forward.3} parent=51 // pred_fallthru
        _
    $region52: #{wide_basic_forward.3} parent=5 // pred_fallthru
      _
    %p2877 = scmp.le.s32.totalorder 2, %s14
    // Predicated region
    $region57: #{wide_basic_forward.3} parent=5 // pred_check
      %p2878 = pneg %p2877
    $region58: #{wide_basic_forward.3} parent=5 // pred_check_branch
      %2880 = sbr.rel (%p2878) target = $region60
    $region59: #{wide_basic_forward.3} parent=5 // pred_region
      %s2881 = ssub.s32 %s14, 2
      // Predicated region
      $region61: #{wide_basic_forward.3} parent=59 // pred_check
        %p2882 = pneg %p221
      $region62: #{wide_basic_forward.3} parent=59 // pred_check_branch
        %2884 = sbr.rel (%p2882) target = $region64
      $region63: #{wide_basic_forward.3} parent=59 // pred_region
        %p2885 = scmp.lt.s32.totalorder %s20, 1
        %s2886 = scalar_select %p2885, %s20, 1
        %s2887 = smul.addr %s2886, 8
        %s2888 = smul.addr %s2887, 8
        %s2889 = scalar_lea.vmem %s8, %s2888
      $region64: #{wide_basic_forward.3} parent=59 // pred_fallthru
        _
    $region60: #{wide_basic_forward.3} parent=5 // pred_fallthru
      _
  $region6: #{wide_basic_forward.3} parent=0 // loop_footer
    %s18 = sadd.s32 1, %s14
  $region7: #{wide_basic_forward.3} parent=0 // loop_footer_branch
    %13 = sbr.rel target = $region3
  $region8: #{wide_basic_forward.3} parent=0 // loop_exit
    _

// kernel: wide_basic_forward.2
$region0: #{wide_basic_forward.2}
  #allocation0 [shape = 'u32[]', space=smem, size = 0x4, offset = 0x4, fixed_abs, tag = 'smem constant byte address 0x4 - core index']
  #allocation1 [shape = 'u32[72,128]{1,0:T(1,128)}', space=vmem, size = 0x9000, scoped, tag = 'internal scratch']
  #allocation2 [shape = 'bf16[18,18,128]{2,1,0:T(8,128)(2,1)}', space=vmem, size = 0x1b000, scoped, tag = 'scratch operand']
  %s0 = inlined_call_operand.vmem [shape: bf16[2,16,16,128], index: 0, kind: input, shape index: {}]
  %s1 = inlined_call_operand.vmem [shape: f32[1,128], index: 1, kind: input, shape index: {}]
  %s2 = inlined_call_operand.vmem [shape: f32[1,128], index: 2, kind: input, shape index: {}]
  %s3 = inlined_call_operand.vmem [shape: bf16[1152,128], index: 3, kind: input, shape index: {}]
  %s4 = inlined_call_operand.vmem [shape: f32[1,128], index: 4, kind: input, shape index: {}]
  %s5 = inlined_call_operand.vmem [shape: bf16[2,16,16,128], index: 5, kind: output, shape index: {}]
  %s6 = sld [smem:[#allocation0]]
  $region53: #{wide_basic_forward.2} parent=0
    _
  %s8 = ssub.s32 1, %s6
  %s9 = scalar_select 0, %s8, %s6
  loop: start=0, step=1, limit=4
  $region2: #{wide_basic_forward.2} parent=0 // loop_pre_header
    _
  $region3: #{wide_basic_forward.2} parent=0 // loop_header
    %s11 = sphi 0, %s15
    %p12 = scmp.ge.s32.totalorder %s11, 4
    %s21 = sphi 0, %s23
    %s24 = sphi 0, %s21
    %s25 = sphi 0, %s24
    %s41 = sphi 0, %s25
    %s45 = sphi 0, %s45
    %s47 = sphi 0, %s45
    %s48 = sphi 0, %s47
    %s62 = sphi 0, %s48
    %s66 = sphi 0, %s66
    %s68 = sphi 0, %s66
    %s69 = sphi 0, %s68
    %s83 = sphi 0, %s69
    %s87 = sphi 0, %s87
    %s89 = sphi 0, %s87
    %s90 = sphi 0, %s89
    %s104 = sphi 0, %s90
    %s108 = sphi 0, %s108
    %s110 = sphi 0, %s108
    %s111 = sphi 0, %s110
    %s125 = sphi 0, %s111
    %s131 = sphi 0, %s133
    %s134 = sphi 0, %s131
    %s135 = sphi 0, %s134
    %s151 = sphi 0, %s135
  $region4: #{wide_basic_forward.2} parent=0 // loop_header_branch
    %14 = sbr.rel (%p12) target = $region8
  $region5: #{wide_basic_forward.2} parent=0 // loop_body
    %s16 = ssub.s32 %s11, 1
    %s17 = ssub.s32 %s11, 2
    %s18 = sadd.s32 %s11, 1
    %s19 = ssub.s32 %s11, %s18
    %p20 = scmp.eq.s32.totalorder %s19, 0
    %s22 = sadd.s32 %s21, 1
    %s23 = scalar_select %p20, %s21, %s22
    %p26 = pneg %p20
    %p27 = scmp.eq.s32.totalorder %s11, 1
    %p28 = por %p26, %p27
    %p29 = scmp.ne.s32.totalorder %s21, %s24
    %p30 = scmp.eq.s32.totalorder %s11, 0
    %p31 = por %p29, %p30
    %p32 = scmp.ne.s32.totalorder %s21, %s24
    %p33 = scmp.eq.s32.totalorder %s16, 1
    %p34 = por %p32, %p33
    %p35 = scmp.ne.s32.totalorder %s24, %s25
    %p36 = scmp.eq.s32.totalorder %s16, 0
    %p37 = por %p35, %p36
    %p38 = scmp.ne.s32.totalorder %s24, %s25
    %p39 = scmp.eq.s32.totalorder %s17, 1
    %p40 = por %p38, %p39
    %p42 = scmp.ne.s32.totalorder %s25, %s41
    %p43 = scmp.eq.s32.totalorder %s17, 0
    %p44 = por %p42, %p43
    %s46 = sadd.s32 %s45, 1
    %p49 = scmp.eq.s32.totalorder %s11, 1
    %p50 = scmp.ne.s32.totalorder %s45, %s47
    %p51 = scmp.eq.s32.totalorder %s11, 0
    %p52 = por %p50, %p51
    %p53 = scmp.ne.s32.totalorder %s45, %s47
    %p54 = scmp.eq.s32.totalorder %s16, 1
    %p55 = por %p53, %p54
    %p56 = scmp.ne.s32.totalorder %s47, %s48
    %p57 = scmp.eq.s32.totalorder %s16, 0
    %p58 = por %p56, %p57
    %p59 = scmp.ne.s32.totalorder %s47, %s48
    %p60 = scmp.eq.s32.totalorder %s17, 1
    %p61 = por %p59, %p60
    %p63 = scmp.ne.s32.totalorder %s48, %s62
    %p64 = scmp.eq.s32.totalorder %s17, 0
    %p65 = por %p63, %p64
    %s67 = sadd.s32 %s66, 1
    %p70 = scmp.eq.s32.totalorder %s11, 1
    %p71 = scmp.ne.s32.totalorder %s66, %s68
    %p72 = scmp.eq.s32.totalorder %s11, 0
    %p73 = por %p71, %p72
    %p74 = scmp.ne.s32.totalorder %s66, %s68
    %p75 = scmp.eq.s32.totalorder %s16, 1
    %p76 = por %p74, %p75
    %p77 = scmp.ne.s32.totalorder %s68, %s69
    %p78 = scmp.eq.s32.totalorder %s16, 0
    %p79 = por %p77, %p78
    %p80 = scmp.ne.s32.totalorder %s68, %s69
    %p81 = scmp.eq.s32.totalorder %s17, 1
    %p82 = por %p80, %p81
    %p84 = scmp.ne.s32.totalorder %s69, %s83
    %p85 = scmp.eq.s32.totalorder %s17, 0
    %p86 = por %p84, %p85
    %s88 = sadd.s32 %s87, 1
    %p91 = scmp.eq.s32.totalorder %s11, 1
    %p92 = scmp.ne.s32.totalorder %s87, %s89
    %p93 = scmp.eq.s32.totalorder %s11, 0
    %p94 = por %p92, %p93
    %p95 = scmp.ne.s32.totalorder %s87, %s89
    %p96 = scmp.eq.s32.totalorder %s16, 1
    %p97 = por %p95, %p96
    %p98 = scmp.ne.s32.totalorder %s89, %s90
    %p99 = scmp.eq.s32.totalorder %s16, 0
    %p100 = por %p98, %p99
    %p101 = scmp.ne.s32.totalorder %s89, %s90
    %p102 = scmp.eq.s32.totalorder %s17, 1
    %p103 = por %p101, %p102
    %p105 = scmp.ne.s32.totalorder %s90, %s104
    %p106 = scmp.eq.s32.totalorder %s17, 0
    %p107 = por %p105, %p106
    %s109 = sadd.s32 %s108, 1
    %p112 = scmp.eq.s32.totalorder %s11, 1
    %p113 = scmp.ne.s32.totalorder %s108, %s110
    %p114 = scmp.eq.s32.totalorder %s11, 0
    %p115 = por %p113, %p114
    %p116 = scmp.ne.s32.totalorder %s108, %s110
    %p117 = scmp.eq.s32.totalorder %s16, 1
    %p118 = por %p116, %p117
    %p119 = scmp.ne.s32.totalorder %s110, %s111
    %p120 = scmp.eq.s32.totalorder %s16, 0
    %p121 = por %p119, %p120
    %p122 = scmp.ne.s32.totalorder %s110, %s111
    %p123 = scmp.eq.s32.totalorder %s17, 1
    %p124 = por %p122, %p123
    %p126 = scmp.ne.s32.totalorder %s111, %s125
    %p127 = scmp.eq.s32.totalorder %s17, 0
    %p128 = por %p126, %p127
    %s129 = ssub.s32 %s11, %s18
    %p130 = scmp.eq.s32.totalorder %s129, 0
    %s132 = sadd.s32 %s131, 1
    %s133 = scalar_select %p130, %s131, %s132
    %p136 = pneg %p130
    %p137 = scmp.eq.s32.totalorder %s11, 1
    %p138 = por %p136, %p137
    %p139 = scmp.ne.s32.totalorder %s131, %s134
    %p140 = scmp.eq.s32.totalorder %s11, 0
    %p141 = por %p139, %p140
    %p142 = scmp.ne.s32.totalorder %s131, %s134
    %p143 = scmp.eq.s32.totalorder %s16, 1
    %p144 = por %p142, %p143
    %p145 = scmp.ne.s32.totalorder %s134, %s135
    %p146 = scmp.eq.s32.totalorder %s16, 0
    %p147 = por %p145, %p146
    %p148 = scmp.ne.s32.totalorder %s134, %s135
    %p149 = scmp.eq.s32.totalorder %s17, 1
    %p150 = por %p148, %p149
    %p152 = scmp.ne.s32.totalorder %s135, %s151
    %p153 = scmp.eq.s32.totalorder %s17, 0
    %p154 = por %p152, %p153
    %p155 = scmp.le.s32.totalorder 1, %s11
    %p156 = scmp.lt.s32.totalorder %s11, 3
    %p157 = pnand %p155, %p156
    %p158 = pneg %p157
    // Predicated region
    $region9: #{wide_basic_forward.2} parent=5 // pred_check
      _
    $region10: #{wide_basic_forward.2} parent=5 // pred_check_branch
      %160 = sbr.rel (%p157) target = $region12
    $region11: #{wide_basic_forward.2} parent=5 // pred_region
      %s161 = ssub.s32 %s11, 1
      // Predicated region
      $region13: #{wide_basic_forward.2} parent=11 // pred_check
        %p162 = pneg %p58
      $region14: #{wide_basic_forward.2} parent=11 // pred_check_branch
        %164 = sbr.rel (%p162) target = $region16
      $region15: #{wide_basic_forward.2} parent=11 // pred_region
        _
      $region16: #{wide_basic_forward.2} parent=11 // pred_fallthru
        _
      // Predicated region
      $region17: #{wide_basic_forward.2} parent=11 // pred_check
        %p165 = pneg %p79
      $region18: #{wide_basic_forward.2} parent=11 // pred_check_branch
        %167 = sbr.rel (%p165) target = $region20
      $region19: #{wide_basic_forward.2} parent=11 // pred_region
        _
      $region20: #{wide_basic_forward.2} parent=11 // pred_fallthru
        _
      // Predicated region
      $region21: #{wide_basic_forward.2} parent=11 // pred_check
        %p168 = pneg %p100
      $region22: #{wide_basic_forward.2} parent=11 // pred_check_branch
        %170 = sbr.rel (%p168) target = $region24
      $region23: #{wide_basic_forward.2} parent=11 // pred_region
        _
      $region24: #{wide_basic_forward.2} parent=11 // pred_fallthru
        _
      // Predicated region
      $region25: #{wide_basic_forward.2} parent=11 // pred_check
        %p171 = pneg %p121
      $region26: #{wide_basic_forward.2} parent=11 // pred_check_branch
        %173 = sbr.rel (%p171) target = $region28
      $region27: #{wide_basic_forward.2} parent=11 // pred_region
        _
      $region28: #{wide_basic_forward.2} parent=11 // pred_fallthru
        _
    $region12: #{wide_basic_forward.2} parent=5 // pred_fallthru
      _
    %p174 = scmp.lt.s32.totalorder %s11, 2
    // Predicated region
    $region29: #{wide_basic_forward.2} parent=5 // pred_check
      %p175 = pneg %p174
    $region30: #{wide_basic_forward.2} parent=5 // pred_check_branch
      %177 = sbr.rel (%p175) target = $region32
    $region31: #{wide_basic_forward.2} parent=5 // pred_region
      // Predicated region
      $region33: #{wide_basic_forward.2} parent=31 // pred_check
        %p178 = pneg %p31
      $region34: #{wide_basic_forward.2} parent=31 // pred_check_branch
        %180 = sbr.rel (%p178) target = $region36
      $region35: #{wide_basic_forward.2} parent=31 // pred_region
        %p181 = scmp.lt.s32.totalorder %s11, 1
        %s182 = scalar_select %p181, %s11, 1
        %s183 = smul.addr %s182, 32
        %s184 = smul.addr %s183, 4
        %s185 = scalar_lea.vmem %s0, %s184
      $region36: #{wide_basic_forward.2} parent=31 // pred_fallthru
        _
    $region32: #{wide_basic_forward.2} parent=5 // pred_fallthru
      _
    %p186 = scmp.le.s32.totalorder 1, %s11
    %p187 = scmp.lt.s32.totalorder %s11, 3
    %p188 = pnand %p186, %p187
    %p189 = pneg %p188
    // Predicated region
    $region37: #{wide_basic_forward.2} parent=5 // pred_check
      _
    $region38: #{wide_basic_forward.2} parent=5 // pred_check_branch
      %191 = sbr.rel (%p188) target = $region40
    $region39: #{wide_basic_forward.2} parent=5 // pred_region
      %s192 = ssub.s32 %s11, 1
      %p193 = scmp.lt.s32.totalorder %s16, 1
      %s194 = scalar_select %p193, %s16, 1
      %s195 = smul.addr %s194, 32
      %s196 = smul.addr %s195, 4
      %s197 = scalar_lea.vmem %s0, %s196
      %p198 = pneg %p37
      %p199 = pneg %p34
      %p200 = pneg %p58
      %p201 = pneg %p55
      %p202 = pneg %p79
      %p203 = pneg %p76
      %p204 = pneg %p100
      %p205 = pneg %p97
      %p206 = pneg %p121
      %p207 = pneg %p118
      %p208 = pneg %p147
      %p209 = pneg %p144
      %p210 = scmp.lt.s32.totalorder %s16, 1
      %s211 = scalar_select %p210, %s16, 1
      %s212 = smul.addr %s211, 32
      %s213 = smul.addr %s212, 4
      %s214 = scalar_lea.vmem %s5, %s213
      %p215 = scmp.lt.s32.totalorder %s16, 1
      %s216 = scalar_select %p215, %s16, 1
      %s217 = smul.addr %s216, 32
      %s218 = smul.addr %s217, 4
      %s219 = scalar_lea.vmem %s0, %s218
      %p220 = scmp.lt.s32.totalorder %s16, 1
      %s221 = scalar_select %p220, %s16, 1
      %s222 = smul.addr %s221, 32
      %s223 = smul.addr %s222, 4
      %s224 = scalar_lea.vmem %s5, %s223
      %v226 = vld [vmem:[%s219] sm:$0xf]
      %v227 = vld [vmem:[%s219 + $0x4] sm:$0xf]
      %v228 = vld [vmem:[%s219 + $0x8] sm:$0xf]
      %v229 = vld [vmem:[%s219 + $0xc] sm:$0xf]
      %v230 = vld [vmem:[%s219 + $0x10] sm:$0xf]
      %v231 = vld [vmem:[%s219 + $0x14] sm:$0xf]
      %v232 = vld [vmem:[%s219 + $0x18] sm:$0xf]
      %v233 = vld [vmem:[%s219 + $0x1c] sm:$0xf]
      %v234 = vld [vmem:[%s219 + $0x20] sm:$0xf]
      %v235 = vld [vmem:[%s219 + $0x24] sm:$0xf]
      %v236 = vld [vmem:[%s219 + $0x28] sm:$0xf]
      %v237 = vld [vmem:[%s219 + $0x2c] sm:$0xf]
      %v238 = vld [vmem:[%s219 + $0x30] sm:$0xf]
      %v239 = vld [vmem:[%s219 + $0x34] sm:$0xf]
      %v240 = vld [vmem:[%s219 + $0x38] sm:$0xf]
      %v241 = vld [vmem:[%s219 + $0x3c] sm:$0xf]
      %v242 = vld [vmem:[%s219 + $0x40] sm:$0xf]
      %v243 = vld [vmem:[%s219 + $0x44] sm:$0xf]
      %v244 = vld [vmem:[%s219 + $0x48] sm:$0xf]
      %v245 = vld [vmem:[%s219 + $0x4c] sm:$0xf]
      %v246 = vld [vmem:[%s219 + $0x50] sm:$0xf]
      %v247 = vld [vmem:[%s219 + $0x54] sm:$0xf]
      %v248 = vld [vmem:[%s219 + $0x58] sm:$0xf]
      %v249 = vld [vmem:[%s219 + $0x5c] sm:$0xf]
      %v250 = vld [vmem:[%s219 + $0x60] sm:$0xf]
      %v251 = vld [vmem:[%s219 + $0x64] sm:$0xf]
      %v252 = vld [vmem:[%s219 + $0x68] sm:$0xf]
      %v253 = vld [vmem:[%s219 + $0x6c] sm:$0xf]
      %v254 = vld [vmem:[%s219 + $0x70] sm:$0xf]
      %v255 = vld [vmem:[%s219 + $0x74] sm:$0xf]
      %v256 = vld [vmem:[%s219 + $0x78] sm:$0xf]
      %v257 = vld [vmem:[%s219 + $0x7c] sm:$0xf]
      %v258 = vunpack.c.l.bf16 %v226
      %v259 = vunpack.c.l.bf16 %v227
      %v260 = vunpack.c.l.bf16 %v228
      %v261 = vunpack.c.l.bf16 %v229
      %v262 = vunpack.c.l.bf16 %v230
      %v263 = vunpack.c.l.bf16 %v231
      %v264 = vunpack.c.l.bf16 %v232
      %v265 = vunpack.c.l.bf16 %v233
      %v266 = vunpack.c.l.bf16 %v234
      %v267 = vunpack.c.l.bf16 %v235
      %v268 = vunpack.c.l.bf16 %v236
      %v269 = vunpack.c.l.bf16 %v237
      %v270 = vunpack.c.l.bf16 %v238
      %v271 = vunpack.c.l.bf16 %v239
      %v272 = vunpack.c.l.bf16 %v240
      %v273 = vunpack.c.l.bf16 %v241
      %v274 = vunpack.c.l.bf16 %v242
      %v275 = vunpack.c.l.bf16 %v243
      %v276 = vunpack.c.l.bf16 %v244
      %v277 = vunpack.c.l.bf16 %v245
      %v278 = vunpack.c.l.bf16 %v246
      %v279 = vunpack.c.l.bf16 %v247
      %v280 = vunpack.c.l.bf16 %v248
      %v281 = vunpack.c.l.bf16 %v249
      %v282 = vunpack.c.l.bf16 %v250
      %v283 = vunpack.c.l.bf16 %v251
      %v284 = vunpack.c.l.bf16 %v252
      %v285 = vunpack.c.l.bf16 %v253
      %v286 = vunpack.c.l.bf16 %v254
      %v287 = vunpack.c.l.bf16 %v255
      %v288 = vunpack.c.l.bf16 %v256
      %v289 = vunpack.c.l.bf16 %v257
      %v290 = vld [vmem:[%s1] sm:$0x1]
      %v291 = vld [vmem:[%s2] sm:$0x1]
      %v293 = vperm.slane %v290, 0
      %v295 = vmul.f32 %v258, %v293
      %v296 = vmul.f32 %v259, %v293
      %v297 = vmul.f32 %v260, %v293
      %v298 = vmul.f32 %v261, %v293
      %v299 = vmul.f32 %v262, %v293
      %v300 = vmul.f32 %v263, %v293
      %v301 = vmul.f32 %v264, %v293
      %v302 = vmul.f32 %v265, %v293
      %v303 = vmul.f32 %v266, %v293
      %v304 = vmul.f32 %v267, %v293
      %v305 = vmul.f32 %v268, %v293
      %v306 = vmul.f32 %v269, %v293
      %v307 = vmul.f32 %v270, %v293
      %v308 = vmul.f32 %v271, %v293
      %v309 = vmul.f32 %v272, %v293
      %v310 = vmul.f32 %v273, %v293
      %v311 = vmul.f32 %v274, %v293
      %v312 = vmul.f32 %v275, %v293
      %v313 = vmul.f32 %v276, %v293
      %v314 = vmul.f32 %v277, %v293
      %v315 = vmul.f32 %v278, %v293
      %v316 = vmul.f32 %v279, %v293
      %v317 = vmul.f32 %v280, %v293
      %v318 = vmul.f32 %v281, %v293
      %v319 = vmul.f32 %v282, %v293
      %v320 = vmul.f32 %v283, %v293
      %v321 = vmul.f32 %v284, %v293
      %v322 = vmul.f32 %v285, %v293
      %v323 = vmul.f32 %v286, %v293
      %v324 = vmul.f32 %v287, %v293
      %v325 = vmul.f32 %v288, %v293
      %v326 = vmul.f32 %v289, %v293
      %v328 = vperm.slane %v291, 0
      %v330 = vadd.f32 %v295, %v328
      %v331 = vadd.f32 %v296, %v328
      %v332 = vadd.f32 %v297, %v328
      %v333 = vadd.f32 %v298, %v328
      %v334 = vadd.f32 %v299, %v328
      %v335 = vadd.f32 %v300, %v328
      %v336 = vadd.f32 %v301, %v328
      %v337 = vadd.f32 %v302, %v328
      %v338 = vadd.f32 %v303, %v328
      %v339 = vadd.f32 %v304, %v328
      %v340 = vadd.f32 %v305, %v328
      %v341 = vadd.f32 %v306, %v328
      %v342 = vadd.f32 %v307, %v328
      %v343 = vadd.f32 %v308, %v328
      %v344 = vadd.f32 %v309, %v328
      %v345 = vadd.f32 %v310, %v328
      %v346 = vadd.f32 %v311, %v328
      %v347 = vadd.f32 %v312, %v328
      %v348 = vadd.f32 %v313, %v328
      %v349 = vadd.f32 %v314, %v328
      %v350 = vadd.f32 %v315, %v328
      %v351 = vadd.f32 %v316, %v328
      %v352 = vadd.f32 %v317, %v328
      %v353 = vadd.f32 %v318, %v328
      %v354 = vadd.f32 %v319, %v328
      %v355 = vadd.f32 %v320, %v328
      %v356 = vadd.f32 %v321, %v328
      %v357 = vadd.f32 %v322, %v328
      %v358 = vadd.f32 %v323, %v328
      %v359 = vadd.f32 %v324, %v328
      %v360 = vadd.f32 %v325, %v328
      %v361 = vadd.f32 %v326, %v328
      %v362 = vmax.f32 %v330, 0.0
      %v363 = vmax.f32 %v331, 0.0
      %v364 = vmax.f32 %v332, 0.0
      %v365 = vmax.f32 %v333, 0.0
      %v366 = vmax.f32 %v334, 0.0
      %v367 = vmax.f32 %v335, 0.0
      %v368 = vmax.f32 %v336, 0.0
      %v369 = vmax.f32 %v337, 0.0
      %v370 = vmax.f32 %v338, 0.0
      %v371 = vmax.f32 %v339, 0.0
      %v372 = vmax.f32 %v340, 0.0
      %v373 = vmax.f32 %v341, 0.0
      %v374 = vmax.f32 %v342, 0.0
      %v375 = vmax.f32 %v343, 0.0
      %v376 = vmax.f32 %v344, 0.0
      %v377 = vmax.f32 %v345, 0.0
      %v378 = vmax.f32 %v346, 0.0
      %v379 = vmax.f32 %v347, 0.0
      %v380 = vmax.f32 %v348, 0.0
      %v381 = vmax.f32 %v349, 0.0
      %v382 = vmax.f32 %v350, 0.0
      %v383 = vmax.f32 %v351, 0.0
      %v384 = vmax.f32 %v352, 0.0
      %v385 = vmax.f32 %v353, 0.0
      %v386 = vmax.f32 %v354, 0.0
      %v387 = vmax.f32 %v355, 0.0
      %v388 = vmax.f32 %v356, 0.0
      %v389 = vmax.f32 %v357, 0.0
      %v390 = vmax.f32 %v358, 0.0
      %v391 = vmax.f32 %v359, 0.0
      %v392 = vmax.f32 %v360, 0.0
      %v393 = vmax.f32 %v361, 0.0
      %v394 = vpack.c.bf16 %v362, %v362
      %v395 = vpack.c.bf16 %v363, %v363
      %v396 = vpack.c.bf16 %v364, %v364
      %v397 = vpack.c.bf16 %v365, %v365
      %v398 = vpack.c.bf16 %v366, %v366
      %v399 = vpack.c.bf16 %v367, %v367
      %v400 = vpack.c.bf16 %v368, %v368
      %v401 = vpack.c.bf16 %v369, %v369
      %v402 = vpack.c.bf16 %v370, %v370
      %v403 = vpack.c.bf16 %v371, %v371
      %v404 = vpack.c.bf16 %v372, %v372
      %v405 = vpack.c.bf16 %v373, %v373
      %v406 = vpack.c.bf16 %v374, %v374
      %v407 = vpack.c.bf16 %v375, %v375
      %v408 = vpack.c.bf16 %v376, %v376
      %v409 = vpack.c.bf16 %v377, %v377
      %v410 = vpack.c.bf16 %v378, %v378
      %v411 = vpack.c.bf16 %v379, %v379
      %v412 = vpack.c.bf16 %v380, %v380
      %v413 = vpack.c.bf16 %v381, %v381
      %v414 = vpack.c.bf16 %v382, %v382
      %v415 = vpack.c.bf16 %v383, %v383
      %v416 = vpack.c.bf16 %v384, %v384
      %v417 = vpack.c.bf16 %v385, %v385
      %v418 = vpack.c.bf16 %v386, %v386
      %v419 = vpack.c.bf16 %v387, %v387
      %v420 = vpack.c.bf16 %v388, %v388
      %v421 = vpack.c.bf16 %v389, %v389
      %v422 = vpack.c.bf16 %v390, %v390
      %v423 = vpack.c.bf16 %v391, %v391
      %v424 = vpack.c.bf16 %v392, %v392
      %v425 = vpack.c.bf16 %v393, %v393
      %426 = vst [vmem:[#allocation2] sm:$0xf] 0
      %427 = vst [vmem:[#allocation2 + $0x4] sm:$0xf] 0
      %428 = vst [vmem:[#allocation2 + $0x8] sm:$0x1] 0
      %s429 = scalar_lea.vmem [#allocation2], 204
      %430 = vst [vmem:[%s429] sm:$0xf] 0
      %431 = vst [vmem:[%s429 + $0x4] sm:$0xf] 0
      %432 = vst [vmem:[%s429 + $0x8] sm:$0x1] 0
      %vm433 = vcmask 1040384
      %vm434 = vsmask.f32 256
      %vm435 = vmand %vm433, %vm434
      %v436 = vld [vmem:[#allocation2] sm:$0x1]
      %v437 = vsel %vm435, 0, %v436
      %438 = vst [vmem:[#allocation2] sm:$0x1] %v437
      %v439 = vld [vmem:[#allocation2 + $0xc] sm:$0x1]
      %v440 = vsel %vm435, 0, %v439
      %441 = vst [vmem:[#allocation2 + $0xc] sm:$0x1] %v440
      %v442 = vld [vmem:[#allocation2 + $0x18] sm:$0x1]
      %v443 = vsel %vm435, 0, %v442
      %444 = vst [vmem:[#allocation2 + $0x18] sm:$0x1] %v443
      %v445 = vld [vmem:[#allocation2 + $0x24] sm:$0x1]
      %v446 = vsel %vm435, 0, %v445
      %447 = vst [vmem:[#allocation2 + $0x24] sm:$0x1] %v446
      %v448 = vld [vmem:[#allocation2 + $0x30] sm:$0x1]
      %v449 = vsel %vm435, 0, %v448
      %450 = vst [vmem:[#allocation2 + $0x30] sm:$0x1] %v449
      %v451 = vld [vmem:[#allocation2 + $0x3c] sm:$0x1]
      %v452 = vsel %vm435, 0, %v451
      %453 = vst [vmem:[#allocation2 + $0x3c] sm:$0x1] %v452
      %v454 = vld [vmem:[#allocation2 + $0x48] sm:$0x1]
      %v455 = vsel %vm435, 0, %v454
      %456 = vst [vmem:[#allocation2 + $0x48] sm:$0x1] %v455
      %v457 = vld [vmem:[#allocation2 + $0x54] sm:$0x1]
      %v458 = vsel %vm435, 0, %v457
      %459 = vst [vmem:[#allocation2 + $0x54] sm:$0x1] %v458
      %v460 = vld [vmem:[#allocation2 + $0x60] sm:$0x1]
      %v461 = vsel %vm435, 0, %v460
      %462 = vst [vmem:[#allocation2 + $0x60] sm:$0x1] %v461
      %v463 = vld [vmem:[#allocation2 + $0x6c] sm:$0x1]
      %v464 = vsel %vm435, 0, %v463
      %465 = vst [vmem:[#allocation2 + $0x6c] sm:$0x1] %v464
      %v466 = vld [vmem:[#allocation2 + $0x78] sm:$0x1]
      %v467 = vsel %vm435, 0, %v466
      %468 = vst [vmem:[#allocation2 + $0x78] sm:$0x1] %v467
      %v469 = vld [vmem:[#allocation2 + $0x84] sm:$0x1]
      %v470 = vsel %vm435, 0, %v469
      %471 = vst [vmem:[#allocation2 + $0x84] sm:$0x1] %v470
      %v472 = vld [vmem:[#allocation2 + $0x90] sm:$0x1]
      %v473 = vsel %vm435, 0, %v472
      %474 = vst [vmem:[#allocation2 + $0x90] sm:$0x1] %v473
      %v475 = vld [vmem:[#allocation2 + $0x9c] sm:$0x1]
      %v476 = vsel %vm435, 0, %v475
      %477 = vst [vmem:[#allocation2 + $0x9c] sm:$0x1] %v476
      %v478 = vld [vmem:[#allocation2 + $0xa8] sm:$0x1]
      %v479 = vsel %vm435, 0, %v478
      %480 = vst [vmem:[#allocation2 + $0xa8] sm:$0x1] %v479
      %v481 = vld [vmem:[#allocation2 + $0xb4] sm:$0x1]
      %v482 = vsel %vm435, 0, %v481
      %483 = vst [vmem:[#allocation2 + $0xb4] sm:$0x1] %v482
      %v484 = vld [vmem:[#allocation2 + $0xc0] sm:$0x1]
      %v485 = vsel %vm435, 0, %v484
      %486 = vst [vmem:[#allocation2 + $0xc0] sm:$0x1] %v485
      %v487 = vld [vmem:[#allocation2 + $0xcc] sm:$0x1]
      %v488 = vsel %vm435, 0, %v487
      %489 = vst [vmem:[#allocation2 + $0xcc] sm:$0x1] %v488
      %vm490 = vsmask.f32 7938
      %vm491 = vmand %vm433, %vm490
      %v492 = vld [vmem:[#allocation2 + $0x8] sm:$0x1]
      %v493 = vsel %vm491, 0, %v492
      %494 = vst [vmem:[#allocation2 + $0x8] sm:$0x1] %v493
      %v495 = vld [vmem:[#allocation2 + $0x14] sm:$0x1]
      %v496 = vsel %vm491, 0, %v495
      %497 = vst [vmem:[#allocation2 + $0x14] sm:$0x1] %v496
      %v498 = vld [vmem:[#allocation2 + $0x20] sm:$0x1]
      %v499 = vsel %vm491, 0, %v498
      %500 = vst [vmem:[#allocation2 + $0x20] sm:$0x1] %v499
      %v501 = vld [vmem:[#allocation2 + $0x2c] sm:$0x1]
      %v502 = vsel %vm491, 0, %v501
      %503 = vst [vmem:[#allocation2 + $0x2c] sm:$0x1] %v502
      %v504 = vld [vmem:[#allocation2 + $0x38] sm:$0x1]
      %v505 = vsel %vm491, 0, %v504
      %506 = vst [vmem:[#allocation2 + $0x38] sm:$0x1] %v505
      %v507 = vld [vmem:[#allocation2 + $0x44] sm:$0x1]
      %v508 = vsel %vm491, 0, %v507
      %509 = vst [vmem:[#allocation2 + $0x44] sm:$0x1] %v508
      %v510 = vld [vmem:[#allocation2 + $0x50] sm:$0x1]
      %v511 = vsel %vm491, 0, %v510
      %512 = vst [vmem:[#allocation2 + $0x50] sm:$0x1] %v511
      %v513 = vld [vmem:[#allocation2 + $0x5c] sm:$0x1]
      %v514 = vsel %vm491, 0, %v513
      %515 = vst [vmem:[#allocation2 + $0x5c] sm:$0x1] %v514
      %v516 = vld [vmem:[#allocation2 + $0x68] sm:$0x1]
      %v517 = vsel %vm491, 0, %v516
      %518 = vst [vmem:[#allocation2 + $0x68] sm:$0x1] %v517
      %v519 = vld [vmem:[#allocation2 + $0x74] sm:$0x1]
      %v520 = vsel %vm491, 0, %v519
      %521 = vst [vmem:[#allocation2 + $0x74] sm:$0x1] %v520
      %v522 = vld [vmem:[#allocation2 + $0x80] sm:$0x1]
      %v523 = vsel %vm491, 0, %v522
      %524 = vst [vmem:[#allocation2 + $0x80] sm:$0x1] %v523
      %v525 = vld [vmem:[#allocation2 + $0x8c] sm:$0x1]
      %v526 = vsel %vm491, 0, %v525
      %527 = vst [vmem:[#allocation2 + $0x8c] sm:$0x1] %v526
      %v528 = vld [vmem:[#allocation2 + $0x98] sm:$0x1]
      %v529 = vsel %vm491, 0, %v528
      %530 = vst [vmem:[#allocation2 + $0x98] sm:$0x1] %v529
      %v531 = vld [vmem:[#allocation2 + $0xa4] sm:$0x1]
      %v532 = vsel %vm491, 0, %v531
      %533 = vst [vmem:[#allocation2 + $0xa4] sm:$0x1] %v532
      %v534 = vld [vmem:[#allocation2 + $0xb0] sm:$0x1]
      %v535 = vsel %vm491, 0, %v534
      %536 = vst [vmem:[#allocation2 + $0xb0] sm:$0x1] %v535
      %v537 = vld [vmem:[#allocation2 + $0xbc] sm:$0x1]
      %v538 = vsel %vm491, 0, %v537
      %539 = vst [vmem:[#allocation2 + $0xbc] sm:$0x1] %v538
      %v540 = vld [vmem:[#allocation2 + $0xc8] sm:$0x1]
      %v541 = vsel %vm491, 0, %v540
      %542 = vst [vmem:[#allocation2 + $0xc8] sm:$0x1] %v541
      %v543 = vld [vmem:[#allocation2 + $0xd4] sm:$0x1]
      %v544 = vsel %vm491, 0, %v543
      %545 = vst [vmem:[#allocation2 + $0xd4] sm:$0x1] %v544
      %vm546 = vsmask.f32 4368
      %vm547 = vmor %vm434, %vm546
      %v549 = vshrl.u32 %v394, 16
      %v551 = vrot.slane %v549, 7
      %v552 = vshll.u32 %v394, 16
      %v554 = vor.u32 %v551, %v552
      %v555 = vrot.slane %v551, 4
      %v557 = vshrl.u32 %v395, 16
      %v559 = vrot.slane %v557, 7
      %v560 = vshll.u32 %v395, 16
      %v562 = vor.u32 %v559, %v560
      %v563 = vsel %vm547, %v555, %v562
      %v564 = vrot.slane %v559, 4
      %v566 = vshrl.u32 %v396, 16
      %v568 = vrot.slane %v566, 7
      %v569 = vshll.u32 %v396, 16
      %v571 = vor.u32 %v568, %v569
      %v572 = vrot.slane %v568, 4
      %v574 = vshrl.u32 %v397, 16
      %v576 = vrot.slane %v574, 7
      %v577 = vshll.u32 %v397, 16
      %v579 = vor.u32 %v576, %v577
      %v580 = vsel %vm547, %v572, %v579
      %v581 = vrot.slane %v576, 4
      %v583 = vshrl.u32 %v398, 16
      %v585 = vrot.slane %v583, 7
      %v586 = vshll.u32 %v398, 16
      %v588 = vor.u32 %v585, %v586
      %v589 = vrot.slane %v585, 4
      %v591 = vshrl.u32 %v399, 16
      %v593 = vrot.slane %v591, 7
      %v594 = vshll.u32 %v399, 16
      %v596 = vor.u32 %v593, %v594
      %v597 = vsel %vm547, %v589, %v596
      %v598 = vrot.slane %v593, 4
      %v600 = vshrl.u32 %v400, 16
      %v602 = vrot.slane %v600, 7
      %v603 = vshll.u32 %v400, 16
      %v605 = vor.u32 %v602, %v603
      %v606 = vrot.slane %v602, 4
      %v608 = vshrl.u32 %v401, 16
      %v610 = vrot.slane %v608, 7
      %v611 = vshll.u32 %v401, 16
      %v613 = vor.u32 %v610, %v611
      %v614 = vsel %vm547, %v606, %v613
      %v615 = vrot.slane %v610, 4
      %v617 = vshrl.u32 %v402, 16
      %v619 = vrot.slane %v617, 7
      %v620 = vshll.u32 %v402, 16
      %v622 = vor.u32 %v619, %v620
      %v623 = vrot.slane %v619, 4
      %v625 = vshrl.u32 %v403, 16
      %v627 = vrot.slane %v625, 7
      %v628 = vshll.u32 %v403, 16
      %v630 = vor.u32 %v627, %v628
      %v631 = vsel %vm547, %v623, %v630
      %v632 = vrot.slane %v627, 4
      %v634 = vshrl.u32 %v404, 16
      %v636 = vrot.slane %v634, 7
      %v637 = vshll.u32 %v404, 16
      %v639 = vor.u32 %v636, %v637
      %v640 = vrot.slane %v636, 4
      %v642 = vshrl.u32 %v405, 16
      %v644 = vrot.slane %v642, 7
      %v645 = vshll.u32 %v405, 16
      %v647 = vor.u32 %v644, %v645
      %v648 = vsel %vm547, %v640, %v647
      %v649 = vrot.slane %v644, 4
      %v651 = vshrl.u32 %v406, 16
      %v653 = vrot.slane %v651, 7
      %v654 = vshll.u32 %v406, 16
      %v656 = vor.u32 %v653, %v654
      %v657 = vrot.slane %v653, 4
      %v659 = vshrl.u32 %v407, 16
      %v661 = vrot.slane %v659, 7
      %v662 = vshll.u32 %v407, 16
      %v664 = vor.u32 %v661, %v662
      %v665 = vsel %vm547, %v657, %v664
      %v666 = vrot.slane %v661, 4
      %v668 = vshrl.u32 %v408, 16
      %v670 = vrot.slane %v668, 7
      %v671 = vshll.u32 %v408, 16
      %v673 = vor.u32 %v670, %v671
      %v674 = vrot.slane %v670, 4
      %v676 = vshrl.u32 %v409, 16
      %v678 = vrot.slane %v676, 7
      %v679 = vshll.u32 %v409, 16
      %v681 = vor.u32 %v678, %v679
      %v682 = vsel %vm547, %v674, %v681
      %v683 = vrot.slane %v678, 4
      %v685 = vshrl.u32 %v410, 16
      %v687 = vrot.slane %v685, 7
      %v688 = vshll.u32 %v410, 16
      %v690 = vor.u32 %v687, %v688
      %v691 = vrot.slane %v687, 4
      %v693 = vshrl.u32 %v411, 16
      %v695 = vrot.slane %v693, 7
      %v696 = vshll.u32 %v411, 16
      %v698 = vor.u32 %v695, %v696
      %v699 = vsel %vm547, %v691, %v698
      %v700 = vrot.slane %v695, 4
      %v702 = vshrl.u32 %v412, 16
      %v704 = vrot.slane %v702, 7
      %v705 = vshll.u32 %v412, 16
      %v707 = vor.u32 %v704, %v705
      %v708 = vrot.slane %v704, 4
      %v710 = vshrl.u32 %v413, 16
      %v712 = vrot.slane %v710, 7
      %v713 = vshll.u32 %v413, 16
      %v715 = vor.u32 %v712, %v713
      %v716 = vsel %vm547, %v708, %v715
      %v717 = vrot.slane %v712, 4
      %v719 = vshrl.u32 %v414, 16
      %v721 = vrot.slane %v719, 7
      %v722 = vshll.u32 %v414, 16
      %v724 = vor.u32 %v721, %v722
      %v725 = vrot.slane %v721, 4
      %v727 = vshrl.u32 %v415, 16
      %v729 = vrot.slane %v727, 7
      %v730 = vshll.u32 %v415, 16
      %v732 = vor.u32 %v729, %v730
      %v733 = vsel %vm547, %v725, %v732
      %v734 = vrot.slane %v729, 4
      %v736 = vshrl.u32 %v416, 16
      %v738 = vrot.slane %v736, 7
      %v739 = vshll.u32 %v416, 16
      %v741 = vor.u32 %v738, %v739
      %v742 = vrot.slane %v738, 4
      %v744 = vshrl.u32 %v417, 16
      %v746 = vrot.slane %v744, 7
      %v747 = vshll.u32 %v417, 16
      %v749 = vor.u32 %v746, %v747
      %v750 = vsel %vm547, %v742, %v749
      %v751 = vrot.slane %v746, 4
      %v753 = vshrl.u32 %v418, 16
      %v755 = vrot.slane %v753, 7
      %v756 = vshll.u32 %v418, 16
      %v758 = vor.u32 %v755, %v756
      %v759 = vrot.slane %v755, 4
      %v761 = vshrl.u32 %v419, 16
      %v763 = vrot.slane %v761, 7
      %v764 = vshll.u32 %v419, 16
      %v766 = vor.u32 %v763, %v764
      %v767 = vsel %vm547, %v759, %v766
      %v768 = vrot.slane %v763, 4
      %v770 = vshrl.u32 %v420, 16
      %v772 = vrot.slane %v770, 7
      %v773 = vshll.u32 %v420, 16
      %v775 = vor.u32 %v772, %v773
      %v776 = vrot.slane %v772, 4
      %v778 = vshrl.u32 %v421, 16
      %v780 = vrot.slane %v778, 7
      %v781 = vshll.u32 %v421, 16
      %v783 = vor.u32 %v780, %v781
      %v784 = vsel %vm547, %v776, %v783
      %v785 = vrot.slane %v780, 4
      %v787 = vshrl.u32 %v422, 16
      %v789 = vrot.slane %v787, 7
      %v790 = vshll.u32 %v422, 16
      %v792 = vor.u32 %v789, %v790
      %v793 = vrot.slane %v789, 4
      %v795 = vshrl.u32 %v423, 16
      %v797 = vrot.slane %v795, 7
      %v798 = vshll.u32 %v423, 16
      %v800 = vor.u32 %v797, %v798
      %v801 = vsel %vm547, %v793, %v800
      %v802 = vrot.slane %v797, 4
      %v804 = vshrl.u32 %v424, 16
      %v806 = vrot.slane %v804, 7
      %v807 = vshll.u32 %v424, 16
      %v809 = vor.u32 %v806, %v807
      %v810 = vrot.slane %v806, 4
      %v812 = vshrl.u32 %v425, 16
      %v814 = vrot.slane %v812, 7
      %v815 = vshll.u32 %v425, 16
      %v817 = vor.u32 %v814, %v815
      %v818 = vsel %vm547, %v810, %v817
      %v819 = vrot.slane %v814, 4
      %s868 = scalar_lea.vmem [#allocation2], 12
      %vm869 = vcmask 1043456
      %vm870 = vmand %vm869, %vm490
      %v871 = vld [vmem:[%s868] sm:$0xf]
      %v872 = vsel %vm870, %v554, %v871
      %873 = vst [vmem:[%s868] sm:$0xf] %v872
      %874 = vst [vmem:[%s868 + $0x4] sm:$0xf] %v563
      %v875 = vld [vmem:[%s868 + $0x8] sm:$0x1]
      %v876 = vsel %vm435, %v564, %v875
      %877 = vst [vmem:[%s868 + $0x8] sm:$0x1] %v876
      %v878 = vld [vmem:[%s868 + $0xc] sm:$0xf]
      %v879 = vsel %vm870, %v571, %v878
      %880 = vst [vmem:[%s868 + $0xc] sm:$0xf] %v879
      %881 = vst [vmem:[%s868 + $0x10] sm:$0xf] %v580
      %v882 = vld [vmem:[%s868 + $0x14] sm:$0x1]
      %v883 = vsel %vm435, %v581, %v882
      %884 = vst [vmem:[%s868 + $0x14] sm:$0x1] %v883
      %v885 = vld [vmem:[%s868 + $0x18] sm:$0xf]
      %v886 = vsel %vm870, %v588, %v885
      %887 = vst [vmem:[%s868 + $0x18] sm:$0xf] %v886
      %888 = vst [vmem:[%s868 + $0x1c] sm:$0xf] %v597
      %v889 = vld [vmem:[%s868 + $0x20] sm:$0x1]
      %v890 = vsel %vm435, %v598, %v889
      %891 = vst [vmem:[%s868 + $0x20] sm:$0x1] %v890
      %v892 = vld [vmem:[%s868 + $0x24] sm:$0xf]
      %v893 = vsel %vm870, %v605, %v892
      %894 = vst [vmem:[%s868 + $0x24] sm:$0xf] %v893
      %895 = vst [vmem:[%s868 + $0x28] sm:$0xf] %v614
      %v896 = vld [vmem:[%s868 + $0x2c] sm:$0x1]
      %v897 = vsel %vm435, %v615, %v896
      %898 = vst [vmem:[%s868 + $0x2c] sm:$0x1] %v897
      %v899 = vld [vmem:[%s868 + $0x30] sm:$0xf]
      %v900 = vsel %vm870, %v622, %v899
      %901 = vst [vmem:[%s868 + $0x30] sm:$0xf] %v900
      %902 = vst [vmem:[%s868 + $0x34] sm:$0xf] %v631
      %v903 = vld [vmem:[%s868 + $0x38] sm:$0x1]
      %v904 = vsel %vm435, %v632, %v903
      %905 = vst [vmem:[%s868 + $0x38] sm:$0x1] %v904
      %v906 = vld [vmem:[%s868 + $0x3c] sm:$0xf]
      %v907 = vsel %vm870, %v639, %v906
      %908 = vst [vmem:[%s868 + $0x3c] sm:$0xf] %v907
      %909 = vst [vmem:[%s868 + $0x40] sm:$0xf] %v648
      %v910 = vld [vmem:[%s868 + $0x44] sm:$0x1]
      %v911 = vsel %vm435, %v649, %v910
      %912 = vst [vmem:[%s868 + $0x44] sm:$0x1] %v911
      %v913 = vld [vmem:[%s868 + $0x48] sm:$0xf]
      %v914 = vsel %vm870, %v656, %v913
      %915 = vst [vmem:[%s868 + $0x48] sm:$0xf] %v914
      %916 = vst [vmem:[%s868 + $0x4c] sm:$0xf] %v665
      %v917 = vld [vmem:[%s868 + $0x50] sm:$0x1]
      %v918 = vsel %vm435, %v666, %v917
      %919 = vst [vmem:[%s868 + $0x50] sm:$0x1] %v918
      %v920 = vld [vmem:[%s868 + $0x54] sm:$0xf]
      %v921 = vsel %vm870, %v673, %v920
      %922 = vst [vmem:[%s868 + $0x54] sm:$0xf] %v921
      %923 = vst [vmem:[%s868 + $0x58] sm:$0xf] %v682
      %v924 = vld [vmem:[%s868 + $0x5c] sm:$0x1]
      %v925 = vsel %vm435, %v683, %v924
      %926 = vst [vmem:[%s868 + $0x5c] sm:$0x1] %v925
      %v927 = vld [vmem:[%s868 + $0x60] sm:$0xf]
      %v928 = vsel %vm870, %v690, %v927
      %929 = vst [vmem:[%s868 + $0x60] sm:$0xf] %v928
      %930 = vst [vmem:[%s868 + $0x64] sm:$0xf] %v699
      %v931 = vld [vmem:[%s868 + $0x68] sm:$0x1]
      %v932 = vsel %vm435, %v700, %v931
      %933 = vst [vmem:[%s868 + $0x68] sm:$0x1] %v932
      %v934 = vld [vmem:[%s868 + $0x6c] sm:$0xf]
      %v935 = vsel %vm870, %v707, %v934
      %936 = vst [vmem:[%s868 + $0x6c] sm:$0xf] %v935
      %937 = vst [vmem:[%s868 + $0x70] sm:$0xf] %v716
      %v938 = vld [vmem:[%s868 + $0x74] sm:$0x1]
      %v939 = vsel %vm435, %v717, %v938
      %940 = vst [vmem:[%s868 + $0x74] sm:$0x1] %v939
      %v941 = vld [vmem:[%s868 + $0x78] sm:$0xf]
      %v942 = vsel %vm870, %v724, %v941
      %943 = vst [vmem:[%s868 + $0x78] sm:$0xf] %v942
      %944 = vst [vmem:[%s868 + $0x7c] sm:$0xf] %v733
      %v945 = vld [vmem:[%s868 + $0x80] sm:$0x1]
      %v946 = vsel %vm435, %v734, %v945
      %947 = vst [vmem:[%s868 + $0x80] sm:$0x1] %v946
      %v948 = vld [vmem:[%s868 + $0x84] sm:$0xf]
      %v949 = vsel %vm870, %v741, %v948
      %950 = vst [vmem:[%s868 + $0x84] sm:$0xf] %v949
      %951 = vst [vmem:[%s868 + $0x88] sm:$0xf] %v750
      %v952 = vld [vmem:[%s868 + $0x8c] sm:$0x1]
      %v953 = vsel %vm435, %v751, %v952
      %954 = vst [vmem:[%s868 + $0x8c] sm:$0x1] %v953
      %v955 = vld [vmem:[%s868 + $0x90] sm:$0xf]
      %v956 = vsel %vm870, %v758, %v955
      %957 = vst [vmem:[%s868 + $0x90] sm:$0xf] %v956
      %958 = vst [vmem:[%s868 + $0x94] sm:$0xf] %v767
      %v959 = vld [vmem:[%s868 + $0x98] sm:$0x1]
      %v960 = vsel %vm435, %v768, %v959
      %961 = vst [vmem:[%s868 + $0x98] sm:$0x1] %v960
      %v962 = vld [vmem:[%s868 + $0x9c] sm:$0xf]
      %v963 = vsel %vm870, %v775, %v962
      %964 = vst [vmem:[%s868 + $0x9c] sm:$0xf] %v963
      %965 = vst [vmem:[%s868 + $0xa0] sm:$0xf] %v784
      %v966 = vld [vmem:[%s868 + $0xa4] sm:$0x1]
      %v967 = vsel %vm435, %v785, %v966
      %968 = vst [vmem:[%s868 + $0xa4] sm:$0x1] %v967
      %v969 = vld [vmem:[%s868 + $0xa8] sm:$0xf]
      %v970 = vsel %vm870, %v792, %v969
      %971 = vst [vmem:[%s868 + $0xa8] sm:$0xf] %v970
      %972 = vst [vmem:[%s868 + $0xac] sm:$0xf] %v801
      %v973 = vld [vmem:[%s868 + $0xb0] sm:$0x1]
      %v974 = vsel %vm435, %v802, %v973
      %975 = vst [vmem:[%s868 + $0xb0] sm:$0x1] %v974
      %v976 = vld [vmem:[%s868 + $0xb4] sm:$0xf]
      %v977 = vsel %vm870, %v809, %v976
      %978 = vst [vmem:[%s868 + $0xb4] sm:$0xf] %v977
      %979 = vst [vmem:[%s868 + $0xb8] sm:$0xf] %v818
      %v980 = vld [vmem:[%s868 + $0xbc] sm:$0x1]
      %v981 = vsel %vm435, %v819, %v980
      %982 = vst [vmem:[%s868 + $0xbc] sm:$0x1] %v981
      %v983 = vld [vmem:[%s4] sm:$0x1]
      %v984 = vld [vmem:[#allocation2] sm:$0xf]
      %v985 = vld [vmem:[#allocation2 + $0x4] sm:$0xf]
      %v986 = vld [vmem:[#allocation2 + $0xc] sm:$0xf]
      %v987 = vld [vmem:[#allocation2 + $0x10] sm:$0xf]
      %v988 = vld [vmem:[#allocation2 + $0x18] sm:$0xf]
      %v989 = vld [vmem:[#allocation2 + $0x1c] sm:$0xf]
      %v990 = vld [vmem:[#allocation2 + $0x24] sm:$0xf]
      %v991 = vld [vmem:[#allocation2 + $0x28] sm:$0xf]
      %v992 = vld [vmem:[#allocation2 + $0x30] sm:$0xf]
      %v993 = vld [vmem:[#allocation2 + $0x34] sm:$0xf]
      %v994 = vld [vmem:[#allocation2 + $0x3c] sm:$0xf]
      %v995 = vld [vmem:[#allocation2 + $0x40] sm:$0xf]
      %v996 = vld [vmem:[#allocation2 + $0x48] sm:$0xf]
      %v997 = vld [vmem:[#allocation2 + $0x4c] sm:$0xf]
      %v998 = vld [vmem:[#allocation2 + $0x54] sm:$0xf]
      %v999 = vld [vmem:[#allocation2 + $0x58] sm:$0xf]
      %v1000 = vld [vmem:[#allocation2 + $0x60] sm:$0xf]
      %v1001 = vld [vmem:[#allocation2 + $0x64] sm:$0xf]
      %v1002 = vld [vmem:[#allocation2 + $0x6c] sm:$0xf]
      %v1003 = vld [vmem:[#allocation2 + $0x70] sm:$0xf]
      %v1004 = vld [vmem:[#allocation2 + $0x78] sm:$0xf]
      %v1005 = vld [vmem:[#allocation2 + $0x7c] sm:$0xf]
      %v1006 = vld [vmem:[#allocation2 + $0x84] sm:$0xf]
      %v1007 = vld [vmem:[#allocation2 + $0x88] sm:$0xf]
      %v1008 = vld [vmem:[#allocation2 + $0x90] sm:$0xf]
      %v1009 = vld [vmem:[#allocation2 + $0x94] sm:$0xf]
      %v1010 = vld [vmem:[#allocation2 + $0x9c] sm:$0xf]
      %v1011 = vld [vmem:[#allocation2 + $0xa0] sm:$0xf]
      %v1012 = vld [vmem:[#allocation2 + $0xa8] sm:$0xf]
      %v1013 = vld [vmem:[#allocation2 + $0xac] sm:$0xf]
      %v1014 = vld [vmem:[#allocation2 + $0xb4] sm:$0xf]
      %v1015 = vld [vmem:[#allocation2 + $0xb8] sm:$0xf]
      %v1016 = vld [vmem:[%s3] sm:$0xf]
      %v1017 = vld [vmem:[%s3 + $0x4] sm:$0xf]
      %v1018 = vld [vmem:[%s3 + $0x8] sm:$0xf]
      %v1019 = vld [vmem:[%s3 + $0xc] sm:$0xf]
      %v1020 = vld [vmem:[%s3 + $0x10] sm:$0xf]
      %v1021 = vld [vmem:[%s3 + $0x14] sm:$0xf]
      %v1022 = vld [vmem:[%s3 + $0x18] sm:$0xf]
      %v1023 = vld [vmem:[%s3 + $0x1c] sm:$0xf]
      %v1024 = vld [vmem:[%s3 + $0x20] sm:$0xf]
      %v1025 = vld [vmem:[%s3 + $0x24] sm:$0xf]
      %v1026 = vld [vmem:[%s3 + $0x28] sm:$0xf]
      %v1027 = vld [vmem:[%s3 + $0x2c] sm:$0xf]
      %v1028 = vld [vmem:[%s3 + $0x30] sm:$0xf]
      %v1029 = vld [vmem:[%s3 + $0x34] sm:$0xf]
      %v1030 = vld [vmem:[%s3 + $0x38] sm:$0xf]
      %v1031 = vld [vmem:[%s3 + $0x3c] sm:$0xf]
      %v1064 = vunpack.c.l.b16 %v984
      %v1065 = vunpack.c.l.b16 %v985
      %v1066 = vunpack.c.l.b16 %v986
      %v1067 = vunpack.c.l.b16 %v987
      %v1068 = vunpack.c.l.b16 %v988
      %v1069 = vunpack.c.l.b16 %v989
      %v1070 = vunpack.c.l.b16 %v990
      %v1071 = vunpack.c.l.b16 %v991
      %v1072 = vunpack.c.l.b16 %v992
      %v1073 = vunpack.c.l.b16 %v993
      %v1074 = vunpack.c.l.b16 %v994
      %v1075 = vunpack.c.l.b16 %v995
      %v1076 = vunpack.c.l.b16 %v996
      %v1077 = vunpack.c.l.b16 %v997
      %v1078 = vunpack.c.l.b16 %v998
      %v1079 = vunpack.c.l.b16 %v999
      %v1080 = vunpack.c.l.b16 %v1000
      %v1081 = vunpack.c.l.b16 %v1001
      %v1082 = vunpack.c.l.b16 %v1002
      %v1083 = vunpack.c.l.b16 %v1003
      %v1084 = vunpack.c.l.b16 %v1004
      %v1085 = vunpack.c.l.b16 %v1005
      %v1086 = vunpack.c.l.b16 %v1006
      %v1087 = vunpack.c.l.b16 %v1007
      %v1088 = vunpack.c.l.b16 %v1008
      %v1089 = vunpack.c.l.b16 %v1009
      %v1090 = vunpack.c.l.b16 %v1010
      %v1091 = vunpack.c.l.b16 %v1011
      %v1092 = vunpack.c.l.b16 %v1012
      %v1093 = vunpack.c.l.b16 %v1013
      %v1094 = vunpack.c.l.b16 %v1014
      %v1095 = vunpack.c.l.b16 %v1015
      %v1096 = vpack.c.b16 %v1065, %v1064
      %v1097 = vpack.c.b16 %v1067, %v1066
      %v1098 = vpack.c.b16 %v1069, %v1068
      %v1099 = vpack.c.b16 %v1071, %v1070
      %v1100 = vpack.c.b16 %v1073, %v1072
      %v1101 = vpack.c.b16 %v1075, %v1074
      %v1102 = vpack.c.b16 %v1077, %v1076
      %v1103 = vpack.c.b16 %v1079, %v1078
      %v1104 = vpack.c.b16 %v1081, %v1080
      %v1105 = vpack.c.b16 %v1083, %v1082
      %v1106 = vpack.c.b16 %v1085, %v1084
      %v1107 = vpack.c.b16 %v1087, %v1086
      %v1108 = vpack.c.b16 %v1089, %v1088
      %v1109 = vpack.c.b16 %v1091, %v1090
      %v1110 = vpack.c.b16 %v1093, %v1092
      %v1111 = vpack.c.b16 %v1095, %v1094
      %v1144 = vunpack.c.l.b16 %v1016
      %v1145 = vunpack.c.l.b16 %v1017
      %v1146 = vunpack.c.l.b16 %v1018
      %v1147 = vunpack.c.l.b16 %v1019
      %v1148 = vunpack.c.l.b16 %v1020
      %v1149 = vunpack.c.l.b16 %v1021
      %v1150 = vunpack.c.l.b16 %v1022
      %v1151 = vunpack.c.l.b16 %v1023
      %v1152 = vunpack.c.l.b16 %v1024
      %v1153 = vunpack.c.l.b16 %v1025
      %v1154 = vunpack.c.l.b16 %v1026
      %v1155 = vunpack.c.l.b16 %v1027
      %v1156 = vunpack.c.l.b16 %v1028
      %v1157 = vunpack.c.l.b16 %v1029
      %v1158 = vunpack.c.l.b16 %v1030
      %v1159 = vunpack.c.l.b16 %v1031
      %v1160 = vpack.c.b16 %v1145, %v1144
      %v1161 = vpack.c.b16 %v1147, %v1146
      %v1162 = vpack.c.b16 %v1149, %v1148
      %v1163 = vpack.c.b16 %v1151, %v1150
      %v1164 = vpack.c.b16 %v1153, %v1152
      %v1165 = vpack.c.b16 %v1155, %v1154
      %v1166 = vpack.c.b16 %v1157, %v1156
      %v1167 = vpack.c.b16 %v1159, %v1158
      %1176 = vmatpush.bf16.msra.mxu0 %v1167
      %1177 = vmatpush.bf16.msra.mxu0 %v1166
      %1178 = vmatpush.bf16.msra.mxu0 %v1165
      %1179 = vmatpush.bf16.msra.mxu0 %v1164
      %1180 = vmatpush.bf16.msra.mxu0 %v1163
      %1181 = vmatpush.bf16.msra.mxu0 %v1162
      %1182 = vmatpush.bf16.msra.mxu0 %v1161
      %1183 = vmatpush.bf16.msra.mxu0 %v1160
      %1184 = vmatmul.bf16.gmra.mxu0 %v1096
      %v1185 = vpop.f32.mrf.mxu0
      %v1186 = vadd.f32 0.0, %v1185
      %v1187 = vpop.f32.mrf.mxu0
      %v1188 = vadd.f32 0.0, %v1187
      %1189 = vmatmul.bf16.gmra.mxu0 %v1097
      %v1190 = vpop.f32.mrf.mxu0
      %v1191 = vadd.f32 0.0, %v1190
      %v1192 = vpop.f32.mrf.mxu0
      %v1193 = vadd.f32 0.0, %v1192
      %1194 = vmatmul.bf16.gmra.mxu0 %v1098
      %v1195 = vpop.f32.mrf.mxu0
      %v1196 = vadd.f32 0.0, %v1195
      %v1197 = vpop.f32.mrf.mxu0
      %v1198 = vadd.f32 0.0, %v1197
      %1199 = vmatmul.bf16.gmra.mxu0 %v1099
      %v1200 = vpop.f32.mrf.mxu0
      %v1201 = vadd.f32 0.0, %v1200
      %v1202 = vpop.f32.mrf.mxu0
      %v1203 = vadd.f32 0.0, %v1202
      %1204 = vmatmul.bf16.gmra.mxu0 %v1100
      %v1205 = vpop.f32.mrf.mxu0
      %v1206 = vadd.f32 0.0, %v1205
      %v1207 = vpop.f32.mrf.mxu0
      %v1208 = vadd.f32 0.0, %v1207
      %1209 = vmatmul.bf16.gmra.mxu0 %v1101
      %v1210 = vpop.f32.mrf.mxu0
      %v1211 = vadd.f32 0.0, %v1210
      %v1212 = vpop.f32.mrf.mxu0
      %v1213 = vadd.f32 0.0, %v1212
      %1214 = vmatmul.bf16.gmra.mxu0 %v1102
      %v1215 = vpop.f32.mrf.mxu0
      %v1216 = vadd.f32 0.0, %v1215
      %v1217 = vpop.f32.mrf.mxu0
      %v1218 = vadd.f32 0.0, %v1217
      %1219 = vmatmul.bf16.gmra.mxu0 %v1103
      %v1220 = vpop.f32.mrf.mxu0
      %v1221 = vadd.f32 0.0, %v1220
      %v1222 = vpop.f32.mrf.mxu0
      %v1223 = vadd.f32 0.0, %v1222
      %1224 = vmatmul.bf16.gmra.mxu0 %v1104
      %v1225 = vpop.f32.mrf.mxu0
      %v1226 = vadd.f32 0.0, %v1225
      %v1227 = vpop.f32.mrf.mxu0
      %v1228 = vadd.f32 0.0, %v1227
      %1229 = vmatmul.bf16.gmra.mxu0 %v1105
      %v1230 = vpop.f32.mrf.mxu0
      %v1231 = vadd.f32 0.0, %v1230
      %v1232 = vpop.f32.mrf.mxu0
      %v1233 = vadd.f32 0.0, %v1232
      %1234 = vmatmul.bf16.gmra.mxu0 %v1106
      %v1235 = vpop.f32.mrf.mxu0
      %v1236 = vadd.f32 0.0, %v1235
      %v1237 = vpop.f32.mrf.mxu0
      %v1238 = vadd.f32 0.0, %v1237
      %1239 = vmatmul.bf16.gmra.mxu0 %v1107
      %v1240 = vpop.f32.mrf.mxu0
      %v1241 = vadd.f32 0.0, %v1240
      %v1242 = vpop.f32.mrf.mxu0
      %v1243 = vadd.f32 0.0, %v1242
      %1244 = vmatmul.bf16.gmra.mxu0 %v1108
      %v1245 = vpop.f32.mrf.mxu0
      %v1246 = vadd.f32 0.0, %v1245
      %v1247 = vpop.f32.mrf.mxu0
      %v1248 = vadd.f32 0.0, %v1247
      %1249 = vmatmul.bf16.gmra.mxu0 %v1109
      %v1250 = vpop.f32.mrf.mxu0
      %v1251 = vadd.f32 0.0, %v1250
      %v1252 = vpop.f32.mrf.mxu0
      %v1253 = vadd.f32 0.0, %v1252
      %1254 = vmatmul.bf16.gmra.mxu0 %v1110
      %v1255 = vpop.f32.mrf.mxu0
      %v1256 = vadd.f32 0.0, %v1255
      %v1257 = vpop.f32.mrf.mxu0
      %v1258 = vadd.f32 0.0, %v1257
      %1259 = vmatmul.bf16.gmra.mxu0 %v1111
      %v1260 = vpop.f32.mrf.mxu0
      %v1261 = vadd.f32 0.0, %v1260
      %v1262 = vpop.f32.mrf.mxu0
      %v1263 = vadd.f32 0.0, %v1262
      %1264 = vdwg.mxu0
      %v1266 = vperm.slane %v983, 0
      %v1268 = vadd.f32 %v1266, %v1186
      %v1269 = vadd.f32 %v1266, %v1188
      %v1270 = vadd.f32 %v1266, %v1191
      %v1271 = vadd.f32 %v1266, %v1193
      %v1272 = vadd.f32 %v1266, %v1196
      %v1273 = vadd.f32 %v1266, %v1198
      %v1274 = vadd.f32 %v1266, %v1201
      %v1275 = vadd.f32 %v1266, %v1203
      %v1276 = vadd.f32 %v1266, %v1206
      %v1277 = vadd.f32 %v1266, %v1208
      %v1278 = vadd.f32 %v1266, %v1211
      %v1279 = vadd.f32 %v1266, %v1213
      %v1280 = vadd.f32 %v1266, %v1216
      %v1281 = vadd.f32 %v1266, %v1218
      %v1282 = vadd.f32 %v1266, %v1221
      %v1283 = vadd.f32 %v1266, %v1223
      %v1284 = vadd.f32 %v1266, %v1226
      %v1285 = vadd.f32 %v1266, %v1228
      %v1286 = vadd.f32 %v1266, %v1231
      %v1287 = vadd.f32 %v1266, %v1233
      %v1288 = vadd.f32 %v1266, %v1236
      %v1289 = vadd.f32 %v1266, %v1238
      %v1290 = vadd.f32 %v1266, %v1241
      %v1291 = vadd.f32 %v1266, %v1243
      %v1292 = vadd.f32 %v1266, %v1246
      %v1293 = vadd.f32 %v1266, %v1248
      %v1294 = vadd.f32 %v1266, %v1251
      %v1295 = vadd.f32 %v1266, %v1253
      %v1296 = vadd.f32 %v1266, %v1256
      %v1297 = vadd.f32 %v1266, %v1258
      %v1298 = vadd.f32 %v1266, %v1261
      %v1299 = vadd.f32 %v1266, %v1263
      %v1300 = vld [vmem:[#allocation2] sm:$0xf]
      %v1301 = vld [vmem:[#allocation2 + $0x4] sm:$0xf]
      %v1302 = vld [vmem:[#allocation2 + $0x8] sm:$0x1]
      %v1303 = vld [vmem:[#allocation2 + $0xc] sm:$0xf]
      %v1304 = vld [vmem:[#allocation2 + $0x10] sm:$0xf]
      %v1305 = vld [vmem:[#allocation2 + $0x14] sm:$0x1]
      %v1306 = vld [vmem:[#allocation2 + $0x18] sm:$0xf]
      %v1307 = vld [vmem:[#allocation2 + $0x1c] sm:$0xf]
      %v1308 = vld [vmem:[#allocation2 + $0x20] sm:$0x1]
      %v1309 = vld [vmem:[#allocation2 + $0x24] sm:$0xf]
      %v1310 = vld [vmem:[#allocation2 + $0x28] sm:$0xf]
      %v1311 = vld [vmem:[#allocation2 + $0x2c] sm:$0x1]
      %v1312 = vld [vmem:[#allocation2 + $0x30] sm:$0xf]
      %v1313 = vld [vmem:[#allocation2 + $0x34] sm:$0xf]
      %v1314 = vld [vmem:[#allocation2 + $0x38] sm:$0x1]
      %v1315 = vld [vmem:[#allocation2 + $0x3c] sm:$0xf]
      %v1316 = vld [vmem:[#allocation2 + $0x40] sm:$0xf]
      %v1317 = vld [vmem:[#allocation2 + $0x44] sm:$0x1]
      %v1318 = vld [vmem:[#allocation2 + $0x48] sm:$0xf]
      %v1319 = vld [vmem:[#allocation2 + $0x4c] sm:$0xf]
      %v1320 = vld [vmem:[#allocation2 + $0x50] sm:$0x1]
      %v1321 = vld [vmem:[#allocation2 + $0x54] sm:$0xf]
      %v1322 = vld [vmem:[#allocation2 + $0x58] sm:$0xf]
      %v1323 = vld [vmem:[#allocation2 + $0x5c] sm:$0x1]
      %v1324 = vld [vmem:[#allocation2 + $0x60] sm:$0xf]
      %v1325 = vld [vmem:[#allocation2 + $0x64] sm:$0xf]
      %v1326 = vld [vmem:[#allocation2 + $0x68] sm:$0x1]
      %v1327 = vld [vmem:[#allocation2 + $0x6c] sm:$0xf]
      %v1328 = vld [vmem:[#allocation2 + $0x70] sm:$0xf]
      %v1329 = vld [vmem:[#allocation2 + $0x74] sm:$0x1]
      %v1330 = vld [vmem:[#allocation2 + $0x78] sm:$0xf]
      %v1331 = vld [vmem:[#allocation2 + $0x7c] sm:$0xf]
      %v1332 = vld [vmem:[#allocation2 + $0x80] sm:$0x1]
      %v1333 = vld [vmem:[#allocation2 + $0x84] sm:$0xf]
      %v1334 = vld [vmem:[#allocation2 + $0x88] sm:$0xf]
      %v1335 = vld [vmem:[#allocation2 + $0x8c] sm:$0x1]
      %v1336 = vld [vmem:[#allocation2 + $0x90] sm:$0xf]
      %v1337 = vld [vmem:[#allocation2 + $0x94] sm:$0xf]
      %v1338 = vld [vmem:[#allocation2 + $0x98] sm:$0x1]
      %v1339 = vld [vmem:[#allocation2 + $0x9c] sm:$0xf]
      %v1340 = vld [vmem:[#allocation2 + $0xa0] sm:$0xf]
      %v1341 = vld [vmem:[#allocation2 + $0xa4] sm:$0x1]
      %v1342 = vld [vmem:[#allocation2 + $0xa8] sm:$0xf]
      %v1343 = vld [vmem:[#allocation2 + $0xac] sm:$0xf]
      %v1344 = vld [vmem:[#allocation2 + $0xb0] sm:$0x1]
      %v1345 = vld [vmem:[#allocation2 + $0xb4] sm:$0xf]
      %v1346 = vld [vmem:[#allocation2 + $0xb8] sm:$0xf]
      %v1347 = vld [vmem:[#allocation2 + $0xbc] sm:$0x1]
      %vm1348 = vsmask.f32 3328
      %vm1349 = vsmask.f32 7440
      %vm1350 = vmor %vm1348, %vm1349
      %v1352 = vshrl.u32 %v1300, 16
      %v1354 = vrot.slane %v1352, 4
      %v1355 = vshll.u32 %v1300, 16
      %v1357 = vrot.slane %v1355, 5
      %v1358 = vor.u32 %v1354, %v1357
      %v1359 = vrot.slane %v1358, 4
      %v1361 = vshll.u32 %v1301, 16
      %v1363 = vrot.slane %v1361, 5
      %v1364 = vsel %vm1350, %v1359, %v1363
      %v1365 = vshrl.u32 %v1301, 16
      %v1367 = vrot.slane %v1365, 4
      %v1368 = vor.u32 %v1367, %v1363
      %v1369 = vrot.slane %v1368, 4
      %v1371 = vshll.u32 %v1302, 16
      %v1373 = vrot.slane %v1371, 5
      %v1374 = vsel %vm1350, %v1369, %v1373
      %v1376 = vshrl.u32 %v1303, 16
      %v1378 = vrot.slane %v1376, 4
      %v1379 = vshll.u32 %v1303, 16
      %v1381 = vrot.slane %v1379, 5
      %v1382 = vor.u32 %v1378, %v1381
      %v1383 = vrot.slane %v1382, 4
      %v1385 = vshll.u32 %v1304, 16
      %v1387 = vrot.slane %v1385, 5
      %v1388 = vsel %vm1350, %v1383, %v1387
      %v1389 = vshrl.u32 %v1304, 16
      %v1391 = vrot.slane %v1389, 4
      %v1392 = vor.u32 %v1391, %v1387
      %v1393 = vrot.slane %v1392, 4
      %v1395 = vshll.u32 %v1305, 16
      %v1397 = vrot.slane %v1395, 5
      %v1398 = vsel %vm1350, %v1393, %v1397
      %v1400 = vshrl.u32 %v1306, 16
      %v1402 = vrot.slane %v1400, 4
      %v1403 = vshll.u32 %v1306, 16
      %v1405 = vrot.slane %v1403, 5
      %v1406 = vor.u32 %v1402, %v1405
      %v1407 = vrot.slane %v1406, 4
      %v1409 = vshll.u32 %v1307, 16
      %v1411 = vrot.slane %v1409, 5
      %v1412 = vsel %vm1350, %v1407, %v1411
      %v1413 = vshrl.u32 %v1307, 16
      %v1415 = vrot.slane %v1413, 4
      %v1416 = vor.u32 %v1415, %v1411
      %v1417 = vrot.slane %v1416, 4
      %v1419 = vshll.u32 %v1308, 16
      %v1421 = vrot.slane %v1419, 5
      %v1422 = vsel %vm1350, %v1417, %v1421
      %v1424 = vshrl.u32 %v1309, 16
      %v1426 = vrot.slane %v1424, 4
      %v1427 = vshll.u32 %v1309, 16
      %v1429 = vrot.slane %v1427, 5
      %v1430 = vor.u32 %v1426, %v1429
      %v1431 = vrot.slane %v1430, 4
      %v1433 = vshll.u32 %v1310, 16
      %v1435 = vrot.slane %v1433, 5
      %v1436 = vsel %vm1350, %v1431, %v1435
      %v1437 = vshrl.u32 %v1310, 16
      %v1439 = vrot.slane %v1437, 4
      %v1440 = vor.u32 %v1439, %v1435
      %v1441 = vrot.slane %v1440, 4
      %v1443 = vshll.u32 %v1311, 16
      %v1445 = vrot.slane %v1443, 5
      %v1446 = vsel %vm1350, %v1441, %v1445
      %v1448 = vshrl.u32 %v1312, 16
      %v1450 = vrot.slane %v1448, 4
      %v1451 = vshll.u32 %v1312, 16
      %v1453 = vrot.slane %v1451, 5
      %v1454 = vor.u32 %v1450, %v1453
      %v1455 = vrot.slane %v1454, 4
      %v1457 = vshll.u32 %v1313, 16
      %v1459 = vrot.slane %v1457, 5
      %v1460 = vsel %vm1350, %v1455, %v1459
      %v1461 = vshrl.u32 %v1313, 16
      %v1463 = vrot.slane %v1461, 4
      %v1464 = vor.u32 %v1463, %v1459
      %v1465 = vrot.slane %v1464, 4
      %v1467 = vshll.u32 %v1314, 16
      %v1469 = vrot.slane %v1467, 5
      %v1470 = vsel %vm1350, %v1465, %v1469
      %v1472 = vshrl.u32 %v1315, 16
      %v1474 = vrot.slane %v1472, 4
      %v1475 = vshll.u32 %v1315, 16
      %v1477 = vrot.slane %v1475, 5
      %v1478 = vor.u32 %v1474, %v1477
      %v1479 = vrot.slane %v1478, 4
      %v1481 = vshll.u32 %v1316, 16
      %v1483 = vrot.slane %v1481, 5
      %v1484 = vsel %vm1350, %v1479, %v1483
      %v1485 = vshrl.u32 %v1316, 16
      %v1487 = vrot.slane %v1485, 4
      %v1488 = vor.u32 %v1487, %v1483
      %v1489 = vrot.slane %v1488, 4
      %v1491 = vshll.u32 %v1317, 16
      %v1493 = vrot.slane %v1491, 5
      %v1494 = vsel %vm1350, %v1489, %v1493
      %v1496 = vshrl.u32 %v1318, 16
      %v1498 = vrot.slane %v1496, 4
      %v1499 = vshll.u32 %v1318, 16
      %v1501 = vrot.slane %v1499, 5
      %v1502 = vor.u32 %v1498, %v1501
      %v1503 = vrot.slane %v1502, 4
      %v1505 = vshll.u32 %v1319, 16
      %v1507 = vrot.slane %v1505, 5
      %v1508 = vsel %vm1350, %v1503, %v1507
      %v1509 = vshrl.u32 %v1319, 16
      %v1511 = vrot.slane %v1509, 4
      %v1512 = vor.u32 %v1511, %v1507
      %v1513 = vrot.slane %v1512, 4
      %v1515 = vshll.u32 %v1320, 16
      %v1517 = vrot.slane %v1515, 5
      %v1518 = vsel %vm1350, %v1513, %v1517
      %v1520 = vshrl.u32 %v1321, 16
      %v1522 = vrot.slane %v1520, 4
      %v1523 = vshll.u32 %v1321, 16
      %v1525 = vrot.slane %v1523, 5
      %v1526 = vor.u32 %v1522, %v1525
      %v1527 = vrot.slane %v1526, 4
      %v1529 = vshll.u32 %v1322, 16
      %v1531 = vrot.slane %v1529, 5
      %v1532 = vsel %vm1350, %v1527, %v1531
      %v1533 = vshrl.u32 %v1322, 16
      %v1535 = vrot.slane %v1533, 4
      %v1536 = vor.u32 %v1535, %v1531
      %v1537 = vrot.slane %v1536, 4
      %v1539 = vshll.u32 %v1323, 16
      %v1541 = vrot.slane %v1539, 5
      %v1542 = vsel %vm1350, %v1537, %v1541
      %v1544 = vshrl.u32 %v1324, 16
      %v1546 = vrot.slane %v1544, 4
      %v1547 = vshll.u32 %v1324, 16
      %v1549 = vrot.slane %v1547, 5
      %v1550 = vor.u32 %v1546, %v1549
      %v1551 = vrot.slane %v1550, 4
      %v1553 = vshll.u32 %v1325, 16
      %v1555 = vrot.slane %v1553, 5
      %v1556 = vsel %vm1350, %v1551, %v1555
      %v1557 = vshrl.u32 %v1325, 16
      %v1559 = vrot.slane %v1557, 4
      %v1560 = vor.u32 %v1559, %v1555
      %v1561 = vrot.slane %v1560, 4
      %v1563 = vshll.u32 %v1326, 16
      %v1565 = vrot.slane %v1563, 5
      %v1566 = vsel %vm1350, %v1561, %v1565
      %v1568 = vshrl.u32 %v1327, 16
      %v1570 = vrot.slane %v1568, 4
      %v1571 = vshll.u32 %v1327, 16
      %v1573 = vrot.slane %v1571, 5
      %v1574 = vor.u32 %v1570, %v1573
      %v1575 = vrot.slane %v1574, 4
      %v1577 = vshll.u32 %v1328, 16
      %v1579 = vrot.slane %v1577, 5
      %v1580 = vsel %vm1350, %v1575, %v1579
      %v1581 = vshrl.u32 %v1328, 16
      %v1583 = vrot.slane %v1581, 4
      %v1584 = vor.u32 %v1583, %v1579
      %v1585 = vrot.slane %v1584, 4
      %v1587 = vshll.u32 %v1329, 16
      %v1589 = vrot.slane %v1587, 5
      %v1590 = vsel %vm1350, %v1585, %v1589
      %v1592 = vshrl.u32 %v1330, 16
      %v1594 = vrot.slane %v1592, 4
      %v1595 = vshll.u32 %v1330, 16
      %v1597 = vrot.slane %v1595, 5
      %v1598 = vor.u32 %v1594, %v1597
      %v1599 = vrot.slane %v1598, 4
      %v1601 = vshll.u32 %v1331, 16
      %v1603 = vrot.slane %v1601, 5
      %v1604 = vsel %vm1350, %v1599, %v1603
      %v1605 = vshrl.u32 %v1331, 16
      %v1607 = vrot.slane %v1605, 4
      %v1608 = vor.u32 %v1607, %v1603
      %v1609 = vrot.slane %v1608, 4
      %v1611 = vshll.u32 %v1332, 16
      %v1613 = vrot.slane %v1611, 5
      %v1614 = vsel %vm1350, %v1609, %v1613
      %v1616 = vshrl.u32 %v1333, 16
      %v1618 = vrot.slane %v1616, 4
      %v1619 = vshll.u32 %v1333, 16
      %v1621 = vrot.slane %v1619, 5
      %v1622 = vor.u32 %v1618, %v1621
      %v1623 = vrot.slane %v1622, 4
      %v1625 = vshll.u32 %v1334, 16
      %v1627 = vrot.slane %v1625, 5
      %v1628 = vsel %vm1350, %v1623, %v1627
      %v1629 = vshrl.u32 %v1334, 16
      %v1631 = vrot.slane %v1629, 4
      %v1632 = vor.u32 %v1631, %v1627
      %v1633 = vrot.slane %v1632, 4
      %v1635 = vshll.u32 %v1335, 16
      %v1637 = vrot.slane %v1635, 5
      %v1638 = vsel %vm1350, %v1633, %v1637
      %v1640 = vshrl.u32 %v1336, 16
      %v1642 = vrot.slane %v1640, 4
      %v1643 = vshll.u32 %v1336, 16
      %v1645 = vrot.slane %v1643, 5
      %v1646 = vor.u32 %v1642, %v1645
      %v1647 = vrot.slane %v1646, 4
      %v1649 = vshll.u32 %v1337, 16
      %v1651 = vrot.slane %v1649, 5
      %v1652 = vsel %vm1350, %v1647, %v1651
      %v1653 = vshrl.u32 %v1337, 16
      %v1655 = vrot.slane %v1653, 4
      %v1656 = vor.u32 %v1655, %v1651
      %v1657 = vrot.slane %v1656, 4
      %v1659 = vshll.u32 %v1338, 16
      %v1661 = vrot.slane %v1659, 5
      %v1662 = vsel %vm1350, %v1657, %v1661
      %v1664 = vshrl.u32 %v1339, 16
      %v1666 = vrot.slane %v1664, 4
      %v1667 = vshll.u32 %v1339, 16
      %v1669 = vrot.slane %v1667, 5
      %v1670 = vor.u32 %v1666, %v1669
      %v1671 = vrot.slane %v1670, 4
      %v1673 = vshll.u32 %v1340, 16
      %v1675 = vrot.slane %v1673, 5
      %v1676 = vsel %vm1350, %v1671, %v1675
      %v1677 = vshrl.u32 %v1340, 16
      %v1679 = vrot.slane %v1677, 4
      %v1680 = vor.u32 %v1679, %v1675
      %v1681 = vrot.slane %v1680, 4
      %v1683 = vshll.u32 %v1341, 16
      %v1685 = vrot.slane %v1683, 5
      %v1686 = vsel %vm1350, %v1681, %v1685
      %v1688 = vshrl.u32 %v1342, 16
      %v1690 = vrot.slane %v1688, 4
      %v1691 = vshll.u32 %v1342, 16
      %v1693 = vrot.slane %v1691, 5
      %v1694 = vor.u32 %v1690, %v1693
      %v1695 = vrot.slane %v1694, 4
      %v1697 = vshll.u32 %v1343, 16
      %v1699 = vrot.slane %v1697, 5
      %v1700 = vsel %vm1350, %v1695, %v1699
      %v1701 = vshrl.u32 %v1343, 16
      %v1703 = vrot.slane %v1701, 4
      %v1704 = vor.u32 %v1703, %v1699
      %v1705 = vrot.slane %v1704, 4
      %v1707 = vshll.u32 %v1344, 16
      %v1709 = vrot.slane %v1707, 5
      %v1710 = vsel %vm1350, %v1705, %v1709
      %v1712 = vshrl.u32 %v1345, 16
      %v1714 = vrot.slane %v1712, 4
      %v1715 = vshll.u32 %v1345, 16
      %v1717 = vrot.slane %v1715, 5
      %v1718 = vor.u32 %v1714, %v1717
      %v1719 = vrot.slane %v1718, 4
      %v1721 = vshll.u32 %v1346, 16
      %v1723 = vrot.slane %v1721, 5
      %v1724 = vsel %vm1350, %v1719, %v1723
      %v1725 = vshrl.u32 %v1346, 16
      %v1727 = vrot.slane %v1725, 4
      %v1728 = vor.u32 %v1727, %v1723
      %v1729 = vrot.slane %v1728, 4
      %v1731 = vshll.u32 %v1347, 16
      %v1733 = vrot.slane %v1731, 5
      %v1734 = vsel %vm1350, %v1729, %v1733
      %v1735 = vld [vmem:[%s3 + $0x40] sm:$0xf]
      %v1736 = vld [vmem:[%s3 + $0x44] sm:$0xf]
      %v1737 = vld [vmem:[%s3 + $0x48] sm:$0xf]
      %v1738 = vld [vmem:[%s3 + $0x4c] sm:$0xf]
      %v1739 = vld [vmem:[%s3 + $0x50] sm:$0xf]
      %v1740 = vld [vmem:[%s3 + $0x54] sm:$0xf]
      %v1741 = vld [vmem:[%s3 + $0x58] sm:$0xf]
      %v1742 = vld [vmem:[%s3 + $0x5c] sm:$0xf]
      %v1743 = vld [vmem:[%s3 + $0x60] sm:$0xf]
      %v1744 = vld [vmem:[%s3 + $0x64] sm:$0xf]
      %v1745 = vld [vmem:[%s3 + $0x68] sm:$0xf]
      %v1746 = vld [vmem:[%s3 + $0x6c] sm:$0xf]
      %v1747 = vld [vmem:[%s3 + $0x70] sm:$0xf]
      %v1748 = vld [vmem:[%s3 + $0x74] sm:$0xf]
      %v1749 = vld [vmem:[%s3 + $0x78] sm:$0xf]
      %v1750 = vld [vmem:[%s3 + $0x7c] sm:$0xf]
      %v1751 = vunpack.c.l.b16 %v1364
      %v1752 = vunpack.c.l.b16 %v1374
      %v1753 = vunpack.c.l.b16 %v1388
      %v1754 = vunpack.c.l.b16 %v1398
      %v1755 = vunpack.c.l.b16 %v1412
      %v1756 = vunpack.c.l.b16 %v1422
      %v1757 = vunpack.c.l.b16 %v1436
      %v1758 = vunpack.c.l.b16 %v1446
      %v1759 = vunpack.c.l.b16 %v1460
      %v1760 = vunpack.c.l.b16 %v1470
      %v1761 = vunpack.c.l.b16 %v1484
      %v1762 = vunpack.c.l.b16 %v1494
      %v1763 = vunpack.c.l.b16 %v1508
      %v1764 = vunpack.c.l.b16 %v1518
      %v1765 = vunpack.c.l.b16 %v1532
      %v1766 = vunpack.c.l.b16 %v1542
      %v1767 = vunpack.c.l.b16 %v1556
      %v1768 = vunpack.c.l.b16 %v1566
      %v1769 = vunpack.c.l.b16 %v1580
      %v1770 = vunpack.c.l.b16 %v1590
      %v1771 = vunpack.c.l.b16 %v1604
      %v1772 = vunpack.c.l.b16 %v1614
      %v1773 = vunpack.c.l.b16 %v1628
      %v1774 = vunpack.c.l.b16 %v1638
      %v1775 = vunpack.c.l.b16 %v1652
      %v1776 = vunpack.c.l.b16 %v1662
      %v1777 = vunpack.c.l.b16 %v1676
      %v1778 = vunpack.c.l.b16 %v1686
      %v1779 = vunpack.c.l.b16 %v1700
      %v1780 = vunpack.c.l.b16 %v1710
      %v1781 = vunpack.c.l.b16 %v1724
      %v1782 = vunpack.c.l.b16 %v1734
      %v1783 = vpack.c.b16 %v1752, %v1751
      %v1784 = vpack.c.b16 %v1754, %v1753
      %v1785 = vpack.c.b16 %v1756, %v1755
      %v1786 = vpack.c.b16 %v1758, %v1757
      %v1787 = vpack.c.b16 %v1760, %v1759
      %v1788 = vpack.c.b16 %v1762, %v1761
      %v1789 = vpack.c.b16 %v1764, %v1763
      %v1790 = vpack.c.b16 %v1766, %v1765
      %v1791 = vpack.c.b16 %v1768, %v1767
      %v1792 = vpack.c.b16 %v1770, %v1769
      %v1793 = vpack.c.b16 %v1772, %v1771
      %v1794 = vpack.c.b16 %v1774, %v1773
      %v1795 = vpack.c.b16 %v1776, %v1775
      %v1796 = vpack.c.b16 %v1778, %v1777
      %v1797 = vpack.c.b16 %v1780, %v1779
      %v1798 = vpack.c.b16 %v1782, %v1781
      %v1831 = vunpack.c.l.b16 %v1735
      %v1832 = vunpack.c.l.b16 %v1736
      %v1833 = vunpack.c.l.b16 %v1737
      %v1834 = vunpack.c.l.b16 %v1738
      %v1835 = vunpack.c.l.b16 %v1739
      %v1836 = vunpack.c.l.b16 %v1740
      %v1837 = vunpack.c.l.b16 %v1741
      %v1838 = vunpack.c.l.b16 %v1742
      %v1839 = vunpack.c.l.b16 %v1743
      %v1840 = vunpack.c.l.b16 %v1744
      %v1841 = vunpack.c.l.b16 %v1745
      %v1842 = vunpack.c.l.b16 %v1746
      %v1843 = vunpack.c.l.b16 %v1747
      %v1844 = vunpack.c.l.b16 %v1748
      %v1845 = vunpack.c.l.b16 %v1749
      %v1846 = vunpack.c.l.b16 %v1750
      %v1847 = vpack.c.b16 %v1832, %v1831
      %v1848 = vpack.c.b16 %v1834, %v1833
      %v1849 = vpack.c.b16 %v1836, %v1835
      %v1850 = vpack.c.b16 %v1838, %v1837
      %v1851 = vpack.c.b16 %v1840, %v1839
      %v1852 = vpack.c.b16 %v1842, %v1841
      %v1853 = vpack.c.b16 %v1844, %v1843
      %v1854 = vpack.c.b16 %v1846, %v1845
      %1863 = vmatpush.bf16.msra.mxu0 %v1854
      %1864 = vmatpush.bf16.msra.mxu0 %v1853
      %1865 = vmatpush.bf16.msra.mxu0 %v1852
      %1866 = vmatpush.bf16.msra.mxu0 %v1851
      %1867 = vmatpush.bf16.msra.mxu0 %v1850
      %1868 = vmatpush.bf16.msra.mxu0 %v1849
      %1869 = vmatpush.bf16.msra.mxu0 %v1848
      %1870 = vmatpush.bf16.msra.mxu0 %v1847
      %1871 = vmatmul.bf16.gmra.mxu0 %v1783
      %v1872 = vpop.f32.mrf.mxu0
      %v1873 = vadd.f32 0.0, %v1872
      %v1874 = vpop.f32.mrf.mxu0
      %v1875 = vadd.f32 0.0, %v1874
      %1876 = vmatmul.bf16.gmra.mxu0 %v1784
      %v1877 = vpop.f32.mrf.mxu0
      %v1878 = vadd.f32 0.0, %v1877
      %v1879 = vpop.f32.mrf.mxu0
      %v1880 = vadd.f32 0.0, %v1879
      %1881 = vmatmul.bf16.gmra.mxu0 %v1785
      %v1882 = vpop.f32.mrf.mxu0
      %v1883 = vadd.f32 0.0, %v1882
      %v1884 = vpop.f32.mrf.mxu0
      %v1885 = vadd.f32 0.0, %v1884
      %1886 = vmatmul.bf16.gmra.mxu0 %v1786
      %v1887 = vpop.f32.mrf.mxu0
      %v1888 = vadd.f32 0.0, %v1887
      %v1889 = vpop.f32.mrf.mxu0
      %v1890 = vadd.f32 0.0, %v1889
      %1891 = vmatmul.bf16.gmra.mxu0 %v1787
      %v1892 = vpop.f32.mrf.mxu0
      %v1893 = vadd.f32 0.0, %v1892
      %v1894 = vpop.f32.mrf.mxu0
      %v1895 = vadd.f32 0.0, %v1894
      %1896 = vmatmul.bf16.gmra.mxu0 %v1788
      %v1897 = vpop.f32.mrf.mxu0
      %v1898 = vadd.f32 0.0, %v1897
      %v1899 = vpop.f32.mrf.mxu0
      %v1900 = vadd.f32 0.0, %v1899
      %1901 = vmatmul.bf16.gmra.mxu0 %v1789
      %v1902 = vpop.f32.mrf.mxu0
      %v1903 = vadd.f32 0.0, %v1902
      %v1904 = vpop.f32.mrf.mxu0
      %v1905 = vadd.f32 0.0, %v1904
      %1906 = vmatmul.bf16.gmra.mxu0 %v1790
      %v1907 = vpop.f32.mrf.mxu0
      %v1908 = vadd.f32 0.0, %v1907
      %v1909 = vpop.f32.mrf.mxu0
      %v1910 = vadd.f32 0.0, %v1909
      %1911 = vmatmul.bf16.gmra.mxu0 %v1791
      %v1912 = vpop.f32.mrf.mxu0
      %v1913 = vadd.f32 0.0, %v1912
      %v1914 = vpop.f32.mrf.mxu0
      %v1915 = vadd.f32 0.0, %v1914
      %1916 = vmatmul.bf16.gmra.mxu0 %v1792
      %v1917 = vpop.f32.mrf.mxu0
      %v1918 = vadd.f32 0.0, %v1917
      %v1919 = vpop.f32.mrf.mxu0
      %v1920 = vadd.f32 0.0, %v1919
      %1921 = vmatmul.bf16.gmra.mxu0 %v1793
      %v1922 = vpop.f32.mrf.mxu0
      %v1923 = vadd.f32 0.0, %v1922
      %v1924 = vpop.f32.mrf.mxu0
      %v1925 = vadd.f32 0.0, %v1924
      %1926 = vmatmul.bf16.gmra.mxu0 %v1794
      %v1927 = vpop.f32.mrf.mxu0
      %v1928 = vadd.f32 0.0, %v1927
      %v1929 = vpop.f32.mrf.mxu0
      %v1930 = vadd.f32 0.0, %v1929
      %1931 = vmatmul.bf16.gmra.mxu0 %v1795
      %v1932 = vpop.f32.mrf.mxu0
      %v1933 = vadd.f32 0.0, %v1932
      %v1934 = vpop.f32.mrf.mxu0
      %v1935 = vadd.f32 0.0, %v1934
      %1936 = vmatmul.bf16.gmra.mxu0 %v1796
      %v1937 = vpop.f32.mrf.mxu0
      %v1938 = vadd.f32 0.0, %v1937
      %v1939 = vpop.f32.mrf.mxu0
      %v1940 = vadd.f32 0.0, %v1939
      %1941 = vmatmul.bf16.gmra.mxu0 %v1797
      %v1942 = vpop.f32.mrf.mxu0
      %v1943 = vadd.f32 0.0, %v1942
      %v1944 = vpop.f32.mrf.mxu0
      %v1945 = vadd.f32 0.0, %v1944
      %1946 = vmatmul.bf16.gmra.mxu0 %v1798
      %v1947 = vpop.f32.mrf.mxu0
      %v1948 = vadd.f32 0.0, %v1947
      %v1949 = vpop.f32.mrf.mxu0
      %v1950 = vadd.f32 0.0, %v1949
      %1951 = vdwg.mxu0
      %v1952 = vadd.f32 %v1268, %v1873
      %v1953 = vadd.f32 %v1269, %v1875
      %v1954 = vadd.f32 %v1270, %v1878
      %v1955 = vadd.f32 %v1271, %v1880
      %v1956 = vadd.f32 %v1272, %v1883
      %v1957 = vadd.f32 %v1273, %v1885
      %v1958 = vadd.f32 %v1274, %v1888
      %v1959 = vadd.f32 %v1275, %v1890
      %v1960 = vadd.f32 %v1276, %v1893
      %v1961 = vadd.f32 %v1277, %v1895
      %v1962 = vadd.f32 %v1278, %v1898
      %v1963 = vadd.f32 %v1279, %v1900
      %v1964 = vadd.f32 %v1280, %v1903
      %v1965 = vadd.f32 %v1281, %v1905
      %v1966 = vadd.f32 %v1282, %v1908
      %v1967 = vadd.f32 %v1283, %v1910
      %v1968 = vadd.f32 %v1284, %v1913
      %v1969 = vadd.f32 %v1285, %v1915
      %v1970 = vadd.f32 %v1286, %v1918
      %v1971 = vadd.f32 %v1287, %v1920
      %v1972 = vadd.f32 %v1288, %v1923
      %v1973 = vadd.f32 %v1289, %v1925
      %v1974 = vadd.f32 %v1290, %v1928
      %v1975 = vadd.f32 %v1291, %v1930
      %v1976 = vadd.f32 %v1292, %v1933
      %v1977 = vadd.f32 %v1293, %v1935
      %v1978 = vadd.f32 %v1294, %v1938
      %v1979 = vadd.f32 %v1295, %v1940
      %v1980 = vadd.f32 %v1296, %v1943
      %v1981 = vadd.f32 %v1297, %v1945
      %v1982 = vadd.f32 %v1298, %v1948
      %v1983 = vadd.f32 %v1299, %v1950
      %v1984 = vld [vmem:[#allocation2] sm:$0xe]
      %v1985 = vld [vmem:[#allocation2 + $0xc] sm:$0xe]
      %v1986 = vld [vmem:[#allocation2 + $0x18] sm:$0xe]
      %v1987 = vld [vmem:[#allocation2 + $0x24] sm:$0xe]
      %v1988 = vld [vmem:[#allocation2 + $0x30] sm:$0xe]
      %v1989 = vld [vmem:[#allocation2 + $0x3c] sm:$0xe]
      %v1990 = vld [vmem:[#allocation2 + $0x48] sm:$0xe]
      %v1991 = vld [vmem:[#allocation2 + $0x54] sm:$0xe]
      %v1992 = vld [vmem:[#allocation2 + $0x60] sm:$0xe]
      %v1993 = vld [vmem:[#allocation2 + $0x6c] sm:$0xe]
      %v1994 = vld [vmem:[#allocation2 + $0x78] sm:$0xe]
      %v1995 = vld [vmem:[#allocation2 + $0x84] sm:$0xe]
      %v1996 = vld [vmem:[#allocation2 + $0x90] sm:$0xe]
      %v1997 = vld [vmem:[#allocation2 + $0x9c] sm:$0xe]
      %v1998 = vld [vmem:[#allocation2 + $0xa8] sm:$0xe]
      %v1999 = vld [vmem:[#allocation2 + $0xb4] sm:$0xe]
      %vm2048 = vcmask 1042432
      %vm2049 = vcmask 1046532
      %vm2050 = vmor %vm2048, %vm2049
      %v2051 = vrot.slane %v1984, 5
      %v2052 = vrot.slane %v2051, 4
      %v2053 = vrot.slane %v1301, 5
      %v2054 = vsel %vm2050, %v2052, %v2053
      %v2055 = vrot.slane %v2053, 4
      %v2056 = vrot.slane %v1302, 5
      %v2057 = vsel %vm2050, %v2055, %v2056
      %v2058 = vrot.slane %v1985, 5
      %v2059 = vrot.slane %v2058, 4
      %v2060 = vrot.slane %v1304, 5
      %v2061 = vsel %vm2050, %v2059, %v2060
      %v2062 = vrot.slane %v2060, 4
      %v2063 = vrot.slane %v1305, 5
      %v2064 = vsel %vm2050, %v2062, %v2063
      %v2065 = vrot.slane %v1986, 5
      %v2066 = vrot.slane %v2065, 4
      %v2067 = vrot.slane %v1307, 5
      %v2068 = vsel %vm2050, %v2066, %v2067
      %v2069 = vrot.slane %v2067, 4
      %v2070 = vrot.slane %v1308, 5
      %v2071 = vsel %vm2050, %v2069, %v2070
      %v2072 = vrot.slane %v1987, 5
      %v2073 = vrot.slane %v2072, 4
      %v2074 = vrot.slane %v1310, 5
      %v2075 = vsel %vm2050, %v2073, %v2074
      %v2076 = vrot.slane %v2074, 4
      %v2077 = vrot.slane %v1311, 5
      %v2078 = vsel %vm2050, %v2076, %v2077
      %v2079 = vrot.slane %v1988, 5
      %v2080 = vrot.slane %v2079, 4
      %v2081 = vrot.slane %v1313, 5
      %v2082 = vsel %vm2050, %v2080, %v2081
      %v2083 = vrot.slane %v2081, 4
      %v2084 = vrot.slane %v1314, 5
      %v2085 = vsel %vm2050, %v2083, %v2084
      %v2086 = vrot.slane %v1989, 5
      %v2087 = vrot.slane %v2086, 4
      %v2088 = vrot.slane %v1316, 5
      %v2089 = vsel %vm2050, %v2087, %v2088
      %v2090 = vrot.slane %v2088, 4
      %v2091 = vrot.slane %v1317, 5
      %v2092 = vsel %vm2050, %v2090, %v2091
      %v2093 = vrot.slane %v1990, 5
      %v2094 = vrot.slane %v2093, 4
      %v2095 = vrot.slane %v1319, 5
      %v2096 = vsel %vm2050, %v2094, %v2095
      %v2097 = vrot.slane %v2095, 4
      %v2098 = vrot.slane %v1320, 5
      %v2099 = vsel %vm2050, %v2097, %v2098
      %v2100 = vrot.slane %v1991, 5
      %v2101 = vrot.slane %v2100, 4
      %v2102 = vrot.slane %v1322, 5
      %v2103 = vsel %vm2050, %v2101, %v2102
      %v2104 = vrot.slane %v2102, 4
      %v2105 = vrot.slane %v1323, 5
      %v2106 = vsel %vm2050, %v2104, %v2105
      %v2107 = vrot.slane %v1992, 5
      %v2108 = vrot.slane %v2107, 4
      %v2109 = vrot.slane %v1325, 5
      %v2110 = vsel %vm2050, %v2108, %v2109
      %v2111 = vrot.slane %v2109, 4
      %v2112 = vrot.slane %v1326, 5
      %v2113 = vsel %vm2050, %v2111, %v2112
      %v2114 = vrot.slane %v1993, 5
      %v2115 = vrot.slane %v2114, 4
      %v2116 = vrot.slane %v1328, 5
      %v2117 = vsel %vm2050, %v2115, %v2116
      %v2118 = vrot.slane %v2116, 4
      %v2119 = vrot.slane %v1329, 5
      %v2120 = vsel %vm2050, %v2118, %v2119
      %v2121 = vrot.slane %v1994, 5
      %v2122 = vrot.slane %v2121, 4
      %v2123 = vrot.slane %v1331, 5
      %v2124 = vsel %vm2050, %v2122, %v2123
      %v2125 = vrot.slane %v2123, 4
      %v2126 = vrot.slane %v1332, 5
      %v2127 = vsel %vm2050, %v2125, %v2126
      %v2128 = vrot.slane %v1995, 5
      %v2129 = vrot.slane %v2128, 4
      %v2130 = vrot.slane %v1334, 5
      %v2131 = vsel %vm2050, %v2129, %v2130
      %v2132 = vrot.slane %v2130, 4
      %v2133 = vrot.slane %v1335, 5
      %v2134 = vsel %vm2050, %v2132, %v2133
      %v2135 = vrot.slane %v1996, 5
      %v2136 = vrot.slane %v2135, 4
      %v2137 = vrot.slane %v1337, 5
      %v2138 = vsel %vm2050, %v2136, %v2137
      %v2139 = vrot.slane %v2137, 4
      %v2140 = vrot.slane %v1338, 5
      %v2141 = vsel %vm2050, %v2139, %v2140
      %v2142 = vrot.slane %v1997, 5
      %v2143 = vrot.slane %v2142, 4
      %v2144 = vrot.slane %v1340, 5
      %v2145 = vsel %vm2050, %v2143, %v2144
      %v2146 = vrot.slane %v2144, 4
      %v2147 = vrot.slane %v1341, 5
      %v2148 = vsel %vm2050, %v2146, %v2147
      %v2149 = vrot.slane %v1998, 5
      %v2150 = vrot.slane %v2149, 4
      %v2151 = vrot.slane %v1343, 5
      %v2152 = vsel %vm2050, %v2150, %v2151
      %v2153 = vrot.slane %v2151, 4
      %v2154 = vrot.slane %v1344, 5
      %v2155 = vsel %vm2050, %v2153, %v2154
      %v2156 = vrot.slane %v1999, 5
      %v2157 = vrot.slane %v2156, 4
      %v2158 = vrot.slane %v1346, 5
      %v2159 = vsel %vm2050, %v2157, %v2158
      %v2160 = vrot.slane %v2158, 4
      %v2161 = vrot.slane %v1347, 5
      %v2162 = vsel %vm2050, %v2160, %v2161
      %v2163 = vld [vmem:[%s3 + $0x80] sm:$0xf]
      %v2164 = vld [vmem:[%s3 + $0x84] sm:$0xf]
      %v2165 = vld [vmem:[%s3 + $0x88] sm:$0xf]
      %v2166 = vld [vmem:[%s3 + $0x8c] sm:$0xf]
      %v2167 = vld [vmem:[%s3 + $0x90] sm:$0xf]
      %v2168 = vld [vmem:[%s3 + $0x94] sm:$0xf]
      %v2169 = vld [vmem:[%s3 + $0x98] sm:$0xf]
      %v2170 = vld [vmem:[%s3 + $0x9c] sm:$0xf]
      %v2171 = vld [vmem:[%s3 + $0xa0] sm:$0xf]
      %v2172 = vld [vmem:[%s3 + $0xa4] sm:$0xf]
      %v2173 = vld [vmem:[%s3 + $0xa8] sm:$0xf]
      %v2174 = vld [vmem:[%s3 + $0xac] sm:$0xf]
      %v2175 = vld [vmem:[%s3 + $0xb0] sm:$0xf]
      %v2176 = vld [vmem:[%s3 + $0xb4] sm:$0xf]
      %v2177 = vld [vmem:[%s3 + $0xb8] sm:$0xf]
      %v2178 = vld [vmem:[%s3 + $0xbc] sm:$0xf]
      %v2179 = vunpack.c.l.b16 %v2054
      %v2180 = vunpack.c.l.b16 %v2057
      %v2181 = vunpack.c.l.b16 %v2061
      %v2182 = vunpack.c.l.b16 %v2064
      %v2183 = vunpack.c.l.b16 %v2068
      %v2184 = vunpack.c.l.b16 %v2071
      %v2185 = vunpack.c.l.b16 %v2075
      %v2186 = vunpack.c.l.b16 %v2078
      %v2187 = vunpack.c.l.b16 %v2082
      %v2188 = vunpack.c.l.b16 %v2085
      %v2189 = vunpack.c.l.b16 %v2089
      %v2190 = vunpack.c.l.b16 %v2092
      %v2191 = vunpack.c.l.b16 %v2096
      %v2192 = vunpack.c.l.b16 %v2099
      %v2193 = vunpack.c.l.b16 %v2103
      %v2194 = vunpack.c.l.b16 %v2106
      %v2195 = vunpack.c.l.b16 %v2110
      %v2196 = vunpack.c.l.b16 %v2113
      %v2197 = vunpack.c.l.b16 %v2117
      %v2198 = vunpack.c.l.b16 %v2120
      %v2199 = vunpack.c.l.b16 %v2124
      %v2200 = vunpack.c.l.b16 %v2127
      %v2201 = vunpack.c.l.b16 %v2131
      %v2202 = vunpack.c.l.b16 %v2134
      %v2203 = vunpack.c.l.b16 %v2138
      %v2204 = vunpack.c.l.b16 %v2141
      %v2205 = vunpack.c.l.b16 %v2145
      %v2206 = vunpack.c.l.b16 %v2148
      %v2207 = vunpack.c.l.b16 %v2152
      %v2208 = vunpack.c.l.b16 %v2155
      %v2209 = vunpack.c.l.b16 %v2159
      %v2210 = vunpack.c.l.b16 %v2162
      %v2211 = vpack.c.b16 %v2180, %v2179
      %v2212 = vpack.c.b16 %v2182, %v2181
      %v2213 = vpack.c.b16 %v2184, %v2183
      %v2214 = vpack.c.b16 %v2186, %v2185
      %v2215 = vpack.c.b16 %v2188, %v2187
      %v2216 = vpack.c.b16 %v2190, %v2189
      %v2217 = vpack.c.b16 %v2192, %v2191
      %v2218 = vpack.c.b16 %v2194, %v2193
      %v2219 = vpack.c.b16 %v2196, %v2195
      %v2220 = vpack.c.b16 %v2198, %v2197
      %v2221 = vpack.c.b16 %v2200, %v2199
      %v2222 = vpack.c.b16 %v2202, %v2201
      %v2223 = vpack.c.b16 %v2204, %v2203
      %v2224 = vpack.c.b16 %v2206, %v2205
      %v2225 = vpack.c.b16 %v2208, %v2207
      %v2226 = vpack.c.b16 %v2210, %v2209
      %v2259 = vunpack.c.l.b16 %v2163
      %v2260 = vunpack.c.l.b16 %v2164
      %v2261 = vunpack.c.l.b16 %v2165
      %v2262 = vunpack.c.l.b16 %v2166
      %v2263 = vunpack.c.l.b16 %v2167
      %v2264 = vunpack.c.l.b16 %v2168
      %v2265 = vunpack.c.l.b16 %v2169
      %v2266 = vunpack.c.l.b16 %v2170
      %v2267 = vunpack.c.l.b16 %v2171
      %v2268 = vunpack.c.l.b16 %v2172
      %v2269 = vunpack.c.l.b16 %v2173
      %v2270 = vunpack.c.l.b16 %v2174
      %v2271 = vunpack.c.l.b16 %v2175
      %v2272 = vunpack.c.l.b16 %v2176
      %v2273 = vunpack.c.l.b16 %v2177
      %v2274 = vunpack.c.l.b16 %v2178
      %v2275 = vpack.c.b16 %v2260, %v2259
      %v2276 = vpack.c.b16 %v2262, %v2261
      %v2277 = vpack.c.b16 %v2264, %v2263
      %v2278 = vpack.c.b16 %v2266, %v2265
      %v2279 = vpack.c.b16 %v2268, %v2267
      %v2280 = vpack.c.b16 %v2270, %v2269
      %v2281 = vpack.c.b16 %v2272, %v2271
      %v2282 = vpack.c.b16 %v2274, %v2273
      %2291 = vmatpush.bf16.msra.mxu0 %v2282
      %2292 = vmatpush.bf16.msra.mxu0 %v2281
      %2293 = vmatpush.bf16.msra.mxu0 %v2280
      %2294 = vmatpush.bf16.msra.mxu0 %v2279
      %2295 = vmatpush.bf16.msra.mxu0 %v2278
      %2296 = vmatpush.bf16.msra.mxu0 %v2277
      %2297 = vmatpush.bf16.msra.mxu0 %v2276
      %2298 = vmatpush.bf16.msra.mxu0 %v2275
      %2299 = vmatmul.bf16.gmra.mxu0 %v2211
      %v2300 = vpop.f32.mrf.mxu0
      %v2301 = vadd.f32 0.0, %v2300
      %v2302 = vpop.f32.mrf.mxu0
      %v2303 = vadd.f32 0.0, %v2302
      %2304 = vmatmul.bf16.gmra.mxu0 %v2212
      %v2305 = vpop.f32.mrf.mxu0
      %v2306 = vadd.f32 0.0, %v2305
      %v2307 = vpop.f32.mrf.mxu0
      %v2308 = vadd.f32 0.0, %v2307
      %2309 = vmatmul.bf16.gmra.mxu0 %v2213
      %v2310 = vpop.f32.mrf.mxu0
      %v2311 = vadd.f32 0.0, %v2310
      %v2312 = vpop.f32.mrf.mxu0
      %v2313 = vadd.f32 0.0, %v2312
      %2314 = vmatmul.bf16.gmra.mxu0 %v2214
      %v2315 = vpop.f32.mrf.mxu0
      %v2316 = vadd.f32 0.0, %v2315
      %v2317 = vpop.f32.mrf.mxu0
      %v2318 = vadd.f32 0.0, %v2317
      %2319 = vmatmul.bf16.gmra.mxu0 %v2215
      %v2320 = vpop.f32.mrf.mxu0
      %v2321 = vadd.f32 0.0, %v2320
      %v2322 = vpop.f32.mrf.mxu0
      %v2323 = vadd.f32 0.0, %v2322
      %2324 = vmatmul.bf16.gmra.mxu0 %v2216
      %v2325 = vpop.f32.mrf.mxu0
      %v2326 = vadd.f32 0.0, %v2325
      %v2327 = vpop.f32.mrf.mxu0
      %v2328 = vadd.f32 0.0, %v2327
      %2329 = vmatmul.bf16.gmra.mxu0 %v2217
      %v2330 = vpop.f32.mrf.mxu0
      %v2331 = vadd.f32 0.0, %v2330
      %v2332 = vpop.f32.mrf.mxu0
      %v2333 = vadd.f32 0.0, %v2332
      %2334 = vmatmul.bf16.gmra.mxu0 %v2218
      %v2335 = vpop.f32.mrf.mxu0
      %v2336 = vadd.f32 0.0, %v2335
      %v2337 = vpop.f32.mrf.mxu0
      %v2338 = vadd.f32 0.0, %v2337
      %2339 = vmatmul.bf16.gmra.mxu0 %v2219
      %v2340 = vpop.f32.mrf.mxu0
      %v2341 = vadd.f32 0.0, %v2340
      %v2342 = vpop.f32.mrf.mxu0
      %v2343 = vadd.f32 0.0, %v2342
      %2344 = vmatmul.bf16.gmra.mxu0 %v2220
      %v2345 = vpop.f32.mrf.mxu0
      %v2346 = vadd.f32 0.0, %v2345
      %v2347 = vpop.f32.mrf.mxu0
      %v2348 = vadd.f32 0.0, %v2347
      %2349 = vmatmul.bf16.gmra.mxu0 %v2221
      %v2350 = vpop.f32.mrf.mxu0
      %v2351 = vadd.f32 0.0, %v2350
      %v2352 = vpop.f32.mrf.mxu0
      %v2353 = vadd.f32 0.0, %v2352
      %2354 = vmatmul.bf16.gmra.mxu0 %v2222
      %v2355 = vpop.f32.mrf.mxu0
      %v2356 = vadd.f32 0.0, %v2355
      %v2357 = vpop.f32.mrf.mxu0
      %v2358 = vadd.f32 0.0, %v2357
      %2359 = vmatmul.bf16.gmra.mxu0 %v2223
      %v2360 = vpop.f32.mrf.mxu0
      %v2361 = vadd.f32 0.0, %v2360
      %v2362 = vpop.f32.mrf.mxu0
      %v2363 = vadd.f32 0.0, %v2362
      %2364 = vmatmul.bf16.gmra.mxu0 %v2224
      %v2365 = vpop.f32.mrf.mxu0
      %v2366 = vadd.f32 0.0, %v2365
      %v2367 = vpop.f32.mrf.mxu0
      %v2368 = vadd.f32 0.0, %v2367
      %2369 = vmatmul.bf16.gmra.mxu0 %v2225
      %v2370 = vpop.f32.mrf.mxu0
      %v2371 = vadd.f32 0.0, %v2370
      %v2372 = vpop.f32.mrf.mxu0
      %v2373 = vadd.f32 0.0, %v2372
      %2374 = vmatmul.bf16.gmra.mxu0 %v2226
      %v2375 = vpop.f32.mrf.mxu0
      %v2376 = vadd.f32 0.0, %v2375
      %v2377 = vpop.f32.mrf.mxu0
      %v2378 = vadd.f32 0.0, %v2377
      %2379 = vdwg.mxu0
      %v2380 = vadd.f32 %v1952, %v2301
      %v2381 = vadd.f32 %v1953, %v2303
      %v2382 = vadd.f32 %v1954, %v2306
      %v2383 = vadd.f32 %v1955, %v2308
      %v2384 = vadd.f32 %v1956, %v2311
      %v2385 = vadd.f32 %v1957, %v2313
      %v2386 = vadd.f32 %v1958, %v2316
      %v2387 = vadd.f32 %v1959, %v2318
      %v2388 = vadd.f32 %v1960, %v2321
      %v2389 = vadd.f32 %v1961, %v2323
      %v2390 = vadd.f32 %v1962, %v2326
      %v2391 = vadd.f32 %v1963, %v2328
      %v2392 = vadd.f32 %v1964, %v2331
      %v2393 = vadd.f32 %v1965, %v2333
      %v2394 = vadd.f32 %v1966, %v2336
      %v2395 = vadd.f32 %v1967, %v2338
      %v2396 = vadd.f32 %v1968, %v2341
      %v2397 = vadd.f32 %v1969, %v2343
      %v2398 = vadd.f32 %v1970, %v2346
      %v2399 = vadd.f32 %v1971, %v2348
      %v2400 = vadd.f32 %v1972, %v2351
      %v2401 = vadd.f32 %v1973, %v2353
      %v2402 = vadd.f32 %v1974, %v2356
      %v2403 = vadd.f32 %v1975, %v2358
      %v2404 = vadd.f32 %v1976, %v2361
      %v2405 = vadd.f32 %v1977, %v2363
      %v2406 = vadd.f32 %v1978, %v2366
      %v2407 = vadd.f32 %v1979, %v2368
      %v2408 = vadd.f32 %v1980, %v2371
      %v2409 = vadd.f32 %v1981, %v2373
      %v2410 = vadd.f32 %v1982, %v2376
      %v2411 = vadd.f32 %v1983, %v2378
      %v2412 = vld [vmem:[%s868] sm:$0xf]
      %v2413 = vld [vmem:[%s868 + $0x4] sm:$0xf]
      %v2414 = vld [vmem:[%s868 + $0xc] sm:$0xf]
      %v2415 = vld [vmem:[%s868 + $0x10] sm:$0xf]
      %v2416 = vld [vmem:[%s868 + $0x18] sm:$0xf]
      %v2417 = vld [vmem:[%s868 + $0x1c] sm:$0xf]
      %v2418 = vld [vmem:[%s868 + $0x24] sm:$0xf]
      %v2419 = vld [vmem:[%s868 + $0x28] sm:$0xf]
      %v2420 = vld [vmem:[%s868 + $0x30] sm:$0xf]
      %v2421 = vld [vmem:[%s868 + $0x34] sm:$0xf]
      %v2422 = vld [vmem:[%s868 + $0x3c] sm:$0xf]
      %v2423 = vld [vmem:[%s868 + $0x40] sm:$0xf]
      %v2424 = vld [vmem:[%s868 + $0x48] sm:$0xf]
      %v2425 = vld [vmem:[%s868 + $0x4c] sm:$0xf]
      %v2426 = vld [vmem:[%s868 + $0x54] sm:$0xf]
      %v2427 = vld [vmem:[%s868 + $0x58] sm:$0xf]
      %v2428 = vld [vmem:[%s868 + $0x60] sm:$0xf]
      %v2429 = vld [vmem:[%s868 + $0x64] sm:$0xf]
      %v2430 = vld [vmem:[%s868 + $0x6c] sm:$0xf]
      %v2431 = vld [vmem:[%s868 + $0x70] sm:$0xf]
      %v2432 = vld [vmem:[%s868 + $0x78] sm:$0xf]
      %v2433 = vld [vmem:[%s868 + $0x7c] sm:$0xf]
      %v2434 = vld [vmem:[%s868 + $0x84] sm:$0xf]
      %v2435 = vld [vmem:[%s868 + $0x88] sm:$0xf]
      %v2436 = vld [vmem:[%s868 + $0x90] sm:$0xf]
      %v2437 = vld [vmem:[%s868 + $0x94] sm:$0xf]
      %v2438 = vld [vmem:[%s868 + $0x9c] sm:$0xf]
      %v2439 = vld [vmem:[%s868 + $0xa0] sm:$0xf]
      %v2440 = vld [vmem:[%s868 + $0xa8] sm:$0xf]
      %v2441 = vld [vmem:[%s868 + $0xac] sm:$0xf]
      %v2442 = vld [vmem:[%s868 + $0xb4] sm:$0xf]
      %v2443 = vld [vmem:[%s868 + $0xb8] sm:$0xf]
      %v2444 = vld [vmem:[%s3 + $0xc0] sm:$0xf]
      %v2445 = vld [vmem:[%s3 + $0xc4] sm:$0xf]
      %v2446 = vld [vmem:[%s3 + $0xc8] sm:$0xf]
      %v2447 = vld [vmem:[%s3 + $0xcc] sm:$0xf]
      %v2448 = vld [vmem:[%s3 + $0xd0] sm:$0xf]
      %v2449 = vld [vmem:[%s3 + $0xd4] sm:$0xf]
      %v2450 = vld [vmem:[%s3 + $0xd8] sm:$0xf]
      %v2451 = vld [vmem:[%s3 + $0xdc] sm:$0xf]
      %v2452 = vld [vmem:[%s3 + $0xe0] sm:$0xf]
      %v2453 = vld [vmem:[%s3 + $0xe4] sm:$0xf]
      %v2454 = vld [vmem:[%s3 + $0xe8] sm:$0xf]
      %v2455 = vld [vmem:[%s3 + $0xec] sm:$0xf]
      %v2456 = vld [vmem:[%s3 + $0xf0] sm:$0xf]
      %v2457 = vld [vmem:[%s3 + $0xf4] sm:$0xf]
      %v2458 = vld [vmem:[%s3 + $0xf8] sm:$0xf]
      %v2459 = vld [vmem:[%s3 + $0xfc] sm:$0xf]
      %v2492 = vunpack.c.l.b16 %v2412
      %v2493 = vunpack.c.l.b16 %v2413
      %v2494 = vunpack.c.l.b16 %v2414
      %v2495 = vunpack.c.l.b16 %v2415
      %v2496 = vunpack.c.l.b16 %v2416
      %v2497 = vunpack.c.l.b16 %v2417
      %v2498 = vunpack.c.l.b16 %v2418
      %v2499 = vunpack.c.l.b16 %v2419
      %v2500 = vunpack.c.l.b16 %v2420
      %v2501 = vunpack.c.l.b16 %v2421
      %v2502 = vunpack.c.l.b16 %v2422
      %v2503 = vunpack.c.l.b16 %v2423
      %v2504 = vunpack.c.l.b16 %v2424
      %v2505 = vunpack.c.l.b16 %v2425
      %v2506 = vunpack.c.l.b16 %v2426
      %v2507 = vunpack.c.l.b16 %v2427
      %v2508 = vunpack.c.l.b16 %v2428
      %v2509 = vunpack.c.l.b16 %v2429
      %v2510 = vunpack.c.l.b16 %v2430
      %v2511 = vunpack.c.l.b16 %v2431
      %v2512 = vunpack.c.l.b16 %v2432
      %v2513 = vunpack.c.l.b16 %v2433
      %v2514 = vunpack.c.l.b16 %v2434
      %v2515 = vunpack.c.l.b16 %v2435
      %v2516 = vunpack.c.l.b16 %v2436
      %v2517 = vunpack.c.l.b16 %v2437
      %v2518 = vunpack.c.l.b16 %v2438
      %v2519 = vunpack.c.l.b16 %v2439
      %v2520 = vunpack.c.l.b16 %v2440
      %v2521 = vunpack.c.l.b16 %v2441
      %v2522 = vunpack.c.l.b16 %v2442
      %v2523 = vunpack.c.l.b16 %v2443
      %v2524 = vpack.c.b16 %v2493, %v2492
      %v2525 = vpack.c.b16 %v2495, %v2494
      %v2526 = vpack.c.b16 %v2497, %v2496
      %v2527 = vpack.c.b16 %v2499, %v2498
      %v2528 = vpack.c.b16 %v2501, %v2500
      %v2529 = vpack.c.b16 %v2503, %v2502
      %v2530 = vpack.c.b16 %v2505, %v2504
      %v2531 = vpack.c.b16 %v2507, %v2506
      %v2532 = vpack.c.b16 %v2509, %v2508
      %v2533 = vpack.c.b16 %v2511, %v2510
      %v2534 = vpack.c.b16 %v2513, %v2512
      %v2535 = vpack.c.b16 %v2515, %v2514
      %v2536 = vpack.c.b16 %v2517, %v2516
      %v2537 = vpack.c.b16 %v2519, %v2518
      %v2538 = vpack.c.b16 %v2521, %v2520
      %v2539 = vpack.c.b16 %v2523, %v2522
      %v2572 = vunpack.c.l.b16 %v2444
      %v2573 = vunpack.c.l.b16 %v2445
      %v2574 = vunpack.c.l.b16 %v2446
      %v2575 = vunpack.c.l.b16 %v2447
      %v2576 = vunpack.c.l.b16 %v2448
      %v2577 = vunpack.c.l.b16 %v2449
      %v2578 = vunpack.c.l.b16 %v2450
      %v2579 = vunpack.c.l.b16 %v2451
      %v2580 = vunpack.c.l.b16 %v2452
      %v2581 = vunpack.c.l.b16 %v2453
      %v2582 = vunpack.c.l.b16 %v2454
      %v2583 = vunpack.c.l.b16 %v2455
      %v2584 = vunpack.c.l.b16 %v2456
      %v2585 = vunpack.c.l.b16 %v2457
      %v2586 = vunpack.c.l.b16 %v2458
      %v2587 = vunpack.c.l.b16 %v2459
      %v2588 = vpack.c.b16 %v2573, %v2572
      %v2589 = vpack.c.b16 %v2575, %v2574
      %v2590 = vpack.c.b16 %v2577, %v2576
      %v2591 = vpack.c.b16 %v2579, %v2578
      %v2592 = vpack.c.b16 %v2581, %v2580
      %v2593 = vpack.c.b16 %v2583, %v2582
      %v2594 = vpack.c.b16 %v2585, %v2584
      %v2595 = vpack.c.b16 %v2587, %v2586
      %2604 = vmatpush.bf16.msra.mxu0 %v2595
      %2605 = vmatpush.bf16.msra.mxu0 %v2594
      %2606 = vmatpush.bf16.msra.mxu0 %v2593
      %2607 = vmatpush.bf16.msra.mxu0 %v2592
      %2608 = vmatpush.bf16.msra.mxu0 %v2591
      %2609 = vmatpush.bf16.msra.mxu0 %v2590
      %2610 = vmatpush.bf16.msra.mxu0 %v2589
      %2611 = vmatpush.bf16.msra.mxu0 %v2588
      %2612 = vmatmul.bf16.gmra.mxu0 %v2524
      %v2613 = vpop.f32.mrf.mxu0
      %v2614 = vadd.f32 0.0, %v2613
      %v2615 = vpop.f32.mrf.mxu0
      %v2616 = vadd.f32 0.0, %v2615
      %2617 = vmatmul.bf16.gmra.mxu0 %v2525
      %v2618 = vpop.f32.mrf.mxu0
      %v2619 = vadd.f32 0.0, %v2618
      %v2620 = vpop.f32.mrf.mxu0
      %v2621 = vadd.f32 0.0, %v2620
      %2622 = vmatmul.bf16.gmra.mxu0 %v2526
      %v2623 = vpop.f32.mrf.mxu0
      %v2624 = vadd.f32 0.0, %v2623
      %v2625 = vpop.f32.mrf.mxu0
      %v2626 = vadd.f32 0.0, %v2625
      %2627 = vmatmul.bf16.gmra.mxu0 %v2527
      %v2628 = vpop.f32.mrf.mxu0
      %v2629 = vadd.f32 0.0, %v2628
      %v2630 = vpop.f32.mrf.mxu0
      %v2631 = vadd.f32 0.0, %v2630
      %2632 = vmatmul.bf16.gmra.mxu0 %v2528
      %v2633 = vpop.f32.mrf.mxu0
      %v2634 = vadd.f32 0.0, %v2633
      %v2635 = vpop.f32.mrf.mxu0
      %v2636 = vadd.f32 0.0, %v2635
      %2637 = vmatmul.bf16.gmra.mxu0 %v2529
      %v2638 = vpop.f32.mrf.mxu0
      %v2639 = vadd.f32 0.0, %v2638
      %v2640 = vpop.f32.mrf.mxu0
      %v2641 = vadd.f32 0.0, %v2640
      %2642 = vmatmul.bf16.gmra.mxu0 %v2530
      %v2643 = vpop.f32.mrf.mxu0
      %v2644 = vadd.f32 0.0, %v2643
      %v2645 = vpop.f32.mrf.mxu0
      %v2646 = vadd.f32 0.0, %v2645
      %2647 = vmatmul.bf16.gmra.mxu0 %v2531
      %v2648 = vpop.f32.mrf.mxu0
      %v2649 = vadd.f32 0.0, %v2648
      %v2650 = vpop.f32.mrf.mxu0
      %v2651 = vadd.f32 0.0, %v2650
      %2652 = vmatmul.bf16.gmra.mxu0 %v2532
      %v2653 = vpop.f32.mrf.mxu0
      %v2654 = vadd.f32 0.0, %v2653
      %v2655 = vpop.f32.mrf.mxu0
      %v2656 = vadd.f32 0.0, %v2655
      %2657 = vmatmul.bf16.gmra.mxu0 %v2533
      %v2658 = vpop.f32.mrf.mxu0
      %v2659 = vadd.f32 0.0, %v2658
      %v2660 = vpop.f32.mrf.mxu0
      %v2661 = vadd.f32 0.0, %v2660
      %2662 = vmatmul.bf16.gmra.mxu0 %v2534
      %v2663 = vpop.f32.mrf.mxu0
      %v2664 = vadd.f32 0.0, %v2663
      %v2665 = vpop.f32.mrf.mxu0
      %v2666 = vadd.f32 0.0, %v2665
      %2667 = vmatmul.bf16.gmra.mxu0 %v2535
      %v2668 = vpop.f32.mrf.mxu0
      %v2669 = vadd.f32 0.0, %v2668
      %v2670 = vpop.f32.mrf.mxu0
      %v2671 = vadd.f32 0.0, %v2670
      %2672 = vmatmul.bf16.gmra.mxu0 %v2536
      %v2673 = vpop.f32.mrf.mxu0
      %v2674 = vadd.f32 0.0, %v2673
      %v2675 = vpop.f32.mrf.mxu0
      %v2676 = vadd.f32 0.0, %v2675
      %2677 = vmatmul.bf16.gmra.mxu0 %v2537
      %v2678 = vpop.f32.mrf.mxu0
      %v2679 = vadd.f32 0.0, %v2678
      %v2680 = vpop.f32.mrf.mxu0
      %v2681 = vadd.f32 0.0, %v2680
      %2682 = vmatmul.bf16.gmra.mxu0 %v2538
      %v2683 = vpop.f32.mrf.mxu0
      %v2684 = vadd.f32 0.0, %v2683
      %v2685 = vpop.f32.mrf.mxu0
      %v2686 = vadd.f32 0.0, %v2685
      %2687 = vmatmul.bf16.gmra.mxu0 %v2539
      %v2688 = vpop.f32.mrf.mxu0
      %v2689 = vadd.f32 0.0, %v2688
      %v2690 = vpop.f32.mrf.mxu0
      %v2691 = vadd.f32 0.0, %v2690
      %2692 = vdwg.mxu0
      %v2693 = vadd.f32 %v2380, %v2614
      %v2694 = vadd.f32 %v2381, %v2616
      %v2695 = vadd.f32 %v2382, %v2619
      %v2696 = vadd.f32 %v2383, %v2621
      %v2697 = vadd.f32 %v2384, %v2624
      %v2698 = vadd.f32 %v2385, %v2626
      %v2699 = vadd.f32 %v2386, %v2629
      %v2700 = vadd.f32 %v2387, %v2631
      %v2701 = vadd.f32 %v2388, %v2634
      %v2702 = vadd.f32 %v2389, %v2636
      %v2703 = vadd.f32 %v2390, %v2639
      %v2704 = vadd.f32 %v2391, %v2641
      %v2705 = vadd.f32 %v2392, %v2644
      %v2706 = vadd.f32 %v2393, %v2646
      %v2707 = vadd.f32 %v2394, %v2649
      %v2708 = vadd.f32 %v2395, %v2651
      %v2709 = vadd.f32 %v2396, %v2654
      %v2710 = vadd.f32 %v2397, %v2656
      %v2711 = vadd.f32 %v2398, %v2659
      %v2712 = vadd.f32 %v2399, %v2661
      %v2713 = vadd.f32 %v2400, %v2664
      %v2714 = vadd.f32 %v2401, %v2666
      %v2715 = vadd.f32 %v2402, %v2669
      %v2716 = vadd.f32 %v2403, %v2671
      %v2717 = vadd.f32 %v2404, %v2674
      %v2718 = vadd.f32 %v2405, %v2676
      %v2719 = vadd.f32 %v2406, %v2679
      %v2720 = vadd.f32 %v2407, %v2681
      %v2721 = vadd.f32 %v2408, %v2684
      %v2722 = vadd.f32 %v2409, %v2686
      %v2723 = vadd.f32 %v2410, %v2689
      %v2724 = vadd.f32 %v2411, %v2691
      %v2725 = vld [vmem:[%s868] sm:$0xf]
      %v2726 = vld [vmem:[%s868 + $0x4] sm:$0xf]
      %v2727 = vld [vmem:[%s868 + $0x8] sm:$0x1]
      %v2728 = vld [vmem:[%s868 + $0xc] sm:$0xf]
      %v2729 = vld [vmem:[%s868 + $0x10] sm:$0xf]
      %v2730 = vld [vmem:[%s868 + $0x14] sm:$0x1]
      %v2731 = vld [vmem:[%s868 + $0x18] sm:$0xf]
      %v2732 = vld [vmem:[%s868 + $0x1c] sm:$0xf]
      %v2733 = vld [vmem:[%s868 + $0x20] sm:$0x1]
      %v2734 = vld [vmem:[%s868 + $0x24] sm:$0xf]
      %v2735 = vld [vmem:[%s868 + $0x28] sm:$0xf]
      %v2736 = vld [vmem:[%s868 + $0x2c] sm:$0x1]
      %v2737 = vld [vmem:[%s868 + $0x30] sm:$0xf]
      %v2738 = vld [vmem:[%s868 + $0x34] sm:$0xf]
      %v2739 = vld [vmem:[%s868 + $0x38] sm:$0x1]
      %v2740 = vld [vmem:[%s868 + $0x3c] sm:$0xf]
      %v2741 = vld [vmem:[%s868 + $0x40] sm:$0xf]
      %v2742 = vld [vmem:[%s868 + $0x44] sm:$0x1]
      %v2743 = vld [vmem:[%s868 + $0x48] sm:$0xf]
      %v2744 = vld [vmem:[%s868 + $0x4c] sm:$0xf]
      %v2745 = vld [vmem:[%s868 + $0x50] sm:$0x1]
      %v2746 = vld [vmem:[%s868 + $0x54] sm:$0xf]
      %v2747 = vld [vmem:[%s868 + $0x58] sm:$0xf]
      %v2748 = vld [vmem:[%s868 + $0x5c] sm:$0x1]
      %v2749 = vld [vmem:[%s868 + $0x60] sm:$0xf]
      %v2750 = vld [vmem:[%s868 + $0x64] sm:$0xf]
      %v2751 = vld [vmem:[%s868 + $0x68] sm:$0x1]
      %v2752 = vld [vmem:[%s868 + $0x6c] sm:$0xf]
      %v2753 = vld [vmem:[%s868 + $0x70] sm:$0xf]
      %v2754 = vld [vmem:[%s868 + $0x74] sm:$0x1]
      %v2755 = vld [vmem:[%s868 + $0x78] sm:$0xf]
      %v2756 = vld [vmem:[%s868 + $0x7c] sm:$0xf]
      %v2757 = vld [vmem:[%s868 + $0x80] sm:$0x1]
      %v2758 = vld [vmem:[%s868 + $0x84] sm:$0xf]
      %v2759 = vld [vmem:[%s868 + $0x88] sm:$0xf]
      %v2760 = vld [vmem:[%s868 + $0x8c] sm:$0x1]
      %v2761 = vld [vmem:[%s868 + $0x90] sm:$0xf]
      %v2762 = vld [vmem:[%s868 + $0x94] sm:$0xf]
      %v2763 = vld [vmem:[%s868 + $0x98] sm:$0x1]
      %v2764 = vld [vmem:[%s868 + $0x9c] sm:$0xf]
      %v2765 = vld [vmem:[%s868 + $0xa0] sm:$0xf]
      %v2766 = vld [vmem:[%s868 + $0xa4] sm:$0x1]
      %v2767 = vld [vmem:[%s868 + $0xa8] sm:$0xf]
      %v2768 = vld [vmem:[%s868 + $0xac] sm:$0xf]
      %v2769 = vld [vmem:[%s868 + $0xb0] sm:$0x1]
      %v2770 = vld [vmem:[%s868 + $0xb4] sm:$0xf]
      %v2771 = vld [vmem:[%s868 + $0xb8] sm:$0xf]
      %v2772 = vld [vmem:[%s868 + $0xbc] sm:$0x1]
      %v2774 = vshrl.u32 %v2725, 16
      %v2776 = vrot.slane %v2774, 4
      %v2777 = vshll.u32 %v2725, 16
      %v2779 = vrot.slane %v2777, 5
      %v2780 = vor.u32 %v2776, %v2779
      %v2781 = vrot.slane %v2780, 4
      %v2783 = vshll.u32 %v2726, 16
      %v2785 = vrot.slane %v2783, 5
      %v2786 = vsel %vm1350, %v2781, %v2785
      %v2787 = vshrl.u32 %v2726, 16
      %v2789 = vrot.slane %v2787, 4
      %v2790 = vor.u32 %v2789, %v2785
      %v2791 = vrot.slane %v2790, 4
      %v2793 = vshll.u32 %v2727, 16
      %v2795 = vrot.slane %v2793, 5
      %v2796 = vsel %vm1350, %v2791, %v2795
      %v2798 = vshrl.u32 %v2728, 16
      %v2800 = vrot.slane %v2798, 4
      %v2801 = vshll.u32 %v2728, 16
      %v2803 = vrot.slane %v2801, 5
      %v2804 = vor.u32 %v2800, %v2803
      %v2805 = vrot.slane %v2804, 4
      %v2807 = vshll.u32 %v2729, 16
      %v2809 = vrot.slane %v2807, 5
      %v2810 = vsel %vm1350, %v2805, %v2809
      %v2811 = vshrl.u32 %v2729, 16
      %v2813 = vrot.slane %v2811, 4
      %v2814 = vor.u32 %v2813, %v2809
      %v2815 = vrot.slane %v2814, 4
      %v2817 = vshll.u32 %v2730, 16
      %v2819 = vrot.slane %v2817, 5
      %v2820 = vsel %vm1350, %v2815, %v2819
      %v2822 = vshrl.u32 %v2731, 16
      %v2824 = vrot.slane %v2822, 4
      %v2825 = vshll.u32 %v2731, 16
      %v2827 = vrot.slane %v2825, 5
      %v2828 = vor.u32 %v2824, %v2827
      %v2829 = vrot.slane %v2828, 4
      %v2831 = vshll.u32 %v2732, 16
      %v2833 = vrot.slane %v2831, 5
      %v2834 = vsel %vm1350, %v2829, %v2833
      %v2835 = vshrl.u32 %v2732, 16
      %v2837 = vrot.slane %v2835, 4
      %v2838 = vor.u32 %v2837, %v2833
      %v2839 = vrot.slane %v2838, 4
      %v2841 = vshll.u32 %v2733, 16
      %v2843 = vrot.slane %v2841, 5
      %v2844 = vsel %vm1350, %v2839, %v2843
      %v2846 = vshrl.u32 %v2734, 16
      %v2848 = vrot.slane %v2846, 4
      %v2849 = vshll.u32 %v2734, 16
      %v2851 = vrot.slane %v2849, 5
      %v2852 = vor.u32 %v2848, %v2851
      %v2853 = vrot.slane %v2852, 4
      %v2855 = vshll.u32 %v2735, 16
      %v2857 = vrot.slane %v2855, 5
      %v2858 = vsel %vm1350, %v2853, %v2857
      %v2859 = vshrl.u32 %v2735, 16
      %v2861 = vrot.slane %v2859, 4
      %v2862 = vor.u32 %v2861, %v2857
      %v2863 = vrot.slane %v2862, 4
      %v2865 = vshll.u32 %v2736, 16
      %v2867 = vrot.slane %v2865, 5
      %v2868 = vsel %vm1350, %v2863, %v2867
      %v2870 = vshrl.u32 %v2737, 16
      %v2872 = vrot.slane %v2870, 4
      %v2873 = vshll.u32 %v2737, 16
      %v2875 = vrot.slane %v2873, 5
      %v2876 = vor.u32 %v2872, %v2875
      %v2877 = vrot.slane %v2876, 4
      %v2879 = vshll.u32 %v2738, 16
      %v2881 = vrot.slane %v2879, 5
      %v2882 = vsel %vm1350, %v2877, %v2881
      %v2883 = vshrl.u32 %v2738, 16
      %v2885 = vrot.slane %v2883, 4
      %v2886 = vor.u32 %v2885, %v2881
      %v2887 = vrot.slane %v2886, 4
      %v2889 = vshll.u32 %v2739, 16
      %v2891 = vrot.slane %v2889, 5
      %v2892 = vsel %vm1350, %v2887, %v2891
      %v2894 = vshrl.u32 %v2740, 16
      %v2896 = vrot.slane %v2894, 4
      %v2897 = vshll.u32 %v2740, 16
      %v2899 = vrot.slane %v2897, 5
      %v2900 = vor.u32 %v2896, %v2899
      %v2901 = vrot.slane %v2900, 4
      %v2903 = vshll.u32 %v2741, 16
      %v2905 = vrot.slane %v2903, 5
      %v2906 = vsel %vm1350, %v2901, %v2905
      %v2907 = vshrl.u32 %v2741, 16
      %v2909 = vrot.slane %v2907, 4
      %v2910 = vor.u32 %v2909, %v2905
      %v2911 = vrot.slane %v2910, 4
      %v2913 = vshll.u32 %v2742, 16
      %v2915 = vrot.slane %v2913, 5
      %v2916 = vsel %vm1350, %v2911, %v2915
      %v2918 = vshrl.u32 %v2743, 16
      %v2920 = vrot.slane %v2918, 4
      %v2921 = vshll.u32 %v2743, 16
      %v2923 = vrot.slane %v2921, 5
      %v2924 = vor.u32 %v2920, %v2923
      %v2925 = vrot.slane %v2924, 4
      %v2927 = vshll.u32 %v2744, 16
      %v2929 = vrot.slane %v2927, 5
      %v2930 = vsel %vm1350, %v2925, %v2929
      %v2931 = vshrl.u32 %v2744, 16
      %v2933 = vrot.slane %v2931, 4
      %v2934 = vor.u32 %v2933, %v2929
      %v2935 = vrot.slane %v2934, 4
      %v2937 = vshll.u32 %v2745, 16
      %v2939 = vrot.slane %v2937, 5
      %v2940 = vsel %vm1350, %v2935, %v2939
      %v2942 = vshrl.u32 %v2746, 16
      %v2944 = vrot.slane %v2942, 4
      %v2945 = vshll.u32 %v2746, 16
      %v2947 = vrot.slane %v2945, 5
      %v2948 = vor.u32 %v2944, %v2947
      %v2949 = vrot.slane %v2948, 4
      %v2951 = vshll.u32 %v2747, 16
      %v2953 = vrot.slane %v2951, 5
      %v2954 = vsel %vm1350, %v2949, %v2953
      %v2955 = vshrl.u32 %v2747, 16
      %v2957 = vrot.slane %v2955, 4
      %v2958 = vor.u32 %v2957, %v2953
      %v2959 = vrot.slane %v2958, 4
      %v2961 = vshll.u32 %v2748, 16
      %v2963 = vrot.slane %v2961, 5
      %v2964 = vsel %vm1350, %v2959, %v2963
      %v2966 = vshrl.u32 %v2749, 16
      %v2968 = vrot.slane %v2966, 4
      %v2969 = vshll.u32 %v2749, 16
      %v2971 = vrot.slane %v2969, 5
      %v2972 = vor.u32 %v2968, %v2971
      %v2973 = vrot.slane %v2972, 4
      %v2975 = vshll.u32 %v2750, 16
      %v2977 = vrot.slane %v2975, 5
      %v2978 = vsel %vm1350, %v2973, %v2977
      %v2979 = vshrl.u32 %v2750, 16
      %v2981 = vrot.slane %v2979, 4
      %v2982 = vor.u32 %v2981, %v2977
      %v2983 = vrot.slane %v2982, 4
      %v2985 = vshll.u32 %v2751, 16
      %v2987 = vrot.slane %v2985, 5
      %v2988 = vsel %vm1350, %v2983, %v2987
      %v2990 = vshrl.u32 %v2752, 16
      %v2992 = vrot.slane %v2990, 4
      %v2993 = vshll.u32 %v2752, 16
      %v2995 = vrot.slane %v2993, 5
      %v2996 = vor.u32 %v2992, %v2995
      %v2997 = vrot.slane %v2996, 4
      %v2999 = vshll.u32 %v2753, 16
      %v3001 = vrot.slane %v2999, 5
      %v3002 = vsel %vm1350, %v2997, %v3001
      %v3003 = vshrl.u32 %v2753, 16
      %v3005 = vrot.slane %v3003, 4
      %v3006 = vor.u32 %v3005, %v3001
      %v3007 = vrot.slane %v3006, 4
      %v3009 = vshll.u32 %v2754, 16
      %v3011 = vrot.slane %v3009, 5
      %v3012 = vsel %vm1350, %v3007, %v3011
      %v3014 = vshrl.u32 %v2755, 16
      %v3016 = vrot.slane %v3014, 4
      %v3017 = vshll.u32 %v2755, 16
      %v3019 = vrot.slane %v3017, 5
      %v3020 = vor.u32 %v3016, %v3019
      %v3021 = vrot.slane %v3020, 4
      %v3023 = vshll.u32 %v2756, 16
      %v3025 = vrot.slane %v3023, 5
      %v3026 = vsel %vm1350, %v3021, %v3025
      %v3027 = vshrl.u32 %v2756, 16
      %v3029 = vrot.slane %v3027, 4
      %v3030 = vor.u32 %v3029, %v3025
      %v3031 = vrot.slane %v3030, 4
      %v3033 = vshll.u32 %v2757, 16
      %v3035 = vrot.slane %v3033, 5
      %v3036 = vsel %vm1350, %v3031, %v3035
      %v3038 = vshrl.u32 %v2758, 16
      %v3040 = vrot.slane %v3038, 4
      %v3041 = vshll.u32 %v2758, 16
      %v3043 = vrot.slane %v3041, 5
      %v3044 = vor.u32 %v3040, %v3043
      %v3045 = vrot.slane %v3044, 4
      %v3047 = vshll.u32 %v2759, 16
      %v3049 = vrot.slane %v3047, 5
      %v3050 = vsel %vm1350, %v3045, %v3049
      %v3051 = vshrl.u32 %v2759, 16
      %v3053 = vrot.slane %v3051, 4
      %v3054 = vor.u32 %v3053, %v3049
      %v3055 = vrot.slane %v3054, 4
      %v3057 = vshll.u32 %v2760, 16
      %v3059 = vrot.slane %v3057, 5
      %v3060 = vsel %vm1350, %v3055, %v3059
      %v3062 = vshrl.u32 %v2761, 16
      %v3064 = vrot.slane %v3062, 4
      %v3065 = vshll.u32 %v2761, 16
      %v3067 = vrot.slane %v3065, 5
      %v3068 = vor.u32 %v3064, %v3067
      %v3069 = vrot.slane %v3068, 4
      %v3071 = vshll.u32 %v2762, 16
      %v3073 = vrot.slane %v3071, 5
      %v3074 = vsel %vm1350, %v3069, %v3073
      %v3075 = vshrl.u32 %v2762, 16
      %v3077 = vrot.slane %v3075, 4
      %v3078 = vor.u32 %v3077, %v3073
      %v3079 = vrot.slane %v3078, 4
      %v3081 = vshll.u32 %v2763, 16
      %v3083 = vrot.slane %v3081, 5
      %v3084 = vsel %vm1350, %v3079, %v3083
      %v3086 = vshrl.u32 %v2764, 16
      %v3088 = vrot.slane %v3086, 4
      %v3089 = vshll.u32 %v2764, 16
      %v3091 = vrot.slane %v3089, 5
      %v3092 = vor.u32 %v3088, %v3091
      %v3093 = vrot.slane %v3092, 4
      %v3095 = vshll.u32 %v2765, 16
      %v3097 = vrot.slane %v3095, 5
      %v3098 = vsel %vm1350, %v3093, %v3097
      %v3099 = vshrl.u32 %v2765, 16
      %v3101 = vrot.slane %v3099, 4
      %v3102 = vor.u32 %v3101, %v3097
      %v3103 = vrot.slane %v3102, 4
      %v3105 = vshll.u32 %v2766, 16
      %v3107 = vrot.slane %v3105, 5
      %v3108 = vsel %vm1350, %v3103, %v3107
      %v3110 = vshrl.u32 %v2767, 16
      %v3112 = vrot.slane %v3110, 4
      %v3113 = vshll.u32 %v2767, 16
      %v3115 = vrot.slane %v3113, 5
      %v3116 = vor.u32 %v3112, %v3115
      %v3117 = vrot.slane %v3116, 4
      %v3119 = vshll.u32 %v2768, 16
      %v3121 = vrot.slane %v3119, 5
      %v3122 = vsel %vm1350, %v3117, %v3121
      %v3123 = vshrl.u32 %v2768, 16
      %v3125 = vrot.slane %v3123, 4
      %v3126 = vor.u32 %v3125, %v3121
      %v3127 = vrot.slane %v3126, 4
      %v3129 = vshll.u32 %v2769, 16
      %v3131 = vrot.slane %v3129, 5
      %v3132 = vsel %vm1350, %v3127, %v3131
      %v3134 = vshrl.u32 %v2770, 16
      %v3136 = vrot.slane %v3134, 4
      %v3137 = vshll.u32 %v2770, 16
      %v3139 = vrot.slane %v3137, 5
      %v3140 = vor.u32 %v3136, %v3139
      %v3141 = vrot.slane %v3140, 4
      %v3143 = vshll.u32 %v2771, 16
      %v3145 = vrot.slane %v3143, 5
      %v3146 = vsel %vm1350, %v3141, %v3145
      %v3147 = vshrl.u32 %v2771, 16
      %v3149 = vrot.slane %v3147, 4
      %v3150 = vor.u32 %v3149, %v3145
      %v3151 = vrot.slane %v3150, 4
      %v3153 = vshll.u32 %v2772, 16
      %v3155 = vrot.slane %v3153, 5
      %v3156 = vsel %vm1350, %v3151, %v3155
      %v3157 = vld [vmem:[%s3 + $0x100] sm:$0xf]
      %v3158 = vld [vmem:[%s3 + $0x104] sm:$0xf]
      %v3159 = vld [vmem:[%s3 + $0x108] sm:$0xf]
      %v3160 = vld [vmem:[%s3 + $0x10c] sm:$0xf]
      %v3161 = vld [vmem:[%s3 + $0x110] sm:$0xf]
      %v3162 = vld [vmem:[%s3 + $0x114] sm:$0xf]
      %v3163 = vld [vmem:[%s3 + $0x118] sm:$0xf]
      %v3164 = vld [vmem:[%s3 + $0x11c] sm:$0xf]
      %v3165 = vld [vmem:[%s3 + $0x120] sm:$0xf]
      %v3166 = vld [vmem:[%s3 + $0x124] sm:$0xf]
      %v3167 = vld [vmem:[%s3 + $0x128] sm:$0xf]
      %v3168 = vld [vmem:[%s3 + $0x12c] sm:$0xf]
      %v3169 = vld [vmem:[%s3 + $0x130] sm:$0xf]
      %v3170 = vld [vmem:[%s3 + $0x134] sm:$0xf]
      %v3171 = vld [vmem:[%s3 + $0x138] sm:$0xf]
      %v3172 = vld [vmem:[%s3 + $0x13c] sm:$0xf]
      %v3173 = vunpack.c.l.b16 %v2786
      %v3174 = vunpack.c.l.b16 %v2796
      %v3175 = vunpack.c.l.b16 %v2810
      %v3176 = vunpack.c.l.b16 %v2820
      %v3177 = vunpack.c.l.b16 %v2834
      %v3178 = vunpack.c.l.b16 %v2844
      %v3179 = vunpack.c.l.b16 %v2858
      %v3180 = vunpack.c.l.b16 %v2868
      %v3181 = vunpack.c.l.b16 %v2882
      %v3182 = vunpack.c.l.b16 %v2892
      %v3183 = vunpack.c.l.b16 %v2906
      %v3184 = vunpack.c.l.b16 %v2916
      %v3185 = vunpack.c.l.b16 %v2930
      %v3186 = vunpack.c.l.b16 %v2940
      %v3187 = vunpack.c.l.b16 %v2954
      %v3188 = vunpack.c.l.b16 %v2964
      %v3189 = vunpack.c.l.b16 %v2978
      %v3190 = vunpack.c.l.b16 %v2988
      %v3191 = vunpack.c.l.b16 %v3002
      %v3192 = vunpack.c.l.b16 %v3012
      %v3193 = vunpack.c.l.b16 %v3026
      %v3194 = vunpack.c.l.b16 %v3036
      %v3195 = vunpack.c.l.b16 %v3050
      %v3196 = vunpack.c.l.b16 %v3060
      %v3197 = vunpack.c.l.b16 %v3074
      %v3198 = vunpack.c.l.b16 %v3084
      %v3199 = vunpack.c.l.b16 %v3098
      %v3200 = vunpack.c.l.b16 %v3108
      %v3201 = vunpack.c.l.b16 %v3122
      %v3202 = vunpack.c.l.b16 %v3132
      %v3203 = vunpack.c.l.b16 %v3146
      %v3204 = vunpack.c.l.b16 %v3156
      %v3205 = vpack.c.b16 %v3174, %v3173
      %v3206 = vpack.c.b16 %v3176, %v3175
      %v3207 = vpack.c.b16 %v3178, %v3177
      %v3208 = vpack.c.b16 %v3180, %v3179
      %v3209 = vpack.c.b16 %v3182, %v3181
      %v3210 = vpack.c.b16 %v3184, %v3183
      %v3211 = vpack.c.b16 %v3186, %v3185
      %v3212 = vpack.c.b16 %v3188, %v3187
      %v3213 = vpack.c.b16 %v3190, %v3189
      %v3214 = vpack.c.b16 %v3192, %v3191
      %v3215 = vpack.c.b16 %v3194, %v3193
      %v3216 = vpack.c.b16 %v3196, %v3195
      %v3217 = vpack.c.b16 %v3198, %v3197
      %v3218 = vpack.c.b16 %v3200, %v3199
      %v3219 = vpack.c.b16 %v3202, %v3201
      %v3220 = vpack.c.b16 %v3204, %v3203
      %v3253 = vunpack.c.l.b16 %v3157
      %v3254 = vunpack.c.l.b16 %v3158
      %v3255 = vunpack.c.l.b16 %v3159
      %v3256 = vunpack.c.l.b16 %v3160
      %v3257 = vunpack.c.l.b16 %v3161
      %v3258 = vunpack.c.l.b16 %v3162
      %v3259 = vunpack.c.l.b16 %v3163
      %v3260 = vunpack.c.l.b16 %v3164
      %v3261 = vunpack.c.l.b16 %v3165
      %v3262 = vunpack.c.l.b16 %v3166
      %v3263 = vunpack.c.l.b16 %v3167
      %v3264 = vunpack.c.l.b16 %v3168
      %v3265 = vunpack.c.l.b16 %v3169
      %v3266 = vunpack.c.l.b16 %v3170
      %v3267 = vunpack.c.l.b16 %v3171
      %v3268 = vunpack.c.l.b16 %v3172
      %v3269 = vpack.c.b16 %v3254, %v3253
      %v3270 = vpack.c.b16 %v3256, %v3255
      %v3271 = vpack.c.b16 %v3258, %v3257
      %v3272 = vpack.c.b16 %v3260, %v3259
      %v3273 = vpack.c.b16 %v3262, %v3261
      %v3274 = vpack.c.b16 %v3264, %v3263
      %v3275 = vpack.c.b16 %v3266, %v3265
      %v3276 = vpack.c.b16 %v3268, %v3267
      %3285 = vmatpush.bf16.msra.mxu0 %v3276
      %3286 = vmatpush.bf16.msra.mxu0 %v3275
      %3287 = vmatpush.bf16.msra.mxu0 %v3274
      %3288 = vmatpush.bf16.msra.mxu0 %v3273
      %3289 = vmatpush.bf16.msra.mxu0 %v3272
      %3290 = vmatpush.bf16.msra.mxu0 %v3271
      %3291 = vmatpush.bf16.msra.mxu0 %v3270
      %3292 = vmatpush.bf16.msra.mxu0 %v3269
      %3293 = vmatmul.bf16.gmra.mxu0 %v3205
      %v3294 = vpop.f32.mrf.mxu0
      %v3295 = vadd.f32 0.0, %v3294
      %v3296 = vpop.f32.mrf.mxu0
      %v3297 = vadd.f32 0.0, %v3296
      %3298 = vmatmul.bf16.gmra.mxu0 %v3206
      %v3299 = vpop.f32.mrf.mxu0
      %v3300 = vadd.f32 0.0, %v3299
      %v3301 = vpop.f32.mrf.mxu0
      %v3302 = vadd.f32 0.0, %v3301
      %3303 = vmatmul.bf16.gmra.mxu0 %v3207
      %v3304 = vpop.f32.mrf.mxu0
      %v3305 = vadd.f32 0.0, %v3304
      %v3306 = vpop.f32.mrf.mxu0
      %v3307 = vadd.f32 0.0, %v3306
      %3308 = vmatmul.bf16.gmra.mxu0 %v3208
      %v3309 = vpop.f32.mrf.mxu0
      %v3310 = vadd.f32 0.0, %v3309
      %v3311 = vpop.f32.mrf.mxu0
      %v3312 = vadd.f32 0.0, %v3311
      %3313 = vmatmul.bf16.gmra.mxu0 %v3209
      %v3314 = vpop.f32.mrf.mxu0
      %v3315 = vadd.f32 0.0, %v3314
      %v3316 = vpop.f32.mrf.mxu0
      %v3317 = vadd.f32 0.0, %v3316
      %3318 = vmatmul.bf16.gmra.mxu0 %v3210
      %v3319 = vpop.f32.mrf.mxu0
      %v3320 = vadd.f32 0.0, %v3319
      %v3321 = vpop.f32.mrf.mxu0
      %v3322 = vadd.f32 0.0, %v3321
      %3323 = vmatmul.bf16.gmra.mxu0 %v3211
      %v3324 = vpop.f32.mrf.mxu0
      %v3325 = vadd.f32 0.0, %v3324
      %v3326 = vpop.f32.mrf.mxu0
      %v3327 = vadd.f32 0.0, %v3326
      %3328 = vmatmul.bf16.gmra.mxu0 %v3212
      %v3329 = vpop.f32.mrf.mxu0
      %v3330 = vadd.f32 0.0, %v3329
      %v3331 = vpop.f32.mrf.mxu0
      %v3332 = vadd.f32 0.0, %v3331
      %3333 = vmatmul.bf16.gmra.mxu0 %v3213
      %v3334 = vpop.f32.mrf.mxu0
      %v3335 = vadd.f32 0.0, %v3334
      %v3336 = vpop.f32.mrf.mxu0
      %v3337 = vadd.f32 0.0, %v3336
      %3338 = vmatmul.bf16.gmra.mxu0 %v3214
      %v3339 = vpop.f32.mrf.mxu0
      %v3340 = vadd.f32 0.0, %v3339
      %v3341 = vpop.f32.mrf.mxu0
      %v3342 = vadd.f32 0.0, %v3341
      %3343 = vmatmul.bf16.gmra.mxu0 %v3215
      %v3344 = vpop.f32.mrf.mxu0
      %v3345 = vadd.f32 0.0, %v3344
      %v3346 = vpop.f32.mrf.mxu0
      %v3347 = vadd.f32 0.0, %v3346
      %3348 = vmatmul.bf16.gmra.mxu0 %v3216
      %v3349 = vpop.f32.mrf.mxu0
      %v3350 = vadd.f32 0.0, %v3349
      %v3351 = vpop.f32.mrf.mxu0
      %v3352 = vadd.f32 0.0, %v3351
      %3353 = vmatmul.bf16.gmra.mxu0 %v3217
      %v3354 = vpop.f32.mrf.mxu0
      %v3355 = vadd.f32 0.0, %v3354
      %v3356 = vpop.f32.mrf.mxu0
      %v3357 = vadd.f32 0.0, %v3356
      %3358 = vmatmul.bf16.gmra.mxu0 %v3218
      %v3359 = vpop.f32.mrf.mxu0
      %v3360 = vadd.f32 0.0, %v3359
      %v3361 = vpop.f32.mrf.mxu0
      %v3362 = vadd.f32 0.0, %v3361
      %3363 = vmatmul.bf16.gmra.mxu0 %v3219
      %v3364 = vpop.f32.mrf.mxu0
      %v3365 = vadd.f32 0.0, %v3364
      %v3366 = vpop.f32.mrf.mxu0
      %v3367 = vadd.f32 0.0, %v3366
      %3368 = vmatmul.bf16.gmra.mxu0 %v3220
      %v3369 = vpop.f32.mrf.mxu0
      %v3370 = vadd.f32 0.0, %v3369
      %v3371 = vpop.f32.mrf.mxu0
      %v3372 = vadd.f32 0.0, %v3371
      %3373 = vdwg.mxu0
      %v3374 = vadd.f32 %v2693, %v3295
      %v3375 = vadd.f32 %v2694, %v3297
      %v3376 = vadd.f32 %v2695, %v3300
      %v3377 = vadd.f32 %v2696, %v3302
      %v3378 = vadd.f32 %v2697, %v3305
      %v3379 = vadd.f32 %v2698, %v3307
      %v3380 = vadd.f32 %v2699, %v3310
      %v3381 = vadd.f32 %v2700, %v3312
      %v3382 = vadd.f32 %v2701, %v3315
      %v3383 = vadd.f32 %v2702, %v3317
      %v3384 = vadd.f32 %v2703, %v3320
      %v3385 = vadd.f32 %v2704, %v3322
      %v3386 = vadd.f32 %v2705, %v3325
      %v3387 = vadd.f32 %v2706, %v3327
      %v3388 = vadd.f32 %v2707, %v3330
      %v3389 = vadd.f32 %v2708, %v3332
      %v3390 = vadd.f32 %v2709, %v3335
      %v3391 = vadd.f32 %v2710, %v3337
      %v3392 = vadd.f32 %v2711, %v3340
      %v3393 = vadd.f32 %v2712, %v3342
      %v3394 = vadd.f32 %v2713, %v3345
      %v3395 = vadd.f32 %v2714, %v3347
      %v3396 = vadd.f32 %v2715, %v3350
      %v3397 = vadd.f32 %v2716, %v3352
      %v3398 = vadd.f32 %v2717, %v3355
      %v3399 = vadd.f32 %v2718, %v3357
      %v3400 = vadd.f32 %v2719, %v3360
      %v3401 = vadd.f32 %v2720, %v3362
      %v3402 = vadd.f32 %v2721, %v3365
      %v3403 = vadd.f32 %v2722, %v3367
      %v3404 = vadd.f32 %v2723, %v3370
      %v3405 = vadd.f32 %v2724, %v3372
      %v3406 = vld [vmem:[%s868] sm:$0xe]
      %v3407 = vld [vmem:[%s868 + $0xc] sm:$0xe]
      %v3408 = vld [vmem:[%s868 + $0x18] sm:$0xe]
      %v3409 = vld [vmem:[%s868 + $0x24] sm:$0xe]
      %v3410 = vld [vmem:[%s868 + $0x30] sm:$0xe]
      %v3411 = vld [vmem:[%s868 + $0x3c] sm:$0xe]
      %v3412 = vld [vmem:[%s868 + $0x48] sm:$0xe]
      %v3413 = vld [vmem:[%s868 + $0x54] sm:$0xe]
      %v3414 = vld [vmem:[%s868 + $0x60] sm:$0xe]
      %v3415 = vld [vmem:[%s868 + $0x6c] sm:$0xe]
      %v3416 = vld [vmem:[%s868 + $0x78] sm:$0xe]
      %v3417 = vld [vmem:[%s868 + $0x84] sm:$0xe]
      %v3418 = vld [vmem:[%s868 + $0x90] sm:$0xe]
      %v3419 = vld [vmem:[%s868 + $0x9c] sm:$0xe]
      %v3420 = vld [vmem:[%s868 + $0xa8] sm:$0xe]
      %v3421 = vld [vmem:[%s868 + $0xb4] sm:$0xe]
      %v3470 = vrot.slane %v3406, 5
      %v3471 = vrot.slane %v3470, 4
      %v3472 = vrot.slane %v2726, 5
      %v3473 = vsel %vm2050, %v3471, %v3472
      %v3474 = vrot.slane %v3472, 4
      %v3475 = vrot.slane %v2727, 5
      %v3476 = vsel %vm2050, %v3474, %v3475
      %v3477 = vrot.slane %v3407, 5
      %v3478 = vrot.slane %v3477, 4
      %v3479 = vrot.slane %v2729, 5
      %v3480 = vsel %vm2050, %v3478, %v3479
      %v3481 = vrot.slane %v3479, 4
      %v3482 = vrot.slane %v2730, 5
      %v3483 = vsel %vm2050, %v3481, %v3482
      %v3484 = vrot.slane %v3408, 5
      %v3485 = vrot.slane %v3484, 4
      %v3486 = vrot.slane %v2732, 5
      %v3487 = vsel %vm2050, %v3485, %v3486
      %v3488 = vrot.slane %v3486, 4
      %v3489 = vrot.slane %v2733, 5
      %v3490 = vsel %vm2050, %v3488, %v3489
      %v3491 = vrot.slane %v3409, 5
      %v3492 = vrot.slane %v3491, 4
      %v3493 = vrot.slane %v2735, 5
      %v3494 = vsel %vm2050, %v3492, %v3493
      %v3495 = vrot.slane %v3493, 4
      %v3496 = vrot.slane %v2736, 5
      %v3497 = vsel %vm2050, %v3495, %v3496
      %v3498 = vrot.slane %v3410, 5
      %v3499 = vrot.slane %v3498, 4
      %v3500 = vrot.slane %v2738, 5
      %v3501 = vsel %vm2050, %v3499, %v3500
      %v3502 = vrot.slane %v3500, 4
      %v3503 = vrot.slane %v2739, 5
      %v3504 = vsel %vm2050, %v3502, %v3503
      %v3505 = vrot.slane %v3411, 5
      %v3506 = vrot.slane %v3505, 4
      %v3507 = vrot.slane %v2741, 5
      %v3508 = vsel %vm2050, %v3506, %v3507
      %v3509 = vrot.slane %v3507, 4
      %v3510 = vrot.slane %v2742, 5
      %v3511 = vsel %vm2050, %v3509, %v3510
      %v3512 = vrot.slane %v3412, 5
      %v3513 = vrot.slane %v3512, 4
      %v3514 = vrot.slane %v2744, 5
      %v3515 = vsel %vm2050, %v3513, %v3514
      %v3516 = vrot.slane %v3514, 4
      %v3517 = vrot.slane %v2745, 5
      %v3518 = vsel %vm2050, %v3516, %v3517
      %v3519 = vrot.slane %v3413, 5
      %v3520 = vrot.slane %v3519, 4
      %v3521 = vrot.slane %v2747, 5
      %v3522 = vsel %vm2050, %v3520, %v3521
      %v3523 = vrot.slane %v3521, 4
      %v3524 = vrot.slane %v2748, 5
      %v3525 = vsel %vm2050, %v3523, %v3524
      %v3526 = vrot.slane %v3414, 5
      %v3527 = vrot.slane %v3526, 4
      %v3528 = vrot.slane %v2750, 5
      %v3529 = vsel %vm2050, %v3527, %v3528
      %v3530 = vrot.slane %v3528, 4
      %v3531 = vrot.slane %v2751, 5
      %v3532 = vsel %vm2050, %v3530, %v3531
      %v3533 = vrot.slane %v3415, 5
      %v3534 = vrot.slane %v3533, 4
      %v3535 = vrot.slane %v2753, 5
      %v3536 = vsel %vm2050, %v3534, %v3535
      %v3537 = vrot.slane %v3535, 4
      %v3538 = vrot.slane %v2754, 5
      %v3539 = vsel %vm2050, %v3537, %v3538
      %v3540 = vrot.slane %v3416, 5
      %v3541 = vrot.slane %v3540, 4
      %v3542 = vrot.slane %v2756, 5
      %v3543 = vsel %vm2050, %v3541, %v3542
      %v3544 = vrot.slane %v3542, 4
      %v3545 = vrot.slane %v2757, 5
      %v3546 = vsel %vm2050, %v3544, %v3545
      %v3547 = vrot.slane %v3417, 5
      %v3548 = vrot.slane %v3547, 4
      %v3549 = vrot.slane %v2759, 5
      %v3550 = vsel %vm2050, %v3548, %v3549
      %v3551 = vrot.slane %v3549, 4
      %v3552 = vrot.slane %v2760, 5
      %v3553 = vsel %vm2050, %v3551, %v3552
      %v3554 = vrot.slane %v3418, 5
      %v3555 = vrot.slane %v3554, 4
      %v3556 = vrot.slane %v2762, 5
      %v3557 = vsel %vm2050, %v3555, %v3556
      %v3558 = vrot.slane %v3556, 4
      %v3559 = vrot.slane %v2763, 5
      %v3560 = vsel %vm2050, %v3558, %v3559
      %v3561 = vrot.slane %v3419, 5
      %v3562 = vrot.slane %v3561, 4
      %v3563 = vrot.slane %v2765, 5
      %v3564 = vsel %vm2050, %v3562, %v3563
      %v3565 = vrot.slane %v3563, 4
      %v3566 = vrot.slane %v2766, 5
      %v3567 = vsel %vm2050, %v3565, %v3566
      %v3568 = vrot.slane %v3420, 5
      %v3569 = vrot.slane %v3568, 4
      %v3570 = vrot.slane %v2768, 5
      %v3571 = vsel %vm2050, %v3569, %v3570
      %v3572 = vrot.slane %v3570, 4
      %v3573 = vrot.slane %v2769, 5
      %v3574 = vsel %vm2050, %v3572, %v3573
      %v3575 = vrot.slane %v3421, 5
      %v3576 = vrot.slane %v3575, 4
      %v3577 = vrot.slane %v2771, 5
      %v3578 = vsel %vm2050, %v3576, %v3577
      %v3579 = vrot.slane %v3577, 4
      %v3580 = vrot.slane %v2772, 5
      %v3581 = vsel %vm2050, %v3579, %v3580
      %v3582 = vld [vmem:[%s3 + $0x140] sm:$0xf]
      %v3583 = vld [vmem:[%s3 + $0x144] sm:$0xf]
      %v3584 = vld [vmem:[%s3 + $0x148] sm:$0xf]
      %v3585 = vld [vmem:[%s3 + $0x14c] sm:$0xf]
      %v3586 = vld [vmem:[%s3 + $0x150] sm:$0xf]
      %v3587 = vld [vmem:[%s3 + $0x154] sm:$0xf]
      %v3588 = vld [vmem:[%s3 + $0x158] sm:$0xf]
      %v3589 = vld [vmem:[%s3 + $0x15c] sm:$0xf]
      %v3590 = vld [vmem:[%s3 + $0x160] sm:$0xf]
      %v3591 = vld [vmem:[%s3 + $0x164] sm:$0xf]
      %v3592 = vld [vmem:[%s3 + $0x168] sm:$0xf]
      %v3593 = vld [vmem:[%s3 + $0x16c] sm:$0xf]
      %v3594 = vld [vmem:[%s3 + $0x170] sm:$0xf]
      %v3595 = vld [vmem:[%s3 + $0x174] sm:$0xf]
      %v3596 = vld [vmem:[%s3 + $0x178] sm:$0xf]
      %v3597 = vld [vmem:[%s3 + $0x17c] sm:$0xf]
      %v3598 = vunpack.c.l.b16 %v3473
      %v3599 = vunpack.c.l.b16 %v3476
      %v3600 = vunpack.c.l.b16 %v3480
      %v3601 = vunpack.c.l.b16 %v3483
      %v3602 = vunpack.c.l.b16 %v3487
      %v3603 = vunpack.c.l.b16 %v3490
      %v3604 = vunpack.c.l.b16 %v3494
      %v3605 = vunpack.c.l.b16 %v3497
      %v3606 = vunpack.c.l.b16 %v3501
      %v3607 = vunpack.c.l.b16 %v3504
      %v3608 = vunpack.c.l.b16 %v3508
      %v3609 = vunpack.c.l.b16 %v3511
      %v3610 = vunpack.c.l.b16 %v3515
      %v3611 = vunpack.c.l.b16 %v3518
      %v3612 = vunpack.c.l.b16 %v3522
      %v3613 = vunpack.c.l.b16 %v3525
      %v3614 = vunpack.c.l.b16 %v3529
      %v3615 = vunpack.c.l.b16 %v3532
      %v3616 = vunpack.c.l.b16 %v3536
      %v3617 = vunpack.c.l.b16 %v3539
      %v3618 = vunpack.c.l.b16 %v3543
      %v3619 = vunpack.c.l.b16 %v3546
      %v3620 = vunpack.c.l.b16 %v3550
      %v3621 = vunpack.c.l.b16 %v3553
      %v3622 = vunpack.c.l.b16 %v3557
      %v3623 = vunpack.c.l.b16 %v3560
      %v3624 = vunpack.c.l.b16 %v3564
      %v3625 = vunpack.c.l.b16 %v3567
      %v3626 = vunpack.c.l.b16 %v3571
      %v3627 = vunpack.c.l.b16 %v3574
      %v3628 = vunpack.c.l.b16 %v3578
      %v3629 = vunpack.c.l.b16 %v3581
      %v3630 = vpack.c.b16 %v3599, %v3598
      %v3631 = vpack.c.b16 %v3601, %v3600
      %v3632 = vpack.c.b16 %v3603, %v3602
      %v3633 = vpack.c.b16 %v3605, %v3604
      %v3634 = vpack.c.b16 %v3607, %v3606
      %v3635 = vpack.c.b16 %v3609, %v3608
      %v3636 = vpack.c.b16 %v3611, %v3610
      %v3637 = vpack.c.b16 %v3613, %v3612
      %v3638 = vpack.c.b16 %v3615, %v3614
      %v3639 = vpack.c.b16 %v3617, %v3616
      %v3640 = vpack.c.b16 %v3619, %v3618
      %v3641 = vpack.c.b16 %v3621, %v3620
      %v3642 = vpack.c.b16 %v3623, %v3622
      %v3643 = vpack.c.b16 %v3625, %v3624
      %v3644 = vpack.c.b16 %v3627, %v3626
      %v3645 = vpack.c.b16 %v3629, %v3628
      %v3678 = vunpack.c.l.b16 %v3582
      %v3679 = vunpack.c.l.b16 %v3583
      %v3680 = vunpack.c.l.b16 %v3584
      %v3681 = vunpack.c.l.b16 %v3585
      %v3682 = vunpack.c.l.b16 %v3586
      %v3683 = vunpack.c.l.b16 %v3587
      %v3684 = vunpack.c.l.b16 %v3588
      %v3685 = vunpack.c.l.b16 %v3589
      %v3686 = vunpack.c.l.b16 %v3590
      %v3687 = vunpack.c.l.b16 %v3591
      %v3688 = vunpack.c.l.b16 %v3592
      %v3689 = vunpack.c.l.b16 %v3593
      %v3690 = vunpack.c.l.b16 %v3594
      %v3691 = vunpack.c.l.b16 %v3595
      %v3692 = vunpack.c.l.b16 %v3596
      %v3693 = vunpack.c.l.b16 %v3597
      %v3694 = vpack.c.b16 %v3679, %v3678
      %v3695 = vpack.c.b16 %v3681, %v3680
      %v3696 = vpack.c.b16 %v3683, %v3682
      %v3697 = vpack.c.b16 %v3685, %v3684
      %v3698 = vpack.c.b16 %v3687, %v3686
      %v3699 = vpack.c.b16 %v3689, %v3688
      %v3700 = vpack.c.b16 %v3691, %v3690
      %v3701 = vpack.c.b16 %v3693, %v3692
      %3710 = vmatpush.bf16.msra.mxu0 %v3701
      %3711 = vmatpush.bf16.msra.mxu0 %v3700
      %3712 = vmatpush.bf16.msra.mxu0 %v3699
      %3713 = vmatpush.bf16.msra.mxu0 %v3698
      %3714 = vmatpush.bf16.msra.mxu0 %v3697
      %3715 = vmatpush.bf16.msra.mxu0 %v3696
      %3716 = vmatpush.bf16.msra.mxu0 %v3695
      %3717 = vmatpush.bf16.msra.mxu0 %v3694
      %3718 = vmatmul.bf16.gmra.mxu0 %v3630
      %v3719 = vpop.f32.mrf.mxu0
      %v3720 = vadd.f32 0.0, %v3719
      %v3721 = vpop.f32.mrf.mxu0
      %v3722 = vadd.f32 0.0, %v3721
      %3723 = vmatmul.bf16.gmra.mxu0 %v3631
      %v3724 = vpop.f32.mrf.mxu0
      %v3725 = vadd.f32 0.0, %v3724
      %v3726 = vpop.f32.mrf.mxu0
      %v3727 = vadd.f32 0.0, %v3726
      %3728 = vmatmul.bf16.gmra.mxu0 %v3632
      %v3729 = vpop.f32.mrf.mxu0
      %v3730 = vadd.f32 0.0, %v3729
      %v3731 = vpop.f32.mrf.mxu0
      %v3732 = vadd.f32 0.0, %v3731
      %3733 = vmatmul.bf16.gmra.mxu0 %v3633
      %v3734 = vpop.f32.mrf.mxu0
      %v3735 = vadd.f32 0.0, %v3734
      %v3736 = vpop.f32.mrf.mxu0
      %v3737 = vadd.f32 0.0, %v3736
      %3738 = vmatmul.bf16.gmra.mxu0 %v3634
      %v3739 = vpop.f32.mrf.mxu0
      %v3740 = vadd.f32 0.0, %v3739
      %v3741 = vpop.f32.mrf.mxu0
      %v3742 = vadd.f32 0.0, %v3741
      %3743 = vmatmul.bf16.gmra.mxu0 %v3635
      %v3744 = vpop.f32.mrf.mxu0
      %v3745 = vadd.f32 0.0, %v3744
      %v3746 = vpop.f32.mrf.mxu0
      %v3747 = vadd.f32 0.0, %v3746
      %3748 = vmatmul.bf16.gmra.mxu0 %v3636
      %v3749 = vpop.f32.mrf.mxu0
      %v3750 = vadd.f32 0.0, %v3749
      %v3751 = vpop.f32.mrf.mxu0
      %v3752 = vadd.f32 0.0, %v3751
      %3753 = vmatmul.bf16.gmra.mxu0 %v3637
      %v3754 = vpop.f32.mrf.mxu0
      %v3755 = vadd.f32 0.0, %v3754
      %v3756 = vpop.f32.mrf.mxu0
      %v3757 = vadd.f32 0.0, %v3756
      %3758 = vmatmul.bf16.gmra.mxu0 %v3638
      %v3759 = vpop.f32.mrf.mxu0
      %v3760 = vadd.f32 0.0, %v3759
      %v3761 = vpop.f32.mrf.mxu0
      %v3762 = vadd.f32 0.0, %v3761
      %3763 = vmatmul.bf16.gmra.mxu0 %v3639
      %v3764 = vpop.f32.mrf.mxu0
      %v3765 = vadd.f32 0.0, %v3764
      %v3766 = vpop.f32.mrf.mxu0
      %v3767 = vadd.f32 0.0, %v3766
      %3768 = vmatmul.bf16.gmra.mxu0 %v3640
      %v3769 = vpop.f32.mrf.mxu0
      %v3770 = vadd.f32 0.0, %v3769
      %v3771 = vpop.f32.mrf.mxu0
      %v3772 = vadd.f32 0.0, %v3771
      %3773 = vmatmul.bf16.gmra.mxu0 %v3641
      %v3774 = vpop.f32.mrf.mxu0
      %v3775 = vadd.f32 0.0, %v3774
      %v3776 = vpop.f32.mrf.mxu0
      %v3777 = vadd.f32 0.0, %v3776
      %3778 = vmatmul.bf16.gmra.mxu0 %v3642
      %v3779 = vpop.f32.mrf.mxu0
      %v3780 = vadd.f32 0.0, %v3779
      %v3781 = vpop.f32.mrf.mxu0
      %v3782 = vadd.f32 0.0, %v3781
      %3783 = vmatmul.bf16.gmra.mxu0 %v3643
      %v3784 = vpop.f32.mrf.mxu0
      %v3785 = vadd.f32 0.0, %v3784
      %v3786 = vpop.f32.mrf.mxu0
      %v3787 = vadd.f32 0.0, %v3786
      %3788 = vmatmul.bf16.gmra.mxu0 %v3644
      %v3789 = vpop.f32.mrf.mxu0
      %v3790 = vadd.f32 0.0, %v3789
      %v3791 = vpop.f32.mrf.mxu0
      %v3792 = vadd.f32 0.0, %v3791
      %3793 = vmatmul.bf16.gmra.mxu0 %v3645
      %v3794 = vpop.f32.mrf.mxu0
      %v3795 = vadd.f32 0.0, %v3794
      %v3796 = vpop.f32.mrf.mxu0
      %v3797 = vadd.f32 0.0, %v3796
      %3798 = vdwg.mxu0
      %v3799 = vadd.f32 %v3374, %v3720
      %v3800 = vadd.f32 %v3375, %v3722
      %v3801 = vadd.f32 %v3376, %v3725
      %v3802 = vadd.f32 %v3377, %v3727
      %v3803 = vadd.f32 %v3378, %v3730
      %v3804 = vadd.f32 %v3379, %v3732
      %v3805 = vadd.f32 %v3380, %v3735
      %v3806 = vadd.f32 %v3381, %v3737
      %v3807 = vadd.f32 %v3382, %v3740
      %v3808 = vadd.f32 %v3383, %v3742
      %v3809 = vadd.f32 %v3384, %v3745
      %v3810 = vadd.f32 %v3385, %v3747
      %v3811 = vadd.f32 %v3386, %v3750
      %v3812 = vadd.f32 %v3387, %v3752
      %v3813 = vadd.f32 %v3388, %v3755
      %v3814 = vadd.f32 %v3389, %v3757
      %v3815 = vadd.f32 %v3390, %v3760
      %v3816 = vadd.f32 %v3391, %v3762
      %v3817 = vadd.f32 %v3392, %v3765
      %v3818 = vadd.f32 %v3393, %v3767
      %v3819 = vadd.f32 %v3394, %v3770
      %v3820 = vadd.f32 %v3395, %v3772
      %v3821 = vadd.f32 %v3396, %v3775
      %v3822 = vadd.f32 %v3397, %v3777
      %v3823 = vadd.f32 %v3398, %v3780
      %v3824 = vadd.f32 %v3399, %v3782
      %v3825 = vadd.f32 %v3400, %v3785
      %v3826 = vadd.f32 %v3401, %v3787
      %v3827 = vadd.f32 %v3402, %v3790
      %v3828 = vadd.f32 %v3403, %v3792
      %v3829 = vadd.f32 %v3404, %v3795
      %v3830 = vadd.f32 %v3405, %v3797
      %s3831 = scalar_lea.vmem [#allocation2], 24
      %v3832 = vld [vmem:[%s3831] sm:$0xf]
      %v3833 = vld [vmem:[%s3831 + $0x4] sm:$0xf]
      %v3834 = vld [vmem:[%s3831 + $0xc] sm:$0xf]
      %v3835 = vld [vmem:[%s3831 + $0x10] sm:$0xf]
      %v3836 = vld [vmem:[%s3831 + $0x18] sm:$0xf]
      %v3837 = vld [vmem:[%s3831 + $0x1c] sm:$0xf]
      %v3838 = vld [vmem:[%s3831 + $0x24] sm:$0xf]
      %v3839 = vld [vmem:[%s3831 + $0x28] sm:$0xf]
      %v3840 = vld [vmem:[%s3831 + $0x30] sm:$0xf]
      %v3841 = vld [vmem:[%s3831 + $0x34] sm:$0xf]
      %v3842 = vld [vmem:[%s3831 + $0x3c] sm:$0xf]
      %v3843 = vld [vmem:[%s3831 + $0x40] sm:$0xf]
      %v3844 = vld [vmem:[%s3831 + $0x48] sm:$0xf]
      %v3845 = vld [vmem:[%s3831 + $0x4c] sm:$0xf]
      %v3846 = vld [vmem:[%s3831 + $0x54] sm:$0xf]
      %v3847 = vld [vmem:[%s3831 + $0x58] sm:$0xf]
      %v3848 = vld [vmem:[%s3831 + $0x60] sm:$0xf]
      %v3849 = vld [vmem:[%s3831 + $0x64] sm:$0xf]
      %v3850 = vld [vmem:[%s3831 + $0x6c] sm:$0xf]
      %v3851 = vld [vmem:[%s3831 + $0x70] sm:$0xf]
      %v3852 = vld [vmem:[%s3831 + $0x78] sm:$0xf]
      %v3853 = vld [vmem:[%s3831 + $0x7c] sm:$0xf]
      %v3854 = vld [vmem:[%s3831 + $0x84] sm:$0xf]
      %v3855 = vld [vmem:[%s3831 + $0x88] sm:$0xf]
      %v3856 = vld [vmem:[%s3831 + $0x90] sm:$0xf]
      %v3857 = vld [vmem:[%s3831 + $0x94] sm:$0xf]
      %v3858 = vld [vmem:[%s3831 + $0x9c] sm:$0xf]
      %v3859 = vld [vmem:[%s3831 + $0xa0] sm:$0xf]
      %v3860 = vld [vmem:[%s3831 + $0xa8] sm:$0xf]
      %v3861 = vld [vmem:[%s3831 + $0xac] sm:$0xf]
      %v3862 = vld [vmem:[%s3831 + $0xb4] sm:$0xf]
      %v3863 = vld [vmem:[%s3831 + $0xb8] sm:$0xf]
      %v3864 = vld [vmem:[%s3 + $0x180] sm:$0xf]
      %v3865 = vld [vmem:[%s3 + $0x184] sm:$0xf]
      %v3866 = vld [vmem:[%s3 + $0x188] sm:$0xf]
      %v3867 = vld [vmem:[%s3 + $0x18c] sm:$0xf]
      %v3868 = vld [vmem:[%s3 + $0x190] sm:$0xf]
      %v3869 = vld [vmem:[%s3 + $0x194] sm:$0xf]
      %v3870 = vld [vmem:[%s3 + $0x198] sm:$0xf]
      %v3871 = vld [vmem:[%s3 + $0x19c] sm:$0xf]
      %v3872 = vld [vmem:[%s3 + $0x1a0] sm:$0xf]
      %v3873 = vld [vmem:[%s3 + $0x1a4] sm:$0xf]
      %v3874 = vld [vmem:[%s3 + $0x1a8] sm:$0xf]
      %v3875 = vld [vmem:[%s3 + $0x1ac] sm:$0xf]
      %v3876 = vld [vmem:[%s3 + $0x1b0] sm:$0xf]
      %v3877 = vld [vmem:[%s3 + $0x1b4] sm:$0xf]
      %v3878 = vld [vmem:[%s3 + $0x1b8] sm:$0xf]
      %v3879 = vld [vmem:[%s3 + $0x1bc] sm:$0xf]
      %v3912 = vunpack.c.l.b16 %v3832
      %v3913 = vunpack.c.l.b16 %v3833
      %v3914 = vunpack.c.l.b16 %v3834
      %v3915 = vunpack.c.l.b16 %v3835
      %v3916 = vunpack.c.l.b16 %v3836
      %v3917 = vunpack.c.l.b16 %v3837
      %v3918 = vunpack.c.l.b16 %v3838
      %v3919 = vunpack.c.l.b16 %v3839
      %v3920 = vunpack.c.l.b16 %v3840
      %v3921 = vunpack.c.l.b16 %v3841
      %v3922 = vunpack.c.l.b16 %v3842
      %v3923 = vunpack.c.l.b16 %v3843
      %v3924 = vunpack.c.l.b16 %v3844
      %v3925 = vunpack.c.l.b16 %v3845
      %v3926 = vunpack.c.l.b16 %v3846
      %v3927 = vunpack.c.l.b16 %v3847
      %v3928 = vunpack.c.l.b16 %v3848
      %v3929 = vunpack.c.l.b16 %v3849
      %v3930 = vunpack.c.l.b16 %v3850
      %v3931 = vunpack.c.l.b16 %v3851
      %v3932 = vunpack.c.l.b16 %v3852
      %v3933 = vunpack.c.l.b16 %v3853
      %v3934 = vunpack.c.l.b16 %v3854
      %v3935 = vunpack.c.l.b16 %v3855
      %v3936 = vunpack.c.l.b16 %v3856
      %v3937 = vunpack.c.l.b16 %v3857
      %v3938 = vunpack.c.l.b16 %v3858
      %v3939 = vunpack.c.l.b16 %v3859
      %v3940 = vunpack.c.l.b16 %v3860
      %v3941 = vunpack.c.l.b16 %v3861
      %v3942 = vunpack.c.l.b16 %v3862
      %v3943 = vunpack.c.l.b16 %v3863
      %v3944 = vpack.c.b16 %v3913, %v3912
      %v3945 = vpack.c.b16 %v3915, %v3914
      %v3946 = vpack.c.b16 %v3917, %v3916
      %v3947 = vpack.c.b16 %v3919, %v3918
      %v3948 = vpack.c.b16 %v3921, %v3920
      %v3949 = vpack.c.b16 %v3923, %v3922
      %v3950 = vpack.c.b16 %v3925, %v3924
      %v3951 = vpack.c.b16 %v3927, %v3926
      %v3952 = vpack.c.b16 %v3929, %v3928
      %v3953 = vpack.c.b16 %v3931, %v3930
      %v3954 = vpack.c.b16 %v3933, %v3932
      %v3955 = vpack.c.b16 %v3935, %v3934
      %v3956 = vpack.c.b16 %v3937, %v3936
      %v3957 = vpack.c.b16 %v3939, %v3938
      %v3958 = vpack.c.b16 %v3941, %v3940
      %v3959 = vpack.c.b16 %v3943, %v3942
      %v3992 = vunpack.c.l.b16 %v3864
      %v3993 = vunpack.c.l.b16 %v3865
      %v3994 = vunpack.c.l.b16 %v3866
      %v3995 = vunpack.c.l.b16 %v3867
      %v3996 = vunpack.c.l.b16 %v3868
      %v3997 = vunpack.c.l.b16 %v3869
      %v3998 = vunpack.c.l.b16 %v3870
      %v3999 = vunpack.c.l.b16 %v3871
      %v4000 = vunpack.c.l.b16 %v3872
      %v4001 = vunpack.c.l.b16 %v3873
      %v4002 = vunpack.c.l.b16 %v3874
      %v4003 = vunpack.c.l.b16 %v3875
      %v4004 = vunpack.c.l.b16 %v3876
      %v4005 = vunpack.c.l.b16 %v3877
      %v4006 = vunpack.c.l.b16 %v3878
      %v4007 = vunpack.c.l.b16 %v3879
      %v4008 = vpack.c.b16 %v3993, %v3992
      %v4009 = vpack.c.b16 %v3995, %v3994
      %v4010 = vpack.c.b16 %v3997, %v3996
      %v4011 = vpack.c.b16 %v3999, %v3998
      %v4012 = vpack.c.b16 %v4001, %v4000
      %v4013 = vpack.c.b16 %v4003, %v4002
      %v4014 = vpack.c.b16 %v4005, %v4004
      %v4015 = vpack.c.b16 %v4007, %v4006
      %4024 = vmatpush.bf16.msra.mxu0 %v4015
      %4025 = vmatpush.bf16.msra.mxu0 %v4014
      %4026 = vmatpush.bf16.msra.mxu0 %v4013
      %4027 = vmatpush.bf16.msra.mxu0 %v4012
      %4028 = vmatpush.bf16.msra.mxu0 %v4011
      %4029 = vmatpush.bf16.msra.mxu0 %v4010
      %4030 = vmatpush.bf16.msra.mxu0 %v4009
      %4031 = vmatpush.bf16.msra.mxu0 %v4008
      %4032 = vmatmul.bf16.gmra.mxu0 %v3944
      %v4033 = vpop.f32.mrf.mxu0
      %v4034 = vadd.f32 0.0, %v4033
      %v4035 = vpop.f32.mrf.mxu0
      %v4036 = vadd.f32 0.0, %v4035
      %4037 = vmatmul.bf16.gmra.mxu0 %v3945
      %v4038 = vpop.f32.mrf.mxu0
      %v4039 = vadd.f32 0.0, %v4038
      %v4040 = vpop.f32.mrf.mxu0
      %v4041 = vadd.f32 0.0, %v4040
      %4042 = vmatmul.bf16.gmra.mxu0 %v3946
      %v4043 = vpop.f32.mrf.mxu0
      %v4044 = vadd.f32 0.0, %v4043
      %v4045 = vpop.f32.mrf.mxu0
      %v4046 = vadd.f32 0.0, %v4045
      %4047 = vmatmul.bf16.gmra.mxu0 %v3947
      %v4048 = vpop.f32.mrf.mxu0
      %v4049 = vadd.f32 0.0, %v4048
      %v4050 = vpop.f32.mrf.mxu0
      %v4051 = vadd.f32 0.0, %v4050
      %4052 = vmatmul.bf16.gmra.mxu0 %v3948
      %v4053 = vpop.f32.mrf.mxu0
      %v4054 = vadd.f32 0.0, %v4053
      %v4055 = vpop.f32.mrf.mxu0
      %v4056 = vadd.f32 0.0, %v4055
      %4057 = vmatmul.bf16.gmra.mxu0 %v3949
      %v4058 = vpop.f32.mrf.mxu0
      %v4059 = vadd.f32 0.0, %v4058
      %v4060 = vpop.f32.mrf.mxu0
      %v4061 = vadd.f32 0.0, %v4060
      %4062 = vmatmul.bf16.gmra.mxu0 %v3950
      %v4063 = vpop.f32.mrf.mxu0
      %v4064 = vadd.f32 0.0, %v4063
      %v4065 = vpop.f32.mrf.mxu0
      %v4066 = vadd.f32 0.0, %v4065
      %4067 = vmatmul.bf16.gmra.mxu0 %v3951
      %v4068 = vpop.f32.mrf.mxu0
      %v4069 = vadd.f32 0.0, %v4068
      %v4070 = vpop.f32.mrf.mxu0
      %v4071 = vadd.f32 0.0, %v4070
      %4072 = vmatmul.bf16.gmra.mxu0 %v3952
      %v4073 = vpop.f32.mrf.mxu0
      %v4074 = vadd.f32 0.0, %v4073
      %v4075 = vpop.f32.mrf.mxu0
      %v4076 = vadd.f32 0.0, %v4075
      %4077 = vmatmul.bf16.gmra.mxu0 %v3953
      %v4078 = vpop.f32.mrf.mxu0
      %v4079 = vadd.f32 0.0, %v4078
      %v4080 = vpop.f32.mrf.mxu0
      %v4081 = vadd.f32 0.0, %v4080
      %4082 = vmatmul.bf16.gmra.mxu0 %v3954
      %v4083 = vpop.f32.mrf.mxu0
      %v4084 = vadd.f32 0.0, %v4083
      %v4085 = vpop.f32.mrf.mxu0
      %v4086 = vadd.f32 0.0, %v4085
      %4087 = vmatmul.bf16.gmra.mxu0 %v3955
      %v4088 = vpop.f32.mrf.mxu0
      %v4089 = vadd.f32 0.0, %v4088
      %v4090 = vpop.f32.mrf.mxu0
      %v4091 = vadd.f32 0.0, %v4090
      %4092 = vmatmul.bf16.gmra.mxu0 %v3956
      %v4093 = vpop.f32.mrf.mxu0
      %v4094 = vadd.f32 0.0, %v4093
      %v4095 = vpop.f32.mrf.mxu0
      %v4096 = vadd.f32 0.0, %v4095
      %4097 = vmatmul.bf16.gmra.mxu0 %v3957
      %v4098 = vpop.f32.mrf.mxu0
      %v4099 = vadd.f32 0.0, %v4098
      %v4100 = vpop.f32.mrf.mxu0
      %v4101 = vadd.f32 0.0, %v4100
      %4102 = vmatmul.bf16.gmra.mxu0 %v3958
      %v4103 = vpop.f32.mrf.mxu0
      %v4104 = vadd.f32 0.0, %v4103
      %v4105 = vpop.f32.mrf.mxu0
      %v4106 = vadd.f32 0.0, %v4105
      %4107 = vmatmul.bf16.gmra.mxu0 %v3959
      %v4108 = vpop.f32.mrf.mxu0
      %v4109 = vadd.f32 0.0, %v4108
      %v4110 = vpop.f32.mrf.mxu0
      %v4111 = vadd.f32 0.0, %v4110
      %4112 = vdwg.mxu0
      %v4113 = vadd.f32 %v3799, %v4034
      %v4114 = vadd.f32 %v3800, %v4036
      %v4115 = vadd.f32 %v3801, %v4039
      %v4116 = vadd.f32 %v3802, %v4041
      %v4117 = vadd.f32 %v3803, %v4044
      %v4118 = vadd.f32 %v3804, %v4046
      %v4119 = vadd.f32 %v3805, %v4049
      %v4120 = vadd.f32 %v3806, %v4051
      %v4121 = vadd.f32 %v3807, %v4054
      %v4122 = vadd.f32 %v3808, %v4056
      %v4123 = vadd.f32 %v3809, %v4059
      %v4124 = vadd.f32 %v3810, %v4061
      %v4125 = vadd.f32 %v3811, %v4064
      %v4126 = vadd.f32 %v3812, %v4066
      %v4127 = vadd.f32 %v3813, %v4069
      %v4128 = vadd.f32 %v3814, %v4071
      %v4129 = vadd.f32 %v3815, %v4074
      %v4130 = vadd.f32 %v3816, %v4076
      %v4131 = vadd.f32 %v3817, %v4079
      %v4132 = vadd.f32 %v3818, %v4081
      %v4133 = vadd.f32 %v3819, %v4084
      %v4134 = vadd.f32 %v3820, %v4086
      %v4135 = vadd.f32 %v3821, %v4089
      %v4136 = vadd.f32 %v3822, %v4091
      %v4137 = vadd.f32 %v3823, %v4094
      %v4138 = vadd.f32 %v3824, %v4096
      %v4139 = vadd.f32 %v3825, %v4099
      %v4140 = vadd.f32 %v3826, %v4101
      %v4141 = vadd.f32 %v3827, %v4104
      %v4142 = vadd.f32 %v3828, %v4106
      %v4143 = vadd.f32 %v3829, %v4109
      %v4144 = vadd.f32 %v3830, %v4111
      %v4145 = vld [vmem:[%s3831] sm:$0xf]
      %v4146 = vld [vmem:[%s3831 + $0x4] sm:$0xf]
      %v4147 = vld [vmem:[%s3831 + $0x8] sm:$0x1]
      %v4148 = vld [vmem:[%s3831 + $0xc] sm:$0xf]
      %v4149 = vld [vmem:[%s3831 + $0x10] sm:$0xf]
      %v4150 = vld [vmem:[%s3831 + $0x14] sm:$0x1]
      %v4151 = vld [vmem:[%s3831 + $0x18] sm:$0xf]
      %v4152 = vld [vmem:[%s3831 + $0x1c] sm:$0xf]
      %v4153 = vld [vmem:[%s3831 + $0x20] sm:$0x1]
      %v4154 = vld [vmem:[%s3831 + $0x24] sm:$0xf]
      %v4155 = vld [vmem:[%s3831 + $0x28] sm:$0xf]
      %v4156 = vld [vmem:[%s3831 + $0x2c] sm:$0x1]
      %v4157 = vld [vmem:[%s3831 + $0x30] sm:$0xf]
      %v4158 = vld [vmem:[%s3831 + $0x34] sm:$0xf]
      %v4159 = vld [vmem:[%s3831 + $0x38] sm:$0x1]
      %v4160 = vld [vmem:[%s3831 + $0x3c] sm:$0xf]
      %v4161 = vld [vmem:[%s3831 + $0x40] sm:$0xf]
      %v4162 = vld [vmem:[%s3831 + $0x44] sm:$0x1]
      %v4163 = vld [vmem:[%s3831 + $0x48] sm:$0xf]
      %v4164 = vld [vmem:[%s3831 + $0x4c] sm:$0xf]
      %v4165 = vld [vmem:[%s3831 + $0x50] sm:$0x1]
      %v4166 = vld [vmem:[%s3831 + $0x54] sm:$0xf]
      %v4167 = vld [vmem:[%s3831 + $0x58] sm:$0xf]
      %v4168 = vld [vmem:[%s3831 + $0x5c] sm:$0x1]
      %v4169 = vld [vmem:[%s3831 + $0x60] sm:$0xf]
      %v4170 = vld [vmem:[%s3831 + $0x64] sm:$0xf]
      %v4171 = vld [vmem:[%s3831 + $0x68] sm:$0x1]
      %v4172 = vld [vmem:[%s3831 + $0x6c] sm:$0xf]
      %v4173 = vld [vmem:[%s3831 + $0x70] sm:$0xf]
      %v4174 = vld [vmem:[%s3831 + $0x74] sm:$0x1]
      %v4175 = vld [vmem:[%s3831 + $0x78] sm:$0xf]
      %v4176 = vld [vmem:[%s3831 + $0x7c] sm:$0xf]
      %v4177 = vld [vmem:[%s3831 + $0x80] sm:$0x1]
      %v4178 = vld [vmem:[%s3831 + $0x84] sm:$0xf]
      %v4179 = vld [vmem:[%s3831 + $0x88] sm:$0xf]
      %v4180 = vld [vmem:[%s3831 + $0x8c] sm:$0x1]
      %v4181 = vld [vmem:[%s3831 + $0x90] sm:$0xf]
      %v4182 = vld [vmem:[%s3831 + $0x94] sm:$0xf]
      %v4183 = vld [vmem:[%s3831 + $0x98] sm:$0x1]
      %v4184 = vld [vmem:[%s3831 + $0x9c] sm:$0xf]
      %v4185 = vld [vmem:[%s3831 + $0xa0] sm:$0xf]
      %v4186 = vld [vmem:[%s3831 + $0xa4] sm:$0x1]
      %v4187 = vld [vmem:[%s3831 + $0xa8] sm:$0xf]
      %v4188 = vld [vmem:[%s3831 + $0xac] sm:$0xf]
      %v4189 = vld [vmem:[%s3831 + $0xb0] sm:$0x1]
      %v4190 = vld [vmem:[%s3831 + $0xb4] sm:$0xf]
      %v4191 = vld [vmem:[%s3831 + $0xb8] sm:$0xf]
      %v4192 = vld [vmem:[%s3831 + $0xbc] sm:$0x1]
      %v4194 = vshrl.u32 %v4145, 16
      %v4196 = vrot.slane %v4194, 4
      %v4197 = vshll.u32 %v4145, 16
      %v4199 = vrot.slane %v4197, 5
      %v4200 = vor.u32 %v4196, %v4199
      %v4201 = vrot.slane %v4200, 4
      %v4203 = vshll.u32 %v4146, 16
      %v4205 = vrot.slane %v4203, 5
      %v4206 = vsel %vm1350, %v4201, %v4205
      %v4207 = vshrl.u32 %v4146, 16
      %v4209 = vrot.slane %v4207, 4
      %v4210 = vor.u32 %v4209, %v4205
      %v4211 = vrot.slane %v4210, 4
      %v4213 = vshll.u32 %v4147, 16
      %v4215 = vrot.slane %v4213, 5
      %v4216 = vsel %vm1350, %v4211, %v4215
      %v4218 = vshrl.u32 %v4148, 16
      %v4220 = vrot.slane %v4218, 4
      %v4221 = vshll.u32 %v4148, 16
      %v4223 = vrot.slane %v4221, 5
      %v4224 = vor.u32 %v4220, %v4223
      %v4225 = vrot.slane %v4224, 4
      %v4227 = vshll.u32 %v4149, 16
      %v4229 = vrot.slane %v4227, 5
      %v4230 = vsel %vm1350, %v4225, %v4229
      %v4231 = vshrl.u32 %v4149, 16
      %v4233 = vrot.slane %v4231, 4
      %v4234 = vor.u32 %v4233, %v4229
      %v4235 = vrot.slane %v4234, 4
      %v4237 = vshll.u32 %v4150, 16
      %v4239 = vrot.slane %v4237, 5
      %v4240 = vsel %vm1350, %v4235, %v4239
      %v4242 = vshrl.u32 %v4151, 16
      %v4244 = vrot.slane %v4242, 4
      %v4245 = vshll.u32 %v4151, 16
      %v4247 = vrot.slane %v4245, 5
      %v4248 = vor.u32 %v4244, %v4247
      %v4249 = vrot.slane %v4248, 4
      %v4251 = vshll.u32 %v4152, 16
      %v4253 = vrot.slane %v4251, 5
      %v4254 = vsel %vm1350, %v4249, %v4253
      %v4255 = vshrl.u32 %v4152, 16
      %v4257 = vrot.slane %v4255, 4
      %v4258 = vor.u32 %v4257, %v4253
      %v4259 = vrot.slane %v4258, 4
      %v4261 = vshll.u32 %v4153, 16
      %v4263 = vrot.slane %v4261, 5
      %v4264 = vsel %vm1350, %v4259, %v4263
      %v4266 = vshrl.u32 %v4154, 16
      %v4268 = vrot.slane %v4266, 4
      %v4269 = vshll.u32 %v4154, 16
      %v4271 = vrot.slane %v4269, 5
      %v4272 = vor.u32 %v4268, %v4271
      %v4273 = vrot.slane %v4272, 4
      %v4275 = vshll.u32 %v4155, 16
      %v4277 = vrot.slane %v4275, 5
      %v4278 = vsel %vm1350, %v4273, %v4277
      %v4279 = vshrl.u32 %v4155, 16
      %v4281 = vrot.slane %v4279, 4
      %v4282 = vor.u32 %v4281, %v4277
      %v4283 = vrot.slane %v4282, 4
      %v4285 = vshll.u32 %v4156, 16
      %v4287 = vrot.slane %v4285, 5
      %v4288 = vsel %vm1350, %v4283, %v4287
      %v4290 = vshrl.u32 %v4157, 16
      %v4292 = vrot.slane %v4290, 4
      %v4293 = vshll.u32 %v4157, 16
      %v4295 = vrot.slane %v4293, 5
      %v4296 = vor.u32 %v4292, %v4295
      %v4297 = vrot.slane %v4296, 4
      %v4299 = vshll.u32 %v4158, 16
      %v4301 = vrot.slane %v4299, 5
      %v4302 = vsel %vm1350, %v4297, %v4301
      %v4303 = vshrl.u32 %v4158, 16
      %v4305 = vrot.slane %v4303, 4
      %v4306 = vor.u32 %v4305, %v4301
      %v4307 = vrot.slane %v4306, 4
      %v4309 = vshll.u32 %v4159, 16
      %v4311 = vrot.slane %v4309, 5
      %v4312 = vsel %vm1350, %v4307, %v4311
      %v4314 = vshrl.u32 %v4160, 16
      %v4316 = vrot.slane %v4314, 4
      %v4317 = vshll.u32 %v4160, 16
      %v4319 = vrot.slane %v4317, 5
      %v4320 = vor.u32 %v4316, %v4319
      %v4321 = vrot.slane %v4320, 4
      %v4323 = vshll.u32 %v4161, 16
      %v4325 = vrot.slane %v4323, 5
      %v4326 = vsel %vm1350, %v4321, %v4325
      %v4327 = vshrl.u32 %v4161, 16
      %v4329 = vrot.slane %v4327, 4
      %v4330 = vor.u32 %v4329, %v4325
      %v4331 = vrot.slane %v4330, 4
      %v4333 = vshll.u32 %v4162, 16
      %v4335 = vrot.slane %v4333, 5
      %v4336 = vsel %vm1350, %v4331, %v4335
      %v4338 = vshrl.u32 %v4163, 16
      %v4340 = vrot.slane %v4338, 4
      %v4341 = vshll.u32 %v4163, 16
      %v4343 = vrot.slane %v4341, 5
      %v4344 = vor.u32 %v4340, %v4343
      %v4345 = vrot.slane %v4344, 4
      %v4347 = vshll.u32 %v4164, 16
      %v4349 = vrot.slane %v4347, 5
      %v4350 = vsel %vm1350, %v4345, %v4349
      %v4351 = vshrl.u32 %v4164, 16
      %v4353 = vrot.slane %v4351, 4
      %v4354 = vor.u32 %v4353, %v4349
      %v4355 = vrot.slane %v4354, 4
      %v4357 = vshll.u32 %v4165, 16
      %v4359 = vrot.slane %v4357, 5
      %v4360 = vsel %vm1350, %v4355, %v4359
      %v4362 = vshrl.u32 %v4166, 16
      %v4364 = vrot.slane %v4362, 4
      %v4365 = vshll.u32 %v4166, 16
      %v4367 = vrot.slane %v4365, 5
      %v4368 = vor.u32 %v4364, %v4367
      %v4369 = vrot.slane %v4368, 4
      %v4371 = vshll.u32 %v4167, 16
      %v4373 = vrot.slane %v4371, 5
      %v4374 = vsel %vm1350, %v4369, %v4373
      %v4375 = vshrl.u32 %v4167, 16
      %v4377 = vrot.slane %v4375, 4
      %v4378 = vor.u32 %v4377, %v4373
      %v4379 = vrot.slane %v4378, 4
      %v4381 = vshll.u32 %v4168, 16
      %v4383 = vrot.slane %v4381, 5
      %v4384 = vsel %vm1350, %v4379, %v4383
      %v4386 = vshrl.u32 %v4169, 16
      %v4388 = vrot.slane %v4386, 4
      %v4389 = vshll.u32 %v4169, 16
      %v4391 = vrot.slane %v4389, 5
      %v4392 = vor.u32 %v4388, %v4391
      %v4393 = vrot.slane %v4392, 4
      %v4395 = vshll.u32 %v4170, 16
      %v4397 = vrot.slane %v4395, 5
      %v4398 = vsel %vm1350, %v4393, %v4397
      %v4399 = vshrl.u32 %v4170, 16
      %v4401 = vrot.slane %v4399, 4
      %v4402 = vor.u32 %v4401, %v4397
      %v4403 = vrot.slane %v4402, 4
      %v4405 = vshll.u32 %v4171, 16
      %v4407 = vrot.slane %v4405, 5
      %v4408 = vsel %vm1350, %v4403, %v4407
      %v4410 = vshrl.u32 %v4172, 16
      %v4412 = vrot.slane %v4410, 4
      %v4413 = vshll.u32 %v4172, 16
      %v4415 = vrot.slane %v4413, 5
      %v4416 = vor.u32 %v4412, %v4415
      %v4417 = vrot.slane %v4416, 4
      %v4419 = vshll.u32 %v4173, 16
      %v4421 = vrot.slane %v4419, 5
      %v4422 = vsel %vm1350, %v4417, %v4421
      %v4423 = vshrl.u32 %v4173, 16
      %v4425 = vrot.slane %v4423, 4
      %v4426 = vor.u32 %v4425, %v4421
      %v4427 = vrot.slane %v4426, 4
      %v4429 = vshll.u32 %v4174, 16
      %v4431 = vrot.slane %v4429, 5
      %v4432 = vsel %vm1350, %v4427, %v4431
      %v4434 = vshrl.u32 %v4175, 16
      %v4436 = vrot.slane %v4434, 4
      %v4437 = vshll.u32 %v4175, 16
      %v4439 = vrot.slane %v4437, 5
      %v4440 = vor.u32 %v4436, %v4439
      %v4441 = vrot.slane %v4440, 4
      %v4443 = vshll.u32 %v4176, 16
      %v4445 = vrot.slane %v4443, 5
      %v4446 = vsel %vm1350, %v4441, %v4445
      %v4447 = vshrl.u32 %v4176, 16
      %v4449 = vrot.slane %v4447, 4
      %v4450 = vor.u32 %v4449, %v4445
      %v4451 = vrot.slane %v4450, 4
      %v4453 = vshll.u32 %v4177, 16
      %v4455 = vrot.slane %v4453, 5
      %v4456 = vsel %vm1350, %v4451, %v4455
      %v4458 = vshrl.u32 %v4178, 16
      %v4460 = vrot.slane %v4458, 4
      %v4461 = vshll.u32 %v4178, 16
      %v4463 = vrot.slane %v4461, 5
      %v4464 = vor.u32 %v4460, %v4463
      %v4465 = vrot.slane %v4464, 4
      %v4467 = vshll.u32 %v4179, 16
      %v4469 = vrot.slane %v4467, 5
      %v4470 = vsel %vm1350, %v4465, %v4469
      %v4471 = vshrl.u32 %v4179, 16
      %v4473 = vrot.slane %v4471, 4
      %v4474 = vor.u32 %v4473, %v4469
      %v4475 = vrot.slane %v4474, 4
      %v4477 = vshll.u32 %v4180, 16
      %v4479 = vrot.slane %v4477, 5
      %v4480 = vsel %vm1350, %v4475, %v4479
      %v4482 = vshrl.u32 %v4181, 16
      %v4484 = vrot.slane %v4482, 4
      %v4485 = vshll.u32 %v4181, 16
      %v4487 = vrot.slane %v4485, 5
      %v4488 = vor.u32 %v4484, %v4487
      %v4489 = vrot.slane %v4488, 4
      %v4491 = vshll.u32 %v4182, 16
      %v4493 = vrot.slane %v4491, 5
      %v4494 = vsel %vm1350, %v4489, %v4493
      %v4495 = vshrl.u32 %v4182, 16
      %v4497 = vrot.slane %v4495, 4
      %v4498 = vor.u32 %v4497, %v4493
      %v4499 = vrot.slane %v4498, 4
      %v4501 = vshll.u32 %v4183, 16
      %v4503 = vrot.slane %v4501, 5
      %v4504 = vsel %vm1350, %v4499, %v4503
      %v4506 = vshrl.u32 %v4184, 16
      %v4508 = vrot.slane %v4506, 4
      %v4509 = vshll.u32 %v4184, 16
      %v4511 = vrot.slane %v4509, 5
      %v4512 = vor.u32 %v4508, %v4511
      %v4513 = vrot.slane %v4512, 4
      %v4515 = vshll.u32 %v4185, 16
      %v4517 = vrot.slane %v4515, 5
      %v4518 = vsel %vm1350, %v4513, %v4517
      %v4519 = vshrl.u32 %v4185, 16
      %v4521 = vrot.slane %v4519, 4
      %v4522 = vor.u32 %v4521, %v4517
      %v4523 = vrot.slane %v4522, 4
      %v4525 = vshll.u32 %v4186, 16
      %v4527 = vrot.slane %v4525, 5
      %v4528 = vsel %vm1350, %v4523, %v4527
      %v4530 = vshrl.u32 %v4187, 16
      %v4532 = vrot.slane %v4530, 4
      %v4533 = vshll.u32 %v4187, 16
      %v4535 = vrot.slane %v4533, 5
      %v4536 = vor.u32 %v4532, %v4535
      %v4537 = vrot.slane %v4536, 4
      %v4539 = vshll.u32 %v4188, 16
      %v4541 = vrot.slane %v4539, 5
      %v4542 = vsel %vm1350, %v4537, %v4541
      %v4543 = vshrl.u32 %v4188, 16
      %v4545 = vrot.slane %v4543, 4
      %v4546 = vor.u32 %v4545, %v4541
      %v4547 = vrot.slane %v4546, 4
      %v4549 = vshll.u32 %v4189, 16
      %v4551 = vrot.slane %v4549, 5
      %v4552 = vsel %vm1350, %v4547, %v4551
      %v4554 = vshrl.u32 %v4190, 16
      %v4556 = vrot.slane %v4554, 4
      %v4557 = vshll.u32 %v4190, 16
      %v4559 = vrot.slane %v4557, 5
      %v4560 = vor.u32 %v4556, %v4559
      %v4561 = vrot.slane %v4560, 4
      %v4563 = vshll.u32 %v4191, 16
      %v4565 = vrot.slane %v4563, 5
      %v4566 = vsel %vm1350, %v4561, %v4565
      %v4567 = vshrl.u32 %v4191, 16
      %v4569 = vrot.slane %v4567, 4
      %v4570 = vor.u32 %v4569, %v4565
      %v4571 = vrot.slane %v4570, 4
      %v4573 = vshll.u32 %v4192, 16
      %v4575 = vrot.slane %v4573, 5
      %v4576 = vsel %vm1350, %v4571, %v4575
      %v4577 = vld [vmem:[%s3 + $0x1c0] sm:$0xf]
      %v4578 = vld [vmem:[%s3 + $0x1c4] sm:$0xf]
      %v4579 = vld [vmem:[%s3 + $0x1c8] sm:$0xf]
      %v4580 = vld [vmem:[%s3 + $0x1cc] sm:$0xf]
      %v4581 = vld [vmem:[%s3 + $0x1d0] sm:$0xf]
      %v4582 = vld [vmem:[%s3 + $0x1d4] sm:$0xf]
      %v4583 = vld [vmem:[%s3 + $0x1d8] sm:$0xf]
      %v4584 = vld [vmem:[%s3 + $0x1dc] sm:$0xf]
      %v4585 = vld [vmem:[%s3 + $0x1e0] sm:$0xf]
      %v4586 = vld [vmem:[%s3 + $0x1e4] sm:$0xf]
      %v4587 = vld [vmem:[%s3 + $0x1e8] sm:$0xf]
      %v4588 = vld [vmem:[%s3 + $0x1ec] sm:$0xf]
      %v4589 = vld [vmem:[%s3 + $0x1f0] sm:$0xf]
      %v4590 = vld [vmem:[%s3 + $0x1f4] sm:$0xf]
      %v4591 = vld [vmem:[%s3 + $0x1f8] sm:$0xf]
      %v4592 = vld [vmem:[%s3 + $0x1fc] sm:$0xf]
      %v4593 = vunpack.c.l.b16 %v4206
      %v4594 = vunpack.c.l.b16 %v4216
      %v4595 = vunpack.c.l.b16 %v4230
      %v4596 = vunpack.c.l.b16 %v4240
      %v4597 = vunpack.c.l.b16 %v4254
      %v4598 = vunpack.c.l.b16 %v4264
      %v4599 = vunpack.c.l.b16 %v4278
      %v4600 = vunpack.c.l.b16 %v4288
      %v4601 = vunpack.c.l.b16 %v4302
      %v4602 = vunpack.c.l.b16 %v4312
      %v4603 = vunpack.c.l.b16 %v4326
      %v4604 = vunpack.c.l.b16 %v4336
      %v4605 = vunpack.c.l.b16 %v4350
      %v4606 = vunpack.c.l.b16 %v4360
      %v4607 = vunpack.c.l.b16 %v4374
      %v4608 = vunpack.c.l.b16 %v4384
      %v4609 = vunpack.c.l.b16 %v4398
      %v4610 = vunpack.c.l.b16 %v4408
      %v4611 = vunpack.c.l.b16 %v4422
      %v4612 = vunpack.c.l.b16 %v4432
      %v4613 = vunpack.c.l.b16 %v4446
      %v4614 = vunpack.c.l.b16 %v4456
      %v4615 = vunpack.c.l.b16 %v4470
      %v4616 = vunpack.c.l.b16 %v4480
      %v4617 = vunpack.c.l.b16 %v4494
      %v4618 = vunpack.c.l.b16 %v4504
      %v4619 = vunpack.c.l.b16 %v4518
      %v4620 = vunpack.c.l.b16 %v4528
      %v4621 = vunpack.c.l.b16 %v4542
      %v4622 = vunpack.c.l.b16 %v4552
      %v4623 = vunpack.c.l.b16 %v4566
      %v4624 = vunpack.c.l.b16 %v4576
      %v4625 = vpack.c.b16 %v4594, %v4593
      %v4626 = vpack.c.b16 %v4596, %v4595
      %v4627 = vpack.c.b16 %v4598, %v4597
      %v4628 = vpack.c.b16 %v4600, %v4599
      %v4629 = vpack.c.b16 %v4602, %v4601
      %v4630 = vpack.c.b16 %v4604, %v4603
      %v4631 = vpack.c.b16 %v4606, %v4605
      %v4632 = vpack.c.b16 %v4608, %v4607
      %v4633 = vpack.c.b16 %v4610, %v4609
      %v4634 = vpack.c.b16 %v4612, %v4611
      %v4635 = vpack.c.b16 %v4614, %v4613
      %v4636 = vpack.c.b16 %v4616, %v4615
      %v4637 = vpack.c.b16 %v4618, %v4617
      %v4638 = vpack.c.b16 %v4620, %v4619
      %v4639 = vpack.c.b16 %v4622, %v4621
      %v4640 = vpack.c.b16 %v4624, %v4623
      %v4673 = vunpack.c.l.b16 %v4577
      %v4674 = vunpack.c.l.b16 %v4578
      %v4675 = vunpack.c.l.b16 %v4579
      %v4676 = vunpack.c.l.b16 %v4580
      %v4677 = vunpack.c.l.b16 %v4581
      %v4678 = vunpack.c.l.b16 %v4582
      %v4679 = vunpack.c.l.b16 %v4583
      %v4680 = vunpack.c.l.b16 %v4584
      %v4681 = vunpack.c.l.b16 %v4585
      %v4682 = vunpack.c.l.b16 %v4586
      %v4683 = vunpack.c.l.b16 %v4587
      %v4684 = vunpack.c.l.b16 %v4588
      %v4685 = vunpack.c.l.b16 %v4589
      %v4686 = vunpack.c.l.b16 %v4590
      %v4687 = vunpack.c.l.b16 %v4591
      %v4688 = vunpack.c.l.b16 %v4592
      %v4689 = vpack.c.b16 %v4674, %v4673
      %v4690 = vpack.c.b16 %v4676, %v4675
      %v4691 = vpack.c.b16 %v4678, %v4677
      %v4692 = vpack.c.b16 %v4680, %v4679
      %v4693 = vpack.c.b16 %v4682, %v4681
      %v4694 = vpack.c.b16 %v4684, %v4683
      %v4695 = vpack.c.b16 %v4686, %v4685
      %v4696 = vpack.c.b16 %v4688, %v4687
      %4705 = vmatpush.bf16.msra.mxu0 %v4696
      %4706 = vmatpush.bf16.msra.mxu0 %v4695
      %4707 = vmatpush.bf16.msra.mxu0 %v4694
      %4708 = vmatpush.bf16.msra.mxu0 %v4693
      %4709 = vmatpush.bf16.msra.mxu0 %v4692
      %4710 = vmatpush.bf16.msra.mxu0 %v4691
      %4711 = vmatpush.bf16.msra.mxu0 %v4690
      %4712 = vmatpush.bf16.msra.mxu0 %v4689
      %4713 = vmatmul.bf16.gmra.mxu0 %v4625
      %v4714 = vpop.f32.mrf.mxu0
      %v4715 = vadd.f32 0.0, %v4714
      %v4716 = vpop.f32.mrf.mxu0
      %v4717 = vadd.f32 0.0, %v4716
      %4718 = vmatmul.bf16.gmra.mxu0 %v4626
      %v4719 = vpop.f32.mrf.mxu0
      %v4720 = vadd.f32 0.0, %v4719
      %v4721 = vpop.f32.mrf.mxu0
      %v4722 = vadd.f32 0.0, %v4721
      %4723 = vmatmul.bf16.gmra.mxu0 %v4627
      %v4724 = vpop.f32.mrf.mxu0
      %v4725 = vadd.f32 0.0, %v4724
      %v4726 = vpop.f32.mrf.mxu0
      %v4727 = vadd.f32 0.0, %v4726
      %4728 = vmatmul.bf16.gmra.mxu0 %v4628
      %v4729 = vpop.f32.mrf.mxu0
      %v4730 = vadd.f32 0.0, %v4729
      %v4731 = vpop.f32.mrf.mxu0
      %v4732 = vadd.f32 0.0, %v4731
      %4733 = vmatmul.bf16.gmra.mxu0 %v4629
      %v4734 = vpop.f32.mrf.mxu0
      %v4735 = vadd.f32 0.0, %v4734
      %v4736 = vpop.f32.mrf.mxu0
      %v4737 = vadd.f32 0.0, %v4736
      %4738 = vmatmul.bf16.gmra.mxu0 %v4630
      %v4739 = vpop.f32.mrf.mxu0
      %v4740 = vadd.f32 0.0, %v4739
      %v4741 = vpop.f32.mrf.mxu0
      %v4742 = vadd.f32 0.0, %v4741
      %4743 = vmatmul.bf16.gmra.mxu0 %v4631
      %v4744 = vpop.f32.mrf.mxu0
      %v4745 = vadd.f32 0.0, %v4744
      %v4746 = vpop.f32.mrf.mxu0
      %v4747 = vadd.f32 0.0, %v4746
      %4748 = vmatmul.bf16.gmra.mxu0 %v4632
      %v4749 = vpop.f32.mrf.mxu0
      %v4750 = vadd.f32 0.0, %v4749
      %v4751 = vpop.f32.mrf.mxu0
      %v4752 = vadd.f32 0.0, %v4751
      %4753 = vmatmul.bf16.gmra.mxu0 %v4633
      %v4754 = vpop.f32.mrf.mxu0
      %v4755 = vadd.f32 0.0, %v4754
      %v4756 = vpop.f32.mrf.mxu0
      %v4757 = vadd.f32 0.0, %v4756
      %4758 = vmatmul.bf16.gmra.mxu0 %v4634
      %v4759 = vpop.f32.mrf.mxu0
      %v4760 = vadd.f32 0.0, %v4759
      %v4761 = vpop.f32.mrf.mxu0
      %v4762 = vadd.f32 0.0, %v4761
      %4763 = vmatmul.bf16.gmra.mxu0 %v4635
      %v4764 = vpop.f32.mrf.mxu0
      %v4765 = vadd.f32 0.0, %v4764
      %v4766 = vpop.f32.mrf.mxu0
      %v4767 = vadd.f32 0.0, %v4766
      %4768 = vmatmul.bf16.gmra.mxu0 %v4636
      %v4769 = vpop.f32.mrf.mxu0
      %v4770 = vadd.f32 0.0, %v4769
      %v4771 = vpop.f32.mrf.mxu0
      %v4772 = vadd.f32 0.0, %v4771
      %4773 = vmatmul.bf16.gmra.mxu0 %v4637
      %v4774 = vpop.f32.mrf.mxu0
      %v4775 = vadd.f32 0.0, %v4774
      %v4776 = vpop.f32.mrf.mxu0
      %v4777 = vadd.f32 0.0, %v4776
      %4778 = vmatmul.bf16.gmra.mxu0 %v4638
      %v4779 = vpop.f32.mrf.mxu0
      %v4780 = vadd.f32 0.0, %v4779
      %v4781 = vpop.f32.mrf.mxu0
      %v4782 = vadd.f32 0.0, %v4781
      %4783 = vmatmul.bf16.gmra.mxu0 %v4639
      %v4784 = vpop.f32.mrf.mxu0
      %v4785 = vadd.f32 0.0, %v4784
      %v4786 = vpop.f32.mrf.mxu0
      %v4787 = vadd.f32 0.0, %v4786
      %4788 = vmatmul.bf16.gmra.mxu0 %v4640
      %v4789 = vpop.f32.mrf.mxu0
      %v4790 = vadd.f32 0.0, %v4789
      %v4791 = vpop.f32.mrf.mxu0
      %v4792 = vadd.f32 0.0, %v4791
      %4793 = vdwg.mxu0
      %v4794 = vadd.f32 %v4113, %v4715
      %v4795 = vadd.f32 %v4114, %v4717
      %v4796 = vadd.f32 %v4115, %v4720
      %v4797 = vadd.f32 %v4116, %v4722
      %v4798 = vadd.f32 %v4117, %v4725
      %v4799 = vadd.f32 %v4118, %v4727
      %v4800 = vadd.f32 %v4119, %v4730
      %v4801 = vadd.f32 %v4120, %v4732
      %v4802 = vadd.f32 %v4121, %v4735
      %v4803 = vadd.f32 %v4122, %v4737
      %v4804 = vadd.f32 %v4123, %v4740
      %v4805 = vadd.f32 %v4124, %v4742
      %v4806 = vadd.f32 %v4125, %v4745
      %v4807 = vadd.f32 %v4126, %v4747
      %v4808 = vadd.f32 %v4127, %v4750
      %v4809 = vadd.f32 %v4128, %v4752
      %v4810 = vadd.f32 %v4129, %v4755
      %v4811 = vadd.f32 %v4130, %v4757
      %v4812 = vadd.f32 %v4131, %v4760
      %v4813 = vadd.f32 %v4132, %v4762
      %v4814 = vadd.f32 %v4133, %v4765
      %v4815 = vadd.f32 %v4134, %v4767
      %v4816 = vadd.f32 %v4135, %v4770
      %v4817 = vadd.f32 %v4136, %v4772
      %v4818 = vadd.f32 %v4137, %v4775
      %v4819 = vadd.f32 %v4138, %v4777
      %v4820 = vadd.f32 %v4139, %v4780
      %v4821 = vadd.f32 %v4140, %v4782
      %v4822 = vadd.f32 %v4141, %v4785
      %v4823 = vadd.f32 %v4142, %v4787
      %v4824 = vadd.f32 %v4143, %v4790
      %v4825 = vadd.f32 %v4144, %v4792
      %v4826 = vld [vmem:[%s3831] sm:$0xe]
      %v4827 = vld [vmem:[%s3831 + $0xc] sm:$0xe]
      %v4828 = vld [vmem:[%s3831 + $0x18] sm:$0xe]
      %v4829 = vld [vmem:[%s3831 + $0x24] sm:$0xe]
      %v4830 = vld [vmem:[%s3831 + $0x30] sm:$0xe]
      %v4831 = vld [vmem:[%s3831 + $0x3c] sm:$0xe]
      %v4832 = vld [vmem:[%s3831 + $0x48] sm:$0xe]
      %v4833 = vld [vmem:[%s3831 + $0x54] sm:$0xe]
      %v4834 = vld [vmem:[%s3831 + $0x60] sm:$0xe]
      %v4835 = vld [vmem:[%s3831 + $0x6c] sm:$0xe]
      %v4836 = vld [vmem:[%s3831 + $0x78] sm:$0xe]
      %v4837 = vld [vmem:[%s3831 + $0x84] sm:$0xe]
      %v4838 = vld [vmem:[%s3831 + $0x90] sm:$0xe]
      %v4839 = vld [vmem:[%s3831 + $0x9c] sm:$0xe]
      %v4840 = vld [vmem:[%s3831 + $0xa8] sm:$0xe]
      %v4841 = vld [vmem:[%s3831 + $0xb4] sm:$0xe]
      %v4890 = vrot.slane %v4826, 5
      %v4891 = vrot.slane %v4890, 4
      %v4892 = vrot.slane %v4146, 5
      %v4893 = vsel %vm2050, %v4891, %v4892
      %v4894 = vrot.slane %v4892, 4
      %v4895 = vrot.slane %v4147, 5
      %v4896 = vsel %vm2050, %v4894, %v4895
      %v4897 = vrot.slane %v4827, 5
      %v4898 = vrot.slane %v4897, 4
      %v4899 = vrot.slane %v4149, 5
      %v4900 = vsel %vm2050, %v4898, %v4899
      %v4901 = vrot.slane %v4899, 4
      %v4902 = vrot.slane %v4150, 5
      %v4903 = vsel %vm2050, %v4901, %v4902
      %v4904 = vrot.slane %v4828, 5
      %v4905 = vrot.slane %v4904, 4
      %v4906 = vrot.slane %v4152, 5
      %v4907 = vsel %vm2050, %v4905, %v4906
      %v4908 = vrot.slane %v4906, 4
      %v4909 = vrot.slane %v4153, 5
      %v4910 = vsel %vm2050, %v4908, %v4909
      %v4911 = vrot.slane %v4829, 5
      %v4912 = vrot.slane %v4911, 4
      %v4913 = vrot.slane %v4155, 5
      %v4914 = vsel %vm2050, %v4912, %v4913
      %v4915 = vrot.slane %v4913, 4
      %v4916 = vrot.slane %v4156, 5
      %v4917 = vsel %vm2050, %v4915, %v4916
      %v4918 = vrot.slane %v4830, 5
      %v4919 = vrot.slane %v4918, 4
      %v4920 = vrot.slane %v4158, 5
      %v4921 = vsel %vm2050, %v4919, %v4920
      %v4922 = vrot.slane %v4920, 4
      %v4923 = vrot.slane %v4159, 5
      %v4924 = vsel %vm2050, %v4922, %v4923
      %v4925 = vrot.slane %v4831, 5
      %v4926 = vrot.slane %v4925, 4
      %v4927 = vrot.slane %v4161, 5
      %v4928 = vsel %vm2050, %v4926, %v4927
      %v4929 = vrot.slane %v4927, 4
      %v4930 = vrot.slane %v4162, 5
      %v4931 = vsel %vm2050, %v4929, %v4930
      %v4932 = vrot.slane %v4832, 5
      %v4933 = vrot.slane %v4932, 4
      %v4934 = vrot.slane %v4164, 5
      %v4935 = vsel %vm2050, %v4933, %v4934
      %v4936 = vrot.slane %v4934, 4
      %v4937 = vrot.slane %v4165, 5
      %v4938 = vsel %vm2050, %v4936, %v4937
      %v4939 = vrot.slane %v4833, 5
      %v4940 = vrot.slane %v4939, 4
      %v4941 = vrot.slane %v4167, 5
      %v4942 = vsel %vm2050, %v4940, %v4941
      %v4943 = vrot.slane %v4941, 4
      %v4944 = vrot.slane %v4168, 5
      %v4945 = vsel %vm2050, %v4943, %v4944
      %v4946 = vrot.slane %v4834, 5
      %v4947 = vrot.slane %v4946, 4
      %v4948 = vrot.slane %v4170, 5
      %v4949 = vsel %vm2050, %v4947, %v4948
      %v4950 = vrot.slane %v4948, 4
      %v4951 = vrot.slane %v4171, 5
      %v4952 = vsel %vm2050, %v4950, %v4951
      %v4953 = vrot.slane %v4835, 5
      %v4954 = vrot.slane %v4953, 4
      %v4955 = vrot.slane %v4173, 5
      %v4956 = vsel %vm2050, %v4954, %v4955
      %v4957 = vrot.slane %v4955, 4
      %v4958 = vrot.slane %v4174, 5
      %v4959 = vsel %vm2050, %v4957, %v4958
      %v4960 = vrot.slane %v4836, 5
      %v4961 = vrot.slane %v4960, 4
      %v4962 = vrot.slane %v4176, 5
      %v4963 = vsel %vm2050, %v4961, %v4962
      %v4964 = vrot.slane %v4962, 4
      %v4965 = vrot.slane %v4177, 5
      %v4966 = vsel %vm2050, %v4964, %v4965
      %v4967 = vrot.slane %v4837, 5
      %v4968 = vrot.slane %v4967, 4
      %v4969 = vrot.slane %v4179, 5
      %v4970 = vsel %vm2050, %v4968, %v4969
      %v4971 = vrot.slane %v4969, 4
      %v4972 = vrot.slane %v4180, 5
      %v4973 = vsel %vm2050, %v4971, %v4972
      %v4974 = vrot.slane %v4838, 5
      %v4975 = vrot.slane %v4974, 4
      %v4976 = vrot.slane %v4182, 5
      %v4977 = vsel %vm2050, %v4975, %v4976
      %v4978 = vrot.slane %v4976, 4
      %v4979 = vrot.slane %v4183, 5
      %v4980 = vsel %vm2050, %v4978, %v4979
      %v4981 = vrot.slane %v4839, 5
      %v4982 = vrot.slane %v4981, 4
      %v4983 = vrot.slane %v4185, 5
      %v4984 = vsel %vm2050, %v4982, %v4983
      %v4985 = vrot.slane %v4983, 4
      %v4986 = vrot.slane %v4186, 5
      %v4987 = vsel %vm2050, %v4985, %v4986
      %v4988 = vrot.slane %v4840, 5
      %v4989 = vrot.slane %v4988, 4
      %v4990 = vrot.slane %v4188, 5
      %v4991 = vsel %vm2050, %v4989, %v4990
      %v4992 = vrot.slane %v4990, 4
      %v4993 = vrot.slane %v4189, 5
      %v4994 = vsel %vm2050, %v4992, %v4993
      %v4995 = vrot.slane %v4841, 5
      %v4996 = vrot.slane %v4995, 4
      %v4997 = vrot.slane %v4191, 5
      %v4998 = vsel %vm2050, %v4996, %v4997
      %v4999 = vrot.slane %v4997, 4
      %v5000 = vrot.slane %v4192, 5
      %v5001 = vsel %vm2050, %v4999, %v5000
      %v5002 = vld [vmem:[%s3 + $0x200] sm:$0xf]
      %v5003 = vld [vmem:[%s3 + $0x204] sm:$0xf]
      %v5004 = vld [vmem:[%s3 + $0x208] sm:$0xf]
      %v5005 = vld [vmem:[%s3 + $0x20c] sm:$0xf]
      %v5006 = vld [vmem:[%s3 + $0x210] sm:$0xf]
      %v5007 = vld [vmem:[%s3 + $0x214] sm:$0xf]
      %v5008 = vld [vmem:[%s3 + $0x218] sm:$0xf]
      %v5009 = vld [vmem:[%s3 + $0x21c] sm:$0xf]
      %v5010 = vld [vmem:[%s3 + $0x220] sm:$0xf]
      %v5011 = vld [vmem:[%s3 + $0x224] sm:$0xf]
      %v5012 = vld [vmem:[%s3 + $0x228] sm:$0xf]
      %v5013 = vld [vmem:[%s3 + $0x22c] sm:$0xf]
      %v5014 = vld [vmem:[%s3 + $0x230] sm:$0xf]
      %v5015 = vld [vmem:[%s3 + $0x234] sm:$0xf]
      %v5016 = vld [vmem:[%s3 + $0x238] sm:$0xf]
      %v5017 = vld [vmem:[%s3 + $0x23c] sm:$0xf]
      %v5018 = vunpack.c.l.b16 %v4893
      %v5019 = vunpack.c.l.b16 %v4896
      %v5020 = vunpack.c.l.b16 %v4900
      %v5021 = vunpack.c.l.b16 %v4903
      %v5022 = vunpack.c.l.b16 %v4907
      %v5023 = vunpack.c.l.b16 %v4910
      %v5024 = vunpack.c.l.b16 %v4914
      %v5025 = vunpack.c.l.b16 %v4917
      %v5026 = vunpack.c.l.b16 %v4921
      %v5027 = vunpack.c.l.b16 %v4924
      %v5028 = vunpack.c.l.b16 %v4928
      %v5029 = vunpack.c.l.b16 %v4931
      %v5030 = vunpack.c.l.b16 %v4935
      %v5031 = vunpack.c.l.b16 %v4938
      %v5032 = vunpack.c.l.b16 %v4942
      %v5033 = vunpack.c.l.b16 %v4945
      %v5034 = vunpack.c.l.b16 %v4949
      %v5035 = vunpack.c.l.b16 %v4952
      %v5036 = vunpack.c.l.b16 %v4956
      %v5037 = vunpack.c.l.b16 %v4959
      %v5038 = vunpack.c.l.b16 %v4963
      %v5039 = vunpack.c.l.b16 %v4966
      %v5040 = vunpack.c.l.b16 %v4970
      %v5041 = vunpack.c.l.b16 %v4973
      %v5042 = vunpack.c.l.b16 %v4977
      %v5043 = vunpack.c.l.b16 %v4980
      %v5044 = vunpack.c.l.b16 %v4984
      %v5045 = vunpack.c.l.b16 %v4987
      %v5046 = vunpack.c.l.b16 %v4991
      %v5047 = vunpack.c.l.b16 %v4994
      %v5048 = vunpack.c.l.b16 %v4998
      %v5049 = vunpack.c.l.b16 %v5001
      %v5050 = vpack.c.b16 %v5019, %v5018
      %v5051 = vpack.c.b16 %v5021, %v5020
      %v5052 = vpack.c.b16 %v5023, %v5022
      %v5053 = vpack.c.b16 %v5025, %v5024
      %v5054 = vpack.c.b16 %v5027, %v5026
      %v5055 = vpack.c.b16 %v5029, %v5028
      %v5056 = vpack.c.b16 %v5031, %v5030
      %v5057 = vpack.c.b16 %v5033, %v5032
      %v5058 = vpack.c.b16 %v5035, %v5034
      %v5059 = vpack.c.b16 %v5037, %v5036
      %v5060 = vpack.c.b16 %v5039, %v5038
      %v5061 = vpack.c.b16 %v5041, %v5040
      %v5062 = vpack.c.b16 %v5043, %v5042
      %v5063 = vpack.c.b16 %v5045, %v5044
      %v5064 = vpack.c.b16 %v5047, %v5046
      %v5065 = vpack.c.b16 %v5049, %v5048
      %v5098 = vunpack.c.l.b16 %v5002
      %v5099 = vunpack.c.l.b16 %v5003
      %v5100 = vunpack.c.l.b16 %v5004
      %v5101 = vunpack.c.l.b16 %v5005
      %v5102 = vunpack.c.l.b16 %v5006
      %v5103 = vunpack.c.l.b16 %v5007
      %v5104 = vunpack.c.l.b16 %v5008
      %v5105 = vunpack.c.l.b16 %v5009
      %v5106 = vunpack.c.l.b16 %v5010
      %v5107 = vunpack.c.l.b16 %v5011
      %v5108 = vunpack.c.l.b16 %v5012
      %v5109 = vunpack.c.l.b16 %v5013
      %v5110 = vunpack.c.l.b16 %v5014
      %v5111 = vunpack.c.l.b16 %v5015
      %v5112 = vunpack.c.l.b16 %v5016
      %v5113 = vunpack.c.l.b16 %v5017
      %v5114 = vpack.c.b16 %v5099, %v5098
      %v5115 = vpack.c.b16 %v5101, %v5100
      %v5116 = vpack.c.b16 %v5103, %v5102
      %v5117 = vpack.c.b16 %v5105, %v5104
      %v5118 = vpack.c.b16 %v5107, %v5106
      %v5119 = vpack.c.b16 %v5109, %v5108
      %v5120 = vpack.c.b16 %v5111, %v5110
      %v5121 = vpack.c.b16 %v5113, %v5112
      %5130 = vmatpush.bf16.msra.mxu0 %v5121
      %5131 = vmatpush.bf16.msra.mxu0 %v5120
      %5132 = vmatpush.bf16.msra.mxu0 %v5119
      %5133 = vmatpush.bf16.msra.mxu0 %v5118
      %5134 = vmatpush.bf16.msra.mxu0 %v5117
      %5135 = vmatpush.bf16.msra.mxu0 %v5116
      %5136 = vmatpush.bf16.msra.mxu0 %v5115
      %5137 = vmatpush.bf16.msra.mxu0 %v5114
      %5138 = vmatmul.bf16.gmra.mxu0 %v5050
      %v5139 = vpop.f32.mrf.mxu0
      %v5140 = vadd.f32 0.0, %v5139
      %v5141 = vpop.f32.mrf.mxu0
      %v5142 = vadd.f32 0.0, %v5141
      %5143 = vmatmul.bf16.gmra.mxu0 %v5051
      %v5144 = vpop.f32.mrf.mxu0
      %v5145 = vadd.f32 0.0, %v5144
      %v5146 = vpop.f32.mrf.mxu0
      %v5147 = vadd.f32 0.0, %v5146
      %5148 = vmatmul.bf16.gmra.mxu0 %v5052
      %v5149 = vpop.f32.mrf.mxu0
      %v5150 = vadd.f32 0.0, %v5149
      %v5151 = vpop.f32.mrf.mxu0
      %v5152 = vadd.f32 0.0, %v5151
      %5153 = vmatmul.bf16.gmra.mxu0 %v5053
      %v5154 = vpop.f32.mrf.mxu0
      %v5155 = vadd.f32 0.0, %v5154
      %v5156 = vpop.f32.mrf.mxu0
      %v5157 = vadd.f32 0.0, %v5156
      %5158 = vmatmul.bf16.gmra.mxu0 %v5054
      %v5159 = vpop.f32.mrf.mxu0
      %v5160 = vadd.f32 0.0, %v5159
      %v5161 = vpop.f32.mrf.mxu0
      %v5162 = vadd.f32 0.0, %v5161
      %5163 = vmatmul.bf16.gmra.mxu0 %v5055
      %v5164 = vpop.f32.mrf.mxu0
      %v5165 = vadd.f32 0.0, %v5164
      %v5166 = vpop.f32.mrf.mxu0
      %v5167 = vadd.f32 0.0, %v5166
      %5168 = vmatmul.bf16.gmra.mxu0 %v5056
      %v5169 = vpop.f32.mrf.mxu0
      %v5170 = vadd.f32 0.0, %v5169
      %v5171 = vpop.f32.mrf.mxu0
      %v5172 = vadd.f32 0.0, %v5171
      %5173 = vmatmul.bf16.gmra.mxu0 %v5057
      %v5174 = vpop.f32.mrf.mxu0
      %v5175 = vadd.f32 0.0, %v5174
      %v5176 = vpop.f32.mrf.mxu0
      %v5177 = vadd.f32 0.0, %v5176
      %5178 = vmatmul.bf16.gmra.mxu0 %v5058
      %v5179 = vpop.f32.mrf.mxu0
      %v5180 = vadd.f32 0.0, %v5179
      %v5181 = vpop.f32.mrf.mxu0
      %v5182 = vadd.f32 0.0, %v5181
      %5183 = vmatmul.bf16.gmra.mxu0 %v5059
      %v5184 = vpop.f32.mrf.mxu0
      %v5185 = vadd.f32 0.0, %v5184
      %v5186 = vpop.f32.mrf.mxu0
      %v5187 = vadd.f32 0.0, %v5186
      %5188 = vmatmul.bf16.gmra.mxu0 %v5060
      %v5189 = vpop.f32.mrf.mxu0
      %v5190 = vadd.f32 0.0, %v5189
      %v5191 = vpop.f32.mrf.mxu0
      %v5192 = vadd.f32 0.0, %v5191
      %5193 = vmatmul.bf16.gmra.mxu0 %v5061
      %v5194 = vpop.f32.mrf.mxu0
      %v5195 = vadd.f32 0.0, %v5194
      %v5196 = vpop.f32.mrf.mxu0
      %v5197 = vadd.f32 0.0, %v5196
      %5198 = vmatmul.bf16.gmra.mxu0 %v5062
      %v5199 = vpop.f32.mrf.mxu0
      %v5200 = vadd.f32 0.0, %v5199
      %v5201 = vpop.f32.mrf.mxu0
      %v5202 = vadd.f32 0.0, %v5201
      %5203 = vmatmul.bf16.gmra.mxu0 %v5063
      %v5204 = vpop.f32.mrf.mxu0
      %v5205 = vadd.f32 0.0, %v5204
      %v5206 = vpop.f32.mrf.mxu0
      %v5207 = vadd.f32 0.0, %v5206
      %5208 = vmatmul.bf16.gmra.mxu0 %v5064
      %v5209 = vpop.f32.mrf.mxu0
      %v5210 = vadd.f32 0.0, %v5209
      %v5211 = vpop.f32.mrf.mxu0
      %v5212 = vadd.f32 0.0, %v5211
      %5213 = vmatmul.bf16.gmra.mxu0 %v5065
      %v5214 = vpop.f32.mrf.mxu0
      %v5215 = vadd.f32 0.0, %v5214
      %v5216 = vpop.f32.mrf.mxu0
      %v5217 = vadd.f32 0.0, %v5216
      %5218 = vdwg.mxu0
      %v5219 = vadd.f32 %v4794, %v5140
      %v5220 = vadd.f32 %v4795, %v5142
      %v5221 = vadd.f32 %v4796, %v5145
      %v5222 = vadd.f32 %v4797, %v5147
      %v5223 = vadd.f32 %v4798, %v5150
      %v5224 = vadd.f32 %v4799, %v5152
      %v5225 = vadd.f32 %v4800, %v5155
      %v5226 = vadd.f32 %v4801, %v5157
      %v5227 = vadd.f32 %v4802, %v5160
      %v5228 = vadd.f32 %v4803, %v5162
      %v5229 = vadd.f32 %v4804, %v5165
      %v5230 = vadd.f32 %v4805, %v5167
      %v5231 = vadd.f32 %v4806, %v5170
      %v5232 = vadd.f32 %v4807, %v5172
      %v5233 = vadd.f32 %v4808, %v5175
      %v5234 = vadd.f32 %v4809, %v5177
      %v5235 = vadd.f32 %v4810, %v5180
      %v5236 = vadd.f32 %v4811, %v5182
      %v5237 = vadd.f32 %v4812, %v5185
      %v5238 = vadd.f32 %v4813, %v5187
      %v5239 = vadd.f32 %v4814, %v5190
      %v5240 = vadd.f32 %v4815, %v5192
      %v5241 = vadd.f32 %v4816, %v5195
      %v5242 = vadd.f32 %v4817, %v5197
      %v5243 = vadd.f32 %v4818, %v5200
      %v5244 = vadd.f32 %v4819, %v5202
      %v5245 = vadd.f32 %v4820, %v5205
      %v5246 = vadd.f32 %v4821, %v5207
      %v5247 = vadd.f32 %v4822, %v5210
      %v5248 = vadd.f32 %v4823, %v5212
      %v5249 = vadd.f32 %v4824, %v5215
      %v5250 = vadd.f32 %v4825, %v5217
      %v5251 = vpack.c.bf16 %v5219, %v5219
      %v5252 = vpack.c.bf16 %v5220, %v5220
      %v5253 = vpack.c.bf16 %v5221, %v5221
      %v5254 = vpack.c.bf16 %v5222, %v5222
      %v5255 = vpack.c.bf16 %v5223, %v5223
      %v5256 = vpack.c.bf16 %v5224, %v5224
      %v5257 = vpack.c.bf16 %v5225, %v5225
      %v5258 = vpack.c.bf16 %v5226, %v5226
      %v5259 = vpack.c.bf16 %v5227, %v5227
      %v5260 = vpack.c.bf16 %v5228, %v5228
      %v5261 = vpack.c.bf16 %v5229, %v5229
      %v5262 = vpack.c.bf16 %v5230, %v5230
      %v5263 = vpack.c.bf16 %v5231, %v5231
      %v5264 = vpack.c.bf16 %v5232, %v5232
      %v5265 = vpack.c.bf16 %v5233, %v5233
      %v5266 = vpack.c.bf16 %v5234, %v5234
      %v5267 = vpack.c.bf16 %v5235, %v5235
      %v5268 = vpack.c.bf16 %v5236, %v5236
      %v5269 = vpack.c.bf16 %v5237, %v5237
      %v5270 = vpack.c.bf16 %v5238, %v5238
      %v5271 = vpack.c.bf16 %v5239, %v5239
      %v5272 = vpack.c.bf16 %v5240, %v5240
      %v5273 = vpack.c.bf16 %v5241, %v5241
      %v5274 = vpack.c.bf16 %v5242, %v5242
      %v5275 = vpack.c.bf16 %v5243, %v5243
      %v5276 = vpack.c.bf16 %v5244, %v5244
      %v5277 = vpack.c.bf16 %v5245, %v5245
      %v5278 = vpack.c.bf16 %v5246, %v5246
      %v5279 = vpack.c.bf16 %v5247, %v5247
      %v5280 = vpack.c.bf16 %v5248, %v5248
      %v5281 = vpack.c.bf16 %v5249, %v5249
      %v5282 = vpack.c.bf16 %v5250, %v5250
      %5283 = vst [vmem:[%s224] sm:$0xf] %v5251
      %5284 = vst [vmem:[%s224 + $0x4] sm:$0xf] %v5252
      %5285 = vst [vmem:[%s224 + $0x8] sm:$0xf] %v5253
      %5286 = vst [vmem:[%s224 + $0xc] sm:$0xf] %v5254
      %5287 = vst [vmem:[%s224 + $0x10] sm:$0xf] %v5255
      %5288 = vst [vmem:[%s224 + $0x14] sm:$0xf] %v5256
      %5289 = vst [vmem:[%s224 + $0x18] sm:$0xf] %v5257
      %5290 = vst [vmem:[%s224 + $0x1c] sm:$0xf] %v5258
      %5291 = vst [vmem:[%s224 + $0x20] sm:$0xf] %v5259
      %5292 = vst [vmem:[%s224 + $0x24] sm:$0xf] %v5260
      %5293 = vst [vmem:[%s224 + $0x28] sm:$0xf] %v5261
      %5294 = vst [vmem:[%s224 + $0x2c] sm:$0xf] %v5262
      %5295 = vst [vmem:[%s224 + $0x30] sm:$0xf] %v5263
      %5296 = vst [vmem:[%s224 + $0x34] sm:$0xf] %v5264
      %5297 = vst [vmem:[%s224 + $0x38] sm:$0xf] %v5265
      %5298 = vst [vmem:[%s224 + $0x3c] sm:$0xf] %v5266
      %5299 = vst [vmem:[%s224 + $0x40] sm:$0xf] %v5267
      %5300 = vst [vmem:[%s224 + $0x44] sm:$0xf] %v5268
      %5301 = vst [vmem:[%s224 + $0x48] sm:$0xf] %v5269
      %5302 = vst [vmem:[%s224 + $0x4c] sm:$0xf] %v5270
      %5303 = vst [vmem:[%s224 + $0x50] sm:$0xf] %v5271
      %5304 = vst [vmem:[%s224 + $0x54] sm:$0xf] %v5272
      %5305 = vst [vmem:[%s224 + $0x58] sm:$0xf] %v5273
      %5306 = vst [vmem:[%s224 + $0x5c] sm:$0xf] %v5274
      %5307 = vst [vmem:[%s224 + $0x60] sm:$0xf] %v5275
      %5308 = vst [vmem:[%s224 + $0x64] sm:$0xf] %v5276
      %5309 = vst [vmem:[%s224 + $0x68] sm:$0xf] %v5277
      %5310 = vst [vmem:[%s224 + $0x6c] sm:$0xf] %v5278
      %5311 = vst [vmem:[%s224 + $0x70] sm:$0xf] %v5279
      %5312 = vst [vmem:[%s224 + $0x74] sm:$0xf] %v5280
      %5313 = vst [vmem:[%s224 + $0x78] sm:$0xf] %v5281
      %5314 = vst [vmem:[%s224 + $0x7c] sm:$0xf] %v5282
      %p5315 = scmp.lt.s32.totalorder %s16, 1
      %s5316 = scalar_select %p5315, %s16, 1
      %s5317 = smul.addr %s5316, 32
      %s5318 = smul.addr %s5317, 4
      %s5319 = scalar_lea.vmem %s5, %s5318
      // Predicated region
      $region41: #{wide_basic_forward.2} parent=39 // pred_check
        %p5320 = pneg %p144
      $region42: #{wide_basic_forward.2} parent=39 // pred_check_branch
        %5322 = sbr.rel (%p5320) target = $region44
      $region43: #{wide_basic_forward.2} parent=39 // pred_region
        _
      $region44: #{wide_basic_forward.2} parent=39 // pred_fallthru
        _
    $region40: #{wide_basic_forward.2} parent=5 // pred_fallthru
      _
    %p5323 = scmp.le.s32.totalorder 2, %s11
    // Predicated region
    $region45: #{wide_basic_forward.2} parent=5 // pred_check
      %p5324 = pneg %p5323
    $region46: #{wide_basic_forward.2} parent=5 // pred_check_branch
      %5326 = sbr.rel (%p5324) target = $region48
    $region47: #{wide_basic_forward.2} parent=5 // pred_region
      %s5327 = ssub.s32 %s11, 2
      // Predicated region
      $region49: #{wide_basic_forward.2} parent=47 // pred_check
        %p5328 = pneg %p150
      $region50: #{wide_basic_forward.2} parent=47 // pred_check_branch
        %5330 = sbr.rel (%p5328) target = $region52
      $region51: #{wide_basic_forward.2} parent=47 // pred_region
        %p5331 = scmp.lt.s32.totalorder %s17, 1
        %s5332 = scalar_select %p5331, %s17, 1
        %s5333 = smul.addr %s5332, 32
        %s5334 = smul.addr %s5333, 4
        %s5335 = scalar_lea.vmem %s5, %s5334
      $region52: #{wide_basic_forward.2} parent=47 // pred_fallthru
        _
    $region48: #{wide_basic_forward.2} parent=5 // pred_fallthru
      _
  $region6: #{wide_basic_forward.2} parent=0 // loop_footer
    %s15 = sadd.s32 1, %s11
  $region7: #{wide_basic_forward.2} parent=0 // loop_footer_branch
    %10 = sbr.rel target = $region3
  $region8: #{wide_basic_forward.2} parent=0 // loop_exit
    _

</llo_original>
